<compile_context>
chip_gen: v7x
topology: tpu7x:2x2x1
jax: 0.10.0
libtpu: 0.0.40
codegen_flags: <defaults>
</compile_context>

<pallas_src>
import functools
import math

import jax
import jax.numpy as jnp
from jax.experimental import pallas as pl
from jax.experimental.pallas import tpu as pltpu


# ----------------------------- Pallas kernels ------------------------------

def _sqdist_kernel(c_ref, o_ref):
    c = c_ref[0]                                                  # (N, 8) f32
    csq = c * c
    row = jnp.sum(csq, axis=-1, keepdims=True)                    # (N, 1)
    col = jnp.sum(csq, axis=-1)[None, :]                          # (1, N)
    cross = jax.lax.dot_general(c, c, (((1,), (1,)), ((), ())),
                                preferred_element_type=jnp.float32)
    o_ref[0] = jnp.maximum(row + col - 2.0 * cross, 0.0)


def pallas_square_dists(coords):
    """coords: (B, N, 3) -> (B, N, N) pairwise squared distances (>= 0)."""
    B, N, _ = coords.shape
    cp = jnp.pad(coords, ((0, 0), (0, 0), (0, 5)))                # pad 3 -> 8 lanes
    return pl.pallas_call(
        _sqdist_kernel,
        out_shape=jax.ShapeDtypeStruct((B, N, N), jnp.float32),
        grid=(B,),
        in_specs=[pl.BlockSpec((1, N, 8), lambda b: (b, 0, 0))],
        out_specs=pl.BlockSpec((1, N, N), lambda b: (b, 0, 0)),
        compiler_params=pltpu.CompilerParams(dimension_semantics=("parallel",)),
    )(cp)


def _edgeconv_body(x_flat, w, K, N, slope, eps):
    """x_flat: (K*N, Cin) bf16, w: (Cin, Cout) bf16 -> (N, Cout) f32.

    Conv2d(1x1, no bias) + InstanceNorm2d + LeakyReLU(slope) + max over K.
    One fused matmul; one-pass (sum, sum-of-squares) statistics.
    """
    y = jnp.dot(x_flat, w, preferred_element_type=jnp.float32)    # (K*N, Cout)
    inv_cnt = 1.0 / (K * N)
    mean = jnp.sum(y, axis=0, keepdims=True) * inv_cnt
    var = jnp.sum(y * y, axis=0, keepdims=True) * inv_cnt - mean * mean
    var = jnp.maximum(var, 0.0)
    yn = (y - mean) * jax.lax.rsqrt(var + eps)
    ya = jnp.maximum(yn, slope * yn)                              # leaky ReLU
    out = ya[0:N]
    for kidx in range(1, K):                                      # max over K
        out = jnp.maximum(out, ya[kidx * N:(kidx + 1) * N])
    return out


def _make_edgeconv_kernel(slope=0.2, eps=1e-5):
    def kernel(x_ref, w_ref, o_ref):
        _, K, N, Cin = x_ref.shape
        x = x_ref[0].reshape(K * N, Cin)                          # bf16
        o_ref[0] = _edgeconv_body(x, w_ref[...], K, N, slope, eps)
    return kernel


def pallas_edgeconv(x, w):
    """x: (B, K, N, Cin) bf16 graph features; w: (Cin, Cout) f32 -> (B, N, Cout)."""
    B, K, N, Cin = x.shape
    Cout = w.shape[1]
    return pl.pallas_call(
        _make_edgeconv_kernel(),
        out_shape=jax.ShapeDtypeStruct((B, N, Cout), jnp.float32),
        grid=(B,),
        in_specs=[pl.BlockSpec((1, K, N, Cin), lambda b: (b, 0, 0, 0)),
                  pl.BlockSpec((Cin, Cout), lambda b: (0, 0))],
        out_specs=pl.BlockSpec((1, N, Cout), lambda b: (b, 0, 0)),
        compiler_params=pltpu.CompilerParams(dimension_semantics=("parallel",)),
    )(x, w.astype(jnp.bfloat16))


def _make_gcn_tail_kernel(slope=0.2, eps=1e-5):
    # Fused: edgeconv2 (Conv2d+IN2d+leaky+max_k) -> concat([feats, f1, f2]) ->
    # Conv1d(4C->C, no bias) + InstanceNorm1d + LeakyReLU.  The concat is
    # replaced by a row-split of w3 (three accumulated matmuls).
    def kernel(g_ref, f0_ref, f1_ref, w2_ref, w3a_ref, w3b_ref, w3c_ref, o_ref):
        _, K, N, C2 = g_ref.shape
        x = g_ref[0].reshape(K * N, C2)                           # bf16
        f2 = _edgeconv_body(x, w2_ref[...], K, N, slope, eps)     # (N, 2C) f32
        z = (jnp.dot(f0_ref[0].astype(jnp.bfloat16), w3a_ref[...],
                     preferred_element_type=jnp.float32)
             + jnp.dot(f1_ref[0].astype(jnp.bfloat16), w3b_ref[...],
                       preferred_element_type=jnp.float32)
             + jnp.dot(f2.astype(jnp.bfloat16), w3c_ref[...],
                       preferred_element_type=jnp.float32))       # (N, C)
        inv_n = 1.0 / N
        zm = jnp.sum(z, axis=0, keepdims=True) * inv_n
        zv = jnp.maximum(jnp.sum(z * z, axis=0, keepdims=True) * inv_n - zm * zm, 0.0)
        zn = (z - zm) * jax.lax.rsqrt(zv + eps)
        o_ref[0] = jnp.maximum(zn, slope * zn)
    return kernel


def pallas_gcn_tail(g, f0, f1, w2, w3):
    """g: (B, K, N, 2C) bf16; f0, f1: (B, N, C) f32; w2: (2C, 2C); w3: (4C, C)."""
    B, K, N, C2 = g.shape
    C = f0.shape[2]
    Cout = w3.shape[1]
    w2b = w2.astype(jnp.bfloat16)
    w3b = w3.astype(jnp.bfloat16)
    w3_a, w3_b, w3_c = w3b[:C], w3b[C:2 * C], w3b[2 * C:]
    return pl.pallas_call(
        _make_gcn_tail_kernel(),
        out_shape=jax.ShapeDtypeStruct((B, N, Cout), jnp.float32),
        grid=(B,),
        in_specs=[pl.BlockSpec((1, K, N, C2), lambda b: (b, 0, 0, 0)),
                  pl.BlockSpec((1, N, C), lambda b: (b, 0, 0)),
                  pl.BlockSpec((1, N, C), lambda b: (b, 0, 0)),
                  pl.BlockSpec((C2, C2), lambda b: (0, 0)),
                  pl.BlockSpec((C, Cout), lambda b: (0, 0)),
                  pl.BlockSpec((C, Cout), lambda b: (0, 0)),
                  pl.BlockSpec((C2, Cout), lambda b: (0, 0))],
        out_specs=pl.BlockSpec((1, N, Cout), lambda b: (b, 0, 0)),
        compiler_params=pltpu.CompilerParams(dimension_semantics=("parallel",)),
    )(g, f0, f1, w2b, w3_a, w3_b, w3_c)


def _make_cross_attn_kernel(nhead, d, eps=1e-5):
    # Fully fused Cross_Attention + residual:
    #   q/k/v 1x1 convs -> per-head attention -> output conv -> MLP(2C->2C IN
    #   ReLU -> 2C->C) on [f1 ; attn] -> f1 + out.
    # Weights arrive pre-permuted so each head is a contiguous (C, d) block
    # (no in-kernel lane shuffles); the output conv is accumulated per head.
    # TODO(synk): at production N/M (>=2k) flash-tile the score matrix per head
    # and add an N grid axis; this whole-cloud version assumes it fits VMEM.
    scale = 1.0 / math.sqrt(d)

    def kernel(f1_ref, f2_ref, wq_ref, bq_ref, wk_ref, bk_ref, wv_ref, bv_ref,
               wc_ref, bc_ref, wm1a_ref, wm1b_ref, bm1_ref, wm2_ref, bm2_ref,
               o_ref):
        f1 = f1_ref[0]                                            # (N, C) f32
        f2 = f2_ref[0]                                            # (M, C) f32
        N, C = f1.shape
        f1b = f1.astype(jnp.bfloat16)
        f2b = f2.astype(jnp.bfloat16)

        attn_out = jnp.zeros((N, C), jnp.float32)
        for h in range(nhead):
            qh = (jnp.dot(f1b, wq_ref[h], preferred_element_type=jnp.float32)
                  + bq_ref[h])                                    # (N, d)
            kh = (jnp.dot(f2b, wk_ref[h], preferred_element_type=jnp.float32)
                  + bk_ref[h])                                    # (M, d)
            vh = (jnp.dot(f2b, wv_ref[h], preferred_element_type=jnp.float32)
                  + bv_ref[h])                                    # (M, d)
            s = jax.lax.dot_general(
                qh.astype(jnp.bfloat16), kh.astype(jnp.bfloat16),
                (((1,), (1,)), ((), ())),
                preferred_element_type=jnp.float32) * scale       # (N, M)
            s = s - jnp.max(s, axis=-1, keepdims=True)
            p = jnp.exp(s)
            p = p * pl.reciprocal(jnp.sum(p, axis=-1, keepdims=True), approx=True)
            oh = jnp.dot(p.astype(jnp.bfloat16), vh.astype(jnp.bfloat16),
                         preferred_element_type=jnp.float32)      # (N, d)
            attn_out = attn_out + jnp.dot(oh.astype(jnp.bfloat16), wc_ref[h],
                                          preferred_element_type=jnp.float32)
        attn_out = attn_out + bc_ref[...]                         # self.conv output

        # MLP on concat([f1, attn_out]) without materializing the concat.
        h1 = (jnp.dot(f1b, wm1a_ref[...], preferred_element_type=jnp.float32)
              + jnp.dot(attn_out.astype(jnp.bfloat16), wm1b_ref[...],
                        preferred_element_type=jnp.float32)
              + bm1_ref[...])                                     # (N, 2C)
        inv_n = 1.0 / N
        mu = jnp.sum(h1, axis=0, keepdims=True) * inv_n
        var = jnp.maximum(jnp.sum(h1 * h1, axis=0, keepdims=True) * inv_n - mu * mu, 0.0)
        h1 = jnp.maximum((h1 - mu) * jax.lax.rsqrt(var + eps), 0.0)  # IN + ReLU
        out = (jnp.dot(h1.astype(jnp.bfloat16), wm2_ref[...],
                       preferred_element_type=jnp.float32) + bm2_ref[...])
        o_ref[0] = f1 + out                                       # fused residual
    return kernel


def cross_attention_residual(f1_nlc, f2_nlc, p, nhead):
    """f1_nlc: (B, N, C); f2_nlc: (B, M, C) -> f1_nlc + CrossAttention(f1, f2)."""
    B, N, C = f1_nlc.shape
    M = f2_nlc.shape[1]
    d = C // nhead
    # PyTorch head split of channel c: (dim = c // nhead, head = c % nhead).
    # perm makes head channels contiguous: perm[h*d + j] = j*nhead + h.
    perm = jnp.transpose(jnp.arange(C).reshape(d, nhead)).reshape(-1)

    def head_w(w):   # (C, C) -> (H, C, d) bf16
        return jnp.transpose(w[:, perm].reshape(C, nhead, d), (1, 0, 2)).astype(jnp.bfloat16)

    def head_b(b):   # (C,) -> (H, 1, d) f32
        return b[perm].reshape(nhead, 1, d)

    wq, wk, wv = head_w(p["wq"]), head_w(p["wk"]), head_w(p["wv"])
    bq, bk, bv = head_b(p["bq"]), head_b(p["bk"]), head_b(p["bv"])
    wc = p["wc"][perm, :].reshape(nhead, d, C).astype(jnp.bfloat16)
    bc = p["bc"].reshape(1, C)
    wm1 = p["wm1"].astype(jnp.bfloat16)
    wm1a, wm1b = wm1[:C], wm1[C:]
    bm1 = p["bm1"].reshape(1, 2 * C)
    wm2 = p["wm2"].astype(jnp.bfloat16)
    bm2 = p["bm2"].reshape(1, C)

    return pl.pallas_call(
        _make_cross_attn_kernel(nhead, d),
        out_shape=jax.ShapeDtypeStruct((B, N, C), jnp.float32),
        grid=(B,),
        in_specs=[pl.BlockSpec((1, N, C), lambda b: (b, 0, 0)),
                  pl.BlockSpec((1, M, C), lambda b: (b, 0, 0)),
                  pl.BlockSpec((nhead, C, d), lambda b: (0, 0, 0)),
                  pl.BlockSpec((nhead, 1, d), lambda b: (0, 0, 0)),
                  pl.BlockSpec((nhead, C, d), lambda b: (0, 0, 0)),
                  pl.BlockSpec((nhead, 1, d), lambda b: (0, 0, 0)),
                  pl.BlockSpec((nhead, C, d), lambda b: (0, 0, 0)),
                  pl.BlockSpec((nhead, 1, d), lambda b: (0, 0, 0)),
                  pl.BlockSpec((nhead, d, C), lambda b: (0, 0, 0)),
                  pl.BlockSpec((1, C), lambda b: (0, 0)),
                  pl.BlockSpec((C, 2 * C), lambda b: (0, 0)),
                  pl.BlockSpec((C, 2 * C), lambda b: (0, 0)),
                  pl.BlockSpec((1, 2 * C), lambda b: (0, 0)),
                  pl.BlockSpec((2 * C, C), lambda b: (0, 0)),
                  pl.BlockSpec((1, C), lambda b: (0, 0))],
        out_specs=pl.BlockSpec((1, N, C), lambda b: (b, 0, 0)),
        compiler_params=pltpu.CompilerParams(dimension_semantics=("parallel",)),
    )(f1_nlc, f2_nlc, wq, bq, wk, bk, wv, bv, wc, bc, wm1a, wm1b, bm1, wm2, bm2)


# ------------------------------- JAX glue -----------------------------------

# TODO(synk): the k-NN top-k + neighbor gather stays in plain JAX (no clean
# Pallas TPU sort/gather primitive); fusing the gather into the edgeconv kernel
# via PrefetchScalarGridSpec (index table in SMEM) would remove the (B,K,N,2C)
# HBM intermediate entirely.
def get_graph_features_t(feats, inds):
    """feats: (B, N, C); inds: (B, N, K) -> (B, K, N, 2C) bf16 (K-leading)."""
    inds_t = jnp.transpose(inds, (0, 2, 1))                       # (B, K, N)
    neigh = jax.vmap(lambda f, i: f[i])(feats, inds_t)            # (B, K, N, C)
    center = jnp.broadcast_to(feats[:, None, :, :], neigh.shape)  # (B, K, N, C)
    return jnp.concatenate([center, neigh - center], axis=-1).astype(jnp.bfloat16)


def gcn_forward(coords_nlc, feats_nlc, p, k):
    """coords_nlc: (B, N, 3); feats_nlc: (B, N, C) -> (B, N, C)."""
    B, N, C = feats_nlc.shape
    sq = pallas_square_dists(coords_nlc)                          # (B, N, N)
    kk = min(N, k + 1)
    _, inds = jax.lax.top_k(-sq, kk)                              # smallest dists
    inds = inds[:, :, 1:]                                         # drop self; (B,N,K)
    g1 = get_graph_features_t(feats_nlc, inds)                    # (B,K,N,2C) bf16
    f1 = pallas_edgeconv(g1, p["w1"])                             # (B, N, C)
    g2 = get_graph_features_t(f1, inds)                           # (B,K,N,2C) bf16
    return pallas_gcn_tail(g2, feats_nlc, f1, p["w2"], p["w3"])   # (B, N, C)


def information_interactive(coords1, feats1, coords2, feats2, normals1, normals2,
                            params, layer_names, gcn_k, nhead):
    """coords*: (B, 3, L); feats*: (B, C, L). Returns (B, C, N), (B, C, M)."""
    del normals1, normals2  # only the 'gge' layer type uses normals
    c1 = jnp.transpose(coords1, (0, 2, 1))
    c2 = jnp.transpose(coords2, (0, 2, 1))
    f1 = jnp.transpose(feats1, (0, 2, 1))
    f2 = jnp.transpose(feats2, (0, 2, 1))
    for layer_name, p in zip(layer_names, params):
        if layer_name == "gcn":
            f1 = gcn_forward(c1, f1, p, gcn_k)
            f2 = gcn_forward(c2, f2, p, gcn_k)
        elif layer_name == "cross_attn":
            f1 = cross_attention_residual(f1, f2, p, nhead)       # residual fused
            f2 = cross_attention_residual(f2, f1, p, nhead)       # uses updated f1
        else:
            raise NotImplementedError(layer_name)
    return jnp.transpose(f1, (0, 2, 1)), jnp.transpose(f2, (0, 2, 1))


# --------------------------- deterministic params ---------------------------

def init_params(key, feat_dims, layer_names):
    C = feat_dims
    params = []
    for ln in layer_names:
        if ln == "gcn":
            key, k1, k2, k3 = jax.random.split(key, 4)
            params.append({
                "w1": 0.1 * jax.random.normal(k1, (2 * C, C), jnp.float32),
                "w2": 0.1 * jax.random.normal(k2, (2 * C, 2 * C), jnp.float32),
                "w3": 0.1 * jax.random.normal(k3, (4 * C, C), jnp.float32),
            })
        elif ln == "cross_attn":
            key, kc, kbc, km1, kbm1, km2, kbm2 = jax.random.split(key, 7)
            wc = 0.1 * jax.random.normal(kc, (C, C), jnp.float32)
            bc = 0.01 * jax.random.normal(kbc, (C,), jnp.float32)
            # q_conv / k_conv / v_conv are deepcopies of self.conv -> same init.
            params.append({
                "wq": wc, "bq": bc, "wk": wc, "bk": bc, "wv": wc, "bv": bc,
                "wc": wc, "bc": bc,
                "wm1": 0.1 * jax.random.normal(km1, (2 * C, 2 * C), jnp.float32),
                "bm1": 0.01 * jax.random.normal(kbm1, (2 * C,), jnp.float32),
                "wm2": 0.1 * jax.random.normal(km2, (2 * C, C), jnp.float32),
                "bm2": 0.01 * jax.random.normal(kbm2, (C,), jnp.float32),
            })
        else:
            raise NotImplementedError(ln)
    return params


if __name__ == "__main__":
    B, C, N, M = 2, 32, 16, 16
    nhead, gcn_k = 4, 4
    layer_names = ("gcn", "cross_attn")

    key = jax.random.PRNGKey(0)
    k1, k2, k3, k4, k5, k6, kp = jax.random.split(key, 7)
    coords1 = jax.random.normal(k1, (B, 3, N), jnp.float32)
    feats1 = jax.random.normal(k2, (B, C, N), jnp.float32)
    coords2 = jax.random.normal(k3, (B, 3, M), jnp.float32)
    feats2 = jax.random.normal(k4, (B, C, M), jnp.float32)
    normals1 = jax.random.normal(k5, (B, 3, N), jnp.float32)
    normals2 = jax.random.normal(k6, (B, 3, M), jnp.float32)

    params = init_params(kp, C, layer_names)

    fwd = jax.jit(functools.partial(information_interactive,
                                    layer_names=layer_names,
                                    gcn_k=gcn_k, nhead=nhead))
    out1, out2 = fwd(coords1, feats1, coords2, feats2, normals1, normals2,
                     params=params)
    jax.block_until_ready((out1, out2))
    assert out1.shape == (B, C, N) and out2.shape == (B, C, M)
    assert bool(jnp.all(jnp.isfinite(out1))) and bool(jnp.all(jnp.isfinite(out2)))
    print("KERNEL_OK")
</pallas_src>

<mosaic_0001>
module attributes {stable_mosaic.version = 11 : i64} {
  func.func @_sqdist_kernel(%arg0: i32, %arg1: memref<1x16x8xf32, #tpu.memory_space<vmem>>, %arg2: memref<1x16x16xf32, #tpu.memory_space<vmem>>) attributes {dimension_semantics = [#tpu.dimension_semantics<parallel>], iteration_bounds = array<i64: 2>, scalar_prefetch = 0 : i64, scratch_operands = 0 : i64, tpu.core_type = #tpu.core_type<tc>, window_params = [{transform_indices = @transform_0, window_bounds = array<i64: 1, 16, 8>}, {transform_indices = @transform_1, window_bounds = array<i64: 1, 16, 16>}]} {
    %c0 = arith.constant 0 : index
    %c0_0 = arith.constant 0 : index
    %c0_1 = arith.constant 0 : index
    %0 = vector.load %arg1[%c0, %c0_0, %c0_1] : memref<1x16x8xf32, #tpu.memory_space<vmem>>, vector<1x16x8xf32>
    %1 = vector.shape_cast %0 : vector<1x16x8xf32> to vector<16x8xf32>
    %2 = arith.mulf %1, %1 : vector<16x8xf32>
    %cst = arith.constant dense<0.000000e+00> : vector<16xf32>
    %3 = vector.multi_reduction <add>, %2, %cst [1] : vector<16x8xf32> to vector<16xf32>
    %4 = vector.shape_cast %3 : vector<16xf32> to vector<16x1xf32>
    %cst_2 = arith.constant dense<0.000000e+00> : vector<16xf32>
    %5 = vector.multi_reduction <add>, %2, %cst_2 [1] : vector<16x8xf32> to vector<16xf32>
    %6 = vector.shape_cast %5 : vector<16xf32> to vector<1x16xf32>
    %cst_3 = arith.constant dense<0.000000e+00> : vector<16x16xf32>
    %7 = tpu.matmul %1, %1, %cst_3 {dimension_numbers = #tpu.dot_dimension_numbers<[1], [1], [0], [0], [0, 0, 1, 0], [], []>} : vector<16x8xf32>, vector<16x8xf32>, vector<16x16xf32> -> vector<16x16xf32>
    %8 = vector.broadcast %4 : vector<16x1xf32> to vector<16x16xf32>
    %9 = vector.broadcast %6 : vector<1x16xf32> to vector<16x16xf32>
    %10 = arith.addf %8, %9 : vector<16x16xf32>
    %cst_4 = arith.constant 2.000000e+00 : f32
    %11 = vector.broadcast %cst_4 : f32 to vector<16x16xf32>
    %12 = arith.mulf %11, %7 : vector<16x16xf32>
    %13 = arith.subf %10, %12 : vector<16x16xf32>
    %cst_5 = arith.constant 0.000000e+00 : f32
    %14 = vector.broadcast %cst_5 : f32 to vector<16x16xf32>
    %15 = arith.maximumf %13, %14 : vector<16x16xf32>
    %c0_6 = arith.constant 0 : index
    %c0_7 = arith.constant 0 : index
    %c0_8 = arith.constant 0 : index
    %16 = vector.load %arg2[%c0_6, %c0_7, %c0_8] : memref<1x16x16xf32, #tpu.memory_space<vmem>>, vector<1x16x16xf32>
    %17 = vector.shape_cast %16 : vector<1x16x16xf32> to vector<16x16xf32>
    %18 = vector.shape_cast %15 : vector<16x16xf32> to vector<1x16x16xf32>
    tpu.vector_store %arg2[%c0_6, %c0_7, %c0_8], %18 {strides = array<i32>} : memref<1x16x16xf32, #tpu.memory_space<vmem>>, vector<1x16x16xf32>,
    return
  }
  func.func @transform_0(%arg0: i32) -> (i32, i32, i32) {
    %c0_i32 = arith.constant 0 : i32
    %c0_i32_0 = arith.constant 0 : i32
    %c0_i32_1 = arith.constant 0 : i32
    return %arg0, %c0_i32, %c0_i32_0 : i32, i32, i32
  }
  func.func @transform_1(%arg0: i32) -> (i32, i32, i32) {
    %c0_i32 = arith.constant 0 : i32
    %c0_i32_0 = arith.constant 0 : i32
    %c0_i32_1 = arith.constant 0 : i32
    return %arg0, %c0_i32, %c0_i32_0 : i32, i32, i32
  }
}

module attributes {stable_mosaic.version = 11 : i64} {
  func.func @kernel(%arg0: i32, %arg1: memref<1x4x16x64xbf16, #tpu.memory_space<vmem>>, %arg2: memref<64x32xbf16, #tpu.memory_space<vmem>>, %arg3: memref<1x16x32xf32, #tpu.memory_space<vmem>>) attributes {dimension_semantics = [#tpu.dimension_semantics<parallel>], iteration_bounds = array<i64: 2>, scalar_prefetch = 0 : i64, scratch_operands = 0 : i64, tpu.core_type = #tpu.core_type<tc>, window_params = [{transform_indices = @transform_0, window_bounds = array<i64: 1, 4, 16, 64>}, {pipeline_mode = #tpu.pipeline_mode<synchronous>, transform_indices = @transform_1, window_bounds = array<i64: 64, 32>}, {transform_indices = @transform_2, window_bounds = array<i64: 1, 16, 32>}]} {
    %c0 = arith.constant 0 : index
    %c0_0 = arith.constant 0 : index
    %c0_1 = arith.constant 0 : index
    %c0_2 = arith.constant 0 : index
    %0 = vector.load %arg1[%c0, %c0_0, %c0_1, %c0_2] : memref<1x4x16x64xbf16, #tpu.memory_space<vmem>>, vector<1x4x16x64xbf16>
    %1 = vector.shape_cast %0 : vector<1x4x16x64xbf16> to vector<4x16x64xbf16>
    %2 = vector.shape_cast %1 : vector<4x16x64xbf16> to vector<64x64xbf16>
    %c0_3 = arith.constant 0 : index
    %c0_4 = arith.constant 0 : index
    %3 = vector.load %arg2[%c0_3, %c0_4] : memref<64x32xbf16, #tpu.memory_space<vmem>>, vector<64x32xbf16>
    %cst = arith.constant dense<0.000000e+00> : vector<64x32xf32>
    %4 = tpu.matmul %2, %3, %cst {dimension_numbers = #tpu.dot_dimension_numbers<[1], [0], [0], [1], [0, 0, 1, 1], [], []>} : vector<64x64xbf16>, vector<64x32xbf16>, vector<64x32xf32> -> vector<64x32xf32>
    %cst_5 = arith.constant dense<0.000000e+00> : vector<32xf32>
    %5 = vector.multi_reduction <add>, %4, %cst_5 [0] : vector<64x32xf32> to vector<32xf32>
    %6 = vector.shape_cast %5 : vector<32xf32> to vector<1x32xf32>
    %cst_6 = arith.constant 1.562500e-02 : f32
    %7 = vector.broadcast %cst_6 : f32 to vector<1x32xf32>
    %8 = arith.mulf %6, %7 : vector<1x32xf32>
    %9 = arith.mulf %4, %4 : vector<64x32xf32>
    %cst_7 = arith.constant dense<0.000000e+00> : vector<32xf32>
    %10 = vector.multi_reduction <add>, %9, %cst_7 [0] : vector<64x32xf32> to vector<32xf32>
    %11 = vector.shape_cast %10 : vector<32xf32> to vector<1x32xf32>
    %cst_8 = arith.constant 1.562500e-02 : f32
    %12 = vector.broadcast %cst_8 : f32 to vector<1x32xf32>
    %13 = arith.mulf %11, %12 : vector<1x32xf32>
    %14 = arith.mulf %8, %8 : vector<1x32xf32>
    %15 = arith.subf %13, %14 : vector<1x32xf32>
    %cst_9 = arith.constant 0.000000e+00 : f32
    %16 = vector.broadcast %cst_9 : f32 to vector<1x32xf32>
    %17 = arith.maximumf %15, %16 : vector<1x32xf32>
    %18 = vector.broadcast %8 : vector<1x32xf32> to vector<64x32xf32>
    %19 = arith.subf %4, %18 : vector<64x32xf32>
    %cst_10 = arith.constant 9.99999974E-6 : f32
    %20 = vector.broadcast %cst_10 : f32 to vector<1x32xf32>
    %21 = arith.addf %17, %20 : vector<1x32xf32>
    %22 = math.rsqrt %21 : vector<1x32xf32>
    %23 = vector.broadcast %22 : vector<1x32xf32> to vector<64x32xf32>
    %24 = arith.mulf %19, %23 : vector<64x32xf32>
    %cst_11 = arith.constant 2.000000e-01 : f32
    %25 = vector.broadcast %cst_11 : f32 to vector<64x32xf32>
    %26 = arith.mulf %25, %24 : vector<64x32xf32>
    %27 = arith.maximumf %24, %26 : vector<64x32xf32>
    %28 = vector.extract_strided_slice %27 {offsets = [0, 0], sizes = [16, 32], strides = [1, 1]} : vector<64x32xf32> to vector<16x32xf32>
    %29 = vector.extract_strided_slice %27 {offsets = [16, 0], sizes = [16, 32], strides = [1, 1]} : vector<64x32xf32> to vector<16x32xf32>
    %30 = arith.maximumf %28, %29 : vector<16x32xf32>
    %31 = vector.extract_strided_slice %27 {offsets = [32, 0], sizes = [16, 32], strides = [1, 1]} : vector<64x32xf32> to vector<16x32xf32>
    %32 = arith.maximumf %30, %31 : vector<16x32xf32>
    %33 = vector.extract_strided_slice %27 {offsets = [48, 0], sizes = [16, 32], strides = [1, 1]} : vector<64x32xf32> to vector<16x32xf32>
    %34 = arith.maximumf %32, %33 : vector<16x32xf32>
    %c0_12 = arith.constant 0 : index
    %c0_13 = arith.constant 0 : index
    %c0_14 = arith.constant 0 : index
    %35 = vector.load %arg3[%c0_12, %c0_13, %c0_14] : memref<1x16x32xf32, #tpu.memory_space<vmem>>, vector<1x16x32xf32>
    %36 = vector.shape_cast %35 : vector<1x16x32xf32> to vector<16x32xf32>
    %37 = vector.shape_cast %34 : vector<16x32xf32> to vector<1x16x32xf32>
    tpu.vector_store %arg3[%c0_12, %c0_13, %c0_14], %37 {strides = array<i32>} : memref<1x16x32xf32, #tpu.memory_space<vmem>>, vector<1x16x32xf32>,
    return
  }
  func.func @transform_0(%arg0: i32) -> (i32, i32, i32, i32) {
    %c0_i32 = arith.constant 0 : i32
    %c0_i32_0 = arith.constant 0 : i32
    %c0_i32_1 = arith.constant 0 : i32
    %c0_i32_2 = arith.constant 0 : i32
    return %arg0, %c0_i32, %c0_i32_0, %c0_i32_1 : i32, i32, i32, i32
  }
  func.func @transform_1(%arg0: i32) -> (i32, i32) {
    %c0_i32 = arith.constant 0 : i32
    %c0_i32_0 = arith.constant 0 : i32
    %c0_i32_1 = arith.constant 0 : i32
    return %c0_i32, %c0_i32_0 : i32, i32
  }
  func.func @transform_2(%arg0: i32) -> (i32, i32, i32) {
    %c0_i32 = arith.constant 0 : i32
    %c0_i32_0 = arith.constant 0 : i32
    %c0_i32_1 = arith.constant 0 : i32
    return %arg0, %c0_i32, %c0_i32_0 : i32, i32, i32
  }
}

module attributes {stable_mosaic.version = 11 : i64} {
  func.func @kernel(%arg0: i32, %arg1: memref<1x4x16x64xbf16, #tpu.memory_space<vmem>>, %arg2: memref<1x16x32xf32, #tpu.memory_space<vmem>>, %arg3: memref<1x16x32xf32, #tpu.memory_space<vmem>>, %arg4: memref<64x64xbf16, #tpu.memory_space<vmem>>, %arg5: memref<32x32xbf16, #tpu.memory_space<vmem>>, %arg6: memref<32x32xbf16, #tpu.memory_space<vmem>>, %arg7: memref<64x32xbf16, #tpu.memory_space<vmem>>, %arg8: memref<1x16x32xf32, #tpu.memory_space<vmem>>) attributes {dimension_semantics = [#tpu.dimension_semantics<parallel>], iteration_bounds = array<i64: 2>, scalar_prefetch = 0 : i64, scratch_operands = 0 : i64, tpu.core_type = #tpu.core_type<tc>, window_params = [{transform_indices = @transform_0, window_bounds = array<i64: 1, 4, 16, 64>}, {transform_indices = @transform_1, window_bounds = array<i64: 1, 16, 32>}, {transform_indices = @transform_2, window_bounds = array<i64: 1, 16, 32>}, {pipeline_mode = #tpu.pipeline_mode<synchronous>, transform_indices = @transform_3, window_bounds = array<i64: 64, 64>}, {pipeline_mode = #tpu.pipeline_mode<synchronous>, transform_indices = @transform_4, window_bounds = array<i64: 32, 32>}, {pipeline_mode = #tpu.pipeline_mode<synchronous>, transform_indices = @transform_5, window_bounds = array<i64: 32, 32>}, {pipeline_mode = #tpu.pipeline_mode<synchronous>, transform_indices = @transform_6, window_bounds = array<i64: 64, 32>}, {transform_indices = @transform_7, window_bounds = array<i64: 1, 16, 32>}]} {
    %c0 = arith.constant 0 : index
    %c0_0 = arith.constant 0 : index
    %c0_1 = arith.constant 0 : index
    %c0_2 = arith.constant 0 : index
    %0 = vector.load %arg1[%c0, %c0_0, %c0_1, %c0_2] : memref<1x4x16x64xbf16, #tpu.memory_space<vmem>>, vector<1x4x16x64xbf16>
    %1 = vector.shape_cast %0 : vector<1x4x16x64xbf16> to vector<4x16x64xbf16>
    %2 = vector.shape_cast %1 : vector<4x16x64xbf16> to vector<64x64xbf16>
    %c0_3 = arith.constant 0 : index
    %c0_4 = arith.constant 0 : index
    %3 = vector.load %arg4[%c0_3, %c0_4] : memref<64x64xbf16, #tpu.memory_space<vmem>>, vector<64x64xbf16>
    %cst = arith.constant dense<0.000000e+00> : vector<64x64xf32>
    %4 = tpu.matmul %2, %3, %cst {dimension_numbers = #tpu.dot_dimension_numbers<[1], [0], [0], [1], [0, 0, 1, 1], [], []>} : vector<64x64xbf16>, vector<64x64xbf16>, vector<64x64xf32> -> vector<64x64xf32>
    %cst_5 = arith.constant dense<0.000000e+00> : vector<64xf32>
    %5 = vector.multi_reduction <add>, %4, %cst_5 [0] : vector<64x64xf32> to vector<64xf32>
    %6 = vector.shape_cast %5 : vector<64xf32> to vector<1x64xf32>
    %cst_6 = arith.constant 1.562500e-02 : f32
    %7 = vector.broadcast %cst_6 : f32 to vector<1x64xf32>
    %8 = arith.mulf %6, %7 : vector<1x64xf32>
    %9 = arith.mulf %4, %4 : vector<64x64xf32>
    %cst_7 = arith.constant dense<0.000000e+00> : vector<64xf32>
    %10 = vector.multi_reduction <add>, %9, %cst_7 [0] : vector<64x64xf32> to vector<64xf32>
    %11 = vector.shape_cast %10 : vector<64xf32> to vector<1x64xf32>
    %cst_8 = arith.constant 1.562500e-02 : f32
    %12 = vector.broadcast %cst_8 : f32 to vector<1x64xf32>
    %13 = arith.mulf %11, %12 : vector<1x64xf32>
    %14 = arith.mulf %8, %8 : vector<1x64xf32>
    %15 = arith.subf %13, %14 : vector<1x64xf32>
    %cst_9 = arith.constant 0.000000e+00 : f32
    %16 = vector.broadcast %cst_9 : f32 to vector<1x64xf32>
    %17 = arith.maximumf %15, %16 : vector<1x64xf32>
    %18 = vector.broadcast %8 : vector<1x64xf32> to vector<64x64xf32>
    %19 = arith.subf %4, %18 : vector<64x64xf32>
    %cst_10 = arith.constant 9.99999974E-6 : f32
    %20 = vector.broadcast %cst_10 : f32 to vector<1x64xf32>
    %21 = arith.addf %17, %20 : vector<1x64xf32>
    %22 = math.rsqrt %21 : vector<1x64xf32>
    %23 = vector.broadcast %22 : vector<1x64xf32> to vector<64x64xf32>
    %24 = arith.mulf %19, %23 : vector<64x64xf32>
    %cst_11 = arith.constant 2.000000e-01 : f32
    %25 = vector.broadcast %cst_11 : f32 to vector<64x64xf32>
    %26 = arith.mulf %25, %24 : vector<64x64xf32>
    %27 = arith.maximumf %24, %26 : vector<64x64xf32>
    %28 = vector.extract_strided_slice %27 {offsets = [0, 0], sizes = [16, 64], strides = [1, 1]} : vector<64x64xf32> to vector<16x64xf32>
    %29 = vector.extract_strided_slice %27 {offsets = [16, 0], sizes = [16, 64], strides = [1, 1]} : vector<64x64xf32> to vector<16x64xf32>
    %30 = arith.maximumf %28, %29 : vector<16x64xf32>
    %31 = vector.extract_strided_slice %27 {offsets = [32, 0], sizes = [16, 64], strides = [1, 1]} : vector<64x64xf32> to vector<16x64xf32>
    %32 = arith.maximumf %30, %31 : vector<16x64xf32>
    %33 = vector.extract_strided_slice %27 {offsets = [48, 0], sizes = [16, 64], strides = [1, 1]} : vector<64x64xf32> to vector<16x64xf32>
    %34 = arith.maximumf %32, %33 : vector<16x64xf32>
    %c0_12 = arith.constant 0 : index
    %c0_13 = arith.constant 0 : index
    %c0_14 = arith.constant 0 : index
    %35 = vector.load %arg2[%c0_12, %c0_13, %c0_14] : memref<1x16x32xf32, #tpu.memory_space<vmem>>, vector<1x16x32xf32>
    %36 = vector.shape_cast %35 : vector<1x16x32xf32> to vector<16x32xf32>
    %37 = arith.truncf %36 : vector<16x32xf32> to vector<16x32xbf16>
    %c0_15 = arith.constant 0 : index
    %c0_16 = arith.constant 0 : index
    %38 = vector.load %arg5[%c0_15, %c0_16] : memref<32x32xbf16, #tpu.memory_space<vmem>>, vector<32x32xbf16>
    %cst_17 = arith.constant dense<0.000000e+00> : vector<16x32xf32>
    %39 = tpu.matmul %37, %38, %cst_17 {dimension_numbers = #tpu.dot_dimension_numbers<[1], [0], [0], [1], [0, 0, 1, 1], [], []>} : vector<16x32xbf16>, vector<32x32xbf16>, vector<16x32xf32> -> vector<16x32xf32>
    %c0_18 = arith.constant 0 : index
    %c0_19 = arith.constant 0 : index
    %c0_20 = arith.constant 0 : index
    %40 = vector.load %arg3[%c0_18, %c0_19, %c0_20] : memref<1x16x32xf32, #tpu.memory_space<vmem>>, vector<1x16x32xf32>
    %41 = vector.shape_cast %40 : vector<1x16x32xf32> to vector<16x32xf32>
    %42 = arith.truncf %41 : vector<16x32xf32> to vector<16x32xbf16>
    %c0_21 = arith.constant 0 : index
    %c0_22 = arith.constant 0 : index
    %43 = vector.load %arg6[%c0_21, %c0_22] : memref<32x32xbf16, #tpu.memory_space<vmem>>, vector<32x32xbf16>
    %cst_23 = arith.constant dense<0.000000e+00> : vector<16x32xf32>
    %44 = tpu.matmul %42, %43, %cst_23 {dimension_numbers = #tpu.dot_dimension_numbers<[1], [0], [0], [1], [0, 0, 1, 1], [], []>} : vector<16x32xbf16>, vector<32x32xbf16>, vector<16x32xf32> -> vector<16x32xf32>
    %45 = arith.addf %39, %44 : vector<16x32xf32>
    %46 = arith.truncf %34 : vector<16x64xf32> to vector<16x64xbf16>
    %c0_24 = arith.constant 0 : index
    %c0_25 = arith.constant 0 : index
    %47 = vector.load %arg7[%c0_24, %c0_25] : memref<64x32xbf16, #tpu.memory_space<vmem>>, vector<64x32xbf16>
    %cst_26 = arith.constant dense<0.000000e+00> : vector<16x32xf32>
    %48 = tpu.matmul %46, %47, %cst_26 {dimension_numbers = #tpu.dot_dimension_numbers<[1], [0], [0], [1], [0, 0, 1, 1], [], []>} : vector<16x64xbf16>, vector<64x32xbf16>, vector<16x32xf32> -> vector<16x32xf32>
    %49 = arith.addf %45, %48 : vector<16x32xf32>
    %cst_27 = arith.constant dense<0.000000e+00> : vector<32xf32>
    %50 = vector.multi_reduction <add>, %49, %cst_27 [0] : vector<16x32xf32> to vector<32xf32>
    %51 = vector.shape_cast %50 : vector<32xf32> to vector<1x32xf32>
    %cst_28 = arith.constant 6.250000e-02 : f32
    %52 = vector.broadcast %cst_28 : f32 to vector<1x32xf32>
    %53 = arith.mulf %51, %52 : vector<1x32xf32>
    %54 = arith.mulf %49, %49 : vector<16x32xf32>
    %cst_29 = arith.constant dense<0.000000e+00> : vector<32xf32>
    %55 = vector.multi_reduction <add>, %54, %cst_29 [0] : vector<16x32xf32> to vector<32xf32>
    %56 = vector.shape_cast %55 : vector<32xf32> to vector<1x32xf32>
    %cst_30 = arith.constant 6.250000e-02 : f32
    %57 = vector.broadcast %cst_30 : f32 to vector<1x32xf32>
    %58 = arith.mulf %56, %57 : vector<1x32xf32>
    %59 = arith.mulf %53, %53 : vector<1x32xf32>
    %60 = arith.subf %58, %59 : vector<1x32xf32>
    %cst_31 = arith.constant 0.000000e+00 : f32
    %61 = vector.broadcast %cst_31 : f32 to vector<1x32xf32>
    %62 = arith.maximumf %60, %61 : vector<1x32xf32>
    %63 = vector.broadcast %53 : vector<1x32xf32> to vector<16x32xf32>
    %64 = arith.subf %49, %63 : vector<16x32xf32>
    %cst_32 = arith.constant 9.99999974E-6 : f32
    %65 = vector.broadcast %cst_32 : f32 to vector<1x32xf32>
    %66 = arith.addf %62, %65 : vector<1x32xf32>
    %67 = math.rsqrt %66 : vector<1x32xf32>
    %68 = vector.broadcast %67 : vector<1x32xf32> to vector<16x32xf32>
    %69 = arith.mulf %64, %68 : vector<16x32xf32>
    %cst_33 = arith.constant 2.000000e-01 : f32
    %70 = vector.broadcast %cst_33 : f32 to vector<16x32xf32>
    %71 = arith.mulf %70, %69 : vector<16x32xf32>
    %72 = arith.maximumf %69, %71 : vector<16x32xf32>
    %c0_34 = arith.constant 0 : index
    %c0_35 = arith.constant 0 : index
    %c0_36 = arith.constant 0 : index
    %73 = vector.load %arg8[%c0_34, %c0_35, %c0_36] : memref<1x16x32xf32, #tpu.memory_space<vmem>>, vector<1x16x32xf32>
    %74 = vector.shape_cast %73 : vector<1x16x32xf32> to vector<16x32xf32>
    %75 = vector.shape_cast %72 : vector<16x32xf32> to vector<1x16x32xf32>
    tpu.vector_store %arg8[%c0_34, %c0_35, %c0_36], %75 {strides = array<i32>} : memref<1x16x32xf32, #tpu.memory_space<vmem>>, vector<1x16x32xf32>,
    return
  }
  func.func @transform_0(%arg0: i32) -> (i32, i32, i32, i32) {
    %c0_i32 = arith.constant 0 : i32
    %c0_i32_0 = arith.constant 0 : i32
    %c0_i32_1 = arith.constant 0 : i32
    %c0_i32_2 = arith.constant 0 : i32
    return %arg0, %c0_i32, %c0_i32_0, %c0_i32_1 : i32, i32, i32, i32
  }
  func.func @transform_1(%arg0: i32) -> (i32, i32, i32) {
    %c0_i32 = arith.constant 0 : i32
    %c0_i32_0 = arith.constant 0 : i32
    %c0_i32_1 = arith.constant 0 : i32
    return %arg0, %c0_i32, %c0_i32_0 : i32, i32, i32
  }
  func.func @transform_2(%arg0: i32) -> (i32, i32, i32) {
    %c0_i32 = arith.constant 0 : i32
    %c0_i32_0 = arith.constant 0 : i32
    %c0_i32_1 = arith.constant 0 : i32
    return %arg0, %c0_i32, %c0_i32_0 : i32, i32, i32
  }
  func.func @transform_3(%arg0: i32) -> (i32, i32) {
    %c0_i32 = arith.constant 0 : i32
    %c0_i32_0 = arith.constant 0 : i32
    %c0_i32_1 = arith.constant 0 : i32
    return %c0_i32, %c0_i32_0 : i32, i32
  }
  func.func @transform_4(%arg0: i32) -> (i32, i32) {
    %c0_i32 = arith.constant 0 : i32
    %c0_i32_0 = arith.constant 0 : i32
    %c0_i32_1 = arith.constant 0 : i32
    return %c0_i32, %c0_i32_0 : i32, i32
  }
  func.func @transform_5(%arg0: i32) -> (i32, i32) {
    %c0_i32 = arith.constant 0 : i32
    %c0_i32_0 = arith.constant 0 : i32
    %c0_i32_1 = arith.constant 0 : i32
    return %c0_i32, %c0_i32_0 : i32, i32
  }
  func.func @transform_6(%arg0: i32) -> (i32, i32) {
    %c0_i32 = arith.constant 0 : i32
    %c0_i32_0 = arith.constant 0 : i32
    %c0_i32_1 = arith.constant 0 : i32
    return %c0_i32, %c0_i32_0 : i32, i32
  }
  func.func @transform_7(%arg0: i32) -> (i32, i32, i32) {
    %c0_i32 = arith.constant 0 : i32
    %c0_i32_0 = arith.constant 0 : i32
    %c0_i32_1 = arith.constant 0 : i32
    return %arg0, %c0_i32, %c0_i32_0 : i32, i32, i32
  }
}

module attributes {stable_mosaic.version = 11 : i64} {
  func.func @kernel(%arg0: i32, %arg1: memref<1x16x32xf32, #tpu.memory_space<vmem>>, %arg2: memref<1x16x32xf32, #tpu.memory_space<vmem>>, %arg3: memref<4x32x8xbf16, #tpu.memory_space<vmem>>, %arg4: memref<4x1x8xf32, #tpu.memory_space<vmem>>, %arg5: memref<4x32x8xbf16, #tpu.memory_space<vmem>>, %arg6: memref<4x1x8xf32, #tpu.memory_space<vmem>>, %arg7: memref<4x32x8xbf16, #tpu.memory_space<vmem>>, %arg8: memref<4x1x8xf32, #tpu.memory_space<vmem>>, %arg9: memref<4x8x32xbf16, #tpu.memory_space<vmem>>, %arg10: memref<1x32xf32, #tpu.memory_space<vmem>>, %arg11: memref<32x64xbf16, #tpu.memory_space<vmem>>, %arg12: memref<32x64xbf16, #tpu.memory_space<vmem>>, %arg13: memref<1x64xf32, #tpu.memory_space<vmem>>, %arg14: memref<64x32xbf16, #tpu.memory_space<vmem>>, %arg15: memref<1x32xf32, #tpu.memory_space<vmem>>, %arg16: memref<1x16x32xf32, #tpu.memory_space<vmem>>) attributes {dimension_semantics = [#tpu.dimension_semantics<parallel>], iteration_bounds = array<i64: 2>, scalar_prefetch = 0 : i64, scratch_operands = 0 : i64, tpu.core_type = #tpu.core_type<tc>, window_params = [{transform_indices = @transform_0, window_bounds = array<i64: 1, 16, 32>}, {transform_indices = @transform_1, window_bounds = array<i64: 1, 16, 32>}, {pipeline_mode = #tpu.pipeline_mode<synchronous>, transform_indices = @transform_2, window_bounds = array<i64: 4, 32, 8>}, {pipeline_mode = #tpu.pipeline_mode<synchronous>, transform_indices = @transform_3, window_bounds = array<i64: 4, 1, 8>}, {pipeline_mode = #tpu.pipeline_mode<synchronous>, transform_indices = @transform_4, window_bounds = array<i64: 4, 32, 8>}, {pipeline_mode = #tpu.pipeline_mode<synchronous>, transform_indices = @transform_5, window_bounds = array<i64: 4, 1, 8>}, {pipeline_mode = #tpu.pipeline_mode<synchronous>, transform_indices = @transform_6, window_bounds = array<i64: 4, 32, 8>}, {pipeline_mode = #tpu.pipeline_mode<synchronous>, transform_indices = @transform_7, window_bounds = array<i64: 4, 1, 8>}, {pipeline_mode = #tpu.pipeline_mode<synchronous>, transform_indices = @transform_8, window_bounds = array<i64: 4, 8, 32>}, {pipeline_mode = #tpu.pipeline_mode<synchronous>, transform_indices = @transform_9, window_bounds = array<i64: 1, 32>}, {pipeline_mode = #tpu.pipeline_mode<synchronous>, transform_indices = @transform_10, window_bounds = array<i64: 32, 64>}, {pipeline_mode = #tpu.pipeline_mode<synchronous>, transform_indices = @transform_11, window_bounds = array<i64: 32, 64>}, {pipeline_mode = #tpu.pipeline_mode<synchronous>, transform_indices = @transform_12, window_bounds = array<i64: 1, 64>}, {pipeline_mode = #tpu.pipeline_mode<synchronous>, transform_indices = @transform_13, window_bounds = array<i64: 64, 32>}, {pipeline_mode = #tpu.pipeline_mode<synchronous>, transform_indices = @transform_14, window_bounds = array<i64: 1, 32>}, {transform_indices = @transform_15, window_bounds = array<i64: 1, 16, 32>}]} {
    %c0 = arith.constant 0 : index
    %c0_0 = arith.constant 0 : index
    %c0_1 = arith.constant 0 : index
    %0 = vector.load %arg1[%c0, %c0_0, %c0_1] : memref<1x16x32xf32, #tpu.memory_space<vmem>>, vector<1x16x32xf32>
    %1 = vector.shape_cast %0 : vector<1x16x32xf32> to vector<16x32xf32>
    %c0_2 = arith.constant 0 : index
    %c0_3 = arith.constant 0 : index
    %c0_4 = arith.constant 0 : index
    %2 = vector.load %arg2[%c0_2, %c0_3, %c0_4] : memref<1x16x32xf32, #tpu.memory_space<vmem>>, vector<1x16x32xf32>
    %3 = vector.shape_cast %2 : vector<1x16x32xf32> to vector<16x32xf32>
    %4 = arith.truncf %1 : vector<16x32xf32> to vector<16x32xbf16>
    %5 = arith.truncf %3 : vector<16x32xf32> to vector<16x32xbf16>
    %cst = arith.constant 0.000000e+00 : f32
    %6 = vector.broadcast %cst : f32 to vector<16x32xf32>
    %c0_5 = arith.constant 0 : index
    %c0_6 = arith.constant 0 : index
    %c0_7 = arith.constant 0 : index
    %7 = vector.load %arg3[%c0_5, %c0_6, %c0_7] : memref<4x32x8xbf16, #tpu.memory_space<vmem>>, vector<1x32x8xbf16>
    %8 = vector.shape_cast %7 : vector<1x32x8xbf16> to vector<32x8xbf16>
    %cst_8 = arith.constant dense<0.000000e+00> : vector<16x8xf32>
    %9 = tpu.matmul %4, %8, %cst_8 {dimension_numbers = #tpu.dot_dimension_numbers<[1], [0], [0], [1], [0, 0, 1, 1], [], []>} : vector<16x32xbf16>, vector<32x8xbf16>, vector<16x8xf32> -> vector<16x8xf32>
    %c0_9 = arith.constant 0 : index
    %c0_10 = arith.constant 0 : index
    %c0_11 = arith.constant 0 : index
    %10 = vector.load %arg4[%c0_9, %c0_10, %c0_11] : memref<4x1x8xf32, #tpu.memory_space<vmem>>, vector<1x1x8xf32>
    %11 = vector.shape_cast %10 : vector<1x1x8xf32> to vector<1x8xf32>
    %12 = vector.broadcast %11 : vector<1x8xf32> to vector<16x8xf32>
    %13 = arith.addf %9, %12 : vector<16x8xf32>
    %c0_12 = arith.constant 0 : index
    %c0_13 = arith.constant 0 : index
    %c0_14 = arith.constant 0 : index
    %14 = vector.load %arg5[%c0_12, %c0_13, %c0_14] : memref<4x32x8xbf16, #tpu.memory_space<vmem>>, vector<1x32x8xbf16>
    %15 = vector.shape_cast %14 : vector<1x32x8xbf16> to vector<32x8xbf16>
    %cst_15 = arith.constant dense<0.000000e+00> : vector<16x8xf32>
    %16 = tpu.matmul %5, %15, %cst_15 {dimension_numbers = #tpu.dot_dimension_numbers<[1], [0], [0], [1], [0, 0, 1, 1], [], []>} : vector<16x32xbf16>, vector<32x8xbf16>, vector<16x8xf32> -> vector<16x8xf32>
    %c0_16 = arith.constant 0 : index
    %c0_17 = arith.constant 0 : index
    %c0_18 = arith.constant 0 : index
    %17 = vector.load %arg6[%c0_16, %c0_17, %c0_18] : memref<4x1x8xf32, #tpu.memory_space<vmem>>, vector<1x1x8xf32>
    %18 = vector.shape_cast %17 : vector<1x1x8xf32> to vector<1x8xf32>
    %19 = vector.broadcast %18 : vector<1x8xf32> to vector<16x8xf32>
    %20 = arith.addf %16, %19 : vector<16x8xf32>
    %c0_19 = arith.constant 0 : index
    %c0_20 = arith.constant 0 : index
    %c0_21 = arith.constant 0 : index
    %21 = vector.load %arg7[%c0_19, %c0_20, %c0_21] : memref<4x32x8xbf16, #tpu.memory_space<vmem>>, vector<1x32x8xbf16>
    %22 = vector.shape_cast %21 : vector<1x32x8xbf16> to vector<32x8xbf16>
    %cst_22 = arith.constant dense<0.000000e+00> : vector<16x8xf32>
    %23 = tpu.matmul %5, %22, %cst_22 {dimension_numbers = #tpu.dot_dimension_numbers<[1], [0], [0], [1], [0, 0, 1, 1], [], []>} : vector<16x32xbf16>, vector<32x8xbf16>, vector<16x8xf32> -> vector<16x8xf32>
    %c0_23 = arith.constant 0 : index
    %c0_24 = arith.constant 0 : index
    %c0_25 = arith.constant 0 : index
    %24 = vector.load %arg8[%c0_23, %c0_24, %c0_25] : memref<4x1x8xf32, #tpu.memory_space<vmem>>, vector<1x1x8xf32>
    %25 = vector.shape_cast %24 : vector<1x1x8xf32> to vector<1x8xf32>
    %26 = vector.broadcast %25 : vector<1x8xf32> to vector<16x8xf32>
    %27 = arith.addf %23, %26 : vector<16x8xf32>
    %28 = arith.truncf %13 : vector<16x8xf32> to vector<16x8xbf16>
    %29 = arith.truncf %20 : vector<16x8xf32> to vector<16x8xbf16>
    %cst_26 = arith.constant dense<0.000000e+00> : vector<16x16xf32>
    %30 = tpu.matmul %28, %29, %cst_26 {dimension_numbers = #tpu.dot_dimension_numbers<[1], [1], [0], [0], [0, 0, 1, 0], [], []>} : vector<16x8xbf16>, vector<16x8xbf16>, vector<16x16xf32> -> vector<16x16xf32>
    %cst_27 = arith.constant 0.353553385 : f32
    %31 = vector.broadcast %cst_27 : f32 to vector<16x16xf32>
    %32 = arith.mulf %30, %31 : vector<16x16xf32>
    %cst_28 = arith.constant dense<0xFF800000> : vector<16xf32>
    %33 = vector.multi_reduction <maximumf>, %32, %cst_28 [1] : vector<16x16xf32> to vector<16xf32>
    %34 = vector.shape_cast %33 : vector<16xf32> to vector<16x1xf32>
    %35 = vector.broadcast %34 : vector<16x1xf32> to vector<16x16xf32>
    %36 = arith.subf %32, %35 : vector<16x16xf32>
    %37 = math.exp %36 : vector<16x16xf32>
    %cst_29 = arith.constant dense<0.000000e+00> : vector<16xf32>
    %38 = vector.multi_reduction <add>, %37, %cst_29 [1] : vector<16x16xf32> to vector<16xf32>
    %39 = vector.shape_cast %38 : vector<16xf32> to vector<16x1xf32>
    %40 = tpu.reciprocal %39 {approx = true} : vector<16x1xf32> -> vector<16x1xf32>
    %41 = vector.broadcast %40 : vector<16x1xf32> to vector<16x16xf32>
    %42 = arith.mulf %37, %41 : vector<16x16xf32>
    %43 = arith.truncf %42 : vector<16x16xf32> to vector<16x16xbf16>
    %44 = arith.truncf %27 : vector<16x8xf32> to vector<16x8xbf16>
    %cst_30 = arith.constant dense<0.000000e+00> : vector<16x8xf32>
    %45 = tpu.matmul %43, %44, %cst_30 {dimension_numbers = #tpu.dot_dimension_numbers<[1], [0], [0], [1], [0, 0, 1, 1], [], []>} : vector<16x16xbf16>, vector<16x8xbf16>, vector<16x8xf32> -> vector<16x8xf32>
    %46 = arith.truncf %45 : vector<16x8xf32> to vector<16x8xbf16>
    %c0_31 = arith.constant 0 : index
    %c0_32 = arith.constant 0 : index
    %c0_33 = arith.constant 0 : index
    %47 = vector.load %arg9[%c0_31, %c0_32, %c0_33] : memref<4x8x32xbf16, #tpu.memory_space<vmem>>, vector<1x8x32xbf16>
    %48 = vector.shape_cast %47 : vector<1x8x32xbf16> to vector<8x32xbf16>
    %cst_34 = arith.constant dense<0.000000e+00> : vector<16x32xf32>
    %49 = tpu.matmul %46, %48, %cst_34 {dimension_numbers = #tpu.dot_dimension_numbers<[1], [0], [0], [1], [0, 0, 1, 1], [], []>} : vector<16x8xbf16>, vector<8x32xbf16>, vector<16x32xf32> -> vector<16x32xf32>
    %50 = arith.addf %6, %49 : vector<16x32xf32>
    %c1 = arith.constant 1 : index
    %c0_35 = arith.constant 0 : index
    %c0_36 = arith.constant 0 : index
    %51 = vector.load %arg3[%c1, %c0_35, %c0_36] : memref<4x32x8xbf16, #tpu.memory_space<vmem>>, vector<1x32x8xbf16>
    %52 = vector.shape_cast %51 : vector<1x32x8xbf16> to vector<32x8xbf16>
    %cst_37 = arith.constant dense<0.000000e+00> : vector<16x8xf32>
    %53 = tpu.matmul %4, %52, %cst_37 {dimension_numbers = #tpu.dot_dimension_numbers<[1], [0], [0], [1], [0, 0, 1, 1], [], []>} : vector<16x32xbf16>, vector<32x8xbf16>, vector<16x8xf32> -> vector<16x8xf32>
    %c1_38 = arith.constant 1 : index
    %c0_39 = arith.constant 0 : index
    %c0_40 = arith.constant 0 : index
    %54 = vector.load %arg4[%c1_38, %c0_39, %c0_40] : memref<4x1x8xf32, #tpu.memory_space<vmem>>, vector<1x1x8xf32>
    %55 = vector.shape_cast %54 : vector<1x1x8xf32> to vector<1x8xf32>
    %56 = vector.broadcast %55 : vector<1x8xf32> to vector<16x8xf32>
    %57 = arith.addf %53, %56 : vector<16x8xf32>
    %c1_41 = arith.constant 1 : index
    %c0_42 = arith.constant 0 : index
    %c0_43 = arith.constant 0 : index
    %58 = vector.load %arg5[%c1_41, %c0_42, %c0_43] : memref<4x32x8xbf16, #tpu.memory_space<vmem>>, vector<1x32x8xbf16>
    %59 = vector.shape_cast %58 : vector<1x32x8xbf16> to vector<32x8xbf16>
    %cst_44 = arith.constant dense<0.000000e+00> : vector<16x8xf32>
    %60 = tpu.matmul %5, %59, %cst_44 {dimension_numbers = #tpu.dot_dimension_numbers<[1], [0], [0], [1], [0, 0, 1, 1], [], []>} : vector<16x32xbf16>, vector<32x8xbf16>, vector<16x8xf32> -> vector<16x8xf32>
    %c1_45 = arith.constant 1 : index
    %c0_46 = arith.constant 0 : index
    %c0_47 = arith.constant 0 : index
    %61 = vector.load %arg6[%c1_45, %c0_46, %c0_47] : memref<4x1x8xf32, #tpu.memory_space<vmem>>, vector<1x1x8xf32>
    %62 = vector.shape_cast %61 : vector<1x1x8xf32> to vector<1x8xf32>
    %63 = vector.broadcast %62 : vector<1x8xf32> to vector<16x8xf32>
    %64 = arith.addf %60, %63 : vector<16x8xf32>
    %c1_48 = arith.constant 1 : index
    %c0_49 = arith.constant 0 : index
    %c0_50 = arith.constant 0 : index
    %65 = vector.load %arg7[%c1_48, %c0_49, %c0_50] : memref<4x32x8xbf16, #tpu.memory_space<vmem>>, vector<1x32x8xbf16>
    %66 = vector.shape_cast %65 : vector<1x32x8xbf16> to vector<32x8xbf16>
    %cst_51 = arith.constant dense<0.000000e+00> : vector<16x8xf32>
    %67 = tpu.matmul %5, %66, %cst_51 {dimension_numbers = #tpu.dot_dimension_numbers<[1], [0], [0], [1], [0, 0, 1, 1], [], []>} : vector<16x32xbf16>, vector<32x8xbf16>, vector<16x8xf32> -> vector<16x8xf32>
    %c1_52 = arith.constant 1 : index
    %c0_53 = arith.constant 0 : index
    %c0_54 = arith.constant 0 : index
    %68 = vector.load %arg8[%c1_52, %c0_53, %c0_54] : memref<4x1x8xf32, #tpu.memory_space<vmem>>, vector<1x1x8xf32>
    %69 = vector.shape_cast %68 : vector<1x1x8xf32> to vector<1x8xf32>
    %70 = vector.broadcast %69 : vector<1x8xf32> to vector<16x8xf32>
    %71 = arith.addf %67, %70 : vector<16x8xf32>
    %72 = arith.truncf %57 : vector<16x8xf32> to vector<16x8xbf16>
    %73 = arith.truncf %64 : vector<16x8xf32> to vector<16x8xbf16>
    %cst_55 = arith.constant dense<0.000000e+00> : vector<16x16xf32>
    %74 = tpu.matmul %72, %73, %cst_55 {dimension_numbers = #tpu.dot_dimension_numbers<[1], [1], [0], [0], [0, 0, 1, 0], [], []>} : vector<16x8xbf16>, vector<16x8xbf16>, vector<16x16xf32> -> vector<16x16xf32>
    %cst_56 = arith.constant 0.353553385 : f32
    %75 = vector.broadcast %cst_56 : f32 to vector<16x16xf32>
    %76 = arith.mulf %74, %75 : vector<16x16xf32>
    %cst_57 = arith.constant dense<0xFF800000> : vector<16xf32>
    %77 = vector.multi_reduction <maximumf>, %76, %cst_57 [1] : vector<16x16xf32> to vector<16xf32>
    %78 = vector.shape_cast %77 : vector<16xf32> to vector<16x1xf32>
    %79 = vector.broadcast %78 : vector<16x1xf32> to vector<16x16xf32>
    %80 = arith.subf %76, %79 : vector<16x16xf32>
    %81 = math.exp %80 : vector<16x16xf32>
    %cst_58 = arith.constant dense<0.000000e+00> : vector<16xf32>
    %82 = vector.multi_reduction <add>, %81, %cst_58 [1] : vector<16x16xf32> to vector<16xf32>
    %83 = vector.shape_cast %82 : vector<16xf32> to vector<16x1xf32>
    %84 = tpu.reciprocal %83 {approx = true} : vector<16x1xf32> -> vector<16x1xf32>
    %85 = vector.broadcast %84 : vector<16x1xf32> to vector<16x16xf32>
    %86 = arith.mulf %81, %85 : vector<16x16xf32>
    %87 = arith.truncf %86 : vector<16x16xf32> to vector<16x16xbf16>
    %88 = arith.truncf %71 : vector<16x8xf32> to vector<16x8xbf16>
    %cst_59 = arith.constant dense<0.000000e+00> : vector<16x8xf32>
    %89 = tpu.matmul %87, %88, %cst_59 {dimension_numbers = #tpu.dot_dimension_numbers<[1], [0], [0], [1], [0, 0, 1, 1], [], []>} : vector<16x16xbf16>, vector<16x8xbf16>, vector<16x8xf32> -> vector<16x8xf32>
    %90 = arith.truncf %89 : vector<16x8xf32> to vector<16x8xbf16>
    %c1_60 = arith.constant 1 : index
    %c0_61 = arith.constant 0 : index
    %c0_62 = arith.constant 0 : index
    %91 = vector.load %arg9[%c1_60, %c0_61, %c0_62] : memref<4x8x32xbf16, #tpu.memory_space<vmem>>, vector<1x8x32xbf16>
    %92 = vector.shape_cast %91 : vector<1x8x32xbf16> to vector<8x32xbf16>
    %cst_63 = arith.constant dense<0.000000e+00> : vector<16x32xf32>
    %93 = tpu.matmul %90, %92, %cst_63 {dimension_numbers = #tpu.dot_dimension_numbers<[1], [0], [0], [1], [0, 0, 1, 1], [], []>} : vector<16x8xbf16>, vector<8x32xbf16>, vector<16x32xf32> -> vector<16x32xf32>
    %94 = arith.addf %50, %93 : vector<16x32xf32>
    %c2 = arith.constant 2 : index
    %c0_64 = arith.constant 0 : index
    %c0_65 = arith.constant 0 : index
    %95 = vector.load %arg3[%c2, %c0_64, %c0_65] : memref<4x32x8xbf16, #tpu.memory_space<vmem>>, vector<1x32x8xbf16>
    %96 = vector.shape_cast %95 : vector<1x32x8xbf16> to vector<32x8xbf16>
    %cst_66 = arith.constant dense<0.000000e+00> : vector<16x8xf32>
    %97 = tpu.matmul %4, %96, %cst_66 {dimension_numbers = #tpu.dot_dimension_numbers<[1], [0], [0], [1], [0, 0, 1, 1], [], []>} : vector<16x32xbf16>, vector<32x8xbf16>, vector<16x8xf32> -> vector<16x8xf32>
    %c2_67 = arith.constant 2 : index
    %c0_68 = arith.constant 0 : index
    %c0_69 = arith.constant 0 : index
    %98 = vector.load %arg4[%c2_67, %c0_68, %c0_69] : memref<4x1x8xf32, #tpu.memory_space<vmem>>, vector<1x1x8xf32>
    %99 = vector.shape_cast %98 : vector<1x1x8xf32> to vector<1x8xf32>
    %100 = vector.broadcast %99 : vector<1x8xf32> to vector<16x8xf32>
    %101 = arith.addf %97, %100 : vector<16x8xf32>
    %c2_70 = arith.constant 2 : index
    %c0_71 = arith.constant 0 : index
    %c0_72 = arith.constant 0 : index
    %102 = vector.load %arg5[%c2_70, %c0_71, %c0_72] : memref<4x32x8xbf16, #tpu.memory_space<vmem>>, vector<1x32x8xbf16>
    %103 = vector.shape_cast %102 : vector<1x32x8xbf16> to vector<32x8xbf16>
    %cst_73 = arith.constant dense<0.000000e+00> : vector<16x8xf32>
    %104 = tpu.matmul %5, %103, %cst_73 {dimension_numbers = #tpu.dot_dimension_numbers<[1], [0], [0], [1], [0, 0, 1, 1], [], []>} : vector<16x32xbf16>, vector<32x8xbf16>, vector<16x8xf32> -> vector<16x8xf32>
    %c2_74 = arith.constant 2 : index
    %c0_75 = arith.constant 0 : index
    %c0_76 = arith.constant 0 : index
    %105 = vector.load %arg6[%c2_74, %c0_75, %c0_76] : memref<4x1x8xf32, #tpu.memory_space<vmem>>, vector<1x1x8xf32>
    %106 = vector.shape_cast %105 : vector<1x1x8xf32> to vector<1x8xf32>
    %107 = vector.broadcast %106 : vector<1x8xf32> to vector<16x8xf32>
    %108 = arith.addf %104, %107 : vector<16x8xf32>
    %c2_77 = arith.constant 2 : index
    %c0_78 = arith.constant 0 : index
    %c0_79 = arith.constant 0 : index
    %109 = vector.load %arg7[%c2_77, %c0_78, %c0_79] : memref<4x32x8xbf16, #tpu.memory_space<vmem>>, vector<1x32x8xbf16>
    %110 = vector.shape_cast %109 : vector<1x32x8xbf16> to vector<32x8xbf16>
    %cst_80 = arith.constant dense<0.000000e+00> : vector<16x8xf32>
    %111 = tpu.matmul %5, %110, %cst_80 {dimension_numbers = #tpu.dot_dimension_numbers<[1], [0], [0], [1], [0, 0, 1, 1], [], []>} : vector<16x32xbf16>, vector<32x8xbf16>, vector<16x8xf32> -> vector<16x8xf32>
    %c2_81 = arith.constant 2 : index
    %c0_82 = arith.constant 0 : index
    %c0_83 = arith.constant 0 : index
    %112 = vector.load %arg8[%c2_81, %c0_82, %c0_83] : memref<4x1x8xf32, #tpu.memory_space<vmem>>, vector<1x1x8xf32>
    %113 = vector.shape_cast %112 : vector<1x1x8xf32> to vector<1x8xf32>
    %114 = vector.broadcast %113 : vector<1x8xf32> to vector<16x8xf32>
    %115 = arith.addf %111, %114 : vector<16x8xf32>
    %116 = arith.truncf %101 : vector<16x8xf32> to vector<16x8xbf16>
    %117 = arith.truncf %108 : vector<16x8xf32> to vector<16x8xbf16>
    %cst_84 = arith.constant dense<0.000000e+00> : vector<16x16xf32>
    %118 = tpu.matmul %116, %117, %cst_84 {dimension_numbers = #tpu.dot_dimension_numbers<[1], [1], [0], [0], [0, 0, 1, 0], [], []>} : vector<16x8xbf16>, vector<16x8xbf16>, vector<16x16xf32> -> vector<16x16xf32>
    %cst_85 = arith.constant 0.353553385 : f32
    %119 = vector.broadcast %cst_85 : f32 to vector<16x16xf32>
    %120 = arith.mulf %118, %119 : vector<16x16xf32>
    %cst_86 = arith.constant dense<0xFF800000> : vector<16xf32>
    %121 = vector.multi_reduction <maximumf>, %120, %cst_86 [1] : vector<16x16xf32> to vector<16xf32>
    %122 = vector.shape_cast %121 : vector<16xf32> to vector<16x1xf32>
    %123 = vector.broadcast %122 : vector<16x1xf32> to vector<16x16xf32>
    %124 = arith.subf %120, %123 : vector<16x16xf32>
    %125 = math.exp %124 : vector<16x16xf32>
    %cst_87 = arith.constant dense<0.000000e+00> : vector<16xf32>
    %126 = vector.multi_reduction <add>, %125, %cst_87 [1] : vector<16x16xf32> to vector<16xf32>
    %127 = vector.shape_cast %126 : vector<16xf32> to vector<16x1xf32>
    %128 = tpu.reciprocal %127 {approx = true} : vector<16x1xf32> -> vector<16x1xf32>
    %129 = vector.broadcast %128 : vector<16x1xf32> to vector<16x16xf32>
    %130 = arith.mulf %125, %129 : vector<16x16xf32>
    %131 = arith.truncf %130 : vector<16x16xf32> to vector<16x16xbf16>
    %132 = arith.truncf %115 : vector<16x8xf32> to vector<16x8xbf16>
    %cst_88 = arith.constant dense<0.000000e+00> : vector<16x8xf32>
    %133 = tpu.matmul %131, %132, %cst_88 {dimension_numbers = #tpu.dot_dimension_numbers<[1], [0], [0], [1], [0, 0, 1, 1], [], []>} : vector<16x16xbf16>, vector<16x8xbf16>, vector<16x8xf32> -> vector<16x8xf32>
    %134 = arith.truncf %133 : vector<16x8xf32> to vector<16x8xbf16>
    %c2_89 = arith.constant 2 : index
    %c0_90 = arith.constant 0 : index
    %c0_91 = arith.constant 0 : index
    %135 = vector.load %arg9[%c2_89, %c0_90, %c0_91] : memref<4x8x32xbf16, #tpu.memory_space<vmem>>, vector<1x8x32xbf16>
    %136 = vector.shape_cast %135 : vector<1x8x32xbf16> to vector<8x32xbf16>
    %cst_92 = arith.constant dense<0.000000e+00> : vector<16x32xf32>
    %137 = tpu.matmul %134, %136, %cst_92 {dimension_numbers = #tpu.dot_dimension_numbers<[1], [0], [0], [1], [0, 0, 1, 1], [], []>} : vector<16x8xbf16>, vector<8x32xbf16>, vector<16x32xf32> -> vector<16x32xf32>
    %138 = arith.addf %94, %137 : vector<16x32xf32>
    %c3 = arith.constant 3 : index
    %c0_93 = arith.constant 0 : index
    %c0_94 = arith.constant 0 : index
    %139 = vector.load %arg3[%c3, %c0_93, %c0_94] : memref<4x32x8xbf16, #tpu.memory_space<vmem>>, vector<1x32x8xbf16>
    %140 = vector.shape_cast %139 : vector<1x32x8xbf16> to vector<32x8xbf16>
    %cst_95 = arith.constant dense<0.000000e+00> : vector<16x8xf32>
    %141 = tpu.matmul %4, %140, %cst_95 {dimension_numbers = #tpu.dot_dimension_numbers<[1], [0], [0], [1], [0, 0, 1, 1], [], []>} : vector<16x32xbf16>, vector<32x8xbf16>, vector<16x8xf32> -> vector<16x8xf32>
    %c3_96 = arith.constant 3 : index
    %c0_97 = arith.constant 0 : index
    %c0_98 = arith.constant 0 : index
    %142 = vector.load %arg4[%c3_96, %c0_97, %c0_98] : memref<4x1x8xf32, #tpu.memory_space<vmem>>, vector<1x1x8xf32>
    %143 = vector.shape_cast %142 : vector<1x1x8xf32> to vector<1x8xf32>
    %144 = vector.broadcast %143 : vector<1x8xf32> to vector<16x8xf32>
    %145 = arith.addf %141, %144 : vector<16x8xf32>
    %c3_99 = arith.constant 3 : index
    %c0_100 = arith.constant 0 : index
    %c0_101 = arith.constant 0 : index
    %146 = vector.load %arg5[%c3_99, %c0_100, %c0_101] : memref<4x32x8xbf16, #tpu.memory_space<vmem>>, vector<1x32x8xbf16>
    %147 = vector.shape_cast %146 : vector<1x32x8xbf16> to vector<32x8xbf16>
    %cst_102 = arith.constant dense<0.000000e+00> : vector<16x8xf32>
    %148 = tpu.matmul %5, %147, %cst_102 {dimension_numbers = #tpu.dot_dimension_numbers<[1], [0], [0], [1], [0, 0, 1, 1], [], []>} : vector<16x32xbf16>, vector<32x8xbf16>, vector<16x8xf32> -> vector<16x8xf32>
    %c3_103 = arith.constant 3 : index
    %c0_104 = arith.constant 0 : index
    %c0_105 = arith.constant 0 : index
    %149 = vector.load %arg6[%c3_103, %c0_104, %c0_105] : memref<4x1x8xf32, #tpu.memory_space<vmem>>, vector<1x1x8xf32>
    %150 = vector.shape_cast %149 : vector<1x1x8xf32> to vector<1x8xf32>
    %151 = vector.broadcast %150 : vector<1x8xf32> to vector<16x8xf32>
    %152 = arith.addf %148, %151 : vector<16x8xf32>
    %c3_106 = arith.constant 3 : index
    %c0_107 = arith.constant 0 : index
    %c0_108 = arith.constant 0 : index
    %153 = vector.load %arg7[%c3_106, %c0_107, %c0_108] : memref<4x32x8xbf16, #tpu.memory_space<vmem>>, vector<1x32x8xbf16>
    %154 = vector.shape_cast %153 : vector<1x32x8xbf16> to vector<32x8xbf16>
    %cst_109 = arith.constant dense<0.000000e+00> : vector<16x8xf32>
    %155 = tpu.matmul %5, %154, %cst_109 {dimension_numbers = #tpu.dot_dimension_numbers<[1], [0], [0], [1], [0, 0, 1, 1], [], []>} : vector<16x32xbf16>, vector<32x8xbf16>, vector<16x8xf32> -> vector<16x8xf32>
    %c3_110 = arith.constant 3 : index
    %c0_111 = arith.constant 0 : index
    %c0_112 = arith.constant 0 : index
    %156 = vector.load %arg8[%c3_110, %c0_111, %c0_112] : memref<4x1x8xf32, #tpu.memory_space<vmem>>, vector<1x1x8xf32>
    %157 = vector.shape_cast %156 : vector<1x1x8xf32> to vector<1x8xf32>
    %158 = vector.broadcast %157 : vector<1x8xf32> to vector<16x8xf32>
    %159 = arith.addf %155, %158 : vector<16x8xf32>
    %160 = arith.truncf %145 : vector<16x8xf32> to vector<16x8xbf16>
    %161 = arith.truncf %152 : vector<16x8xf32> to vector<16x8xbf16>
    %cst_113 = arith.constant dense<0.000000e+00> : vector<16x16xf32>
    %162 = tpu.matmul %160, %161, %cst_113 {dimension_numbers = #tpu.dot_dimension_numbers<[1], [1], [0], [0], [0, 0, 1, 0], [], []>} : vector<16x8xbf16>, vector<16x8xbf16>, vector<16x16xf32> -> vector<16x16xf32>
    %cst_114 = arith.constant 0.353553385 : f32
    %163 = vector.broadcast %cst_114 : f32 to vector<16x16xf32>
    %164 = arith.mulf %162, %163 : vector<16x16xf32>
    %cst_115 = arith.constant dense<0xFF800000> : vector<16xf32>
    %165 = vector.multi_reduction <maximumf>, %164, %cst_115 [1] : vector<16x16xf32> to vector<16xf32>
    %166 = vector.shape_cast %165 : vector<16xf32> to vector<16x1xf32>
    %167 = vector.broadcast %166 : vector<16x1xf32> to vector<16x16xf32>
    %168 = arith.subf %164, %167 : vector<16x16xf32>
    %169 = math.exp %168 : vector<16x16xf32>
    %cst_116 = arith.constant dense<0.000000e+00> : vector<16xf32>
    %170 = vector.multi_reduction <add>, %169, %cst_116 [1] : vector<16x16xf32> to vector<16xf32>
    %171 = vector.shape_cast %170 : vector<16xf32> to vector<16x1xf32>
    %172 = tpu.reciprocal %171 {approx = true} : vector<16x1xf32> -> vector<16x1xf32>
    %173 = vector.broadcast %172 : vector<16x1xf32> to vector<16x16xf32>
    %174 = arith.mulf %169, %173 : vector<16x16xf32>
    %175 = arith.truncf %174 : vector<16x16xf32> to vector<16x16xbf16>
    %176 = arith.truncf %159 : vector<16x8xf32> to vector<16x8xbf16>
    %cst_117 = arith.constant dense<0.000000e+00> : vector<16x8xf32>
    %177 = tpu.matmul %175, %176, %cst_117 {dimension_numbers = #tpu.dot_dimension_numbers<[1], [0], [0], [1], [0, 0, 1, 1], [], []>} : vector<16x16xbf16>, vector<16x8xbf16>, vector<16x8xf32> -> vector<16x8xf32>
    %178 = arith.truncf %177 : vector<16x8xf32> to vector<16x8xbf16>
    %c3_118 = arith.constant 3 : index
    %c0_119 = arith.constant 0 : index
    %c0_120 = arith.constant 0 : index
    %179 = vector.load %arg9[%c3_118, %c0_119, %c0_120] : memref<4x8x32xbf16, #tpu.memory_space<vmem>>, vector<1x8x32xbf16>
    %180 = vector.shape_cast %179 : vector<1x8x32xbf16> to vector<8x32xbf16>
    %cst_121 = arith.constant dense<0.000000e+00> : vector<16x32xf32>
    %181 = tpu.matmul %178, %180, %cst_121 {dimension_numbers = #tpu.dot_dimension_numbers<[1], [0], [0], [1], [0, 0, 1, 1], [], []>} : vector<16x8xbf16>, vector<8x32xbf16>, vector<16x32xf32> -> vector<16x32xf32>
    %182 = arith.addf %138, %181 : vector<16x32xf32>
    %c0_122 = arith.constant 0 : index
    %c0_123 = arith.constant 0 : index
    %183 = vector.load %arg10[%c0_122, %c0_123] : memref<1x32xf32, #tpu.memory_space<vmem>>, vector<1x32xf32>
    %184 = vector.broadcast %183 : vector<1x32xf32> to vector<16x32xf32>
    %185 = arith.addf %182, %184 : vector<16x32xf32>
    %c0_124 = arith.constant 0 : index
    %c0_125 = arith.constant 0 : index
    %186 = vector.load %arg11[%c0_124, %c0_125] : memref<32x64xbf16, #tpu.memory_space<vmem>>, vector<32x64xbf16>
    %cst_126 = arith.constant dense<0.000000e+00> : vector<16x64xf32>
    %187 = tpu.matmul %4, %186, %cst_126 {dimension_numbers = #tpu.dot_dimension_numbers<[1], [0], [0], [1], [0, 0, 1, 1], [], []>} : vector<16x32xbf16>, vector<32x64xbf16>, vector<16x64xf32> -> vector<16x64xf32>
    %188 = arith.truncf %185 : vector<16x32xf32> to vector<16x32xbf16>
    %c0_127 = arith.constant 0 : index
    %c0_128 = arith.constant 0 : index
    %189 = vector.load %arg12[%c0_127, %c0_128] : memref<32x64xbf16, #tpu.memory_space<vmem>>, vector<32x64xbf16>
    %cst_129 = arith.constant dense<0.000000e+00> : vector<16x64xf32>
    %190 = tpu.matmul %188, %189, %cst_129 {dimension_numbers = #tpu.dot_dimension_numbers<[1], [0], [0], [1], [0, 0, 1, 1], [], []>} : vector<16x32xbf16>, vector<32x64xbf16>, vector<16x64xf32> -> vector<16x64xf32>
    %191 = arith.addf %187, %190 : vector<16x64xf32>
    %c0_130 = arith.constant 0 : index
    %c0_131 = arith.constant 0 : index
    %192 = vector.load %arg13[%c0_130, %c0_131] : memref<1x64xf32, #tpu.memory_space<vmem>>, vector<1x64xf32>
    %193 = vector.broadcast %192 : vector<1x64xf32> to vector<16x64xf32>
    %194 = arith.addf %191, %193 : vector<16x64xf32>
    %cst_132 = arith.constant dense<0.000000e+00> : vector<64xf32>
    %195 = vector.multi_reduction <add>, %194, %cst_132 [0] : vector<16x64xf32> to vector<64xf32>
    %196 = vector.shape_cast %195 : vector<64xf32> to vector<1x64xf32>
    %cst_133 = arith.constant 6.250000e-02 : f32
    %197 = vector.broadcast %cst_133 : f32 to vector<1x64xf32>
    %198 = arith.mulf %196, %197 : vector<1x64xf32>
    %199 = arith.mulf %194, %194 : vector<16x64xf32>
    %cst_134 = arith.constant dense<0.000000e+00> : vector<64xf32>
    %200 = vector.multi_reduction <add>, %199, %cst_134 [0] : vector<16x64xf32> to vector<64xf32>
    %201 = vector.shape_cast %200 : vector<64xf32> to vector<1x64xf32>
    %cst_135 = arith.constant 6.250000e-02 : f32
    %202 = vector.broadcast %cst_135 : f32 to vector<1x64xf32>
    %203 = arith.mulf %201, %202 : vector<1x64xf32>
    %204 = arith.mulf %198, %198 : vector<1x64xf32>
    %205 = arith.subf %203, %204 : vector<1x64xf32>
    %cst_136 = arith.constant 0.000000e+00 : f32
    %206 = vector.broadcast %cst_136 : f32 to vector<1x64xf32>
    %207 = arith.maximumf %205, %206 : vector<1x64xf32>
    %208 = vector.broadcast %198 : vector<1x64xf32> to vector<16x64xf32>
    %209 = arith.subf %194, %208 : vector<16x64xf32>
    %cst_137 = arith.constant 9.99999974E-6 : f32
    %210 = vector.broadcast %cst_137 : f32 to vector<1x64xf32>
    %211 = arith.addf %207, %210 : vector<1x64xf32>
    %212 = math.rsqrt %211 : vector<1x64xf32>
    %213 = vector.broadcast %212 : vector<1x64xf32> to vector<16x64xf32>
    %214 = arith.mulf %209, %213 : vector<16x64xf32>
    %cst_138 = arith.constant 0.000000e+00 : f32
    %215 = vector.broadcast %cst_138 : f32 to vector<16x64xf32>
    %216 = arith.maximumf %214, %215 : vector<16x64xf32>
    %217 = arith.truncf %216 : vector<16x64xf32> to vector<16x64xbf16>
    %c0_139 = arith.constant 0 : index
    %c0_140 = arith.constant 0 : index
    %218 = vector.load %arg14[%c0_139, %c0_140] : memref<64x32xbf16, #tpu.memory_space<vmem>>, vector<64x32xbf16>
    %cst_141 = arith.constant dense<0.000000e+00> : vector<16x32xf32>
    %219 = tpu.matmul %217, %218, %cst_141 {dimension_numbers = #tpu.dot_dimension_numbers<[1], [0], [0], [1], [0, 0, 1, 1], [], []>} : vector<16x64xbf16>, vector<64x32xbf16>, vector<16x32xf32> -> vector<16x32xf32>
    %c0_142 = arith.constant 0 : index
    %c0_143 = arith.constant 0 : index
    %220 = vector.load %arg15[%c0_142, %c0_143] : memref<1x32xf32, #tpu.memory_space<vmem>>, vector<1x32xf32>
    %221 = vector.broadcast %220 : vector<1x32xf32> to vector<16x32xf32>
    %222 = arith.addf %219, %221 : vector<16x32xf32>
    %223 = arith.addf %1, %222 : vector<16x32xf32>
    %c0_144 = arith.constant 0 : index
    %c0_145 = arith.constant 0 : index
    %c0_146 = arith.constant 0 : index
    %224 = vector.load %arg16[%c0_144, %c0_145, %c0_146] : memref<1x16x32xf32, #tpu.memory_space<vmem>>, vector<1x16x32xf32>
    %225 = vector.shape_cast %224 : vector<1x16x32xf32> to vector<16x32xf32>
    %226 = vector.shape_cast %223 : vector<16x32xf32> to vector<1x16x32xf32>
    tpu.vector_store %arg16[%c0_144, %c0_145, %c0_146], %226 {strides = array<i32>} : memref<1x16x32xf32, #tpu.memory_space<vmem>>, vector<1x16x32xf32>,
    return
  }
  func.func @transform_0(%arg0: i32) -> (i32, i32, i32) {
    %c0_i32 = arith.constant 0 : i32
    %c0_i32_0 = arith.constant 0 : i32
    %c0_i32_1 = arith.constant 0 : i32
    return %arg0, %c0_i32, %c0_i32_0 : i32, i32, i32
  }
  func.func @transform_1(%arg0: i32) -> (i32, i32, i32) {
    %c0_i32 = arith.constant 0 : i32
    %c0_i32_0 = arith.constant 0 : i32
    %c0_i32_1 = arith.constant 0 : i32
    return %arg0, %c0_i32, %c0_i32_0 : i32, i32, i32
  }
  func.func @transform_2(%arg0: i32) -> (i32, i32, i32) {
    %c0_i32 = arith.constant 0 : i32
    %c0_i32_0 = arith.constant 0 : i32
    %c0_i32_1 = arith.constant 0 : i32
    %c0_i32_2 = arith.constant 0 : i32
    return %c0_i32, %c0_i32_0, %c0_i32_1 : i32, i32, i32
  }
  func.func @transform_3(%arg0: i32) -> (i32, i32, i32) {
    %c0_i32 = arith.constant 0 : i32
    %c0_i32_0 = arith.constant 0 : i32
    %c0_i32_1 = arith.constant 0 : i32
    %c0_i32_2 = arith.constant 0 : i32
    return %c0_i32, %c0_i32_0, %c0_i32_1 : i32, i32, i32
  }
  func.func @transform_4(%arg0: i32) -> (i32, i32, i32) {
    %c0_i32 = arith.constant 0 : i32
    %c0_i32_0 = arith.constant 0 : i32
    %c0_i32_1 = arith.constant 0 : i32
    %c0_i32_2 = arith.constant 0 : i32
    return %c0_i32, %c0_i32_0, %c0_i32_1 : i32, i32, i32
  }
  func.func @transform_5(%arg0: i32) -> (i32, i32, i32) {
    %c0_i32 = arith.constant 0 : i32
    %c0_i32_0 = arith.constant 0 : i32
    %c0_i32_1 = arith.constant 0 : i32
    %c0_i32_2 = arith.constant 0 : i32
    return %c0_i32, %c0_i32_0, %c0_i32_1 : i32, i32, i32
  }
  func.func @transform_6(%arg0: i32) -> (i32, i32, i32) {
    %c0_i32 = arith.constant 0 : i32
    %c0_i32_0 = arith.constant 0 : i32
    %c0_i32_1 = arith.constant 0 : i32
    %c0_i32_2 = arith.constant 0 : i32
    return %c0_i32, %c0_i32_0, %c0_i32_1 : i32, i32, i32
  }
  func.func @transform_7(%arg0: i32) -> (i32, i32, i32) {
    %c0_i32 = arith.constant 0 : i32
    %c0_i32_0 = arith.constant 0 : i32
    %c0_i32_1 = arith.constant 0 : i32
    %c0_i32_2 = arith.constant 0 : i32
    return %c0_i32, %c0_i32_0, %c0_i32_1 : i32, i32, i32
  }
  func.func @transform_8(%arg0: i32) -> (i32, i32, i32) {
    %c0_i32 = arith.constant 0 : i32
    %c0_i32_0 = arith.constant 0 : i32
    %c0_i32_1 = arith.constant 0 : i32
    %c0_i32_2 = arith.constant 0 : i32
    return %c0_i32, %c0_i32_0, %c0_i32_1 : i32, i32, i32
  }
  func.func @transform_9(%arg0: i32) -> (i32, i32) {
    %c0_i32 = arith.constant 0 : i32
    %c0_i32_0 = arith.constant 0 : i32
    %c0_i32_1 = arith.constant 0 : i32
    return %c0_i32, %c0_i32_0 : i32, i32
  }
  func.func @transform_10(%arg0: i32) -> (i32, i32) {
    %c0_i32 = arith.constant 0 : i32
    %c0_i32_0 = arith.constant 0 : i32
    %c0_i32_1 = arith.constant 0 : i32
    return %c0_i32, %c0_i32_0 : i32, i32
  }
  func.func @transform_11(%arg0: i32) -> (i32, i32) {
    %c0_i32 = arith.constant 0 : i32
    %c0_i32_0 = arith.constant 0 : i32
    %c0_i32_1 = arith.constant 0 : i32
    return %c0_i32, %c0_i32_0 : i32, i32
  }
  func.func @transform_12(%arg0: i32) -> (i32, i32) {
    %c0_i32 = arith.constant 0 : i32
    %c0_i32_0 = arith.constant 0 : i32
    %c0_i32_1 = arith.constant 0 : i32
    return %c0_i32, %c0_i32_0 : i32, i32
  }
  func.func @transform_13(%arg0: i32) -> (i32, i32) {
    %c0_i32 = arith.constant 0 : i32
    %c0_i32_0 = arith.constant 0 : i32
    %c0_i32_1 = arith.constant 0 : i32
    return %c0_i32, %c0_i32_0 : i32, i32
  }
  func.func @transform_14(%arg0: i32) -> (i32, i32) {
    %c0_i32 = arith.constant 0 : i32
    %c0_i32_0 = arith.constant 0 : i32
    %c0_i32_1 = arith.constant 0 : i32
    return %c0_i32, %c0_i32_0 : i32, i32
  }
  func.func @transform_15(%arg0: i32) -> (i32, i32, i32) {
    %c0_i32 = arith.constant 0 : i32
    %c0_i32_0 = arith.constant 0 : i32
    %c0_i32_1 = arith.constant 0 : i32
    return %arg0, %c0_i32, %c0_i32_0 : i32, i32, i32
  }
}

module attributes {stable_mosaic.version = 11 : i64} {
  func.func @kernel(%arg0: i32, %arg1: memref<1x16x32xf32, #tpu.memory_space<vmem>>, %arg2: memref<1x16x32xf32, #tpu.memory_space<vmem>>, %arg3: memref<4x32x8xbf16, #tpu.memory_space<vmem>>, %arg4: memref<4x1x8xf32, #tpu.memory_space<vmem>>, %arg5: memref<4x32x8xbf16, #tpu.memory_space<vmem>>, %arg6: memref<4x1x8xf32, #tpu.memory_space<vmem>>, %arg7: memref<4x32x8xbf16, #tpu.memory_space<vmem>>, %arg8: memref<4x1x8xf32, #tpu.memory_space<vmem>>, %arg9: memref<4x8x32xbf16, #tpu.memory_space<vmem>>, %arg10: memref<1x32xf32, #tpu.memory_space<vmem>>, %arg11: memref<32x64xbf16, #tpu.memory_space<vmem>>, %arg12: memref<32x64xbf16, #tpu.memory_space<vmem>>, %arg13: memref<1x64xf32, #tpu.memory_space<vmem>>, %arg14: memref<64x32xbf16, #tpu.memory_space<vmem>>, %arg15: memref<1x32xf32, #tpu.memory_space<vmem>>, %arg16: memref<1x16x32xf32, #tpu.memory_space<vmem>>) attributes {dimension_semantics = [#tpu.dimension_semantics<parallel>], iteration_bounds = array<i64: 2>, scalar_prefetch = 0 : i64, scratch_operands = 0 : i64, tpu.core_type = #tpu.core_type<tc>, window_params = [{transform_indices = @transform_0, window_bounds = array<i64: 1, 16, 32>}, {transform_indices = @transform_1, window_bounds = array<i64: 1, 16, 32>}, {pipeline_mode = #tpu.pipeline_mode<synchronous>, transform_indices = @transform_2, window_bounds = array<i64: 4, 32, 8>}, {pipeline_mode = #tpu.pipeline_mode<synchronous>, transform_indices = @transform_3, window_bounds = array<i64: 4, 1, 8>}, {pipeline_mode = #tpu.pipeline_mode<synchronous>, transform_indices = @transform_4, window_bounds = array<i64: 4, 32, 8>}, {pipeline_mode = #tpu.pipeline_mode<synchronous>, transform_indices = @transform_5, window_bounds = array<i64: 4, 1, 8>}, {pipeline_mode = #tpu.pipeline_mode<synchronous>, transform_indices = @transform_6, window_bounds = array<i64: 4, 32, 8>}, {pipeline_mode = #tpu.pipeline_mode<synchronous>, transform_indices = @transform_7, window_bounds = array<i64: 4, 1, 8>}, {pipeline_mode = #tpu.pipeline_mode<synchronous>, transform_indices = @transform_8, window_bounds = array<i64: 4, 8, 32>}, {pipeline_mode = #tpu.pipeline_mode<synchronous>, transform_indices = @transform_9, window_bounds = array<i64: 1, 32>}, {pipeline_mode = #tpu.pipeline_mode<synchronous>, transform_indices = @transform_10, window_bounds = array<i64: 32, 64>}, {pipeline_mode = #tpu.pipeline_mode<synchronous>, transform_indices = @transform_11, window_bounds = array<i64: 32, 64>}, {pipeline_mode = #tpu.pipeline_mode<synchronous>, transform_indices = @transform_12, window_bounds = array<i64: 1, 64>}, {pipeline_mode = #tpu.pipeline_mode<synchronous>, transform_indices = @transform_13, window_bounds = array<i64: 64, 32>}, {pipeline_mode = #tpu.pipeline_mode<synchronous>, transform_indices = @transform_14, window_bounds = array<i64: 1, 32>}, {transform_indices = @transform_15, window_bounds = array<i64: 1, 16, 32>}]} {
    %c0 = arith.constant 0 : index
    %c0_0 = arith.constant 0 : index
    %c0_1 = arith.constant 0 : index
    %0 = vector.load %arg1[%c0, %c0_0, %c0_1] : memref<1x16x32xf32, #tpu.memory_space<vmem>>, vector<1x16x32xf32>
    %1 = vector.shape_cast %0 : vector<1x16x32xf32> to vector<16x32xf32>
    %c0_2 = arith.constant 0 : index
    %c0_3 = arith.constant 0 : index
    %c0_4 = arith.constant 0 : index
    %2 = vector.load %arg2[%c0_2, %c0_3, %c0_4] : memref<1x16x32xf32, #tpu.memory_space<vmem>>, vector<1x16x32xf32>
    %3 = vector.shape_cast %2 : vector<1x16x32xf32> to vector<16x32xf32>
    %4 = arith.truncf %1 : vector<16x32xf32> to vector<16x32xbf16>
    %5 = arith.truncf %3 : vector<16x32xf32> to vector<16x32xbf16>
    %cst = arith.constant 0.000000e+00 : f32
    %6 = vector.broadcast %cst : f32 to vector<16x32xf32>
    %c0_5 = arith.constant 0 : index
    %c0_6 = arith.constant 0 : index
    %c0_7 = arith.constant 0 : index
    %7 = vector.load %arg3[%c0_5, %c0_6, %c0_7] : memref<4x32x8xbf16, #tpu.memory_space<vmem>>, vector<1x32x8xbf16>
    %8 = vector.shape_cast %7 : vector<1x32x8xbf16> to vector<32x8xbf16>
    %cst_8 = arith.constant dense<0.000000e+00> : vector<16x8xf32>
    %9 = tpu.matmul %4, %8, %cst_8 {dimension_numbers = #tpu.dot_dimension_numbers<[1], [0], [0], [1], [0, 0, 1, 1], [], []>} : vector<16x32xbf16>, vector<32x8xbf16>, vector<16x8xf32> -> vector<16x8xf32>
    %c0_9 = arith.constant 0 : index
    %c0_10 = arith.constant 0 : index
    %c0_11 = arith.constant 0 : index
    %10 = vector.load %arg4[%c0_9, %c0_10, %c0_11] : memref<4x1x8xf32, #tpu.memory_space<vmem>>, vector<1x1x8xf32>
    %11 = vector.shape_cast %10 : vector<1x1x8xf32> to vector<1x8xf32>
    %12 = vector.broadcast %11 : vector<1x8xf32> to vector<16x8xf32>
    %13 = arith.addf %9, %12 : vector<16x8xf32>
    %c0_12 = arith.constant 0 : index
    %c0_13 = arith.constant 0 : index
    %c0_14 = arith.constant 0 : index
    %14 = vector.load %arg5[%c0_12, %c0_13, %c0_14] : memref<4x32x8xbf16, #tpu.memory_space<vmem>>, vector<1x32x8xbf16>
    %15 = vector.shape_cast %14 : vector<1x32x8xbf16> to vector<32x8xbf16>
    %cst_15 = arith.constant dense<0.000000e+00> : vector<16x8xf32>
    %16 = tpu.matmul %5, %15, %cst_15 {dimension_numbers = #tpu.dot_dimension_numbers<[1], [0], [0], [1], [0, 0, 1, 1], [], []>} : vector<16x32xbf16>, vector<32x8xbf16>, vector<16x8xf32> -> vector<16x8xf32>
    %c0_16 = arith.constant 0 : index
    %c0_17 = arith.constant 0 : index
    %c0_18 = arith.constant 0 : index
    %17 = vector.load %arg6[%c0_16, %c0_17, %c0_18] : memref<4x1x8xf32, #tpu.memory_space<vmem>>, vector<1x1x8xf32>
    %18 = vector.shape_cast %17 : vector<1x1x8xf32> to vector<1x8xf32>
    %19 = vector.broadcast %18 : vector<1x8xf32> to vector<16x8xf32>
    %20 = arith.addf %16, %19 : vector<16x8xf32>
    %c0_19 = arith.constant 0 : index
    %c0_20 = arith.constant 0 : index
    %c0_21 = arith.constant 0 : index
    %21 = vector.load %arg7[%c0_19, %c0_20, %c0_21] : memref<4x32x8xbf16, #tpu.memory_space<vmem>>, vector<1x32x8xbf16>
    %22 = vector.shape_cast %21 : vector<1x32x8xbf16> to vector<32x8xbf16>
    %cst_22 = arith.constant dense<0.000000e+00> : vector<16x8xf32>
    %23 = tpu.matmul %5, %22, %cst_22 {dimension_numbers = #tpu.dot_dimension_numbers<[1], [0], [0], [1], [0, 0, 1, 1], [], []>} : vector<16x32xbf16>, vector<32x8xbf16>, vector<16x8xf32> -> vector<16x8xf32>
    %c0_23 = arith.constant 0 : index
    %c0_24 = arith.constant 0 : index
    %c0_25 = arith.constant 0 : index
    %24 = vector.load %arg8[%c0_23, %c0_24, %c0_25] : memref<4x1x8xf32, #tpu.memory_space<vmem>>, vector<1x1x8xf32>
    %25 = vector.shape_cast %24 : vector<1x1x8xf32> to vector<1x8xf32>
    %26 = vector.broadcast %25 : vector<1x8xf32> to vector<16x8xf32>
    %27 = arith.addf %23, %26 : vector<16x8xf32>
    %28 = arith.truncf %13 : vector<16x8xf32> to vector<16x8xbf16>
    %29 = arith.truncf %20 : vector<16x8xf32> to vector<16x8xbf16>
    %cst_26 = arith.constant dense<0.000000e+00> : vector<16x16xf32>
    %30 = tpu.matmul %28, %29, %cst_26 {dimension_numbers = #tpu.dot_dimension_numbers<[1], [1], [0], [0], [0, 0, 1, 0], [], []>} : vector<16x8xbf16>, vector<16x8xbf16>, vector<16x16xf32> -> vector<16x16xf32>
    %cst_27 = arith.constant 0.353553385 : f32
    %31 = vector.broadcast %cst_27 : f32 to vector<16x16xf32>
    %32 = arith.mulf %30, %31 : vector<16x16xf32>
    %cst_28 = arith.constant dense<0xFF800000> : vector<16xf32>
    %33 = vector.multi_reduction <maximumf>, %32, %cst_28 [1] : vector<16x16xf32> to vector<16xf32>
    %34 = vector.shape_cast %33 : vector<16xf32> to vector<16x1xf32>
    %35 = vector.broadcast %34 : vector<16x1xf32> to vector<16x16xf32>
    %36 = arith.subf %32, %35 : vector<16x16xf32>
    %37 = math.exp %36 : vector<16x16xf32>
    %cst_29 = arith.constant dense<0.000000e+00> : vector<16xf32>
    %38 = vector.multi_reduction <add>, %37, %cst_29 [1] : vector<16x16xf32> to vector<16xf32>
    %39 = vector.shape_cast %38 : vector<16xf32> to vector<16x1xf32>
    %40 = tpu.reciprocal %39 {approx = true} : vector<16x1xf32> -> vector<16x1xf32>
    %41 = vector.broadcast %40 : vector<16x1xf32> to vector<16x16xf32>
    %42 = arith.mulf %37, %41 : vector<16x16xf32>
    %43 = arith.truncf %42 : vector<16x16xf32> to vector<16x16xbf16>
    %44 = arith.truncf %27 : vector<16x8xf32> to vector<16x8xbf16>
    %cst_30 = arith.constant dense<0.000000e+00> : vector<16x8xf32>
    %45 = tpu.matmul %43, %44, %cst_30 {dimension_numbers = #tpu.dot_dimension_numbers<[1], [0], [0], [1], [0, 0, 1, 1], [], []>} : vector<16x16xbf16>, vector<16x8xbf16>, vector<16x8xf32> -> vector<16x8xf32>
    %46 = arith.truncf %45 : vector<16x8xf32> to vector<16x8xbf16>
    %c0_31 = arith.constant 0 : index
    %c0_32 = arith.constant 0 : index
    %c0_33 = arith.constant 0 : index
    %47 = vector.load %arg9[%c0_31, %c0_32, %c0_33] : memref<4x8x32xbf16, #tpu.memory_space<vmem>>, vector<1x8x32xbf16>
    %48 = vector.shape_cast %47 : vector<1x8x32xbf16> to vector<8x32xbf16>
    %cst_34 = arith.constant dense<0.000000e+00> : vector<16x32xf32>
    %49 = tpu.matmul %46, %48, %cst_34 {dimension_numbers = #tpu.dot_dimension_numbers<[1], [0], [0], [1], [0, 0, 1, 1], [], []>} : vector<16x8xbf16>, vector<8x32xbf16>, vector<16x32xf32> -> vector<16x32xf32>
    %50 = arith.addf %6, %49 : vector<16x32xf32>
    %c1 = arith.constant 1 : index
    %c0_35 = arith.constant 0 : index
    %c0_36 = arith.constant 0 : index
    %51 = vector.load %arg3[%c1, %c0_35, %c0_36] : memref<4x32x8xbf16, #tpu.memory_space<vmem>>, vector<1x32x8xbf16>
    %52 = vector.shape_cast %51 : vector<1x32x8xbf16> to vector<32x8xbf16>
    %cst_37 = arith.constant dense<0.000000e+00> : vector<16x8xf32>
    %53 = tpu.matmul %4, %52, %cst_37 {dimension_numbers = #tpu.dot_dimension_numbers<[1], [0], [0], [1], [0, 0, 1, 1], [], []>} : vector<16x32xbf16>, vector<32x8xbf16>, vector<16x8xf32> -> vector<16x8xf32>
    %c1_38 = arith.constant 1 : index
    %c0_39 = arith.constant 0 : index
    %c0_40 = arith.constant 0 : index
    %54 = vector.load %arg4[%c1_38, %c0_39, %c0_40] : memref<4x1x8xf32, #tpu.memory_space<vmem>>, vector<1x1x8xf32>
    %55 = vector.shape_cast %54 : vector<1x1x8xf32> to vector<1x8xf32>
    %56 = vector.broadcast %55 : vector<1x8xf32> to vector<16x8xf32>
    %57 = arith.addf %53, %56 : vector<16x8xf32>
    %c1_41 = arith.constant 1 : index
    %c0_42 = arith.constant 0 : index
    %c0_43 = arith.constant 0 : index
    %58 = vector.load %arg5[%c1_41, %c0_42, %c0_43] : memref<4x32x8xbf16, #tpu.memory_space<vmem>>, vector<1x32x8xbf16>
    %59 = vector.shape_cast %58 : vector<1x32x8xbf16> to vector<32x8xbf16>
    %cst_44 = arith.constant dense<0.000000e+00> : vector<16x8xf32>
    %60 = tpu.matmul %5, %59, %cst_44 {dimension_numbers = #tpu.dot_dimension_numbers<[1], [0], [0], [1], [0, 0, 1, 1], [], []>} : vector<16x32xbf16>, vector<32x8xbf16>, vector<16x8xf32> -> vector<16x8xf32>
    %c1_45 = arith.constant 1 : index
    %c0_46 = arith.constant 0 : index
    %c0_47 = arith.constant 0 : index
    %61 = vector.load %arg6[%c1_45, %c0_46, %c0_47] : memref<4x1x8xf32, #tpu.memory_space<vmem>>, vector<1x1x8xf32>
    %62 = vector.shape_cast %61 : vector<1x1x8xf32> to vector<1x8xf32>
    %63 = vector.broadcast %62 : vector<1x8xf32> to vector<16x8xf32>
    %64 = arith.addf %60, %63 : vector<16x8xf32>
    %c1_48 = arith.constant 1 : index
    %c0_49 = arith.constant 0 : index
    %c0_50 = arith.constant 0 : index
    %65 = vector.load %arg7[%c1_48, %c0_49, %c0_50] : memref<4x32x8xbf16, #tpu.memory_space<vmem>>, vector<1x32x8xbf16>
    %66 = vector.shape_cast %65 : vector<1x32x8xbf16> to vector<32x8xbf16>
    %cst_51 = arith.constant dense<0.000000e+00> : vector<16x8xf32>
    %67 = tpu.matmul %5, %66, %cst_51 {dimension_numbers = #tpu.dot_dimension_numbers<[1], [0], [0], [1], [0, 0, 1, 1], [], []>} : vector<16x32xbf16>, vector<32x8xbf16>, vector<16x8xf32> -> vector<16x8xf32>
    %c1_52 = arith.constant 1 : index
    %c0_53 = arith.constant 0 : index
    %c0_54 = arith.constant 0 : index
    %68 = vector.load %arg8[%c1_52, %c0_53, %c0_54] : memref<4x1x8xf32, #tpu.memory_space<vmem>>, vector<1x1x8xf32>
    %69 = vector.shape_cast %68 : vector<1x1x8xf32> to vector<1x8xf32>
    %70 = vector.broadcast %69 : vector<1x8xf32> to vector<16x8xf32>
    %71 = arith.addf %67, %70 : vector<16x8xf32>
    %72 = arith.truncf %57 : vector<16x8xf32> to vector<16x8xbf16>
    %73 = arith.truncf %64 : vector<16x8xf32> to vector<16x8xbf16>
    %cst_55 = arith.constant dense<0.000000e+00> : vector<16x16xf32>
    %74 = tpu.matmul %72, %73, %cst_55 {dimension_numbers = #tpu.dot_dimension_numbers<[1], [1], [0], [0], [0, 0, 1, 0], [], []>} : vector<16x8xbf16>, vector<16x8xbf16>, vector<16x16xf32> -> vector<16x16xf32>
    %cst_56 = arith.constant 0.353553385 : f32
    %75 = vector.broadcast %cst_56 : f32 to vector<16x16xf32>
    %76 = arith.mulf %74, %75 : vector<16x16xf32>
    %cst_57 = arith.constant dense<0xFF800000> : vector<16xf32>
    %77 = vector.multi_reduction <maximumf>, %76, %cst_57 [1] : vector<16x16xf32> to vector<16xf32>
    %78 = vector.shape_cast %77 : vector<16xf32> to vector<16x1xf32>
    %79 = vector.broadcast %78 : vector<16x1xf32> to vector<16x16xf32>
    %80 = arith.subf %76, %79 : vector<16x16xf32>
    %81 = math.exp %80 : vector<16x16xf32>
    %cst_58 = arith.constant dense<0.000000e+00> : vector<16xf32>
    %82 = vector.multi_reduction <add>, %81, %cst_58 [1] : vector<16x16xf32> to vector<16xf32>
    %83 = vector.shape_cast %82 : vector<16xf32> to vector<16x1xf32>
    %84 = tpu.reciprocal %83 {approx = true} : vector<16x1xf32> -> vector<16x1xf32>
    %85 = vector.broadcast %84 : vector<16x1xf32> to vector<16x16xf32>
    %86 = arith.mulf %81, %85 : vector<16x16xf32>
    %87 = arith.truncf %86 : vector<16x16xf32> to vector<16x16xbf16>
    %88 = arith.truncf %71 : vector<16x8xf32> to vector<16x8xbf16>
    %cst_59 = arith.constant dense<0.000000e+00> : vector<16x8xf32>
    %89 = tpu.matmul %87, %88, %cst_59 {dimension_numbers = #tpu.dot_dimension_numbers<[1], [0], [0], [1], [0, 0, 1, 1], [], []>} : vector<16x16xbf16>, vector<16x8xbf16>, vector<16x8xf32> -> vector<16x8xf32>
    %90 = arith.truncf %89 : vector<16x8xf32> to vector<16x8xbf16>
    %c1_60 = arith.constant 1 : index
    %c0_61 = arith.constant 0 : index
    %c0_62 = arith.constant 0 : index
    %91 = vector.load %arg9[%c1_60, %c0_61, %c0_62] : memref<4x8x32xbf16, #tpu.memory_space<vmem>>, vector<1x8x32xbf16>
    %92 = vector.shape_cast %91 : vector<1x8x32xbf16> to vector<8x32xbf16>
    %cst_63 = arith.constant dense<0.000000e+00> : vector<16x32xf32>
    %93 = tpu.matmul %90, %92, %cst_63 {dimension_numbers = #tpu.dot_dimension_numbers<[1], [0], [0], [1], [0, 0, 1, 1], [], []>} : vector<16x8xbf16>, vector<8x32xbf16>, vector<16x32xf32> -> vector<16x32xf32>
    %94 = arith.addf %50, %93 : vector<16x32xf32>
    %c2 = arith.constant 2 : index
    %c0_64 = arith.constant 0 : index
    %c0_65 = arith.constant 0 : index
    %95 = vector.load %arg3[%c2, %c0_64, %c0_65] : memref<4x32x8xbf16, #tpu.memory_space<vmem>>, vector<1x32x8xbf16>
    %96 = vector.shape_cast %95 : vector<1x32x8xbf16> to vector<32x8xbf16>
    %cst_66 = arith.constant dense<0.000000e+00> : vector<16x8xf32>
    %97 = tpu.matmul %4, %96, %cst_66 {dimension_numbers = #tpu.dot_dimension_numbers<[1], [0], [0], [1], [0, 0, 1, 1], [], []>} : vector<16x32xbf16>, vector<32x8xbf16>, vector<16x8xf32> -> vector<16x8xf32>
    %c2_67 = arith.constant 2 : index
    %c0_68 = arith.constant 0 : index
    %c0_69 = arith.constant 0 : index
    %98 = vector.load %arg4[%c2_67, %c0_68, %c0_69] : memref<4x1x8xf32, #tpu.memory_space<vmem>>, vector<1x1x8xf32>
    %99 = vector.shape_cast %98 : vector<1x1x8xf32> to vector<1x8xf32>
    %100 = vector.broadcast %99 : vector<1x8xf32> to vector<16x8xf32>
    %101 = arith.addf %97, %100 : vector<16x8xf32>
    %c2_70 = arith.constant 2 : index
    %c0_71 = arith.constant 0 : index
    %c0_72 = arith.constant 0 : index
    %102 = vector.load %arg5[%c2_70, %c0_71, %c0_72] : memref<4x32x8xbf16, #tpu.memory_space<vmem>>, vector<1x32x8xbf16>
    %103 = vector.shape_cast %102 : vector<1x32x8xbf16> to vector<32x8xbf16>
    %cst_73 = arith.constant dense<0.000000e+00> : vector<16x8xf32>
    %104 = tpu.matmul %5, %103, %cst_73 {dimension_numbers = #tpu.dot_dimension_numbers<[1], [0], [0], [1], [0, 0, 1, 1], [], []>} : vector<16x32xbf16>, vector<32x8xbf16>, vector<16x8xf32> -> vector<16x8xf32>
    %c2_74 = arith.constant 2 : index
    %c0_75 = arith.constant 0 : index
    %c0_76 = arith.constant 0 : index
    %105 = vector.load %arg6[%c2_74, %c0_75, %c0_76] : memref<4x1x8xf32, #tpu.memory_space<vmem>>, vector<1x1x8xf32>
    %106 = vector.shape_cast %105 : vector<1x1x8xf32> to vector<1x8xf32>
    %107 = vector.broadcast %106 : vector<1x8xf32> to vector<16x8xf32>
    %108 = arith.addf %104, %107 : vector<16x8xf32>
    %c2_77 = arith.constant 2 : index
    %c0_78 = arith.constant 0 : index
    %c0_79 = arith.constant 0 : index
    %109 = vector.load %arg7[%c2_77, %c0_78, %c0_79] : memref<4x32x8xbf16, #tpu.memory_space<vmem>>, vector<1x32x8xbf16>
    %110 = vector.shape_cast %109 : vector<1x32x8xbf16> to vector<32x8xbf16>
    %cst_80 = arith.constant dense<0.000000e+00> : vector<16x8xf32>
    %111 = tpu.matmul %5, %110, %cst_80 {dimension_numbers = #tpu.dot_dimension_numbers<[1], [0], [0], [1], [0, 0, 1, 1], [], []>} : vector<16x32xbf16>, vector<32x8xbf16>, vector<16x8xf32> -> vector<16x8xf32>
    %c2_81 = arith.constant 2 : index
    %c0_82 = arith.constant 0 : index
    %c0_83 = arith.constant 0 : index
    %112 = vector.load %arg8[%c2_81, %c0_82, %c0_83] : memref<4x1x8xf32, #tpu.memory_space<vmem>>, vector<1x1x8xf32>
    %113 = vector.shape_cast %112 : vector<1x1x8xf32> to vector<1x8xf32>
    %114 = vector.broadcast %113 : vector<1x8xf32> to vector<16x8xf32>
    %115 = arith.addf %111, %114 : vector<16x8xf32>
    %116 = arith.truncf %101 : vector<16x8xf32> to vector<16x8xbf16>
    %117 = arith.truncf %108 : vector<16x8xf32> to vector<16x8xbf16>
    %cst_84 = arith.constant dense<0.000000e+00> : vector<16x16xf32>
    %118 = tpu.matmul %116, %117, %cst_84 {dimension_numbers = #tpu.dot_dimension_numbers<[1], [1], [0], [0], [0, 0, 1, 0], [], []>} : vector<16x8xbf16>, vector<16x8xbf16>, vector<16x16xf32> -> vector<16x16xf32>
    %cst_85 = arith.constant 0.353553385 : f32
    %119 = vector.broadcast %cst_85 : f32 to vector<16x16xf32>
    %120 = arith.mulf %118, %119 : vector<16x16xf32>
    %cst_86 = arith.constant dense<0xFF800000> : vector<16xf32>
    %121 = vector.multi_reduction <maximumf>, %120, %cst_86 [1] : vector<16x16xf32> to vector<16xf32>
    %122 = vector.shape_cast %121 : vector<16xf32> to vector<16x1xf32>
    %123 = vector.broadcast %122 : vector<16x1xf32> to vector<16x16xf32>
    %124 = arith.subf %120, %123 : vector<16x16xf32>
    %125 = math.exp %124 : vector<16x16xf32>
    %cst_87 = arith.constant dense<0.000000e+00> : vector<16xf32>
    %126 = vector.multi_reduction <add>, %125, %cst_87 [1] : vector<16x16xf32> to vector<16xf32>
    %127 = vector.shape_cast %126 : vector<16xf32> to vector<16x1xf32>
    %128 = tpu.reciprocal %127 {approx = true} : vector<16x1xf32> -> vector<16x1xf32>
    %129 = vector.broadcast %128 : vector<16x1xf32> to vector<16x16xf32>
    %130 = arith.mulf %125, %129 : vector<16x16xf32>
    %131 = arith.truncf %130 : vector<16x16xf32> to vector<16x16xbf16>
    %132 = arith.truncf %115 : vector<16x8xf32> to vector<16x8xbf16>
    %cst_88 = arith.constant dense<0.000000e+00> : vector<16x8xf32>
    %133 = tpu.matmul %131, %132, %cst_88 {dimension_numbers = #tpu.dot_dimension_numbers<[1], [0], [0], [1], [0, 0, 1, 1], [], []>} : vector<16x16xbf16>, vector<16x8xbf16>, vector<16x8xf32> -> vector<16x8xf32>
    %134 = arith.truncf %133 : vector<16x8xf32> to vector<16x8xbf16>
    %c2_89 = arith.constant 2 : index
    %c0_90 = arith.constant 0 : index
    %c0_91 = arith.constant 0 : index
    %135 = vector.load %arg9[%c2_89, %c0_90, %c0_91] : memref<4x8x32xbf16, #tpu.memory_space<vmem>>, vector<1x8x32xbf16>
    %136 = vector.shape_cast %135 : vector<1x8x32xbf16> to vector<8x32xbf16>
    %cst_92 = arith.constant dense<0.000000e+00> : vector<16x32xf32>
    %137 = tpu.matmul %134, %136, %cst_92 {dimension_numbers = #tpu.dot_dimension_numbers<[1], [0], [0], [1], [0, 0, 1, 1], [], []>} : vector<16x8xbf16>, vector<8x32xbf16>, vector<16x32xf32> -> vector<16x32xf32>
    %138 = arith.addf %94, %137 : vector<16x32xf32>
    %c3 = arith.constant 3 : index
    %c0_93 = arith.constant 0 : index
    %c0_94 = arith.constant 0 : index
    %139 = vector.load %arg3[%c3, %c0_93, %c0_94] : memref<4x32x8xbf16, #tpu.memory_space<vmem>>, vector<1x32x8xbf16>
    %140 = vector.shape_cast %139 : vector<1x32x8xbf16> to vector<32x8xbf16>
    %cst_95 = arith.constant dense<0.000000e+00> : vector<16x8xf32>
    %141 = tpu.matmul %4, %140, %cst_95 {dimension_numbers = #tpu.dot_dimension_numbers<[1], [0], [0], [1], [0, 0, 1, 1], [], []>} : vector<16x32xbf16>, vector<32x8xbf16>, vector<16x8xf32> -> vector<16x8xf32>
    %c3_96 = arith.constant 3 : index
    %c0_97 = arith.constant 0 : index
    %c0_98 = arith.constant 0 : index
    %142 = vector.load %arg4[%c3_96, %c0_97, %c0_98] : memref<4x1x8xf32, #tpu.memory_space<vmem>>, vector<1x1x8xf32>
    %143 = vector.shape_cast %142 : vector<1x1x8xf32> to vector<1x8xf32>
    %144 = vector.broadcast %143 : vector<1x8xf32> to vector<16x8xf32>
    %145 = arith.addf %141, %144 : vector<16x8xf32>
    %c3_99 = arith.constant 3 : index
    %c0_100 = arith.constant 0 : index
    %c0_101 = arith.constant 0 : index
    %146 = vector.load %arg5[%c3_99, %c0_100, %c0_101] : memref<4x32x8xbf16, #tpu.memory_space<vmem>>, vector<1x32x8xbf16>
    %147 = vector.shape_cast %146 : vector<1x32x8xbf16> to vector<32x8xbf16>
    %cst_102 = arith.constant dense<0.000000e+00> : vector<16x8xf32>
    %148 = tpu.matmul %5, %147, %cst_102 {dimension_numbers = #tpu.dot_dimension_numbers<[1], [0], [0], [1], [0, 0, 1, 1], [], []>} : vector<16x32xbf16>, vector<32x8xbf16>, vector<16x8xf32> -> vector<16x8xf32>
    %c3_103 = arith.constant 3 : index
    %c0_104 = arith.constant 0 : index
    %c0_105 = arith.constant 0 : index
    %149 = vector.load %arg6[%c3_103, %c0_104, %c0_105] : memref<4x1x8xf32, #tpu.memory_space<vmem>>, vector<1x1x8xf32>
    %150 = vector.shape_cast %149 : vector<1x1x8xf32> to vector<1x8xf32>
    %151 = vector.broadcast %150 : vector<1x8xf32> to vector<16x8xf32>
    %152 = arith.addf %148, %151 : vector<16x8xf32>
    %c3_106 = arith.constant 3 : index
    %c0_107 = arith.constant 0 : index
    %c0_108 = arith.constant 0 : index
    %153 = vector.load %arg7[%c3_106, %c0_107, %c0_108] : memref<4x32x8xbf16, #tpu.memory_space<vmem>>, vector<1x32x8xbf16>
    %154 = vector.shape_cast %153 : vector<1x32x8xbf16> to vector<32x8xbf16>
    %cst_109 = arith.constant dense<0.000000e+00> : vector<16x8xf32>
    %155 = tpu.matmul %5, %154, %cst_109 {dimension_numbers = #tpu.dot_dimension_numbers<[1], [0], [0], [1], [0, 0, 1, 1], [], []>} : vector<16x32xbf16>, vector<32x8xbf16>, vector<16x8xf32> -> vector<16x8xf32>
    %c3_110 = arith.constant 3 : index
    %c0_111 = arith.constant 0 : index
    %c0_112 = arith.constant 0 : index
    %156 = vector.load %arg8[%c3_110, %c0_111, %c0_112] : memref<4x1x8xf32, #tpu.memory_space<vmem>>, vector<1x1x8xf32>
    %157 = vector.shape_cast %156 : vector<1x1x8xf32> to vector<1x8xf32>
    %158 = vector.broadcast %157 : vector<1x8xf32> to vector<16x8xf32>
    %159 = arith.addf %155, %158 : vector<16x8xf32>
    %160 = arith.truncf %145 : vector<16x8xf32> to vector<16x8xbf16>
    %161 = arith.truncf %152 : vector<16x8xf32> to vector<16x8xbf16>
    %cst_113 = arith.constant dense<0.000000e+00> : vector<16x16xf32>
    %162 = tpu.matmul %160, %161, %cst_113 {dimension_numbers = #tpu.dot_dimension_numbers<[1], [1], [0], [0], [0, 0, 1, 0], [], []>} : vector<16x8xbf16>, vector<16x8xbf16>, vector<16x16xf32> -> vector<16x16xf32>
    %cst_114 = arith.constant 0.353553385 : f32
    %163 = vector.broadcast %cst_114 : f32 to vector<16x16xf32>
    %164 = arith.mulf %162, %163 : vector<16x16xf32>
    %cst_115 = arith.constant dense<0xFF800000> : vector<16xf32>
    %165 = vector.multi_reduction <maximumf>, %164, %cst_115 [1] : vector<16x16xf32> to vector<16xf32>
    %166 = vector.shape_cast %165 : vector<16xf32> to vector<16x1xf32>
    %167 = vector.broadcast %166 : vector<16x1xf32> to vector<16x16xf32>
    %168 = arith.subf %164, %167 : vector<16x16xf32>
    %169 = math.exp %168 : vector<16x16xf32>
    %cst_116 = arith.constant dense<0.000000e+00> : vector<16xf32>
    %170 = vector.multi_reduction <add>, %169, %cst_116 [1] : vector<16x16xf32> to vector<16xf32>
    %171 = vector.shape_cast %170 : vector<16xf32> to vector<16x1xf32>
    %172 = tpu.reciprocal %171 {approx = true} : vector<16x1xf32> -> vector<16x1xf32>
    %173 = vector.broadcast %172 : vector<16x1xf32> to vector<16x16xf32>
    %174 = arith.mulf %169, %173 : vector<16x16xf32>
    %175 = arith.truncf %174 : vector<16x16xf32> to vector<16x16xbf16>
    %176 = arith.truncf %159 : vector<16x8xf32> to vector<16x8xbf16>
    %cst_117 = arith.constant dense<0.000000e+00> : vector<16x8xf32>
    %177 = tpu.matmul %175, %176, %cst_117 {dimension_numbers = #tpu.dot_dimension_numbers<[1], [0], [0], [1], [0, 0, 1, 1], [], []>} : vector<16x16xbf16>, vector<16x8xbf16>, vector<16x8xf32> -> vector<16x8xf32>
    %178 = arith.truncf %177 : vector<16x8xf32> to vector<16x8xbf16>
    %c3_118 = arith.constant 3 : index
    %c0_119 = arith.constant 0 : index
    %c0_120 = arith.constant 0 : index
    %179 = vector.load %arg9[%c3_118, %c0_119, %c0_120] : memref<4x8x32xbf16, #tpu.memory_space<vmem>>, vector<1x8x32xbf16>
    %180 = vector.shape_cast %179 : vector<1x8x32xbf16> to vector<8x32xbf16>
    %cst_121 = arith.constant dense<0.000000e+00> : vector<16x32xf32>
    %181 = tpu.matmul %178, %180, %cst_121 {dimension_numbers = #tpu.dot_dimension_numbers<[1], [0], [0], [1], [0, 0, 1, 1], [], []>} : vector<16x8xbf16>, vector<8x32xbf16>, vector<16x32xf32> -> vector<16x32xf32>
    %182 = arith.addf %138, %181 : vector<16x32xf32>
    %c0_122 = arith.constant 0 : index
    %c0_123 = arith.constant 0 : index
    %183 = vector.load %arg10[%c0_122, %c0_123] : memref<1x32xf32, #tpu.memory_space<vmem>>, vector<1x32xf32>
    %184 = vector.broadcast %183 : vector<1x32xf32> to vector<16x32xf32>
    %185 = arith.addf %182, %184 : vector<16x32xf32>
    %c0_124 = arith.constant 0 : index
    %c0_125 = arith.constant 0 : index
    %186 = vector.load %arg11[%c0_124, %c0_125] : memref<32x64xbf16, #tpu.memory_space<vmem>>, vector<32x64xbf16>
    %cst_126 = arith.constant dense<0.000000e+00> : vector<16x64xf32>
    %187 = tpu.matmul %4, %186, %cst_126 {dimension_numbers = #tpu.dot_dimension_numbers<[1], [0], [0], [1], [0, 0, 1, 1], [], []>} : vector<16x32xbf16>, vector<32x64xbf16>, vector<16x64xf32> -> vector<16x64xf32>
    %188 = arith.truncf %185 : vector<16x32xf32> to vector<16x32xbf16>
    %c0_127 = arith.constant 0 : index
    %c0_128 = arith.constant 0 : index
    %189 = vector.load %arg12[%c0_127, %c0_128] : memref<32x64xbf16, #tpu.memory_space<vmem>>, vector<32x64xbf16>
    %cst_129 = arith.constant dense<0.000000e+00> : vector<16x64xf32>
    %190 = tpu.matmul %188, %189, %cst_129 {dimension_numbers = #tpu.dot_dimension_numbers<[1], [0], [0], [1], [0, 0, 1, 1], [], []>} : vector<16x32xbf16>, vector<32x64xbf16>, vector<16x64xf32> -> vector<16x64xf32>
    %191 = arith.addf %187, %190 : vector<16x64xf32>
    %c0_130 = arith.constant 0 : index
    %c0_131 = arith.constant 0 : index
    %192 = vector.load %arg13[%c0_130, %c0_131] : memref<1x64xf32, #tpu.memory_space<vmem>>, vector<1x64xf32>
    %193 = vector.broadcast %192 : vector<1x64xf32> to vector<16x64xf32>
    %194 = arith.addf %191, %193 : vector<16x64xf32>
    %cst_132 = arith.constant dense<0.000000e+00> : vector<64xf32>
    %195 = vector.multi_reduction <add>, %194, %cst_132 [0] : vector<16x64xf32> to vector<64xf32>
    %196 = vector.shape_cast %195 : vector<64xf32> to vector<1x64xf32>
    %cst_133 = arith.constant 6.250000e-02 : f32
    %197 = vector.broadcast %cst_133 : f32 to vector<1x64xf32>
    %198 = arith.mulf %196, %197 : vector<1x64xf32>
    %199 = arith.mulf %194, %194 : vector<16x64xf32>
    %cst_134 = arith.constant dense<0.000000e+00> : vector<64xf32>
    %200 = vector.multi_reduction <add>, %199, %cst_134 [0] : vector<16x64xf32> to vector<64xf32>
    %201 = vector.shape_cast %200 : vector<64xf32> to vector<1x64xf32>
    %cst_135 = arith.constant 6.250000e-02 : f32
    %202 = vector.broadcast %cst_135 : f32 to vector<1x64xf32>
    %203 = arith.mulf %201, %202 : vector<1x64xf32>
    %204 = arith.mulf %198, %198 : vector<1x64xf32>
    %205 = arith.subf %203, %204 : vector<1x64xf32>
    %cst_136 = arith.constant 0.000000e+00 : f32
    %206 = vector.broadcast %cst_136 : f32 to vector<1x64xf32>
    %207 = arith.maximumf %205, %206 : vector<1x64xf32>
    %208 = vector.broadcast %198 : vector<1x64xf32> to vector<16x64xf32>
    %209 = arith.subf %194, %208 : vector<16x64xf32>
    %cst_137 = arith.constant 9.99999974E-6 : f32
    %210 = vector.broadcast %cst_137 : f32 to vector<1x64xf32>
    %211 = arith.addf %207, %210 : vector<1x64xf32>
    %212 = math.rsqrt %211 : vector<1x64xf32>
    %213 = vector.broadcast %212 : vector<1x64xf32> to vector<16x64xf32>
    %214 = arith.mulf %209, %213 : vector<16x64xf32>
    %cst_138 = arith.constant 0.000000e+00 : f32
    %215 = vector.broadcast %cst_138 : f32 to vector<16x64xf32>
    %216 = arith.maximumf %214, %215 : vector<16x64xf32>
    %217 = arith.truncf %216 : vector<16x64xf32> to vector<16x64xbf16>
    %c0_139 = arith.constant 0 : index
    %c0_140 = arith.constant 0 : index
    %218 = vector.load %arg14[%c0_139, %c0_140] : memref<64x32xbf16, #tpu.memory_space<vmem>>, vector<64x32xbf16>
    %cst_141 = arith.constant dense<0.000000e+00> : vector<16x32xf32>
    %219 = tpu.matmul %217, %218, %cst_141 {dimension_numbers = #tpu.dot_dimension_numbers<[1], [0], [0], [1], [0, 0, 1, 1], [], []>} : vector<16x64xbf16>, vector<64x32xbf16>, vector<16x32xf32> -> vector<16x32xf32>
    %c0_142 = arith.constant 0 : index
    %c0_143 = arith.constant 0 : index
    %220 = vector.load %arg15[%c0_142, %c0_143] : memref<1x32xf32, #tpu.memory_space<vmem>>, vector<1x32xf32>
    %221 = vector.broadcast %220 : vector<1x32xf32> to vector<16x32xf32>
    %222 = arith.addf %219, %221 : vector<16x32xf32>
    %223 = arith.addf %1, %222 : vector<16x32xf32>
    %c0_144 = arith.constant 0 : index
    %c0_145 = arith.constant 0 : index
    %c0_146 = arith.constant 0 : index
    %224 = vector.load %arg16[%c0_144, %c0_145, %c0_146] : memref<1x16x32xf32, #tpu.memory_space<vmem>>, vector<1x16x32xf32>
    %225 = vector.shape_cast %224 : vector<1x16x32xf32> to vector<16x32xf32>
    %226 = vector.shape_cast %223 : vector<16x32xf32> to vector<1x16x32xf32>
    tpu.vector_store %arg16[%c0_144, %c0_145, %c0_146], %226 {strides = array<i32>} : memref<1x16x32xf32, #tpu.memory_space<vmem>>, vector<1x16x32xf32>,
    return
  }
  func.func @transform_0(%arg0: i32) -> (i32, i32, i32) {
    %c0_i32 = arith.constant 0 : i32
    %c0_i32_0 = arith.constant 0 : i32
    %c0_i32_1 = arith.constant 0 : i32
    return %arg0, %c0_i32, %c0_i32_0 : i32, i32, i32
  }
  func.func @transform_1(%arg0: i32) -> (i32, i32, i32) {
    %c0_i32 = arith.constant 0 : i32
    %c0_i32_0 = arith.constant 0 : i32
    %c0_i32_1 = arith.constant 0 : i32
    return %arg0, %c0_i32, %c0_i32_0 : i32, i32, i32
  }
  func.func @transform_2(%arg0: i32) -> (i32, i32, i32) {
    %c0_i32 = arith.constant 0 : i32
    %c0_i32_0 = arith.constant 0 : i32
    %c0_i32_1 = arith.constant 0 : i32
    %c0_i32_2 = arith.constant 0 : i32
    return %c0_i32, %c0_i32_0, %c0_i32_1 : i32, i32, i32
  }
  func.func @transform_3(%arg0: i32) -> (i32, i32, i32) {
    %c0_i32 = arith.constant 0 : i32
    %c0_i32_0 = arith.constant 0 : i32
    %c0_i32_1 = arith.constant 0 : i32
    %c0_i32_2 = arith.constant 0 : i32
    return %c0_i32, %c0_i32_0, %c0_i32_1 : i32, i32, i32
  }
  func.func @transform_4(%arg0: i32) -> (i32, i32, i32) {
    %c0_i32 = arith.constant 0 : i32
    %c0_i32_0 = arith.constant 0 : i32
    %c0_i32_1 = arith.constant 0 : i32
    %c0_i32_2 = arith.constant 0 : i32
    return %c0_i32, %c0_i32_0, %c0_i32_1 : i32, i32, i32
  }
  func.func @transform_5(%arg0: i32) -> (i32, i32, i32) {
    %c0_i32 = arith.constant 0 : i32
    %c0_i32_0 = arith.constant 0 : i32
    %c0_i32_1 = arith.constant 0 : i32
    %c0_i32_2 = arith.constant 0 : i32
    return %c0_i32, %c0_i32_0, %c0_i32_1 : i32, i32, i32
  }
  func.func @transform_6(%arg0: i32) -> (i32, i32, i32) {
    %c0_i32 = arith.constant 0 : i32
    %c0_i32_0 = arith.constant 0 : i32
    %c0_i32_1 = arith.constant 0 : i32
    %c0_i32_2 = arith.constant 0 : i32
    return %c0_i32, %c0_i32_0, %c0_i32_1 : i32, i32, i32
  }
  func.func @transform_7(%arg0: i32) -> (i32, i32, i32) {
    %c0_i32 = arith.constant 0 : i32
    %c0_i32_0 = arith.constant 0 : i32
    %c0_i32_1 = arith.constant 0 : i32
    %c0_i32_2 = arith.constant 0 : i32
    return %c0_i32, %c0_i32_0, %c0_i32_1 : i32, i32, i32
  }
  func.func @transform_8(%arg0: i32) -> (i32, i32, i32) {
    %c0_i32 = arith.constant 0 : i32
    %c0_i32_0 = arith.constant 0 : i32
    %c0_i32_1 = arith.constant 0 : i32
    %c0_i32_2 = arith.constant 0 : i32
    return %c0_i32, %c0_i32_0, %c0_i32_1 : i32, i32, i32
  }
  func.func @transform_9(%arg0: i32) -> (i32, i32) {
    %c0_i32 = arith.constant 0 : i32
    %c0_i32_0 = arith.constant 0 : i32
    %c0_i32_1 = arith.constant 0 : i32
    return %c0_i32, %c0_i32_0 : i32, i32
  }
  func.func @transform_10(%arg0: i32) -> (i32, i32) {
    %c0_i32 = arith.constant 0 : i32
    %c0_i32_0 = arith.constant 0 : i32
    %c0_i32_1 = arith.constant 0 : i32
    return %c0_i32, %c0_i32_0 : i32, i32
  }
  func.func @transform_11(%arg0: i32) -> (i32, i32) {
    %c0_i32 = arith.constant 0 : i32
    %c0_i32_0 = arith.constant 0 : i32
    %c0_i32_1 = arith.constant 0 : i32
    return %c0_i32, %c0_i32_0 : i32, i32
  }
  func.func @transform_12(%arg0: i32) -> (i32, i32) {
    %c0_i32 = arith.constant 0 : i32
    %c0_i32_0 = arith.constant 0 : i32
    %c0_i32_1 = arith.constant 0 : i32
    return %c0_i32, %c0_i32_0 : i32, i32
  }
  func.func @transform_13(%arg0: i32) -> (i32, i32) {
    %c0_i32 = arith.constant 0 : i32
    %c0_i32_0 = arith.constant 0 : i32
    %c0_i32_1 = arith.constant 0 : i32
    return %c0_i32, %c0_i32_0 : i32, i32
  }
  func.func @transform_14(%arg0: i32) -> (i32, i32) {
    %c0_i32 = arith.constant 0 : i32
    %c0_i32_0 = arith.constant 0 : i32
    %c0_i32_1 = arith.constant 0 : i32
    return %c0_i32, %c0_i32_0 : i32, i32
  }
  func.func @transform_15(%arg0: i32) -> (i32, i32, i32) {
    %c0_i32 = arith.constant 0 : i32
    %c0_i32_0 = arith.constant 0 : i32
    %c0_i32_1 = arith.constant 0 : i32
    return %arg0, %c0_i32, %c0_i32_0 : i32, i32, i32
  }
}

</mosaic_0001>

<llo_original>
// kernel: neg.3
$region0: #{neg.3}
  #allocation0 [shape = 's32[1]{0}', space=sflag, size = 0x4, scoped, tag = 'scoped memory for neg.3']
  %s0 = inlined_call_operand.vmem [shape: f32[2,16,16], index: 0, kind: input, shape index: {}]
  %s1 = inlined_call_operand.vmem [shape: f32[2,16,16], index: 1, kind: output, shape index: {}]
  %v2 = vld [vmem:[%s0] sm:$0xff]
  %3 = xla_tuple %v2
  %4 = xla_tuple %3
  %v5 = vxor.u32 %v2, 2147483648
  %6 = xla_tuple %v5
  %7 = vst [vmem:[%s1] sm:$0xff] %v5
  %s8 = scalar_lea.vmem %s0, 16
  %v9 = vld [vmem:[%s8] sm:$0xff]
  %10 = xla_tuple %v9
  %11 = xla_tuple %10
  %v12 = vxor.u32 %v9, 2147483648
  %13 = xla_tuple %v12
  %s14 = scalar_lea.vmem %s1, 16
  %15 = vst [vmem:[%s14] sm:$0xff] %v12
  %s16 = scalar_lea.vmem %s0, 8
  %v17 = vld [vmem:[%s16] sm:$0xff]
  %18 = xla_tuple %v17
  %19 = xla_tuple %18
  %v20 = vxor.u32 %v17, 2147483648
  %21 = xla_tuple %v20
  %s22 = scalar_lea.vmem %s1, 8
  %23 = vst [vmem:[%s22] sm:$0xff] %v20
  %s24 = scalar_lea.vmem %s0, 24
  %v25 = vld [vmem:[%s24] sm:$0xff]
  %26 = xla_tuple %v25
  %27 = xla_tuple %26
  %v28 = vxor.u32 %v25, 2147483648
  %29 = xla_tuple %v28
  %s30 = scalar_lea.vmem %s1, 24
  %31 = vst [vmem:[%s30] sm:$0xff] %v28

// kernel: information_interactive.11
$region0: #{information_interactive.11}
  #allocation0 [shape = 'u32[]', space=smem, size = 0x4, offset = 0x4, fixed_abs, tag = 'smem constant byte address 0x4 - core index']
  #allocation1 [shape = 'u32[144,128]{1,0:T(1,128)}', space=vmem, size = 0x12000, scoped, tag = 'internal scratch']
  %s0 = inlined_call_operand.vmem [shape: f32[2,16,8], index: 0, kind: input, shape index: {}]
  %s1 = inlined_call_operand.vmem [shape: f32[2,16,16], index: 1, kind: output, shape index: {}]
  %s2 = sld [smem:[#allocation0]]
  $region37: #{information_interactive.11} parent=0
    _
  %s4 = ssub.s32 1, %s2
  %s5 = scalar_select 0, %s4, %s2
  loop: start=0, step=1, limit=4
  $region2: #{information_interactive.11} parent=0 // loop_pre_header
    _
  $region3: #{information_interactive.11} parent=0 // loop_header
    %s7 = sphi 0, %s11
    %p8 = scmp.ge.s32.totalorder %s7, 4
    %s17 = sphi 0, %s19
    %s20 = sphi 0, %s17
    %s21 = sphi 0, %s20
    %s37 = sphi 0, %s21
    %s43 = sphi 0, %s45
    %s46 = sphi 0, %s43
    %s47 = sphi 0, %s46
    %s63 = sphi 0, %s47
  $region4: #{information_interactive.11} parent=0 // loop_header_branch
    %10 = sbr.rel (%p8) target = $region8
  $region5: #{information_interactive.11} parent=0 // loop_body
    %s12 = ssub.s32 %s7, 1
    %s13 = ssub.s32 %s7, 2
    %s14 = sadd.s32 %s7, 1
    %s15 = ssub.s32 %s7, %s14
    %p16 = scmp.eq.s32.totalorder %s15, 0
    %s18 = sadd.s32 %s17, 1
    %s19 = scalar_select %p16, %s17, %s18
    %p22 = pneg %p16
    %p23 = scmp.eq.s32.totalorder %s7, 1
    %p24 = por %p22, %p23
    %p25 = scmp.ne.s32.totalorder %s17, %s20
    %p26 = scmp.eq.s32.totalorder %s7, 0
    %p27 = por %p25, %p26
    %p28 = scmp.ne.s32.totalorder %s17, %s20
    %p29 = scmp.eq.s32.totalorder %s12, 1
    %p30 = por %p28, %p29
    %p31 = scmp.ne.s32.totalorder %s20, %s21
    %p32 = scmp.eq.s32.totalorder %s12, 0
    %p33 = por %p31, %p32
    %p34 = scmp.ne.s32.totalorder %s20, %s21
    %p35 = scmp.eq.s32.totalorder %s13, 1
    %p36 = por %p34, %p35
    %p38 = scmp.ne.s32.totalorder %s21, %s37
    %p39 = scmp.eq.s32.totalorder %s13, 0
    %p40 = por %p38, %p39
    %s41 = ssub.s32 %s7, %s14
    %p42 = scmp.eq.s32.totalorder %s41, 0
    %s44 = sadd.s32 %s43, 1
    %s45 = scalar_select %p42, %s43, %s44
    %p48 = pneg %p42
    %p49 = scmp.eq.s32.totalorder %s7, 1
    %p50 = por %p48, %p49
    %p51 = scmp.ne.s32.totalorder %s43, %s46
    %p52 = scmp.eq.s32.totalorder %s7, 0
    %p53 = por %p51, %p52
    %p54 = scmp.ne.s32.totalorder %s43, %s46
    %p55 = scmp.eq.s32.totalorder %s12, 1
    %p56 = por %p54, %p55
    %p57 = scmp.ne.s32.totalorder %s46, %s47
    %p58 = scmp.eq.s32.totalorder %s12, 0
    %p59 = por %p57, %p58
    %p60 = scmp.ne.s32.totalorder %s46, %s47
    %p61 = scmp.eq.s32.totalorder %s13, 1
    %p62 = por %p60, %p61
    %p64 = scmp.ne.s32.totalorder %s47, %s63
    %p65 = scmp.eq.s32.totalorder %s13, 0
    %p66 = por %p64, %p65
    %p67 = scmp.le.s32.totalorder 1, %s7
    %p68 = scmp.lt.s32.totalorder %s7, 3
    %p69 = pnand %p67, %p68
    %p70 = pneg %p69
    // Predicated region
    $region9: #{information_interactive.11} parent=5 // pred_check
      _
    $region10: #{information_interactive.11} parent=5 // pred_check_branch
      %72 = sbr.rel (%p69) target = $region12
    $region11: #{information_interactive.11} parent=5 // pred_region
      %s73 = ssub.s32 %s7, 1
    $region12: #{information_interactive.11} parent=5 // pred_fallthru
      _
    %p74 = scmp.lt.s32.totalorder %s7, 2
    // Predicated region
    $region13: #{information_interactive.11} parent=5 // pred_check
      %p75 = pneg %p74
    $region14: #{information_interactive.11} parent=5 // pred_check_branch
      %77 = sbr.rel (%p75) target = $region16
    $region15: #{information_interactive.11} parent=5 // pred_region
      // Predicated region
      $region17: #{information_interactive.11} parent=15 // pred_check
        %p78 = pneg %p27
      $region18: #{information_interactive.11} parent=15 // pred_check_branch
        %80 = sbr.rel (%p78) target = $region20
      $region19: #{information_interactive.11} parent=15 // pred_region
        %p81 = scmp.lt.s32.totalorder %s7, 1
        %s82 = scalar_select %p81, %s7, 1
        %s83 = smul.addr %s82, 2
        %s84 = smul.addr %s83, 8
        %s85 = scalar_lea.vmem %s0, %s84
      $region20: #{information_interactive.11} parent=15 // pred_fallthru
        _
    $region16: #{information_interactive.11} parent=5 // pred_fallthru
      _
    %p86 = scmp.le.s32.totalorder 1, %s7
    %p87 = scmp.lt.s32.totalorder %s7, 3
    %p88 = pnand %p86, %p87
    %p89 = pneg %p88
    // Predicated region
    $region21: #{information_interactive.11} parent=5 // pred_check
      _
    $region22: #{information_interactive.11} parent=5 // pred_check_branch
      %91 = sbr.rel (%p88) target = $region24
    $region23: #{information_interactive.11} parent=5 // pred_region
      %s92 = ssub.s32 %s7, 1
      %p93 = scmp.lt.s32.totalorder %s12, 1
      %s94 = scalar_select %p93, %s12, 1
      %s95 = smul.addr %s94, 2
      %s96 = smul.addr %s95, 8
      %s97 = scalar_lea.vmem %s0, %s96
      %p98 = pneg %p33
      %p99 = pneg %p30
      %p100 = pneg %p59
      %p101 = pneg %p56
      %p102 = scmp.lt.s32.totalorder %s12, 1
      %s103 = scalar_select %p102, %s12, 1
      %s104 = smul.addr %s103, 2
      %s105 = smul.addr %s104, 8
      %s106 = scalar_lea.vmem %s1, %s105
      %p107 = scmp.lt.s32.totalorder %s12, 1
      %s108 = scalar_select %p107, %s12, 1
      %s109 = smul.addr %s108, 2
      %s110 = smul.addr %s109, 8
      %s111 = scalar_lea.vmem %s0, %s110
      %p112 = scmp.lt.s32.totalorder %s12, 1
      %s113 = scalar_select %p112, %s12, 1
      %s114 = smul.addr %s113, 2
      %s115 = smul.addr %s114, 8
      %s116 = scalar_lea.vmem %s1, %s115
      %v117 = vld [vmem:[%s111] sm:$0xff]
      %v118 = vld [vmem:[%s111 + $0x8] sm:$0xff]
      %v119 = vmul.f32 %v117, %v117
      %v120 = vmul.f32 %v118, %v118
      %vm121 = vcmask 64512
      %v122 = vsel %vm121, %v119, 0.0
      %123 = vadd.xlane.f32.xlu0 %v122
      %v124 = vpop.xlane.xlu0 %123
      %v125 = vsel %vm121, %v120, 0.0
      %126 = vadd.xlane.f32.xlu0 %v125
      %v127 = vpop.xlane.xlu0 %126
      %v129 = vsel %vm121, %v117, 0
      %v132 = vsel %vm121, %v118, 0
      %134 = vmatprep.subr.mxu0 0.0
      %135 = vmatpush1.xpose.msra.mxu0 %v129
      %136 = vmatprep.subr.mxu0 0.0
      %137 = vmatpush1.xpose.msra.mxu0 %v132
      %138 = vmatprep.subr.mxu0 0.0
      %139 = vmatpush1.xpose.msra.mxu0 0.0
      %140 = vmatprep.subr.mxu0 0.0
      %141 = vmatpush1.xpose.msra.mxu0 0.0
      %142 = vmatprep.subr.mxu0 0.0
      %143 = vmatpush1.xpose.msra.mxu0 0.0
      %144 = vmatprep.subr.mxu0 0.0
      %145 = vmatpush1.xpose.msra.mxu0 0.0
      %146 = vmatprep.subr.mxu0 0.0
      %147 = vmatpush1.xpose.msra.mxu0 0.0
      %148 = vmatprep.subr.mxu0 0.0
      %149 = vmatpush1.xpose.msra.mxu0 0.0
      %150 = vmatprep.subr.mxu0 0.0
      %151 = vmatpush1.xpose.msra.mxu0 0.0
      %152 = vmatprep.subr.mxu0 0.0
      %153 = vmatpush1.xpose.msra.mxu0 0.0
      %154 = vmatprep.subr.mxu0 0.0
      %155 = vmatpush1.xpose.msra.mxu0 0.0
      %156 = vmatprep.subr.mxu0 0.0
      %157 = vmatpush1.xpose.msra.mxu0 0.0
      %158 = vmatprep.subr.mxu0 0.0
      %159 = vmatpush1.xpose.msra.mxu0 0.0
      %160 = vmatprep.subr.mxu0 0.0
      %161 = vmatpush1.xpose.msra.mxu0 0.0
      %162 = vmatprep.subr.mxu0 0.0
      %163 = vmatpush1.xpose.msra.mxu0 0.0
      %164 = vmatprep.subr.mxu0 0.0
      %165 = vmatpush1.xpose.msra.mxu0 0.0
      %166 = vmatprep.subr.mxu0 0.0
      %167 = vmatpush1.xpose.msra.mxu0 0.0
      %168 = vmatprep.subr.mxu0 0.0
      %169 = vmatpush1.xpose.msra.mxu0 0.0
      %170 = vmatprep.subr.mxu0 0.0
      %171 = vmatpush1.xpose.msra.mxu0 0.0
      %172 = vmatprep.subr.mxu0 0.0
      %173 = vmatpush1.xpose.msra.mxu0 0.0
      %174 = vmatprep.subr.mxu0 0.0
      %175 = vmatpush1.xpose.msra.mxu0 0.0
      %176 = vmatprep.subr.mxu0 0.0
      %177 = vmatpush1.xpose.msra.mxu0 0.0
      %178 = vmatprep.subr.mxu0 0.0
      %179 = vmatpush1.xpose.msra.mxu0 0.0
      %180 = vmatprep.subr.mxu0 0.0
      %181 = vmatpush1.xpose.msra.mxu0 0.0
      %182 = vmatprep.subr.mxu0 0.0
      %183 = vmatpush1.xpose.msra.mxu0 0.0
      %184 = vmatprep.subr.mxu0 0.0
      %185 = vmatpush1.xpose.msra.mxu0 0.0
      %186 = vmatprep.subr.mxu0 0.0
      %187 = vmatpush1.xpose.msra.mxu0 0.0
      %188 = vmatprep.subr.mxu0 0.0
      %189 = vmatpush1.xpose.msra.mxu0 0.0
      %190 = vmatprep.subr.mxu0 0.0
      %191 = vmatpush1.xpose.msra.mxu0 0.0
      %192 = vmatprep.subr.mxu0 0.0
      %193 = vmatpush1.xpose.msra.mxu0 0.0
      %194 = vmatprep.subr.mxu0 0.0
      %195 = vmatpush1.xpose.msra.mxu0 0.0
      %196 = vmatprep.subr.mxu0 0.0
      %197 = vmatpush1.xpose.msra.mxu0 0.0
      %198 = vmatprep.mubr.f32.mxu0 0.0
      %199 = vmatmul.mubr.f32.gmra.mrb[0].mxu0 %v129
      %v200 = vpop.f32.mrb[0].mxu0
      %v201 = vadd.f32 0.0, %v200
      %v202 = vpop.f32.mrb[0].mxu0
      %203 = vmatprep.mubr.f32.mxu0 0.0
      %204 = vmatmul.mubr.f32.gmra.mrb[0].mxu0 %v132
      %v205 = vpop.f32.mrb[0].mxu0
      %v206 = vadd.f32 0.0, %v205
      %v207 = vpop.f32.mrb[0].mxu0
      %208 = vdwg.mxu0
      %v211 = vlaneseq
      %v212 = vand.u32 %v211, 127
      %v213 = vlaneseq
      %v214 = vshrl.u32 %v213, 7
      %v215 = vsub.s32 %v212, %v214
      %v216 = vrot.slane %v124, %v215
      %v217 = vadd.s32 %v212, 4294967288
      %v218 = vlaneseq
      %v219 = vshrl.u32 %v218, 7
      %v220 = vsub.s32 %v217, %v219
      %v221 = vrot.slane %v127, %v220
      %vm222 = vcmask 130112
      %v223 = vsel %vm222, %v221, %v216
      %vm224 = vcmask 1042434
      %v225 = vsel %vm224, %v223, %v223
      %vm226 = vcmask 1043459
      %v227 = vsel %vm226, %v223, %v225
      %vm228 = vcmask 1044484
      %v229 = vsel %vm228, %v223, %v227
      %vm230 = vcmask 1045509
      %v231 = vsel %vm230, %v223, %v229
      %vm232 = vcmask 1046534
      %v233 = vsel %vm232, %v223, %v231
      %vm234 = vcmask 1047559
      %v235 = vsel %vm234, %v223, %v233
      %v237 = vadd.f32 %v124, %v235
      %v238 = vadd.f32 %v127, %v235
      %v239 = vmul.f32 %v201, 2.0
      %v240 = vmul.f32 %v206, 2.0
      %v241 = vsub.f32 %v237, %v239
      %v242 = vsub.f32 %v238, %v240
      %v243 = vmax.f32 %v241, 0.0
      %v244 = vmax.f32 %v242, 0.0
      %vm245 = vcmask 130048
      %246 = vst.msk [vmem:[%s116] sm:$0xff] %vm245, %v243
      %247 = vst.msk [vmem:[%s116 + $0x8] sm:$0xff] %vm245, %v244
      %p248 = scmp.lt.s32.totalorder %s12, 1
      %s249 = scalar_select %p248, %s12, 1
      %s250 = smul.addr %s249, 2
      %s251 = smul.addr %s250, 8
      %s252 = scalar_lea.vmem %s1, %s251
      // Predicated region
      $region25: #{information_interactive.11} parent=23 // pred_check
        %p253 = pneg %p56
      $region26: #{information_interactive.11} parent=23 // pred_check_branch
        %255 = sbr.rel (%p253) target = $region28
      $region27: #{information_interactive.11} parent=23 // pred_region
        _
      $region28: #{information_interactive.11} parent=23 // pred_fallthru
        _
    $region24: #{information_interactive.11} parent=5 // pred_fallthru
      _
    %p256 = scmp.le.s32.totalorder 2, %s7
    // Predicated region
    $region29: #{information_interactive.11} parent=5 // pred_check
      %p257 = pneg %p256
    $region30: #{information_interactive.11} parent=5 // pred_check_branch
      %259 = sbr.rel (%p257) target = $region32
    $region31: #{information_interactive.11} parent=5 // pred_region
      %s260 = ssub.s32 %s7, 2
      // Predicated region
      $region33: #{information_interactive.11} parent=31 // pred_check
        %p261 = pneg %p62
      $region34: #{information_interactive.11} parent=31 // pred_check_branch
        %263 = sbr.rel (%p261) target = $region36
      $region35: #{information_interactive.11} parent=31 // pred_region
        %p264 = scmp.lt.s32.totalorder %s13, 1
        %s265 = scalar_select %p264, %s13, 1
        %s266 = smul.addr %s265, 2
        %s267 = smul.addr %s266, 8
        %s268 = scalar_lea.vmem %s1, %s267
      $region36: #{information_interactive.11} parent=31 // pred_fallthru
        _
    $region32: #{information_interactive.11} parent=5 // pred_fallthru
      _
  $region6: #{information_interactive.11} parent=0 // loop_footer
    %s11 = sadd.s32 1, %s7
  $region7: #{information_interactive.11} parent=0 // loop_footer_branch
    %6 = sbr.rel target = $region3
  $region8: #{information_interactive.11} parent=0 // loop_exit
    _

// kernel: information_interactive.12
$region0: #{information_interactive.12}
  #allocation0 [shape = 'u32[]', space=smem, size = 0x4, offset = 0x4, fixed_abs, tag = 'smem constant byte address 0x4 - core index']
  #allocation1 [shape = 'u32[144,128]{1,0:T(1,128)}', space=vmem, size = 0x12000, scoped, tag = 'internal scratch']
  %s0 = inlined_call_operand.vmem [shape: bf16[2,4,16,64], index: 0, kind: input, shape index: {}]
  %s1 = inlined_call_operand.vmem [shape: bf16[64,32], index: 1, kind: input, shape index: {}]
  %s2 = inlined_call_operand.vmem [shape: f32[2,16,32], index: 2, kind: output, shape index: {}]
  %s3 = sld [smem:[#allocation0]]
  $region41: #{information_interactive.12} parent=0
    _
  %s5 = ssub.s32 1, %s3
  %s6 = scalar_select 0, %s5, %s3
  loop: start=0, step=1, limit=4
  $region2: #{information_interactive.12} parent=0 // loop_pre_header
    _
  $region3: #{information_interactive.12} parent=0 // loop_header
    %s8 = sphi 0, %s12
    %p9 = scmp.ge.s32.totalorder %s8, 4
    %s18 = sphi 0, %s20
    %s21 = sphi 0, %s18
    %s22 = sphi 0, %s21
    %s38 = sphi 0, %s22
    %s42 = sphi 0, %s42
    %s44 = sphi 0, %s42
    %s45 = sphi 0, %s44
    %s59 = sphi 0, %s45
    %s65 = sphi 0, %s67
    %s68 = sphi 0, %s65
    %s69 = sphi 0, %s68
    %s85 = sphi 0, %s69
  $region4: #{information_interactive.12} parent=0 // loop_header_branch
    %11 = sbr.rel (%p9) target = $region8
  $region5: #{information_interactive.12} parent=0 // loop_body
    %s13 = ssub.s32 %s8, 1
    %s14 = ssub.s32 %s8, 2
    %s15 = sadd.s32 %s8, 1
    %s16 = ssub.s32 %s8, %s15
    %p17 = scmp.eq.s32.totalorder %s16, 0
    %s19 = sadd.s32 %s18, 1
    %s20 = scalar_select %p17, %s18, %s19
    %p23 = pneg %p17
    %p24 = scmp.eq.s32.totalorder %s8, 1
    %p25 = por %p23, %p24
    %p26 = scmp.ne.s32.totalorder %s18, %s21
    %p27 = scmp.eq.s32.totalorder %s8, 0
    %p28 = por %p26, %p27
    %p29 = scmp.ne.s32.totalorder %s18, %s21
    %p30 = scmp.eq.s32.totalorder %s13, 1
    %p31 = por %p29, %p30
    %p32 = scmp.ne.s32.totalorder %s21, %s22
    %p33 = scmp.eq.s32.totalorder %s13, 0
    %p34 = por %p32, %p33
    %p35 = scmp.ne.s32.totalorder %s21, %s22
    %p36 = scmp.eq.s32.totalorder %s14, 1
    %p37 = por %p35, %p36
    %p39 = scmp.ne.s32.totalorder %s22, %s38
    %p40 = scmp.eq.s32.totalorder %s14, 0
    %p41 = por %p39, %p40
    %s43 = sadd.s32 %s42, 1
    %p46 = scmp.eq.s32.totalorder %s8, 1
    %p47 = scmp.ne.s32.totalorder %s42, %s44
    %p48 = scmp.eq.s32.totalorder %s8, 0
    %p49 = por %p47, %p48
    %p50 = scmp.ne.s32.totalorder %s42, %s44
    %p51 = scmp.eq.s32.totalorder %s13, 1
    %p52 = por %p50, %p51
    %p53 = scmp.ne.s32.totalorder %s44, %s45
    %p54 = scmp.eq.s32.totalorder %s13, 0
    %p55 = por %p53, %p54
    %p56 = scmp.ne.s32.totalorder %s44, %s45
    %p57 = scmp.eq.s32.totalorder %s14, 1
    %p58 = por %p56, %p57
    %p60 = scmp.ne.s32.totalorder %s45, %s59
    %p61 = scmp.eq.s32.totalorder %s14, 0
    %p62 = por %p60, %p61
    %s63 = ssub.s32 %s8, %s15
    %p64 = scmp.eq.s32.totalorder %s63, 0
    %s66 = sadd.s32 %s65, 1
    %s67 = scalar_select %p64, %s65, %s66
    %p70 = pneg %p64
    %p71 = scmp.eq.s32.totalorder %s8, 1
    %p72 = por %p70, %p71
    %p73 = scmp.ne.s32.totalorder %s65, %s68
    %p74 = scmp.eq.s32.totalorder %s8, 0
    %p75 = por %p73, %p74
    %p76 = scmp.ne.s32.totalorder %s65, %s68
    %p77 = scmp.eq.s32.totalorder %s13, 1
    %p78 = por %p76, %p77
    %p79 = scmp.ne.s32.totalorder %s68, %s69
    %p80 = scmp.eq.s32.totalorder %s13, 0
    %p81 = por %p79, %p80
    %p82 = scmp.ne.s32.totalorder %s68, %s69
    %p83 = scmp.eq.s32.totalorder %s14, 1
    %p84 = por %p82, %p83
    %p86 = scmp.ne.s32.totalorder %s69, %s85
    %p87 = scmp.eq.s32.totalorder %s14, 0
    %p88 = por %p86, %p87
    %p89 = scmp.le.s32.totalorder 1, %s8
    %p90 = scmp.lt.s32.totalorder %s8, 3
    %p91 = pnand %p89, %p90
    %p92 = pneg %p91
    // Predicated region
    $region9: #{information_interactive.12} parent=5 // pred_check
      _
    $region10: #{information_interactive.12} parent=5 // pred_check_branch
      %94 = sbr.rel (%p91) target = $region12
    $region11: #{information_interactive.12} parent=5 // pred_region
      %s95 = ssub.s32 %s8, 1
      // Predicated region
      $region13: #{information_interactive.12} parent=11 // pred_check
        %p96 = pneg %p55
      $region14: #{information_interactive.12} parent=11 // pred_check_branch
        %98 = sbr.rel (%p96) target = $region16
      $region15: #{information_interactive.12} parent=11 // pred_region
        _
      $region16: #{information_interactive.12} parent=11 // pred_fallthru
        _
    $region12: #{information_interactive.12} parent=5 // pred_fallthru
      _
    %p99 = scmp.lt.s32.totalorder %s8, 2
    // Predicated region
    $region17: #{information_interactive.12} parent=5 // pred_check
      %p100 = pneg %p99
    $region18: #{information_interactive.12} parent=5 // pred_check_branch
      %102 = sbr.rel (%p100) target = $region20
    $region19: #{information_interactive.12} parent=5 // pred_region
      // Predicated region
      $region21: #{information_interactive.12} parent=19 // pred_check
        %p103 = pneg %p28
      $region22: #{information_interactive.12} parent=19 // pred_check_branch
        %105 = sbr.rel (%p103) target = $region24
      $region23: #{information_interactive.12} parent=19 // pred_region
        %p106 = scmp.lt.s32.totalorder %s8, 1
        %s107 = scalar_select %p106, %s8, 1
        %s108 = smul.addr %s107, 8
        %s109 = smul.addr %s108, 4
        %s110 = scalar_lea.vmem %s0, %s109
      $region24: #{information_interactive.12} parent=19 // pred_fallthru
        _
    $region20: #{information_interactive.12} parent=5 // pred_fallthru
      _
    %p111 = scmp.le.s32.totalorder 1, %s8
    %p112 = scmp.lt.s32.totalorder %s8, 3
    %p113 = pnand %p111, %p112
    %p114 = pneg %p113
    // Predicated region
    $region25: #{information_interactive.12} parent=5 // pred_check
      _
    $region26: #{information_interactive.12} parent=5 // pred_check_branch
      %116 = sbr.rel (%p113) target = $region28
    $region27: #{information_interactive.12} parent=5 // pred_region
      %s117 = ssub.s32 %s8, 1
      %p118 = scmp.lt.s32.totalorder %s13, 1
      %s119 = scalar_select %p118, %s13, 1
      %s120 = smul.addr %s119, 8
      %s121 = smul.addr %s120, 4
      %s122 = scalar_lea.vmem %s0, %s121
      %p123 = pneg %p34
      %p124 = pneg %p31
      %p125 = pneg %p55
      %p126 = pneg %p52
      %p127 = pneg %p81
      %p128 = pneg %p78
      %p129 = scmp.lt.s32.totalorder %s13, 1
      %s130 = scalar_select %p129, %s13, 1
      %s131 = smul.addr %s130, 2
      %s132 = smul.addr %s131, 8
      %s133 = scalar_lea.vmem %s2, %s132
      %p134 = scmp.lt.s32.totalorder %s13, 1
      %s135 = scalar_select %p134, %s13, 1
      %s136 = smul.addr %s135, 8
      %s137 = smul.addr %s136, 4
      %s138 = scalar_lea.vmem %s0, %s137
      %p139 = scmp.lt.s32.totalorder %s13, 1
      %s140 = scalar_select %p139, %s13, 1
      %s141 = smul.addr %s140, 2
      %s142 = smul.addr %s141, 8
      %s143 = scalar_lea.vmem %s2, %s142
      %v145 = vld [vmem:[%s138] sm:$0xf]
      %v146 = vld [vmem:[%s138 + $0x4] sm:$0xf]
      %v147 = vld [vmem:[%s138 + $0x8] sm:$0xf]
      %v148 = vld [vmem:[%s138 + $0xc] sm:$0xf]
      %v149 = vld [vmem:[%s138 + $0x10] sm:$0xf]
      %v150 = vld [vmem:[%s138 + $0x14] sm:$0xf]
      %v151 = vld [vmem:[%s138 + $0x18] sm:$0xf]
      %v152 = vld [vmem:[%s138 + $0x1c] sm:$0xf]
      %v153 = vld [vmem:[%s1] sm:$0xf]
      %v154 = vld [vmem:[%s1 + $0x4] sm:$0xf]
      %v155 = vld [vmem:[%s1 + $0x8] sm:$0xf]
      %v156 = vld [vmem:[%s1 + $0xc] sm:$0xf]
      %v157 = vld [vmem:[%s1 + $0x10] sm:$0xf]
      %v158 = vld [vmem:[%s1 + $0x14] sm:$0xf]
      %v159 = vld [vmem:[%s1 + $0x18] sm:$0xf]
      %v160 = vld [vmem:[%s1 + $0x1c] sm:$0xf]
      %v169 = vunpack.c.l.b16 %v145
      %v170 = vunpack.c.l.b16 %v146
      %v171 = vunpack.c.l.b16 %v147
      %v172 = vunpack.c.l.b16 %v148
      %v173 = vunpack.c.l.b16 %v149
      %v174 = vunpack.c.l.b16 %v150
      %v175 = vunpack.c.l.b16 %v151
      %v176 = vunpack.c.l.b16 %v152
      %v177 = vpack.c.b16 %v170, %v169
      %v178 = vpack.c.b16 %v172, %v171
      %v179 = vpack.c.b16 %v174, %v173
      %v180 = vpack.c.b16 %v176, %v175
      %v189 = vunpack.c.l.b16 %v153
      %v190 = vunpack.c.l.b16 %v154
      %v191 = vunpack.c.l.b16 %v155
      %v192 = vunpack.c.l.b16 %v156
      %v193 = vunpack.c.l.b16 %v157
      %v194 = vunpack.c.l.b16 %v158
      %v195 = vunpack.c.l.b16 %v159
      %v196 = vunpack.c.l.b16 %v160
      %v197 = vpack.c.b16 %v190, %v189
      %v198 = vpack.c.b16 %v192, %v191
      %v199 = vpack.c.b16 %v194, %v193
      %v200 = vpack.c.b16 %v196, %v195
      %vm205 = vcmask 523264
      %v207 = vsel %vm205, %v177, 0
      %v210 = vsel %vm205, %v178, 0
      %v213 = vsel %vm205, %v179, 0
      %v216 = vsel %vm205, %v180, 0
      %218 = vmatprep.subr.bf16.mxu0 0
      %219 = vmatpush1.bf16.msra.mxu0 %v197
      %220 = vmatprep.subr.bf16.mxu0 0
      %221 = vmatpush1.bf16.msra.mxu0 %v198
      %222 = vmatprep.subr.bf16.mxu0 0
      %223 = vmatpush1.bf16.msra.mxu0 %v199
      %224 = vmatprep.subr.bf16.mxu0 0
      %225 = vmatpush1.bf16.msra.mxu0 %v200
      %226 = vmatprep.subr.bf16.mxu0 0
      %227 = vmatpush1.bf16.msra.mxu0 0
      %228 = vmatprep.subr.bf16.mxu0 0
      %229 = vmatpush1.bf16.msra.mxu0 0
      %230 = vmatprep.subr.bf16.mxu0 0
      %231 = vmatpush1.bf16.msra.mxu0 0
      %232 = vmatprep.subr.bf16.mxu0 0
      %233 = vmatpush1.bf16.msra.mxu0 0
      %234 = vmatprep.subr.bf16.mxu0 0
      %235 = vmatpush1.bf16.msra.mxu0 0
      %236 = vmatprep.subr.bf16.mxu0 0
      %237 = vmatpush1.bf16.msra.mxu0 0
      %238 = vmatprep.subr.bf16.mxu0 0
      %239 = vmatpush1.bf16.msra.mxu0 0
      %240 = vmatprep.subr.bf16.mxu0 0
      %241 = vmatpush1.bf16.msra.mxu0 0
      %242 = vmatprep.subr.bf16.mxu0 0
      %243 = vmatpush1.bf16.msra.mxu0 0
      %244 = vmatprep.subr.bf16.mxu0 0
      %245 = vmatpush1.bf16.msra.mxu0 0
      %246 = vmatprep.subr.bf16.mxu0 0
      %247 = vmatpush1.bf16.msra.mxu0 0
      %248 = vmatprep.subr.bf16.mxu0 0
      %249 = vmatpush1.bf16.msra.mxu0 0
      %250 = vmatprep.mubr.bf16.mxu0 0
      %251 = vmatmul.mubr.bf16.gmra.mrb[0].mxu0 %v207
      %v252 = vpop.f32.mrb[0].mxu0
      %v253 = vadd.f32 0.0, %v252
      %v254 = vpop.f32.mrb[0].mxu0
      %v255 = vpop.f32.mrb[0].mxu0
      %v256 = vadd.f32 0.0, %v255
      %v257 = vpop.f32.mrb[0].mxu0
      %258 = vmatprep.mubr.bf16.mxu0 0
      %259 = vmatmul.mubr.bf16.gmra.mrb[0].mxu0 %v210
      %v260 = vpop.f32.mrb[0].mxu0
      %v261 = vadd.f32 0.0, %v260
      %v262 = vpop.f32.mrb[0].mxu0
      %v263 = vpop.f32.mrb[0].mxu0
      %v264 = vadd.f32 0.0, %v263
      %v265 = vpop.f32.mrb[0].mxu0
      %266 = vmatprep.mubr.bf16.mxu0 0
      %267 = vmatmul.mubr.bf16.gmra.mrb[0].mxu0 %v213
      %v268 = vpop.f32.mrb[0].mxu0
      %v269 = vadd.f32 0.0, %v268
      %v270 = vpop.f32.mrb[0].mxu0
      %v271 = vpop.f32.mrb[0].mxu0
      %v272 = vadd.f32 0.0, %v271
      %v273 = vpop.f32.mrb[0].mxu0
      %274 = vmatprep.mubr.bf16.mxu0 0
      %275 = vmatmul.mubr.bf16.gmra.mrb[0].mxu0 %v216
      %v276 = vpop.f32.mrb[0].mxu0
      %v277 = vadd.f32 0.0, %v276
      %v278 = vpop.f32.mrb[0].mxu0
      %v279 = vpop.f32.mrb[0].mxu0
      %v280 = vadd.f32 0.0, %v279
      %v281 = vpop.f32.mrb[0].mxu0
      %282 = vdwg.mxu0
      %vm283 = vcmask 261120
      %v284 = vsel %vm283, %v253, 0.0
      %v285 = vsel %vm283, %v256, 0.0
      %v286 = vadd.f32 %v284, %v285
      %v287 = vsel %vm283, %v261, 0.0
      %v288 = vadd.f32 %v286, %v287
      %v289 = vsel %vm283, %v264, 0.0
      %v290 = vadd.f32 %v288, %v289
      %v291 = vsel %vm283, %v269, 0.0
      %v292 = vadd.f32 %v290, %v291
      %v293 = vsel %vm283, %v272, 0.0
      %v294 = vadd.f32 %v292, %v293
      %v295 = vsel %vm283, %v277, 0.0
      %v296 = vadd.f32 %v294, %v295
      %v297 = vsel %vm283, %v280, 0.0
      %v298 = vadd.f32 %v296, %v297
      %v299 = vrot.slane %v298, 4
      %v300 = vadd.f32 %v298, %v299
      %v301 = vrot.slane %v300, 2
      %v302 = vadd.f32 %v300, %v301
      %v303 = vrot.slane %v302, 1
      %v304 = vadd.f32 %v302, %v303
      %v305 = vmul.f32 %v304, 0.015625
      %v306 = vmul.f32 %v253, %v253
      %v307 = vmul.f32 %v256, %v256
      %v308 = vmul.f32 %v261, %v261
      %v309 = vmul.f32 %v264, %v264
      %v310 = vmul.f32 %v269, %v269
      %v311 = vmul.f32 %v272, %v272
      %v312 = vmul.f32 %v277, %v277
      %v313 = vmul.f32 %v280, %v280
      %v314 = vsel %vm283, %v306, 0.0
      %v315 = vsel %vm283, %v307, 0.0
      %v316 = vadd.f32 %v314, %v315
      %v317 = vsel %vm283, %v308, 0.0
      %v318 = vadd.f32 %v316, %v317
      %v319 = vsel %vm283, %v309, 0.0
      %v320 = vadd.f32 %v318, %v319
      %v321 = vsel %vm283, %v310, 0.0
      %v322 = vadd.f32 %v320, %v321
      %v323 = vsel %vm283, %v311, 0.0
      %v324 = vadd.f32 %v322, %v323
      %v325 = vsel %vm283, %v312, 0.0
      %v326 = vadd.f32 %v324, %v325
      %v327 = vsel %vm283, %v313, 0.0
      %v328 = vadd.f32 %v326, %v327
      %v329 = vrot.slane %v328, 4
      %v330 = vadd.f32 %v328, %v329
      %v331 = vrot.slane %v330, 2
      %v332 = vadd.f32 %v330, %v331
      %v333 = vrot.slane %v332, 1
      %v334 = vadd.f32 %v332, %v333
      %v335 = vmul.f32 %v334, 0.015625
      %v336 = vmul.f32 %v305, %v305
      %v337 = vsub.f32 %v335, %v336
      %v338 = vmax.f32 %v337, 0.0
      %v339 = vsub.f32 %v253, %v305
      %v340 = vsub.f32 %v256, %v305
      %v341 = vsub.f32 %v261, %v305
      %v342 = vsub.f32 %v264, %v305
      %v343 = vsub.f32 %v269, %v305
      %v344 = vsub.f32 %v272, %v305
      %v345 = vsub.f32 %v277, %v305
      %v346 = vsub.f32 %v280, %v305
      %v347 = vadd.f32 %v338, 1e-05
      %v348 = vrsqrt.pop %v347
      %v349 = vmul.f32 %v339, %v348
      %v350 = vmul.f32 %v340, %v348
      %v351 = vmul.f32 %v341, %v348
      %v352 = vmul.f32 %v342, %v348
      %v353 = vmul.f32 %v343, %v348
      %v354 = vmul.f32 %v344, %v348
      %v355 = vmul.f32 %v345, %v348
      %v356 = vmul.f32 %v346, %v348
      %v357 = vmul.f32 %v349, 0.2
      %v358 = vmul.f32 %v350, 0.2
      %v359 = vmul.f32 %v351, 0.2
      %v360 = vmul.f32 %v352, 0.2
      %v361 = vmul.f32 %v353, 0.2
      %v362 = vmul.f32 %v354, 0.2
      %v363 = vmul.f32 %v355, 0.2
      %v364 = vmul.f32 %v356, 0.2
      %v365 = vmax.f32 %v349, %v357
      %v366 = vmax.f32 %v350, %v358
      %v367 = vmax.f32 %v351, %v359
      %v368 = vmax.f32 %v352, %v360
      %v369 = vmax.f32 %v353, %v361
      %v370 = vmax.f32 %v354, %v362
      %v371 = vmax.f32 %v355, %v363
      %v372 = vmax.f32 %v356, %v364
      %v373 = vmax.f32 %v365, %v367
      %v374 = vmax.f32 %v366, %v368
      %v375 = vmax.f32 %v373, %v369
      %v376 = vmax.f32 %v374, %v370
      %v377 = vmax.f32 %v375, %v371
      %v378 = vmax.f32 %v376, %v372
      %379 = vst.msk [vmem:[%s143] sm:$0xff] %vm283, %v377
      %380 = vst.msk [vmem:[%s143 + $0x8] sm:$0xff] %vm283, %v378
      %p381 = scmp.lt.s32.totalorder %s13, 1
      %s382 = scalar_select %p381, %s13, 1
      %s383 = smul.addr %s382, 2
      %s384 = smul.addr %s383, 8
      %s385 = scalar_lea.vmem %s2, %s384
      // Predicated region
      $region29: #{information_interactive.12} parent=27 // pred_check
        %p386 = pneg %p78
      $region30: #{information_interactive.12} parent=27 // pred_check_branch
        %388 = sbr.rel (%p386) target = $region32
      $region31: #{information_interactive.12} parent=27 // pred_region
        _
      $region32: #{information_interactive.12} parent=27 // pred_fallthru
        _
    $region28: #{information_interactive.12} parent=5 // pred_fallthru
      _
    %p389 = scmp.le.s32.totalorder 2, %s8
    // Predicated region
    $region33: #{information_interactive.12} parent=5 // pred_check
      %p390 = pneg %p389
    $region34: #{information_interactive.12} parent=5 // pred_check_branch
      %392 = sbr.rel (%p390) target = $region36
    $region35: #{information_interactive.12} parent=5 // pred_region
      %s393 = ssub.s32 %s8, 2
      // Predicated region
      $region37: #{information_interactive.12} parent=35 // pred_check
        %p394 = pneg %p84
      $region38: #{information_interactive.12} parent=35 // pred_check_branch
        %396 = sbr.rel (%p394) target = $region40
      $region39: #{information_interactive.12} parent=35 // pred_region
        %p397 = scmp.lt.s32.totalorder %s14, 1
        %s398 = scalar_select %p397, %s14, 1
        %s399 = smul.addr %s398, 2
        %s400 = smul.addr %s399, 8
        %s401 = scalar_lea.vmem %s2, %s400
      $region40: #{information_interactive.12} parent=35 // pred_fallthru
        _
    $region36: #{information_interactive.12} parent=5 // pred_fallthru
      _
  $region6: #{information_interactive.12} parent=0 // loop_footer
    %s12 = sadd.s32 1, %s8
  $region7: #{information_interactive.12} parent=0 // loop_footer_branch
    %7 = sbr.rel target = $region3
  $region8: #{information_interactive.12} parent=0 // loop_exit
    _

// kernel: information_interactive.13
$region0: #{information_interactive.13}
  #allocation0 [shape = 'u32[]', space=smem, size = 0x4, offset = 0x4, fixed_abs, tag = 'smem constant byte address 0x4 - core index']
  #allocation1 [shape = 'u32[144,128]{1,0:T(1,128)}', space=vmem, size = 0x12000, scoped, tag = 'internal scratch']
  %s0 = inlined_call_operand.vmem [shape: bf16[2,4,16,64], index: 0, kind: input, shape index: {}]
  %s1 = inlined_call_operand.vmem [shape: f32[2,16,32], index: 1, kind: input, shape index: {}]
  %s2 = inlined_call_operand.vmem [shape: f32[2,16,32], index: 2, kind: input, shape index: {}]
  %s3 = inlined_call_operand.vmem [shape: bf16[64,64], index: 3, kind: input, shape index: {}]
  %s4 = inlined_call_operand.vmem [shape: bf16[32,32], index: 4, kind: input, shape index: {}]
  %s5 = inlined_call_operand.vmem [shape: bf16[32,32], index: 5, kind: input, shape index: {}]
  %s6 = inlined_call_operand.vmem [shape: bf16[64,32], index: 6, kind: input, shape index: {}]
  %s7 = inlined_call_operand.vmem [shape: f32[2,16,32], index: 7, kind: output, shape index: {}]
  %s8 = sld [smem:[#allocation0]]
  $region61: #{information_interactive.13} parent=0
    _
  %s10 = ssub.s32 1, %s8
  %s11 = scalar_select 0, %s10, %s8
  loop: start=0, step=1, limit=4
  $region2: #{information_interactive.13} parent=0 // loop_pre_header
    _
  $region3: #{information_interactive.13} parent=0 // loop_header
    %s13 = sphi 0, %s17
    %p14 = scmp.ge.s32.totalorder %s13, 4
    %s23 = sphi 0, %s25
    %s26 = sphi 0, %s23
    %s27 = sphi 0, %s26
    %s43 = sphi 0, %s27
    %s49 = sphi 0, %s51
    %s52 = sphi 0, %s49
    %s53 = sphi 0, %s52
    %s69 = sphi 0, %s53
    %s75 = sphi 0, %s77
    %s78 = sphi 0, %s75
    %s79 = sphi 0, %s78
    %s95 = sphi 0, %s79
    %s99 = sphi 0, %s99
    %s101 = sphi 0, %s99
    %s102 = sphi 0, %s101
    %s116 = sphi 0, %s102
    %s120 = sphi 0, %s120
    %s122 = sphi 0, %s120
    %s123 = sphi 0, %s122
    %s137 = sphi 0, %s123
    %s141 = sphi 0, %s141
    %s143 = sphi 0, %s141
    %s144 = sphi 0, %s143
    %s158 = sphi 0, %s144
    %s162 = sphi 0, %s162
    %s164 = sphi 0, %s162
    %s165 = sphi 0, %s164
    %s179 = sphi 0, %s165
    %s185 = sphi 0, %s187
    %s188 = sphi 0, %s185
    %s189 = sphi 0, %s188
    %s205 = sphi 0, %s189
  $region4: #{information_interactive.13} parent=0 // loop_header_branch
    %16 = sbr.rel (%p14) target = $region8
  $region5: #{information_interactive.13} parent=0 // loop_body
    %s18 = ssub.s32 %s13, 1
    %s19 = ssub.s32 %s13, 2
    %s20 = sadd.s32 %s13, 1
    %s21 = ssub.s32 %s13, %s20
    %p22 = scmp.eq.s32.totalorder %s21, 0
    %s24 = sadd.s32 %s23, 1
    %s25 = scalar_select %p22, %s23, %s24
    %p28 = pneg %p22
    %p29 = scmp.eq.s32.totalorder %s13, 1
    %p30 = por %p28, %p29
    %p31 = scmp.ne.s32.totalorder %s23, %s26
    %p32 = scmp.eq.s32.totalorder %s13, 0
    %p33 = por %p31, %p32
    %p34 = scmp.ne.s32.totalorder %s23, %s26
    %p35 = scmp.eq.s32.totalorder %s18, 1
    %p36 = por %p34, %p35
    %p37 = scmp.ne.s32.totalorder %s26, %s27
    %p38 = scmp.eq.s32.totalorder %s18, 0
    %p39 = por %p37, %p38
    %p40 = scmp.ne.s32.totalorder %s26, %s27
    %p41 = scmp.eq.s32.totalorder %s19, 1
    %p42 = por %p40, %p41
    %p44 = scmp.ne.s32.totalorder %s27, %s43
    %p45 = scmp.eq.s32.totalorder %s19, 0
    %p46 = por %p44, %p45
    %s47 = ssub.s32 %s13, %s20
    %p48 = scmp.eq.s32.totalorder %s47, 0
    %s50 = sadd.s32 %s49, 1
    %s51 = scalar_select %p48, %s49, %s50
    %p54 = pneg %p48
    %p55 = scmp.eq.s32.totalorder %s13, 1
    %p56 = por %p54, %p55
    %p57 = scmp.ne.s32.totalorder %s49, %s52
    %p58 = scmp.eq.s32.totalorder %s13, 0
    %p59 = por %p57, %p58
    %p60 = scmp.ne.s32.totalorder %s49, %s52
    %p61 = scmp.eq.s32.totalorder %s18, 1
    %p62 = por %p60, %p61
    %p63 = scmp.ne.s32.totalorder %s52, %s53
    %p64 = scmp.eq.s32.totalorder %s18, 0
    %p65 = por %p63, %p64
    %p66 = scmp.ne.s32.totalorder %s52, %s53
    %p67 = scmp.eq.s32.totalorder %s19, 1
    %p68 = por %p66, %p67
    %p70 = scmp.ne.s32.totalorder %s53, %s69
    %p71 = scmp.eq.s32.totalorder %s19, 0
    %p72 = por %p70, %p71
    %s73 = ssub.s32 %s13, %s20
    %p74 = scmp.eq.s32.totalorder %s73, 0
    %s76 = sadd.s32 %s75, 1
    %s77 = scalar_select %p74, %s75, %s76
    %p80 = pneg %p74
    %p81 = scmp.eq.s32.totalorder %s13, 1
    %p82 = por %p80, %p81
    %p83 = scmp.ne.s32.totalorder %s75, %s78
    %p84 = scmp.eq.s32.totalorder %s13, 0
    %p85 = por %p83, %p84
    %p86 = scmp.ne.s32.totalorder %s75, %s78
    %p87 = scmp.eq.s32.totalorder %s18, 1
    %p88 = por %p86, %p87
    %p89 = scmp.ne.s32.totalorder %s78, %s79
    %p90 = scmp.eq.s32.totalorder %s18, 0
    %p91 = por %p89, %p90
    %p92 = scmp.ne.s32.totalorder %s78, %s79
    %p93 = scmp.eq.s32.totalorder %s19, 1
    %p94 = por %p92, %p93
    %p96 = scmp.ne.s32.totalorder %s79, %s95
    %p97 = scmp.eq.s32.totalorder %s19, 0
    %p98 = por %p96, %p97
    %s100 = sadd.s32 %s99, 1
    %p103 = scmp.eq.s32.totalorder %s13, 1
    %p104 = scmp.ne.s32.totalorder %s99, %s101
    %p105 = scmp.eq.s32.totalorder %s13, 0
    %p106 = por %p104, %p105
    %p107 = scmp.ne.s32.totalorder %s99, %s101
    %p108 = scmp.eq.s32.totalorder %s18, 1
    %p109 = por %p107, %p108
    %p110 = scmp.ne.s32.totalorder %s101, %s102
    %p111 = scmp.eq.s32.totalorder %s18, 0
    %p112 = por %p110, %p111
    %p113 = scmp.ne.s32.totalorder %s101, %s102
    %p114 = scmp.eq.s32.totalorder %s19, 1
    %p115 = por %p113, %p114
    %p117 = scmp.ne.s32.totalorder %s102, %s116
    %p118 = scmp.eq.s32.totalorder %s19, 0
    %p119 = por %p117, %p118
    %s121 = sadd.s32 %s120, 1
    %p124 = scmp.eq.s32.totalorder %s13, 1
    %p125 = scmp.ne.s32.totalorder %s120, %s122
    %p126 = scmp.eq.s32.totalorder %s13, 0
    %p127 = por %p125, %p126
    %p128 = scmp.ne.s32.totalorder %s120, %s122
    %p129 = scmp.eq.s32.totalorder %s18, 1
    %p130 = por %p128, %p129
    %p131 = scmp.ne.s32.totalorder %s122, %s123
    %p132 = scmp.eq.s32.totalorder %s18, 0
    %p133 = por %p131, %p132
    %p134 = scmp.ne.s32.totalorder %s122, %s123
    %p135 = scmp.eq.s32.totalorder %s19, 1
    %p136 = por %p134, %p135
    %p138 = scmp.ne.s32.totalorder %s123, %s137
    %p139 = scmp.eq.s32.totalorder %s19, 0
    %p140 = por %p138, %p139
    %s142 = sadd.s32 %s141, 1
    %p145 = scmp.eq.s32.totalorder %s13, 1
    %p146 = scmp.ne.s32.totalorder %s141, %s143
    %p147 = scmp.eq.s32.totalorder %s13, 0
    %p148 = por %p146, %p147
    %p149 = scmp.ne.s32.totalorder %s141, %s143
    %p150 = scmp.eq.s32.totalorder %s18, 1
    %p151 = por %p149, %p150
    %p152 = scmp.ne.s32.totalorder %s143, %s144
    %p153 = scmp.eq.s32.totalorder %s18, 0
    %p154 = por %p152, %p153
    %p155 = scmp.ne.s32.totalorder %s143, %s144
    %p156 = scmp.eq.s32.totalorder %s19, 1
    %p157 = por %p155, %p156
    %p159 = scmp.ne.s32.totalorder %s144, %s158
    %p160 = scmp.eq.s32.totalorder %s19, 0
    %p161 = por %p159, %p160
    %s163 = sadd.s32 %s162, 1
    %p166 = scmp.eq.s32.totalorder %s13, 1
    %p167 = scmp.ne.s32.totalorder %s162, %s164
    %p168 = scmp.eq.s32.totalorder %s13, 0
    %p169 = por %p167, %p168
    %p170 = scmp.ne.s32.totalorder %s162, %s164
    %p171 = scmp.eq.s32.totalorder %s18, 1
    %p172 = por %p170, %p171
    %p173 = scmp.ne.s32.totalorder %s164, %s165
    %p174 = scmp.eq.s32.totalorder %s18, 0
    %p175 = por %p173, %p174
    %p176 = scmp.ne.s32.totalorder %s164, %s165
    %p177 = scmp.eq.s32.totalorder %s19, 1
    %p178 = por %p176, %p177
    %p180 = scmp.ne.s32.totalorder %s165, %s179
    %p181 = scmp.eq.s32.totalorder %s19, 0
    %p182 = por %p180, %p181
    %s183 = ssub.s32 %s13, %s20
    %p184 = scmp.eq.s32.totalorder %s183, 0
    %s186 = sadd.s32 %s185, 1
    %s187 = scalar_select %p184, %s185, %s186
    %p190 = pneg %p184
    %p191 = scmp.eq.s32.totalorder %s13, 1
    %p192 = por %p190, %p191
    %p193 = scmp.ne.s32.totalorder %s185, %s188
    %p194 = scmp.eq.s32.totalorder %s13, 0
    %p195 = por %p193, %p194
    %p196 = scmp.ne.s32.totalorder %s185, %s188
    %p197 = scmp.eq.s32.totalorder %s18, 1
    %p198 = por %p196, %p197
    %p199 = scmp.ne.s32.totalorder %s188, %s189
    %p200 = scmp.eq.s32.totalorder %s18, 0
    %p201 = por %p199, %p200
    %p202 = scmp.ne.s32.totalorder %s188, %s189
    %p203 = scmp.eq.s32.totalorder %s19, 1
    %p204 = por %p202, %p203
    %p206 = scmp.ne.s32.totalorder %s189, %s205
    %p207 = scmp.eq.s32.totalorder %s19, 0
    %p208 = por %p206, %p207
    %p209 = scmp.le.s32.totalorder 1, %s13
    %p210 = scmp.lt.s32.totalorder %s13, 3
    %p211 = pnand %p209, %p210
    %p212 = pneg %p211
    // Predicated region
    $region9: #{information_interactive.13} parent=5 // pred_check
      _
    $region10: #{information_interactive.13} parent=5 // pred_check_branch
      %214 = sbr.rel (%p211) target = $region12
    $region11: #{information_interactive.13} parent=5 // pred_region
      %s215 = ssub.s32 %s13, 1
      // Predicated region
      $region13: #{information_interactive.13} parent=11 // pred_check
        %p216 = pneg %p112
      $region14: #{information_interactive.13} parent=11 // pred_check_branch
        %218 = sbr.rel (%p216) target = $region16
      $region15: #{information_interactive.13} parent=11 // pred_region
        _
      $region16: #{information_interactive.13} parent=11 // pred_fallthru
        _
      // Predicated region
      $region17: #{information_interactive.13} parent=11 // pred_check
        %p219 = pneg %p133
      $region18: #{information_interactive.13} parent=11 // pred_check_branch
        %221 = sbr.rel (%p219) target = $region20
      $region19: #{information_interactive.13} parent=11 // pred_region
        _
      $region20: #{information_interactive.13} parent=11 // pred_fallthru
        _
      // Predicated region
      $region21: #{information_interactive.13} parent=11 // pred_check
        %p222 = pneg %p154
      $region22: #{information_interactive.13} parent=11 // pred_check_branch
        %224 = sbr.rel (%p222) target = $region24
      $region23: #{information_interactive.13} parent=11 // pred_region
        _
      $region24: #{information_interactive.13} parent=11 // pred_fallthru
        _
      // Predicated region
      $region25: #{information_interactive.13} parent=11 // pred_check
        %p225 = pneg %p175
      $region26: #{information_interactive.13} parent=11 // pred_check_branch
        %227 = sbr.rel (%p225) target = $region28
      $region27: #{information_interactive.13} parent=11 // pred_region
        _
      $region28: #{information_interactive.13} parent=11 // pred_fallthru
        _
    $region12: #{information_interactive.13} parent=5 // pred_fallthru
      _
    %p228 = scmp.lt.s32.totalorder %s13, 2
    // Predicated region
    $region29: #{information_interactive.13} parent=5 // pred_check
      %p229 = pneg %p228
    $region30: #{information_interactive.13} parent=5 // pred_check_branch
      %231 = sbr.rel (%p229) target = $region32
    $region31: #{information_interactive.13} parent=5 // pred_region
      // Predicated region
      $region33: #{information_interactive.13} parent=31 // pred_check
        %p232 = pneg %p33
      $region34: #{information_interactive.13} parent=31 // pred_check_branch
        %234 = sbr.rel (%p232) target = $region36
      $region35: #{information_interactive.13} parent=31 // pred_region
        %p235 = scmp.lt.s32.totalorder %s13, 1
        %s236 = scalar_select %p235, %s13, 1
        %s237 = smul.addr %s236, 8
        %s238 = smul.addr %s237, 4
        %s239 = scalar_lea.vmem %s0, %s238
      $region36: #{information_interactive.13} parent=31 // pred_fallthru
        _
      // Predicated region
      $region37: #{information_interactive.13} parent=31 // pred_check
        %p240 = pneg %p59
      $region38: #{information_interactive.13} parent=31 // pred_check_branch
        %242 = sbr.rel (%p240) target = $region40
      $region39: #{information_interactive.13} parent=31 // pred_region
        %p243 = scmp.lt.s32.totalorder %s13, 1
        %s244 = scalar_select %p243, %s13, 1
        %s245 = smul.addr %s244, 2
        %s246 = smul.addr %s245, 8
        %s247 = scalar_lea.vmem %s1, %s246
      $region40: #{information_interactive.13} parent=31 // pred_fallthru
        _
      // Predicated region
      $region41: #{information_interactive.13} parent=31 // pred_check
        %p248 = pneg %p85
      $region42: #{information_interactive.13} parent=31 // pred_check_branch
        %250 = sbr.rel (%p248) target = $region44
      $region43: #{information_interactive.13} parent=31 // pred_region
        %p251 = scmp.lt.s32.totalorder %s13, 1
        %s252 = scalar_select %p251, %s13, 1
        %s253 = smul.addr %s252, 2
        %s254 = smul.addr %s253, 8
        %s255 = scalar_lea.vmem %s2, %s254
      $region44: #{information_interactive.13} parent=31 // pred_fallthru
        _
    $region32: #{information_interactive.13} parent=5 // pred_fallthru
      _
    %p256 = scmp.le.s32.totalorder 1, %s13
    %p257 = scmp.lt.s32.totalorder %s13, 3
    %p258 = pnand %p256, %p257
    %p259 = pneg %p258
    // Predicated region
    $region45: #{information_interactive.13} parent=5 // pred_check
      _
    $region46: #{information_interactive.13} parent=5 // pred_check_branch
      %261 = sbr.rel (%p258) target = $region48
    $region47: #{information_interactive.13} parent=5 // pred_region
      %s262 = ssub.s32 %s13, 1
      %p263 = scmp.lt.s32.totalorder %s18, 1
      %s264 = scalar_select %p263, %s18, 1
      %s265 = smul.addr %s264, 8
      %s266 = smul.addr %s265, 4
      %s267 = scalar_lea.vmem %s0, %s266
      %p268 = pneg %p39
      %p269 = pneg %p36
      %p270 = scmp.lt.s32.totalorder %s18, 1
      %s271 = scalar_select %p270, %s18, 1
      %s272 = smul.addr %s271, 2
      %s273 = smul.addr %s272, 8
      %s274 = scalar_lea.vmem %s1, %s273
      %p275 = pneg %p65
      %p276 = pneg %p62
      %p277 = scmp.lt.s32.totalorder %s18, 1
      %s278 = scalar_select %p277, %s18, 1
      %s279 = smul.addr %s278, 2
      %s280 = smul.addr %s279, 8
      %s281 = scalar_lea.vmem %s2, %s280
      %p282 = pneg %p91
      %p283 = pneg %p88
      %p284 = pneg %p112
      %p285 = pneg %p109
      %p286 = pneg %p133
      %p287 = pneg %p130
      %p288 = pneg %p154
      %p289 = pneg %p151
      %p290 = pneg %p175
      %p291 = pneg %p172
      %p292 = pneg %p201
      %p293 = pneg %p198
      %p294 = scmp.lt.s32.totalorder %s18, 1
      %s295 = scalar_select %p294, %s18, 1
      %s296 = smul.addr %s295, 2
      %s297 = smul.addr %s296, 8
      %s298 = scalar_lea.vmem %s7, %s297
      %p299 = scmp.lt.s32.totalorder %s18, 1
      %s300 = scalar_select %p299, %s18, 1
      %s301 = smul.addr %s300, 8
      %s302 = smul.addr %s301, 4
      %s303 = scalar_lea.vmem %s0, %s302
      %p304 = scmp.lt.s32.totalorder %s18, 1
      %s305 = scalar_select %p304, %s18, 1
      %s306 = smul.addr %s305, 2
      %s307 = smul.addr %s306, 8
      %s308 = scalar_lea.vmem %s1, %s307
      %p309 = scmp.lt.s32.totalorder %s18, 1
      %s310 = scalar_select %p309, %s18, 1
      %s311 = smul.addr %s310, 2
      %s312 = smul.addr %s311, 8
      %s313 = scalar_lea.vmem %s2, %s312
      %p314 = scmp.lt.s32.totalorder %s18, 1
      %s315 = scalar_select %p314, %s18, 1
      %s316 = smul.addr %s315, 2
      %s317 = smul.addr %s316, 8
      %s318 = scalar_lea.vmem %s7, %s317
      %v320 = vld [vmem:[%s303] sm:$0xf]
      %v321 = vld [vmem:[%s303 + $0x4] sm:$0xf]
      %v322 = vld [vmem:[%s303 + $0x8] sm:$0xf]
      %v323 = vld [vmem:[%s303 + $0xc] sm:$0xf]
      %v324 = vld [vmem:[%s303 + $0x10] sm:$0xf]
      %v325 = vld [vmem:[%s303 + $0x14] sm:$0xf]
      %v326 = vld [vmem:[%s303 + $0x18] sm:$0xf]
      %v327 = vld [vmem:[%s303 + $0x1c] sm:$0xf]
      %v328 = vld [vmem:[%s3] sm:$0xf]
      %v329 = vld [vmem:[%s3 + $0x4] sm:$0xf]
      %v330 = vld [vmem:[%s3 + $0x8] sm:$0xf]
      %v331 = vld [vmem:[%s3 + $0xc] sm:$0xf]
      %v332 = vld [vmem:[%s3 + $0x10] sm:$0xf]
      %v333 = vld [vmem:[%s3 + $0x14] sm:$0xf]
      %v334 = vld [vmem:[%s3 + $0x18] sm:$0xf]
      %v335 = vld [vmem:[%s3 + $0x1c] sm:$0xf]
      %v344 = vunpack.c.l.b16 %v320
      %v345 = vunpack.c.l.b16 %v321
      %v346 = vunpack.c.l.b16 %v322
      %v347 = vunpack.c.l.b16 %v323
      %v348 = vunpack.c.l.b16 %v324
      %v349 = vunpack.c.l.b16 %v325
      %v350 = vunpack.c.l.b16 %v326
      %v351 = vunpack.c.l.b16 %v327
      %v352 = vpack.c.b16 %v345, %v344
      %v353 = vpack.c.b16 %v347, %v346
      %v354 = vpack.c.b16 %v349, %v348
      %v355 = vpack.c.b16 %v351, %v350
      %v364 = vunpack.c.l.b16 %v328
      %v365 = vunpack.c.l.b16 %v329
      %v366 = vunpack.c.l.b16 %v330
      %v367 = vunpack.c.l.b16 %v331
      %v368 = vunpack.c.l.b16 %v332
      %v369 = vunpack.c.l.b16 %v333
      %v370 = vunpack.c.l.b16 %v334
      %v371 = vunpack.c.l.b16 %v335
      %v372 = vpack.c.b16 %v365, %v364
      %v373 = vpack.c.b16 %v367, %v366
      %v374 = vpack.c.b16 %v369, %v368
      %v375 = vpack.c.b16 %v371, %v370
      %vm380 = vcmask 523264
      %v382 = vsel %vm380, %v352, 0
      %v385 = vsel %vm380, %v353, 0
      %v388 = vsel %vm380, %v354, 0
      %v391 = vsel %vm380, %v355, 0
      %393 = vmatprep.subr.bf16.mxu0 0
      %394 = vmatpush1.bf16.msra.mxu0 %v372
      %395 = vmatprep.subr.bf16.mxu0 0
      %396 = vmatpush1.bf16.msra.mxu0 %v373
      %397 = vmatprep.subr.bf16.mxu0 0
      %398 = vmatpush1.bf16.msra.mxu0 %v374
      %399 = vmatprep.subr.bf16.mxu0 0
      %400 = vmatpush1.bf16.msra.mxu0 %v375
      %401 = vmatprep.subr.bf16.mxu0 0
      %402 = vmatpush1.bf16.msra.mxu0 0
      %403 = vmatprep.subr.bf16.mxu0 0
      %404 = vmatpush1.bf16.msra.mxu0 0
      %405 = vmatprep.subr.bf16.mxu0 0
      %406 = vmatpush1.bf16.msra.mxu0 0
      %407 = vmatprep.subr.bf16.mxu0 0
      %408 = vmatpush1.bf16.msra.mxu0 0
      %409 = vmatprep.subr.bf16.mxu0 0
      %410 = vmatpush1.bf16.msra.mxu0 0
      %411 = vmatprep.subr.bf16.mxu0 0
      %412 = vmatpush1.bf16.msra.mxu0 0
      %413 = vmatprep.subr.bf16.mxu0 0
      %414 = vmatpush1.bf16.msra.mxu0 0
      %415 = vmatprep.subr.bf16.mxu0 0
      %416 = vmatpush1.bf16.msra.mxu0 0
      %417 = vmatprep.subr.bf16.mxu0 0
      %418 = vmatpush1.bf16.msra.mxu0 0
      %419 = vmatprep.subr.bf16.mxu0 0
      %420 = vmatpush1.bf16.msra.mxu0 0
      %421 = vmatprep.subr.bf16.mxu0 0
      %422 = vmatpush1.bf16.msra.mxu0 0
      %423 = vmatprep.subr.bf16.mxu0 0
      %424 = vmatpush1.bf16.msra.mxu0 0
      %425 = vmatprep.mubr.bf16.mxu0 0
      %426 = vmatmul.mubr.bf16.gmra.mrb[0].mxu0 %v382
      %v427 = vpop.f32.mrb[0].mxu0
      %v428 = vadd.f32 0.0, %v427
      %v429 = vpop.f32.mrb[0].mxu0
      %v430 = vpop.f32.mrb[0].mxu0
      %v431 = vadd.f32 0.0, %v430
      %v432 = vpop.f32.mrb[0].mxu0
      %433 = vmatprep.mubr.bf16.mxu0 0
      %434 = vmatmul.mubr.bf16.gmra.mrb[0].mxu0 %v385
      %v435 = vpop.f32.mrb[0].mxu0
      %v436 = vadd.f32 0.0, %v435
      %v437 = vpop.f32.mrb[0].mxu0
      %v438 = vpop.f32.mrb[0].mxu0
      %v439 = vadd.f32 0.0, %v438
      %v440 = vpop.f32.mrb[0].mxu0
      %441 = vmatprep.mubr.bf16.mxu0 0
      %442 = vmatmul.mubr.bf16.gmra.mrb[0].mxu0 %v388
      %v443 = vpop.f32.mrb[0].mxu0
      %v444 = vadd.f32 0.0, %v443
      %v445 = vpop.f32.mrb[0].mxu0
      %v446 = vpop.f32.mrb[0].mxu0
      %v447 = vadd.f32 0.0, %v446
      %v448 = vpop.f32.mrb[0].mxu0
      %449 = vmatprep.mubr.bf16.mxu0 0
      %450 = vmatmul.mubr.bf16.gmra.mrb[0].mxu0 %v391
      %v451 = vpop.f32.mrb[0].mxu0
      %v452 = vadd.f32 0.0, %v451
      %v453 = vpop.f32.mrb[0].mxu0
      %v454 = vpop.f32.mrb[0].mxu0
      %v455 = vadd.f32 0.0, %v454
      %v456 = vpop.f32.mrb[0].mxu0
      %457 = vdwg.mxu0
      %v458 = vsel %vm380, %v428, 0.0
      %v459 = vsel %vm380, %v431, 0.0
      %v460 = vadd.f32 %v458, %v459
      %v461 = vsel %vm380, %v436, 0.0
      %v462 = vadd.f32 %v460, %v461
      %v463 = vsel %vm380, %v439, 0.0
      %v464 = vadd.f32 %v462, %v463
      %v465 = vsel %vm380, %v444, 0.0
      %v466 = vadd.f32 %v464, %v465
      %v467 = vsel %vm380, %v447, 0.0
      %v468 = vadd.f32 %v466, %v467
      %v469 = vsel %vm380, %v452, 0.0
      %v470 = vadd.f32 %v468, %v469
      %v471 = vsel %vm380, %v455, 0.0
      %v472 = vadd.f32 %v470, %v471
      %v473 = vrot.slane %v472, 4
      %v474 = vadd.f32 %v472, %v473
      %v475 = vrot.slane %v474, 2
      %v476 = vadd.f32 %v474, %v475
      %v477 = vrot.slane %v476, 1
      %v478 = vadd.f32 %v476, %v477
      %v479 = vmul.f32 %v478, 0.015625
      %v480 = vmul.f32 %v428, %v428
      %v481 = vmul.f32 %v431, %v431
      %v482 = vmul.f32 %v436, %v436
      %v483 = vmul.f32 %v439, %v439
      %v484 = vmul.f32 %v444, %v444
      %v485 = vmul.f32 %v447, %v447
      %v486 = vmul.f32 %v452, %v452
      %v487 = vmul.f32 %v455, %v455
      %v488 = vsel %vm380, %v480, 0.0
      %v489 = vsel %vm380, %v481, 0.0
      %v490 = vadd.f32 %v488, %v489
      %v491 = vsel %vm380, %v482, 0.0
      %v492 = vadd.f32 %v490, %v491
      %v493 = vsel %vm380, %v483, 0.0
      %v494 = vadd.f32 %v492, %v493
      %v495 = vsel %vm380, %v484, 0.0
      %v496 = vadd.f32 %v494, %v495
      %v497 = vsel %vm380, %v485, 0.0
      %v498 = vadd.f32 %v496, %v497
      %v499 = vsel %vm380, %v486, 0.0
      %v500 = vadd.f32 %v498, %v499
      %v501 = vsel %vm380, %v487, 0.0
      %v502 = vadd.f32 %v500, %v501
      %v503 = vrot.slane %v502, 4
      %v504 = vadd.f32 %v502, %v503
      %v505 = vrot.slane %v504, 2
      %v506 = vadd.f32 %v504, %v505
      %v507 = vrot.slane %v506, 1
      %v508 = vadd.f32 %v506, %v507
      %v509 = vmul.f32 %v508, 0.015625
      %v510 = vmul.f32 %v479, %v479
      %v511 = vsub.f32 %v509, %v510
      %v512 = vmax.f32 %v511, 0.0
      %v513 = vsub.f32 %v428, %v479
      %v514 = vsub.f32 %v431, %v479
      %v515 = vsub.f32 %v436, %v479
      %v516 = vsub.f32 %v439, %v479
      %v517 = vsub.f32 %v444, %v479
      %v518 = vsub.f32 %v447, %v479
      %v519 = vsub.f32 %v452, %v479
      %v520 = vsub.f32 %v455, %v479
      %v521 = vadd.f32 %v512, 1e-05
      %v522 = vrsqrt.pop %v521
      %v523 = vmul.f32 %v513, %v522
      %v524 = vmul.f32 %v514, %v522
      %v525 = vmul.f32 %v515, %v522
      %v526 = vmul.f32 %v516, %v522
      %v527 = vmul.f32 %v517, %v522
      %v528 = vmul.f32 %v518, %v522
      %v529 = vmul.f32 %v519, %v522
      %v530 = vmul.f32 %v520, %v522
      %v531 = vmul.f32 %v523, 0.2
      %v532 = vmul.f32 %v524, 0.2
      %v533 = vmul.f32 %v525, 0.2
      %v534 = vmul.f32 %v526, 0.2
      %v535 = vmul.f32 %v527, 0.2
      %v536 = vmul.f32 %v528, 0.2
      %v537 = vmul.f32 %v529, 0.2
      %v538 = vmul.f32 %v530, 0.2
      %v539 = vmax.f32 %v523, %v531
      %v540 = vmax.f32 %v524, %v532
      %v541 = vmax.f32 %v525, %v533
      %v542 = vmax.f32 %v526, %v534
      %v543 = vmax.f32 %v527, %v535
      %v544 = vmax.f32 %v528, %v536
      %v545 = vmax.f32 %v529, %v537
      %v546 = vmax.f32 %v530, %v538
      %v547 = vmax.f32 %v539, %v541
      %v548 = vmax.f32 %v540, %v542
      %v549 = vmax.f32 %v547, %v543
      %v550 = vmax.f32 %v548, %v544
      %v551 = vmax.f32 %v549, %v545
      %v552 = vmax.f32 %v550, %v546
      %v553 = vld [vmem:[%s308] sm:$0xff]
      %v554 = vld [vmem:[%s308 + $0x8] sm:$0xff]
      %v555 = vpack.c.bf16 %v554, %v553
      %v556 = vld [vmem:[%s4] sm:$0xf]
      %v557 = vld [vmem:[%s4 + $0x4] sm:$0xf]
      %v558 = vld [vmem:[%s4 + $0x8] sm:$0xf]
      %v559 = vld [vmem:[%s4 + $0xc] sm:$0xf]
      %v560 = vld [vmem:[%s313] sm:$0xff]
      %v561 = vld [vmem:[%s313 + $0x8] sm:$0xff]
      %v562 = vpack.c.bf16 %v561, %v560
      %v563 = vld [vmem:[%s5] sm:$0xf]
      %v564 = vld [vmem:[%s5 + $0x4] sm:$0xf]
      %v565 = vld [vmem:[%s5 + $0x8] sm:$0xf]
      %v566 = vld [vmem:[%s5 + $0xc] sm:$0xf]
      %v571 = vunpack.c.l.b16 %v563
      %v572 = vunpack.c.l.b16 %v564
      %v573 = vunpack.c.l.b16 %v565
      %v574 = vunpack.c.l.b16 %v566
      %v575 = vpack.c.b16 %v572, %v571
      %v576 = vpack.c.b16 %v574, %v573
      %vm579 = vcmask 261120
      %v581 = vsel %vm579, %v562, 0
      %583 = vmatprep.subr.bf16.mxu0 0
      %584 = vmatpush1.bf16.msra.mxu0 %v575
      %585 = vmatprep.subr.bf16.mxu0 0
      %586 = vmatpush1.bf16.msra.mxu0 %v576
      %587 = vmatprep.subr.bf16.mxu0 0
      %588 = vmatpush1.bf16.msra.mxu0 0
      %589 = vmatprep.subr.bf16.mxu0 0
      %590 = vmatpush1.bf16.msra.mxu0 0
      %591 = vmatprep.subr.bf16.mxu0 0
      %592 = vmatpush1.bf16.msra.mxu0 0
      %593 = vmatprep.subr.bf16.mxu0 0
      %594 = vmatpush1.bf16.msra.mxu0 0
      %595 = vmatprep.subr.bf16.mxu0 0
      %596 = vmatpush1.bf16.msra.mxu0 0
      %597 = vmatprep.subr.bf16.mxu0 0
      %598 = vmatpush1.bf16.msra.mxu0 0
      %599 = vmatprep.subr.bf16.mxu0 0
      %600 = vmatpush1.bf16.msra.mxu0 0
      %601 = vmatprep.subr.bf16.mxu0 0
      %602 = vmatpush1.bf16.msra.mxu0 0
      %603 = vmatprep.subr.bf16.mxu0 0
      %604 = vmatpush1.bf16.msra.mxu0 0
      %605 = vmatprep.subr.bf16.mxu0 0
      %606 = vmatpush1.bf16.msra.mxu0 0
      %607 = vmatprep.subr.bf16.mxu0 0
      %608 = vmatpush1.bf16.msra.mxu0 0
      %609 = vmatprep.subr.bf16.mxu0 0
      %610 = vmatpush1.bf16.msra.mxu0 0
      %611 = vmatprep.subr.bf16.mxu0 0
      %612 = vmatpush1.bf16.msra.mxu0 0
      %613 = vmatprep.subr.bf16.mxu0 0
      %614 = vmatpush1.bf16.msra.mxu0 0
      %615 = vmatprep.mubr.bf16.mxu0 0
      %616 = vmatmul.mubr.bf16.gmra.mrb[0].mxu0 %v581
      %v617 = vpop.f32.mrb[0].mxu0
      %v618 = vadd.f32 0.0, %v617
      %v619 = vpop.f32.mrb[0].mxu0
      %v620 = vpop.f32.mrb[0].mxu0
      %v621 = vadd.f32 0.0, %v620
      %v622 = vpop.f32.mrb[0].mxu0
      %623 = vdwg.mxu0
      %v628 = vunpack.c.l.b16 %v556
      %v629 = vunpack.c.l.b16 %v557
      %v630 = vunpack.c.l.b16 %v558
      %v631 = vunpack.c.l.b16 %v559
      %v632 = vpack.c.b16 %v629, %v628
      %v633 = vpack.c.b16 %v631, %v630
      %v637 = vsel %vm579, %v555, 0
      %639 = vmatprep.subr.bf16.mxu0 0
      %640 = vmatpush1.bf16.msra.mxu0 %v632
      %641 = vmatprep.subr.bf16.mxu0 0
      %642 = vmatpush1.bf16.msra.mxu0 %v633
      %643 = vmatprep.subr.bf16.mxu0 0
      %644 = vmatpush1.bf16.msra.mxu0 0
      %645 = vmatprep.subr.bf16.mxu0 0
      %646 = vmatpush1.bf16.msra.mxu0 0
      %647 = vmatprep.subr.bf16.mxu0 0
      %648 = vmatpush1.bf16.msra.mxu0 0
      %649 = vmatprep.subr.bf16.mxu0 0
      %650 = vmatpush1.bf16.msra.mxu0 0
      %651 = vmatprep.subr.bf16.mxu0 0
      %652 = vmatpush1.bf16.msra.mxu0 0
      %653 = vmatprep.subr.bf16.mxu0 0
      %654 = vmatpush1.bf16.msra.mxu0 0
      %655 = vmatprep.subr.bf16.mxu0 0
      %656 = vmatpush1.bf16.msra.mxu0 0
      %657 = vmatprep.subr.bf16.mxu0 0
      %658 = vmatpush1.bf16.msra.mxu0 0
      %659 = vmatprep.subr.bf16.mxu0 0
      %660 = vmatpush1.bf16.msra.mxu0 0
      %661 = vmatprep.subr.bf16.mxu0 0
      %662 = vmatpush1.bf16.msra.mxu0 0
      %663 = vmatprep.subr.bf16.mxu0 0
      %664 = vmatpush1.bf16.msra.mxu0 0
      %665 = vmatprep.subr.bf16.mxu0 0
      %666 = vmatpush1.bf16.msra.mxu0 0
      %667 = vmatprep.subr.bf16.mxu0 0
      %668 = vmatpush1.bf16.msra.mxu0 0
      %669 = vmatprep.subr.bf16.mxu0 0
      %670 = vmatpush1.bf16.msra.mxu0 0
      %671 = vmatprep.mubr.bf16.mxu0 0
      %672 = vmatmul.mubr.bf16.gmra.mrb[0].mxu0 %v637
      %v673 = vpop.f32.mrb[0].mxu0
      %v674 = vadd.f32 %v618, %v673
      %v675 = vpop.f32.mrb[0].mxu0
      %v676 = vpop.f32.mrb[0].mxu0
      %v677 = vadd.f32 %v621, %v676
      %v678 = vpop.f32.mrb[0].mxu0
      %679 = vdwg.mxu0
      %v680 = vpack.c.bf16 %v552, %v551
      %v681 = vld [vmem:[%s6] sm:$0xf]
      %v682 = vld [vmem:[%s6 + $0x4] sm:$0xf]
      %v683 = vld [vmem:[%s6 + $0x8] sm:$0xf]
      %v684 = vld [vmem:[%s6 + $0xc] sm:$0xf]
      %v685 = vld [vmem:[%s6 + $0x10] sm:$0xf]
      %v686 = vld [vmem:[%s6 + $0x14] sm:$0xf]
      %v687 = vld [vmem:[%s6 + $0x18] sm:$0xf]
      %v688 = vld [vmem:[%s6 + $0x1c] sm:$0xf]
      %v697 = vunpack.c.l.b16 %v681
      %v698 = vunpack.c.l.b16 %v682
      %v699 = vunpack.c.l.b16 %v683
      %v700 = vunpack.c.l.b16 %v684
      %v701 = vunpack.c.l.b16 %v685
      %v702 = vunpack.c.l.b16 %v686
      %v703 = vunpack.c.l.b16 %v687
      %v704 = vunpack.c.l.b16 %v688
      %v705 = vpack.c.b16 %v698, %v697
      %v706 = vpack.c.b16 %v700, %v699
      %v707 = vpack.c.b16 %v702, %v701
      %v708 = vpack.c.b16 %v704, %v703
      %v714 = vsel %vm380, %v680, 0
      %716 = vmatprep.subr.bf16.mxu0 0
      %717 = vmatpush1.bf16.msra.mxu0 %v705
      %718 = vmatprep.subr.bf16.mxu0 0
      %719 = vmatpush1.bf16.msra.mxu0 %v706
      %720 = vmatprep.subr.bf16.mxu0 0
      %721 = vmatpush1.bf16.msra.mxu0 %v707
      %722 = vmatprep.subr.bf16.mxu0 0
      %723 = vmatpush1.bf16.msra.mxu0 %v708
      %724 = vmatprep.subr.bf16.mxu0 0
      %725 = vmatpush1.bf16.msra.mxu0 0
      %726 = vmatprep.subr.bf16.mxu0 0
      %727 = vmatpush1.bf16.msra.mxu0 0
      %728 = vmatprep.subr.bf16.mxu0 0
      %729 = vmatpush1.bf16.msra.mxu0 0
      %730 = vmatprep.subr.bf16.mxu0 0
      %731 = vmatpush1.bf16.msra.mxu0 0
      %732 = vmatprep.subr.bf16.mxu0 0
      %733 = vmatpush1.bf16.msra.mxu0 0
      %734 = vmatprep.subr.bf16.mxu0 0
      %735 = vmatpush1.bf16.msra.mxu0 0
      %736 = vmatprep.subr.bf16.mxu0 0
      %737 = vmatpush1.bf16.msra.mxu0 0
      %738 = vmatprep.subr.bf16.mxu0 0
      %739 = vmatpush1.bf16.msra.mxu0 0
      %740 = vmatprep.subr.bf16.mxu0 0
      %741 = vmatpush1.bf16.msra.mxu0 0
      %742 = vmatprep.subr.bf16.mxu0 0
      %743 = vmatpush1.bf16.msra.mxu0 0
      %744 = vmatprep.subr.bf16.mxu0 0
      %745 = vmatpush1.bf16.msra.mxu0 0
      %746 = vmatprep.subr.bf16.mxu0 0
      %747 = vmatpush1.bf16.msra.mxu0 0
      %748 = vmatprep.mubr.bf16.mxu0 0
      %749 = vmatmul.mubr.bf16.gmra.mrb[0].mxu0 %v714
      %v750 = vpop.f32.mrb[0].mxu0
      %v751 = vadd.f32 0.0, %v750
      %v752 = vpop.f32.mrb[0].mxu0
      %v753 = vpop.f32.mrb[0].mxu0
      %v754 = vadd.f32 0.0, %v753
      %v755 = vpop.f32.mrb[0].mxu0
      %756 = vdwg.mxu0
      %v757 = vadd.f32 %v674, %v751
      %v758 = vadd.f32 %v677, %v754
      %v759 = vsel %vm579, %v757, 0.0
      %v760 = vsel %vm579, %v758, 0.0
      %v761 = vadd.f32 %v759, %v760
      %v762 = vrot.slane %v761, 4
      %v763 = vadd.f32 %v761, %v762
      %v764 = vrot.slane %v763, 2
      %v765 = vadd.f32 %v763, %v764
      %v766 = vrot.slane %v765, 1
      %v767 = vadd.f32 %v765, %v766
      %v768 = vmul.f32 %v767, 0.0625
      %v769 = vmul.f32 %v757, %v757
      %v770 = vmul.f32 %v758, %v758
      %v771 = vsel %vm579, %v769, 0.0
      %v772 = vsel %vm579, %v770, 0.0
      %v773 = vadd.f32 %v771, %v772
      %v774 = vrot.slane %v773, 4
      %v775 = vadd.f32 %v773, %v774
      %v776 = vrot.slane %v775, 2
      %v777 = vadd.f32 %v775, %v776
      %v778 = vrot.slane %v777, 1
      %v779 = vadd.f32 %v777, %v778
      %v780 = vmul.f32 %v779, 0.0625
      %v781 = vmul.f32 %v768, %v768
      %v782 = vsub.f32 %v780, %v781
      %v783 = vmax.f32 %v782, 0.0
      %v784 = vsub.f32 %v757, %v768
      %v785 = vsub.f32 %v758, %v768
      %v786 = vadd.f32 %v783, 1e-05
      %v787 = vrsqrt.pop %v786
      %v788 = vmul.f32 %v784, %v787
      %v789 = vmul.f32 %v785, %v787
      %v790 = vmul.f32 %v788, 0.2
      %v791 = vmul.f32 %v789, 0.2
      %v792 = vmax.f32 %v788, %v790
      %v793 = vmax.f32 %v789, %v791
      %794 = vst.msk [vmem:[%s318] sm:$0xff] %vm579, %v792
      %795 = vst.msk [vmem:[%s318 + $0x8] sm:$0xff] %vm579, %v793
      %p796 = scmp.lt.s32.totalorder %s18, 1
      %s797 = scalar_select %p796, %s18, 1
      %s798 = smul.addr %s797, 2
      %s799 = smul.addr %s798, 8
      %s800 = scalar_lea.vmem %s7, %s799
      // Predicated region
      $region49: #{information_interactive.13} parent=47 // pred_check
        %p801 = pneg %p198
      $region50: #{information_interactive.13} parent=47 // pred_check_branch
        %803 = sbr.rel (%p801) target = $region52
      $region51: #{information_interactive.13} parent=47 // pred_region
        _
      $region52: #{information_interactive.13} parent=47 // pred_fallthru
        _
    $region48: #{information_interactive.13} parent=5 // pred_fallthru
      _
    %p804 = scmp.le.s32.totalorder 2, %s13
    // Predicated region
    $region53: #{information_interactive.13} parent=5 // pred_check
      %p805 = pneg %p804
    $region54: #{information_interactive.13} parent=5 // pred_check_branch
      %807 = sbr.rel (%p805) target = $region56
    $region55: #{information_interactive.13} parent=5 // pred_region
      %s808 = ssub.s32 %s13, 2
      // Predicated region
      $region57: #{information_interactive.13} parent=55 // pred_check
        %p809 = pneg %p204
      $region58: #{information_interactive.13} parent=55 // pred_check_branch
        %811 = sbr.rel (%p809) target = $region60
      $region59: #{information_interactive.13} parent=55 // pred_region
        %p812 = scmp.lt.s32.totalorder %s19, 1
        %s813 = scalar_select %p812, %s19, 1
        %s814 = smul.addr %s813, 2
        %s815 = smul.addr %s814, 8
        %s816 = scalar_lea.vmem %s7, %s815
      $region60: #{information_interactive.13} parent=55 // pred_fallthru
        _
    $region56: #{information_interactive.13} parent=5 // pred_fallthru
      _
  $region6: #{information_interactive.13} parent=0 // loop_footer
    %s17 = sadd.s32 1, %s13
  $region7: #{information_interactive.13} parent=0 // loop_footer_branch
    %12 = sbr.rel target = $region3
  $region8: #{information_interactive.13} parent=0 // loop_exit
    _

// kernel: information_interactive.14
$region0: #{information_interactive.14}
  #allocation0 [shape = 'u32[]', space=smem, size = 0x4, offset = 0x4, fixed_abs, tag = 'smem constant byte address 0x4 - core index']
  #allocation1 [shape = 'u32[144,128]{1,0:T(1,128)}', space=vmem, size = 0x12000, scoped, tag = 'internal scratch']
  %s0 = inlined_call_operand.vmem [shape: f32[2,16,32], index: 0, kind: input, shape index: {}]
  %s1 = inlined_call_operand.vmem [shape: f32[2,16,32], index: 1, kind: input, shape index: {}]
  %s2 = inlined_call_operand.vmem [shape: bf16[4,32,8], index: 2, kind: input, shape index: {}]
  %s3 = inlined_call_operand.vmem [shape: f32[4,1,8], index: 3, kind: input, shape index: {}]
  %s4 = inlined_call_operand.vmem [shape: bf16[4,32,8], index: 4, kind: input, shape index: {}]
  %s5 = inlined_call_operand.vmem [shape: f32[4,1,8], index: 5, kind: input, shape index: {}]
  %s6 = inlined_call_operand.vmem [shape: bf16[4,32,8], index: 6, kind: input, shape index: {}]
  %s7 = inlined_call_operand.vmem [shape: f32[4,1,8], index: 7, kind: input, shape index: {}]
  %s8 = inlined_call_operand.vmem [shape: bf16[4,8,32], index: 8, kind: input, shape index: {}]
  %s9 = inlined_call_operand.vmem [shape: f32[1,32], index: 9, kind: input, shape index: {}]
  %s10 = inlined_call_operand.vmem [shape: bf16[32,64], index: 10, kind: input, shape index: {}]
  %s11 = inlined_call_operand.vmem [shape: bf16[32,64], index: 11, kind: input, shape index: {}]
  %s12 = inlined_call_operand.vmem [shape: f32[1,64], index: 12, kind: input, shape index: {}]
  %s13 = inlined_call_operand.vmem [shape: bf16[64,32], index: 13, kind: input, shape index: {}]
  %s14 = inlined_call_operand.vmem [shape: f32[1,32], index: 14, kind: input, shape index: {}]
  %s15 = inlined_call_operand.vmem [shape: f32[2,16,32], index: 15, kind: output, shape index: {}]
  %s16 = sld [smem:[#allocation0]]
  $region93: #{information_interactive.14} parent=0
    _
  %s18 = ssub.s32 1, %s16
  %s19 = scalar_select 0, %s18, %s16
  loop: start=0, step=1, limit=4
  $region2: #{information_interactive.14} parent=0 // loop_pre_header
    _
  $region3: #{information_interactive.14} parent=0 // loop_header
    %s21 = sphi 0, %s25
    %p22 = scmp.ge.s32.totalorder %s21, 4
    %s31 = sphi 0, %s33
    %s34 = sphi 0, %s31
    %s35 = sphi 0, %s34
    %s51 = sphi 0, %s35
    %s57 = sphi 0, %s59
    %s60 = sphi 0, %s57
    %s61 = sphi 0, %s60
    %s77 = sphi 0, %s61
    %s81 = sphi 0, %s81
    %s83 = sphi 0, %s81
    %s84 = sphi 0, %s83
    %s98 = sphi 0, %s84
    %s102 = sphi 0, %s102
    %s104 = sphi 0, %s102
    %s105 = sphi 0, %s104
    %s119 = sphi 0, %s105
    %s123 = sphi 0, %s123
    %s125 = sphi 0, %s123
    %s126 = sphi 0, %s125
    %s140 = sphi 0, %s126
    %s144 = sphi 0, %s144
    %s146 = sphi 0, %s144
    %s147 = sphi 0, %s146
    %s161 = sphi 0, %s147
    %s165 = sphi 0, %s165
    %s167 = sphi 0, %s165
    %s168 = sphi 0, %s167
    %s182 = sphi 0, %s168
    %s186 = sphi 0, %s186
    %s188 = sphi 0, %s186
    %s189 = sphi 0, %s188
    %s203 = sphi 0, %s189
    %s207 = sphi 0, %s207
    %s209 = sphi 0, %s207
    %s210 = sphi 0, %s209
    %s224 = sphi 0, %s210
    %s228 = sphi 0, %s228
    %s230 = sphi 0, %s228
    %s231 = sphi 0, %s230
    %s245 = sphi 0, %s231
    %s249 = sphi 0, %s249
    %s251 = sphi 0, %s249
    %s252 = sphi 0, %s251
    %s266 = sphi 0, %s252
    %s270 = sphi 0, %s270
    %s272 = sphi 0, %s270
    %s273 = sphi 0, %s272
    %s287 = sphi 0, %s273
    %s291 = sphi 0, %s291
    %s293 = sphi 0, %s291
    %s294 = sphi 0, %s293
    %s308 = sphi 0, %s294
    %s312 = sphi 0, %s312
    %s314 = sphi 0, %s312
    %s315 = sphi 0, %s314
    %s329 = sphi 0, %s315
    %s333 = sphi 0, %s333
    %s335 = sphi 0, %s333
    %s336 = sphi 0, %s335
    %s350 = sphi 0, %s336
    %s356 = sphi 0, %s358
    %s359 = sphi 0, %s356
    %s360 = sphi 0, %s359
    %s376 = sphi 0, %s360
  $region4: #{information_interactive.14} parent=0 // loop_header_branch
    %24 = sbr.rel (%p22) target = $region8
  $region5: #{information_interactive.14} parent=0 // loop_body
    %s26 = ssub.s32 %s21, 1
    %s27 = ssub.s32 %s21, 2
    %s28 = sadd.s32 %s21, 1
    %s29 = ssub.s32 %s21, %s28
    %p30 = scmp.eq.s32.totalorder %s29, 0
    %s32 = sadd.s32 %s31, 1
    %s33 = scalar_select %p30, %s31, %s32
    %p36 = pneg %p30
    %p37 = scmp.eq.s32.totalorder %s21, 1
    %p38 = por %p36, %p37
    %p39 = scmp.ne.s32.totalorder %s31, %s34
    %p40 = scmp.eq.s32.totalorder %s21, 0
    %p41 = por %p39, %p40
    %p42 = scmp.ne.s32.totalorder %s31, %s34
    %p43 = scmp.eq.s32.totalorder %s26, 1
    %p44 = por %p42, %p43
    %p45 = scmp.ne.s32.totalorder %s34, %s35
    %p46 = scmp.eq.s32.totalorder %s26, 0
    %p47 = por %p45, %p46
    %p48 = scmp.ne.s32.totalorder %s34, %s35
    %p49 = scmp.eq.s32.totalorder %s27, 1
    %p50 = por %p48, %p49
    %p52 = scmp.ne.s32.totalorder %s35, %s51
    %p53 = scmp.eq.s32.totalorder %s27, 0
    %p54 = por %p52, %p53
    %s55 = ssub.s32 %s21, %s28
    %p56 = scmp.eq.s32.totalorder %s55, 0
    %s58 = sadd.s32 %s57, 1
    %s59 = scalar_select %p56, %s57, %s58
    %p62 = pneg %p56
    %p63 = scmp.eq.s32.totalorder %s21, 1
    %p64 = por %p62, %p63
    %p65 = scmp.ne.s32.totalorder %s57, %s60
    %p66 = scmp.eq.s32.totalorder %s21, 0
    %p67 = por %p65, %p66
    %p68 = scmp.ne.s32.totalorder %s57, %s60
    %p69 = scmp.eq.s32.totalorder %s26, 1
    %p70 = por %p68, %p69
    %p71 = scmp.ne.s32.totalorder %s60, %s61
    %p72 = scmp.eq.s32.totalorder %s26, 0
    %p73 = por %p71, %p72
    %p74 = scmp.ne.s32.totalorder %s60, %s61
    %p75 = scmp.eq.s32.totalorder %s27, 1
    %p76 = por %p74, %p75
    %p78 = scmp.ne.s32.totalorder %s61, %s77
    %p79 = scmp.eq.s32.totalorder %s27, 0
    %p80 = por %p78, %p79
    %s82 = sadd.s32 %s81, 1
    %p85 = scmp.eq.s32.totalorder %s21, 1
    %p86 = scmp.ne.s32.totalorder %s81, %s83
    %p87 = scmp.eq.s32.totalorder %s21, 0
    %p88 = por %p86, %p87
    %p89 = scmp.ne.s32.totalorder %s81, %s83
    %p90 = scmp.eq.s32.totalorder %s26, 1
    %p91 = por %p89, %p90
    %p92 = scmp.ne.s32.totalorder %s83, %s84
    %p93 = scmp.eq.s32.totalorder %s26, 0
    %p94 = por %p92, %p93
    %p95 = scmp.ne.s32.totalorder %s83, %s84
    %p96 = scmp.eq.s32.totalorder %s27, 1
    %p97 = por %p95, %p96
    %p99 = scmp.ne.s32.totalorder %s84, %s98
    %p100 = scmp.eq.s32.totalorder %s27, 0
    %p101 = por %p99, %p100
    %s103 = sadd.s32 %s102, 1
    %p106 = scmp.eq.s32.totalorder %s21, 1
    %p107 = scmp.ne.s32.totalorder %s102, %s104
    %p108 = scmp.eq.s32.totalorder %s21, 0
    %p109 = por %p107, %p108
    %p110 = scmp.ne.s32.totalorder %s102, %s104
    %p111 = scmp.eq.s32.totalorder %s26, 1
    %p112 = por %p110, %p111
    %p113 = scmp.ne.s32.totalorder %s104, %s105
    %p114 = scmp.eq.s32.totalorder %s26, 0
    %p115 = por %p113, %p114
    %p116 = scmp.ne.s32.totalorder %s104, %s105
    %p117 = scmp.eq.s32.totalorder %s27, 1
    %p118 = por %p116, %p117
    %p120 = scmp.ne.s32.totalorder %s105, %s119
    %p121 = scmp.eq.s32.totalorder %s27, 0
    %p122 = por %p120, %p121
    %s124 = sadd.s32 %s123, 1
    %p127 = scmp.eq.s32.totalorder %s21, 1
    %p128 = scmp.ne.s32.totalorder %s123, %s125
    %p129 = scmp.eq.s32.totalorder %s21, 0
    %p130 = por %p128, %p129
    %p131 = scmp.ne.s32.totalorder %s123, %s125
    %p132 = scmp.eq.s32.totalorder %s26, 1
    %p133 = por %p131, %p132
    %p134 = scmp.ne.s32.totalorder %s125, %s126
    %p135 = scmp.eq.s32.totalorder %s26, 0
    %p136 = por %p134, %p135
    %p137 = scmp.ne.s32.totalorder %s125, %s126
    %p138 = scmp.eq.s32.totalorder %s27, 1
    %p139 = por %p137, %p138
    %p141 = scmp.ne.s32.totalorder %s126, %s140
    %p142 = scmp.eq.s32.totalorder %s27, 0
    %p143 = por %p141, %p142
    %s145 = sadd.s32 %s144, 1
    %p148 = scmp.eq.s32.totalorder %s21, 1
    %p149 = scmp.ne.s32.totalorder %s144, %s146
    %p150 = scmp.eq.s32.totalorder %s21, 0
    %p151 = por %p149, %p150
    %p152 = scmp.ne.s32.totalorder %s144, %s146
    %p153 = scmp.eq.s32.totalorder %s26, 1
    %p154 = por %p152, %p153
    %p155 = scmp.ne.s32.totalorder %s146, %s147
    %p156 = scmp.eq.s32.totalorder %s26, 0
    %p157 = por %p155, %p156
    %p158 = scmp.ne.s32.totalorder %s146, %s147
    %p159 = scmp.eq.s32.totalorder %s27, 1
    %p160 = por %p158, %p159
    %p162 = scmp.ne.s32.totalorder %s147, %s161
    %p163 = scmp.eq.s32.totalorder %s27, 0
    %p164 = por %p162, %p163
    %s166 = sadd.s32 %s165, 1
    %p169 = scmp.eq.s32.totalorder %s21, 1
    %p170 = scmp.ne.s32.totalorder %s165, %s167
    %p171 = scmp.eq.s32.totalorder %s21, 0
    %p172 = por %p170, %p171
    %p173 = scmp.ne.s32.totalorder %s165, %s167
    %p174 = scmp.eq.s32.totalorder %s26, 1
    %p175 = por %p173, %p174
    %p176 = scmp.ne.s32.totalorder %s167, %s168
    %p177 = scmp.eq.s32.totalorder %s26, 0
    %p178 = por %p176, %p177
    %p179 = scmp.ne.s32.totalorder %s167, %s168
    %p180 = scmp.eq.s32.totalorder %s27, 1
    %p181 = por %p179, %p180
    %p183 = scmp.ne.s32.totalorder %s168, %s182
    %p184 = scmp.eq.s32.totalorder %s27, 0
    %p185 = por %p183, %p184
    %s187 = sadd.s32 %s186, 1
    %p190 = scmp.eq.s32.totalorder %s21, 1
    %p191 = scmp.ne.s32.totalorder %s186, %s188
    %p192 = scmp.eq.s32.totalorder %s21, 0
    %p193 = por %p191, %p192
    %p194 = scmp.ne.s32.totalorder %s186, %s188
    %p195 = scmp.eq.s32.totalorder %s26, 1
    %p196 = por %p194, %p195
    %p197 = scmp.ne.s32.totalorder %s188, %s189
    %p198 = scmp.eq.s32.totalorder %s26, 0
    %p199 = por %p197, %p198
    %p200 = scmp.ne.s32.totalorder %s188, %s189
    %p201 = scmp.eq.s32.totalorder %s27, 1
    %p202 = por %p200, %p201
    %p204 = scmp.ne.s32.totalorder %s189, %s203
    %p205 = scmp.eq.s32.totalorder %s27, 0
    %p206 = por %p204, %p205
    %s208 = sadd.s32 %s207, 1
    %p211 = scmp.eq.s32.totalorder %s21, 1
    %p212 = scmp.ne.s32.totalorder %s207, %s209
    %p213 = scmp.eq.s32.totalorder %s21, 0
    %p214 = por %p212, %p213
    %p215 = scmp.ne.s32.totalorder %s207, %s209
    %p216 = scmp.eq.s32.totalorder %s26, 1
    %p217 = por %p215, %p216
    %p218 = scmp.ne.s32.totalorder %s209, %s210
    %p219 = scmp.eq.s32.totalorder %s26, 0
    %p220 = por %p218, %p219
    %p221 = scmp.ne.s32.totalorder %s209, %s210
    %p222 = scmp.eq.s32.totalorder %s27, 1
    %p223 = por %p221, %p222
    %p225 = scmp.ne.s32.totalorder %s210, %s224
    %p226 = scmp.eq.s32.totalorder %s27, 0
    %p227 = por %p225, %p226
    %s229 = sadd.s32 %s228, 1
    %p232 = scmp.eq.s32.totalorder %s21, 1
    %p233 = scmp.ne.s32.totalorder %s228, %s230
    %p234 = scmp.eq.s32.totalorder %s21, 0
    %p235 = por %p233, %p234
    %p236 = scmp.ne.s32.totalorder %s228, %s230
    %p237 = scmp.eq.s32.totalorder %s26, 1
    %p238 = por %p236, %p237
    %p239 = scmp.ne.s32.totalorder %s230, %s231
    %p240 = scmp.eq.s32.totalorder %s26, 0
    %p241 = por %p239, %p240
    %p242 = scmp.ne.s32.totalorder %s230, %s231
    %p243 = scmp.eq.s32.totalorder %s27, 1
    %p244 = por %p242, %p243
    %p246 = scmp.ne.s32.totalorder %s231, %s245
    %p247 = scmp.eq.s32.totalorder %s27, 0
    %p248 = por %p246, %p247
    %s250 = sadd.s32 %s249, 1
    %p253 = scmp.eq.s32.totalorder %s21, 1
    %p254 = scmp.ne.s32.totalorder %s249, %s251
    %p255 = scmp.eq.s32.totalorder %s21, 0
    %p256 = por %p254, %p255
    %p257 = scmp.ne.s32.totalorder %s249, %s251
    %p258 = scmp.eq.s32.totalorder %s26, 1
    %p259 = por %p257, %p258
    %p260 = scmp.ne.s32.totalorder %s251, %s252
    %p261 = scmp.eq.s32.totalorder %s26, 0
    %p262 = por %p260, %p261
    %p263 = scmp.ne.s32.totalorder %s251, %s252
    %p264 = scmp.eq.s32.totalorder %s27, 1
    %p265 = por %p263, %p264
    %p267 = scmp.ne.s32.totalorder %s252, %s266
    %p268 = scmp.eq.s32.totalorder %s27, 0
    %p269 = por %p267, %p268
    %s271 = sadd.s32 %s270, 1
    %p274 = scmp.eq.s32.totalorder %s21, 1
    %p275 = scmp.ne.s32.totalorder %s270, %s272
    %p276 = scmp.eq.s32.totalorder %s21, 0
    %p277 = por %p275, %p276
    %p278 = scmp.ne.s32.totalorder %s270, %s272
    %p279 = scmp.eq.s32.totalorder %s26, 1
    %p280 = por %p278, %p279
    %p281 = scmp.ne.s32.totalorder %s272, %s273
    %p282 = scmp.eq.s32.totalorder %s26, 0
    %p283 = por %p281, %p282
    %p284 = scmp.ne.s32.totalorder %s272, %s273
    %p285 = scmp.eq.s32.totalorder %s27, 1
    %p286 = por %p284, %p285
    %p288 = scmp.ne.s32.totalorder %s273, %s287
    %p289 = scmp.eq.s32.totalorder %s27, 0
    %p290 = por %p288, %p289
    %s292 = sadd.s32 %s291, 1
    %p295 = scmp.eq.s32.totalorder %s21, 1
    %p296 = scmp.ne.s32.totalorder %s291, %s293
    %p297 = scmp.eq.s32.totalorder %s21, 0
    %p298 = por %p296, %p297
    %p299 = scmp.ne.s32.totalorder %s291, %s293
    %p300 = scmp.eq.s32.totalorder %s26, 1
    %p301 = por %p299, %p300
    %p302 = scmp.ne.s32.totalorder %s293, %s294
    %p303 = scmp.eq.s32.totalorder %s26, 0
    %p304 = por %p302, %p303
    %p305 = scmp.ne.s32.totalorder %s293, %s294
    %p306 = scmp.eq.s32.totalorder %s27, 1
    %p307 = por %p305, %p306
    %p309 = scmp.ne.s32.totalorder %s294, %s308
    %p310 = scmp.eq.s32.totalorder %s27, 0
    %p311 = por %p309, %p310
    %s313 = sadd.s32 %s312, 1
    %p316 = scmp.eq.s32.totalorder %s21, 1
    %p317 = scmp.ne.s32.totalorder %s312, %s314
    %p318 = scmp.eq.s32.totalorder %s21, 0
    %p319 = por %p317, %p318
    %p320 = scmp.ne.s32.totalorder %s312, %s314
    %p321 = scmp.eq.s32.totalorder %s26, 1
    %p322 = por %p320, %p321
    %p323 = scmp.ne.s32.totalorder %s314, %s315
    %p324 = scmp.eq.s32.totalorder %s26, 0
    %p325 = por %p323, %p324
    %p326 = scmp.ne.s32.totalorder %s314, %s315
    %p327 = scmp.eq.s32.totalorder %s27, 1
    %p328 = por %p326, %p327
    %p330 = scmp.ne.s32.totalorder %s315, %s329
    %p331 = scmp.eq.s32.totalorder %s27, 0
    %p332 = por %p330, %p331
    %s334 = sadd.s32 %s333, 1
    %p337 = scmp.eq.s32.totalorder %s21, 1
    %p338 = scmp.ne.s32.totalorder %s333, %s335
    %p339 = scmp.eq.s32.totalorder %s21, 0
    %p340 = por %p338, %p339
    %p341 = scmp.ne.s32.totalorder %s333, %s335
    %p342 = scmp.eq.s32.totalorder %s26, 1
    %p343 = por %p341, %p342
    %p344 = scmp.ne.s32.totalorder %s335, %s336
    %p345 = scmp.eq.s32.totalorder %s26, 0
    %p346 = por %p344, %p345
    %p347 = scmp.ne.s32.totalorder %s335, %s336
    %p348 = scmp.eq.s32.totalorder %s27, 1
    %p349 = por %p347, %p348
    %p351 = scmp.ne.s32.totalorder %s336, %s350
    %p352 = scmp.eq.s32.totalorder %s27, 0
    %p353 = por %p351, %p352
    %s354 = ssub.s32 %s21, %s28
    %p355 = scmp.eq.s32.totalorder %s354, 0
    %s357 = sadd.s32 %s356, 1
    %s358 = scalar_select %p355, %s356, %s357
    %p361 = pneg %p355
    %p362 = scmp.eq.s32.totalorder %s21, 1
    %p363 = por %p361, %p362
    %p364 = scmp.ne.s32.totalorder %s356, %s359
    %p365 = scmp.eq.s32.totalorder %s21, 0
    %p366 = por %p364, %p365
    %p367 = scmp.ne.s32.totalorder %s356, %s359
    %p368 = scmp.eq.s32.totalorder %s26, 1
    %p369 = por %p367, %p368
    %p370 = scmp.ne.s32.totalorder %s359, %s360
    %p371 = scmp.eq.s32.totalorder %s26, 0
    %p372 = por %p370, %p371
    %p373 = scmp.ne.s32.totalorder %s359, %s360
    %p374 = scmp.eq.s32.totalorder %s27, 1
    %p375 = por %p373, %p374
    %p377 = scmp.ne.s32.totalorder %s360, %s376
    %p378 = scmp.eq.s32.totalorder %s27, 0
    %p379 = por %p377, %p378
    %p380 = scmp.le.s32.totalorder 1, %s21
    %p381 = scmp.lt.s32.totalorder %s21, 3
    %p382 = pnand %p380, %p381
    %p383 = pneg %p382
    // Predicated region
    $region9: #{information_interactive.14} parent=5 // pred_check
      _
    $region10: #{information_interactive.14} parent=5 // pred_check_branch
      %385 = sbr.rel (%p382) target = $region12
    $region11: #{information_interactive.14} parent=5 // pred_region
      %s386 = ssub.s32 %s21, 1
      // Predicated region
      $region13: #{information_interactive.14} parent=11 // pred_check
        %p387 = pneg %p94
      $region14: #{information_interactive.14} parent=11 // pred_check_branch
        %389 = sbr.rel (%p387) target = $region16
      $region15: #{information_interactive.14} parent=11 // pred_region
        _
      $region16: #{information_interactive.14} parent=11 // pred_fallthru
        _
      // Predicated region
      $region17: #{information_interactive.14} parent=11 // pred_check
        %p390 = pneg %p115
      $region18: #{information_interactive.14} parent=11 // pred_check_branch
        %392 = sbr.rel (%p390) target = $region20
      $region19: #{information_interactive.14} parent=11 // pred_region
        _
      $region20: #{information_interactive.14} parent=11 // pred_fallthru
        _
      // Predicated region
      $region21: #{information_interactive.14} parent=11 // pred_check
        %p393 = pneg %p136
      $region22: #{information_interactive.14} parent=11 // pred_check_branch
        %395 = sbr.rel (%p393) target = $region24
      $region23: #{information_interactive.14} parent=11 // pred_region
        _
      $region24: #{information_interactive.14} parent=11 // pred_fallthru
        _
      // Predicated region
      $region25: #{information_interactive.14} parent=11 // pred_check
        %p396 = pneg %p157
      $region26: #{information_interactive.14} parent=11 // pred_check_branch
        %398 = sbr.rel (%p396) target = $region28
      $region27: #{information_interactive.14} parent=11 // pred_region
        _
      $region28: #{information_interactive.14} parent=11 // pred_fallthru
        _
      // Predicated region
      $region29: #{information_interactive.14} parent=11 // pred_check
        %p399 = pneg %p178
      $region30: #{information_interactive.14} parent=11 // pred_check_branch
        %401 = sbr.rel (%p399) target = $region32
      $region31: #{information_interactive.14} parent=11 // pred_region
        _
      $region32: #{information_interactive.14} parent=11 // pred_fallthru
        _
      // Predicated region
      $region33: #{information_interactive.14} parent=11 // pred_check
        %p402 = pneg %p199
      $region34: #{information_interactive.14} parent=11 // pred_check_branch
        %404 = sbr.rel (%p402) target = $region36
      $region35: #{information_interactive.14} parent=11 // pred_region
        _
      $region36: #{information_interactive.14} parent=11 // pred_fallthru
        _
      // Predicated region
      $region37: #{information_interactive.14} parent=11 // pred_check
        %p405 = pneg %p220
      $region38: #{information_interactive.14} parent=11 // pred_check_branch
        %407 = sbr.rel (%p405) target = $region40
      $region39: #{information_interactive.14} parent=11 // pred_region
        _
      $region40: #{information_interactive.14} parent=11 // pred_fallthru
        _
      // Predicated region
      $region41: #{information_interactive.14} parent=11 // pred_check
        %p408 = pneg %p241
      $region42: #{information_interactive.14} parent=11 // pred_check_branch
        %410 = sbr.rel (%p408) target = $region44
      $region43: #{information_interactive.14} parent=11 // pred_region
        _
      $region44: #{information_interactive.14} parent=11 // pred_fallthru
        _
      // Predicated region
      $region45: #{information_interactive.14} parent=11 // pred_check
        %p411 = pneg %p262
      $region46: #{information_interactive.14} parent=11 // pred_check_branch
        %413 = sbr.rel (%p411) target = $region48
      $region47: #{information_interactive.14} parent=11 // pred_region
        _
      $region48: #{information_interactive.14} parent=11 // pred_fallthru
        _
      // Predicated region
      $region49: #{information_interactive.14} parent=11 // pred_check
        %p414 = pneg %p283
      $region50: #{information_interactive.14} parent=11 // pred_check_branch
        %416 = sbr.rel (%p414) target = $region52
      $region51: #{information_interactive.14} parent=11 // pred_region
        _
      $region52: #{information_interactive.14} parent=11 // pred_fallthru
        _
      // Predicated region
      $region53: #{information_interactive.14} parent=11 // pred_check
        %p417 = pneg %p304
      $region54: #{information_interactive.14} parent=11 // pred_check_branch
        %419 = sbr.rel (%p417) target = $region56
      $region55: #{information_interactive.14} parent=11 // pred_region
        _
      $region56: #{information_interactive.14} parent=11 // pred_fallthru
        _
      // Predicated region
      $region57: #{information_interactive.14} parent=11 // pred_check
        %p420 = pneg %p325
      $region58: #{information_interactive.14} parent=11 // pred_check_branch
        %422 = sbr.rel (%p420) target = $region60
      $region59: #{information_interactive.14} parent=11 // pred_region
        _
      $region60: #{information_interactive.14} parent=11 // pred_fallthru
        _
      // Predicated region
      $region61: #{information_interactive.14} parent=11 // pred_check
        %p423 = pneg %p346
      $region62: #{information_interactive.14} parent=11 // pred_check_branch
        %425 = sbr.rel (%p423) target = $region64
      $region63: #{information_interactive.14} parent=11 // pred_region
        _
      $region64: #{information_interactive.14} parent=11 // pred_fallthru
        _
    $region12: #{information_interactive.14} parent=5 // pred_fallthru
      _
    %p426 = scmp.lt.s32.totalorder %s21, 2
    // Predicated region
    $region65: #{information_interactive.14} parent=5 // pred_check
      %p427 = pneg %p426
    $region66: #{information_interactive.14} parent=5 // pred_check_branch
      %429 = sbr.rel (%p427) target = $region68
    $region67: #{information_interactive.14} parent=5 // pred_region
      // Predicated region
      $region69: #{information_interactive.14} parent=67 // pred_check
        %p430 = pneg %p41
      $region70: #{information_interactive.14} parent=67 // pred_check_branch
        %432 = sbr.rel (%p430) target = $region72
      $region71: #{information_interactive.14} parent=67 // pred_region
        %p433 = scmp.lt.s32.totalorder %s21, 1
        %s434 = scalar_select %p433, %s21, 1
        %s435 = smul.addr %s434, 2
        %s436 = smul.addr %s435, 8
        %s437 = scalar_lea.vmem %s0, %s436
      $region72: #{information_interactive.14} parent=67 // pred_fallthru
        _
      // Predicated region
      $region73: #{information_interactive.14} parent=67 // pred_check
        %p438 = pneg %p67
      $region74: #{information_interactive.14} parent=67 // pred_check_branch
        %440 = sbr.rel (%p438) target = $region76
      $region75: #{information_interactive.14} parent=67 // pred_region
        %p441 = scmp.lt.s32.totalorder %s21, 1
        %s442 = scalar_select %p441, %s21, 1
        %s443 = smul.addr %s442, 2
        %s444 = smul.addr %s443, 8
        %s445 = scalar_lea.vmem %s1, %s444
      $region76: #{information_interactive.14} parent=67 // pred_fallthru
        _
    $region68: #{information_interactive.14} parent=5 // pred_fallthru
      _
    %p446 = scmp.le.s32.totalorder 1, %s21
    %p447 = scmp.lt.s32.totalorder %s21, 3
    %p448 = pnand %p446, %p447
    %p449 = pneg %p448
    // Predicated region
    $region77: #{information_interactive.14} parent=5 // pred_check
      _
    $region78: #{information_interactive.14} parent=5 // pred_check_branch
      %451 = sbr.rel (%p448) target = $region80
    $region79: #{information_interactive.14} parent=5 // pred_region
      %s452 = ssub.s32 %s21, 1
      %p453 = scmp.lt.s32.totalorder %s26, 1
      %s454 = scalar_select %p453, %s26, 1
      %s455 = smul.addr %s454, 2
      %s456 = smul.addr %s455, 8
      %s457 = scalar_lea.vmem %s0, %s456
      %p458 = pneg %p47
      %p459 = pneg %p44
      %p460 = scmp.lt.s32.totalorder %s26, 1
      %s461 = scalar_select %p460, %s26, 1
      %s462 = smul.addr %s461, 2
      %s463 = smul.addr %s462, 8
      %s464 = scalar_lea.vmem %s1, %s463
      %p465 = pneg %p73
      %p466 = pneg %p70
      %p467 = pneg %p94
      %p468 = pneg %p91
      %p469 = pneg %p115
      %p470 = pneg %p112
      %p471 = pneg %p136
      %p472 = pneg %p133
      %p473 = pneg %p157
      %p474 = pneg %p154
      %p475 = pneg %p178
      %p476 = pneg %p175
      %p477 = pneg %p199
      %p478 = pneg %p196
      %p479 = pneg %p220
      %p480 = pneg %p217
      %p481 = pneg %p241
      %p482 = pneg %p238
      %p483 = pneg %p262
      %p484 = pneg %p259
      %p485 = pneg %p283
      %p486 = pneg %p280
      %p487 = pneg %p304
      %p488 = pneg %p301
      %p489 = pneg %p325
      %p490 = pneg %p322
      %p491 = pneg %p346
      %p492 = pneg %p343
      %p493 = pneg %p372
      %p494 = pneg %p369
      %p495 = scmp.lt.s32.totalorder %s26, 1
      %s496 = scalar_select %p495, %s26, 1
      %s497 = smul.addr %s496, 2
      %s498 = smul.addr %s497, 8
      %s499 = scalar_lea.vmem %s15, %s498
      %p500 = scmp.lt.s32.totalorder %s26, 1
      %s501 = scalar_select %p500, %s26, 1
      %s502 = smul.addr %s501, 2
      %s503 = smul.addr %s502, 8
      %s504 = scalar_lea.vmem %s0, %s503
      %p505 = scmp.lt.s32.totalorder %s26, 1
      %s506 = scalar_select %p505, %s26, 1
      %s507 = smul.addr %s506, 2
      %s508 = smul.addr %s507, 8
      %s509 = scalar_lea.vmem %s1, %s508
      %p510 = scmp.lt.s32.totalorder %s26, 1
      %s511 = scalar_select %p510, %s26, 1
      %s512 = smul.addr %s511, 2
      %s513 = smul.addr %s512, 8
      %s514 = scalar_lea.vmem %s15, %s513
      %v516 = vld [vmem:[%s504] sm:$0xff]
      %v517 = vld [vmem:[%s504 + $0x8] sm:$0xff]
      %v518 = vld [vmem:[%s509] sm:$0xff]
      %v519 = vld [vmem:[%s509 + $0x8] sm:$0xff]
      %v520 = vpack.c.bf16 %v517, %v516
      %v521 = vpack.c.bf16 %v519, %v518
      %v522 = vld [vmem:[%s2] sm:$0xf]
      %v523 = vld [vmem:[%s2 + $0x4] sm:$0xf]
      %v524 = vld [vmem:[%s2 + $0x8] sm:$0xf]
      %v525 = vld [vmem:[%s2 + $0xc] sm:$0xf]
      %v526 = vld [vmem:[%s3] sm:$0x1]
      %v528 = vlaneseq
      %v529 = vshrl.u32 %v528, 7
      %v530 = vsub.s32 0, %v529
      %v531 = vrot.slane %v526, %v530
      %v537 = vunpack.c.l.b16 %v522
      %v538 = vunpack.c.l.b16 %v523
      %v539 = vunpack.c.l.b16 %v524
      %v540 = vunpack.c.l.b16 %v525
      %v541 = vpack.c.b16 %v538, %v537
      %v542 = vpack.c.b16 %v540, %v539
      %vm545 = vcmask 261120
      %v547 = vsel %vm545, %v520, 0
      %549 = vmatprep.subr.bf16.mxu0 0
      %550 = vmatpush1.bf16.msra.mxu0 %v541
      %551 = vmatprep.subr.bf16.mxu0 0
      %552 = vmatpush1.bf16.msra.mxu0 %v542
      %553 = vmatprep.subr.bf16.mxu0 0
      %554 = vmatpush1.bf16.msra.mxu0 0
      %555 = vmatprep.subr.bf16.mxu0 0
      %556 = vmatpush1.bf16.msra.mxu0 0
      %557 = vmatprep.subr.bf16.mxu0 0
      %558 = vmatpush1.bf16.msra.mxu0 0
      %559 = vmatprep.subr.bf16.mxu0 0
      %560 = vmatpush1.bf16.msra.mxu0 0
      %561 = vmatprep.subr.bf16.mxu0 0
      %562 = vmatpush1.bf16.msra.mxu0 0
      %563 = vmatprep.subr.bf16.mxu0 0
      %564 = vmatpush1.bf16.msra.mxu0 0
      %565 = vmatprep.subr.bf16.mxu0 0
      %566 = vmatpush1.bf16.msra.mxu0 0
      %567 = vmatprep.subr.bf16.mxu0 0
      %568 = vmatpush1.bf16.msra.mxu0 0
      %569 = vmatprep.subr.bf16.mxu0 0
      %570 = vmatpush1.bf16.msra.mxu0 0
      %571 = vmatprep.subr.bf16.mxu0 0
      %572 = vmatpush1.bf16.msra.mxu0 0
      %573 = vmatprep.subr.bf16.mxu0 0
      %574 = vmatpush1.bf16.msra.mxu0 0
      %575 = vmatprep.subr.bf16.mxu0 0
      %576 = vmatpush1.bf16.msra.mxu0 0
      %577 = vmatprep.subr.bf16.mxu0 0
      %578 = vmatpush1.bf16.msra.mxu0 0
      %579 = vmatprep.subr.bf16.mxu0 0
      %580 = vmatpush1.bf16.msra.mxu0 0
      %581 = vmatprep.mubr.bf16.mxu0 0
      %582 = vmatmul.mubr.bf16.gmra.mrb[0].mxu0 %v547
      %v583 = vpop.f32.mrb[0].mxu0
      %v584 = vadd.f32 %v531, %v583
      %v585 = vpop.f32.mrb[0].mxu0
      %v586 = vpop.f32.mrb[0].mxu0
      %v587 = vadd.f32 %v531, %v586
      %v588 = vpop.f32.mrb[0].mxu0
      %589 = vdwg.mxu0
      %v590 = vld [vmem:[%s4] sm:$0xf]
      %v591 = vld [vmem:[%s4 + $0x4] sm:$0xf]
      %v592 = vld [vmem:[%s4 + $0x8] sm:$0xf]
      %v593 = vld [vmem:[%s4 + $0xc] sm:$0xf]
      %v594 = vld [vmem:[%s5] sm:$0x1]
      %v596 = vlaneseq
      %v597 = vshrl.u32 %v596, 7
      %v598 = vsub.s32 0, %v597
      %v599 = vrot.slane %v594, %v598
      %v605 = vunpack.c.l.b16 %v590
      %v606 = vunpack.c.l.b16 %v591
      %v607 = vunpack.c.l.b16 %v592
      %v608 = vunpack.c.l.b16 %v593
      %v609 = vpack.c.b16 %v606, %v605
      %v610 = vpack.c.b16 %v608, %v607
      %v614 = vsel %vm545, %v521, 0
      %616 = vmatprep.subr.bf16.mxu0 0
      %617 = vmatpush1.bf16.msra.mxu0 %v609
      %618 = vmatprep.subr.bf16.mxu0 0
      %619 = vmatpush1.bf16.msra.mxu0 %v610
      %620 = vmatprep.subr.bf16.mxu0 0
      %621 = vmatpush1.bf16.msra.mxu0 0
      %622 = vmatprep.subr.bf16.mxu0 0
      %623 = vmatpush1.bf16.msra.mxu0 0
      %624 = vmatprep.subr.bf16.mxu0 0
      %625 = vmatpush1.bf16.msra.mxu0 0
      %626 = vmatprep.subr.bf16.mxu0 0
      %627 = vmatpush1.bf16.msra.mxu0 0
      %628 = vmatprep.subr.bf16.mxu0 0
      %629 = vmatpush1.bf16.msra.mxu0 0
      %630 = vmatprep.subr.bf16.mxu0 0
      %631 = vmatpush1.bf16.msra.mxu0 0
      %632 = vmatprep.subr.bf16.mxu0 0
      %633 = vmatpush1.bf16.msra.mxu0 0
      %634 = vmatprep.subr.bf16.mxu0 0
      %635 = vmatpush1.bf16.msra.mxu0 0
      %636 = vmatprep.subr.bf16.mxu0 0
      %637 = vmatpush1.bf16.msra.mxu0 0
      %638 = vmatprep.subr.bf16.mxu0 0
      %639 = vmatpush1.bf16.msra.mxu0 0
      %640 = vmatprep.subr.bf16.mxu0 0
      %641 = vmatpush1.bf16.msra.mxu0 0
      %642 = vmatprep.subr.bf16.mxu0 0
      %643 = vmatpush1.bf16.msra.mxu0 0
      %644 = vmatprep.subr.bf16.mxu0 0
      %645 = vmatpush1.bf16.msra.mxu0 0
      %646 = vmatprep.subr.bf16.mxu0 0
      %647 = vmatpush1.bf16.msra.mxu0 0
      %648 = vmatprep.mubr.bf16.mxu0 0
      %649 = vmatmul.mubr.bf16.gmra.mrb[0].mxu0 %v614
      %v650 = vpop.f32.mrb[0].mxu0
      %v651 = vadd.f32 %v599, %v650
      %v652 = vpop.f32.mrb[0].mxu0
      %v653 = vpop.f32.mrb[0].mxu0
      %v654 = vadd.f32 %v599, %v653
      %v655 = vpop.f32.mrb[0].mxu0
      %656 = vdwg.mxu0
      %v657 = vld [vmem:[%s6] sm:$0xf]
      %v658 = vld [vmem:[%s6 + $0x4] sm:$0xf]
      %v659 = vld [vmem:[%s6 + $0x8] sm:$0xf]
      %v660 = vld [vmem:[%s6 + $0xc] sm:$0xf]
      %v661 = vld [vmem:[%s7] sm:$0x1]
      %v663 = vlaneseq
      %v664 = vshrl.u32 %v663, 7
      %v665 = vsub.s32 0, %v664
      %v666 = vrot.slane %v661, %v665
      %v672 = vunpack.c.l.b16 %v657
      %v673 = vunpack.c.l.b16 %v658
      %v674 = vunpack.c.l.b16 %v659
      %v675 = vunpack.c.l.b16 %v660
      %v676 = vpack.c.b16 %v673, %v672
      %v677 = vpack.c.b16 %v675, %v674
      %680 = vmatprep.subr.bf16.mxu0 0
      %681 = vmatpush1.bf16.msra.mxu0 %v676
      %682 = vmatprep.subr.bf16.mxu0 0
      %683 = vmatpush1.bf16.msra.mxu0 %v677
      %684 = vmatprep.subr.bf16.mxu0 0
      %685 = vmatpush1.bf16.msra.mxu0 0
      %686 = vmatprep.subr.bf16.mxu0 0
      %687 = vmatpush1.bf16.msra.mxu0 0
      %688 = vmatprep.subr.bf16.mxu0 0
      %689 = vmatpush1.bf16.msra.mxu0 0
      %690 = vmatprep.subr.bf16.mxu0 0
      %691 = vmatpush1.bf16.msra.mxu0 0
      %692 = vmatprep.subr.bf16.mxu0 0
      %693 = vmatpush1.bf16.msra.mxu0 0
      %694 = vmatprep.subr.bf16.mxu0 0
      %695 = vmatpush1.bf16.msra.mxu0 0
      %696 = vmatprep.subr.bf16.mxu0 0
      %697 = vmatpush1.bf16.msra.mxu0 0
      %698 = vmatprep.subr.bf16.mxu0 0
      %699 = vmatpush1.bf16.msra.mxu0 0
      %700 = vmatprep.subr.bf16.mxu0 0
      %701 = vmatpush1.bf16.msra.mxu0 0
      %702 = vmatprep.subr.bf16.mxu0 0
      %703 = vmatpush1.bf16.msra.mxu0 0
      %704 = vmatprep.subr.bf16.mxu0 0
      %705 = vmatpush1.bf16.msra.mxu0 0
      %706 = vmatprep.subr.bf16.mxu0 0
      %707 = vmatpush1.bf16.msra.mxu0 0
      %708 = vmatprep.subr.bf16.mxu0 0
      %709 = vmatpush1.bf16.msra.mxu0 0
      %710 = vmatprep.subr.bf16.mxu0 0
      %711 = vmatpush1.bf16.msra.mxu0 0
      %712 = vmatprep.mubr.bf16.mxu0 0
      %713 = vmatmul.mubr.bf16.gmra.mrb[0].mxu0 %v614
      %v714 = vpop.f32.mrb[0].mxu0
      %v715 = vadd.f32 %v666, %v714
      %v716 = vpop.f32.mrb[0].mxu0
      %v717 = vpop.f32.mrb[0].mxu0
      %v718 = vadd.f32 %v666, %v717
      %v719 = vpop.f32.mrb[0].mxu0
      %720 = vdwg.mxu0
      %v721 = vpack.c.bf16 %v587, %v584
      %v722 = vpack.c.bf16 %v654, %v651
      %vm723 = vcmask 64512
      %v725 = vsel %vm723, %v721, 0
      %v728 = vsel %vm723, %v722, 0
      %730 = vmatprep.subr.bf16.mxu0 0
      %731 = vmatpush1.bf16.xpose.msra.mxu0 %v728
      %732 = vmatprep.subr.bf16.mxu0 0
      %733 = vmatpush1.bf16.xpose.msra.mxu0 0
      %734 = vmatprep.subr.bf16.mxu0 0
      %735 = vmatpush1.bf16.xpose.msra.mxu0 0
      %736 = vmatprep.subr.bf16.mxu0 0
      %737 = vmatpush1.bf16.xpose.msra.mxu0 0
      %738 = vmatprep.subr.bf16.mxu0 0
      %739 = vmatpush1.bf16.xpose.msra.mxu0 0
      %740 = vmatprep.subr.bf16.mxu0 0
      %741 = vmatpush1.bf16.xpose.msra.mxu0 0
      %742 = vmatprep.subr.bf16.mxu0 0
      %743 = vmatpush1.bf16.xpose.msra.mxu0 0
      %744 = vmatprep.subr.bf16.mxu0 0
      %745 = vmatpush1.bf16.xpose.msra.mxu0 0
      %746 = vmatprep.subr.bf16.mxu0 0
      %747 = vmatpush1.bf16.xpose.msra.mxu0 0
      %748 = vmatprep.subr.bf16.mxu0 0
      %749 = vmatpush1.bf16.xpose.msra.mxu0 0
      %750 = vmatprep.subr.bf16.mxu0 0
      %751 = vmatpush1.bf16.xpose.msra.mxu0 0
      %752 = vmatprep.subr.bf16.mxu0 0
      %753 = vmatpush1.bf16.xpose.msra.mxu0 0
      %754 = vmatprep.subr.bf16.mxu0 0
      %755 = vmatpush1.bf16.xpose.msra.mxu0 0
      %756 = vmatprep.subr.bf16.mxu0 0
      %757 = vmatpush1.bf16.xpose.msra.mxu0 0
      %758 = vmatprep.subr.bf16.mxu0 0
      %759 = vmatpush1.bf16.xpose.msra.mxu0 0
      %760 = vmatprep.subr.bf16.mxu0 0
      %761 = vmatpush1.bf16.xpose.msra.mxu0 0
      %762 = vmatprep.mubr.bf16.mxu0 0
      %763 = vmatmul.mubr.bf16.gmra.mrb[0].mxu0 %v725
      %v764 = vpop.f32.mrb[0].mxu0
      %v765 = vadd.f32 0.0, %v764
      %v766 = vpop.f32.mrb[0].mxu0
      %v767 = vpop.f32.mrb[0].mxu0
      %v768 = vadd.f32 0.0, %v767
      %v769 = vpop.f32.mrb[0].mxu0
      %770 = vdwg.mxu0
      %v771 = vmul.f32 %v765, 0.35355338
      %v772 = vmul.f32 %v768, 0.35355338
      %vm773 = vcmask 130048
      %v774 = vsel %vm773, %v771, -inf
      %775 = vmax.xlane.f32.xlu0 %v774
      %v776 = vpop.xlane.xlu0 %775
      %v777 = vsel %vm773, %v772, -inf
      %778 = vmax.xlane.f32.xlu0 %v777
      %v779 = vpop.xlane.xlu0 %778
      %v780 = vsub.f32 %v771, %v776
      %v781 = vsub.f32 %v772, %v779
      %v782 = vmul.f32 %v780, 1.442695
      %v783 = vpow.pop %v782
      %v784 = vmul.f32 %v781, 1.442695
      %v785 = vpow.pop %v784
      %v786 = vsel %vm773, %v783, 0.0
      %787 = vadd.xlane.f32.xlu0 %v786
      %v788 = vpop.xlane.xlu0 %787
      %v789 = vsel %vm773, %v785, 0.0
      %790 = vadd.xlane.f32.xlu0 %v789
      %v791 = vpop.xlane.xlu0 %790
      %v792 = vrcp.pop %v788
      %v793 = vrcp.pop %v791
      %v794 = vmul.f32 %v783, %v792
      %v795 = vmul.f32 %v785, %v793
      %v796 = vpack.c.bf16 %v795, %v794
      %v797 = vpack.c.bf16 %v718, %v715
      %v799 = vsel %vm773, %v796, 0
      %801 = vmatprep.subr.bf16.mxu0 0
      %802 = vmatpush1.bf16.msra.mxu0 %v797
      %803 = vmatprep.subr.bf16.mxu0 0
      %804 = vmatpush1.bf16.msra.mxu0 0
      %805 = vmatprep.subr.bf16.mxu0 0
      %806 = vmatpush1.bf16.msra.mxu0 0
      %807 = vmatprep.subr.bf16.mxu0 0
      %808 = vmatpush1.bf16.msra.mxu0 0
      %809 = vmatprep.subr.bf16.mxu0 0
      %810 = vmatpush1.bf16.msra.mxu0 0
      %811 = vmatprep.subr.bf16.mxu0 0
      %812 = vmatpush1.bf16.msra.mxu0 0
      %813 = vmatprep.subr.bf16.mxu0 0
      %814 = vmatpush1.bf16.msra.mxu0 0
      %815 = vmatprep.subr.bf16.mxu0 0
      %816 = vmatpush1.bf16.msra.mxu0 0
      %817 = vmatprep.subr.bf16.mxu0 0
      %818 = vmatpush1.bf16.msra.mxu0 0
      %819 = vmatprep.subr.bf16.mxu0 0
      %820 = vmatpush1.bf16.msra.mxu0 0
      %821 = vmatprep.subr.bf16.mxu0 0
      %822 = vmatpush1.bf16.msra.mxu0 0
      %823 = vmatprep.subr.bf16.mxu0 0
      %824 = vmatpush1.bf16.msra.mxu0 0
      %825 = vmatprep.subr.bf16.mxu0 0
      %826 = vmatpush1.bf16.msra.mxu0 0
      %827 = vmatprep.subr.bf16.mxu0 0
      %828 = vmatpush1.bf16.msra.mxu0 0
      %829 = vmatprep.subr.bf16.mxu0 0
      %830 = vmatpush1.bf16.msra.mxu0 0
      %831 = vmatprep.subr.bf16.mxu0 0
      %832 = vmatpush1.bf16.msra.mxu0 0
      %833 = vmatprep.mubr.bf16.mxu0 0
      %834 = vmatmul.mubr.bf16.gmra.mrb[0].mxu0 %v799
      %v835 = vpop.f32.mrb[0].mxu0
      %v836 = vadd.f32 0.0, %v835
      %v837 = vpop.f32.mrb[0].mxu0
      %v838 = vpop.f32.mrb[0].mxu0
      %v839 = vadd.f32 0.0, %v838
      %v840 = vpop.f32.mrb[0].mxu0
      %841 = vdwg.mxu0
      %v842 = vpack.c.bf16 %v839, %v836
      %v843 = vld [vmem:[%s8] sm:$0xf]
      %s844 = scalar_lea.vmem %s2, 16
      %v845 = vld [vmem:[%s844] sm:$0xf]
      %v846 = vld [vmem:[%s844 + $0x4] sm:$0xf]
      %v847 = vld [vmem:[%s844 + $0x8] sm:$0xf]
      %v848 = vld [vmem:[%s844 + $0xc] sm:$0xf]
      %s849 = scalar_lea.vmem %s3, 1
      %v850 = vld [vmem:[%s849] sm:$0x1]
      %v852 = vlaneseq
      %v853 = vshrl.u32 %v852, 7
      %v854 = vsub.s32 0, %v853
      %v855 = vrot.slane %v850, %v854
      %v861 = vunpack.c.l.b16 %v845
      %v862 = vunpack.c.l.b16 %v846
      %v863 = vunpack.c.l.b16 %v847
      %v864 = vunpack.c.l.b16 %v848
      %v865 = vpack.c.b16 %v862, %v861
      %v866 = vpack.c.b16 %v864, %v863
      %869 = vmatprep.subr.bf16.mxu0 0
      %870 = vmatpush1.bf16.msra.mxu0 %v865
      %871 = vmatprep.subr.bf16.mxu0 0
      %872 = vmatpush1.bf16.msra.mxu0 %v866
      %873 = vmatprep.subr.bf16.mxu0 0
      %874 = vmatpush1.bf16.msra.mxu0 0
      %875 = vmatprep.subr.bf16.mxu0 0
      %876 = vmatpush1.bf16.msra.mxu0 0
      %877 = vmatprep.subr.bf16.mxu0 0
      %878 = vmatpush1.bf16.msra.mxu0 0
      %879 = vmatprep.subr.bf16.mxu0 0
      %880 = vmatpush1.bf16.msra.mxu0 0
      %881 = vmatprep.subr.bf16.mxu0 0
      %882 = vmatpush1.bf16.msra.mxu0 0
      %883 = vmatprep.subr.bf16.mxu0 0
      %884 = vmatpush1.bf16.msra.mxu0 0
      %885 = vmatprep.subr.bf16.mxu0 0
      %886 = vmatpush1.bf16.msra.mxu0 0
      %887 = vmatprep.subr.bf16.mxu0 0
      %888 = vmatpush1.bf16.msra.mxu0 0
      %889 = vmatprep.subr.bf16.mxu0 0
      %890 = vmatpush1.bf16.msra.mxu0 0
      %891 = vmatprep.subr.bf16.mxu0 0
      %892 = vmatpush1.bf16.msra.mxu0 0
      %893 = vmatprep.subr.bf16.mxu0 0
      %894 = vmatpush1.bf16.msra.mxu0 0
      %895 = vmatprep.subr.bf16.mxu0 0
      %896 = vmatpush1.bf16.msra.mxu0 0
      %897 = vmatprep.subr.bf16.mxu0 0
      %898 = vmatpush1.bf16.msra.mxu0 0
      %899 = vmatprep.subr.bf16.mxu0 0
      %900 = vmatpush1.bf16.msra.mxu0 0
      %901 = vmatprep.mubr.bf16.mxu0 0
      %902 = vmatmul.mubr.bf16.gmra.mrb[0].mxu0 %v547
      %v903 = vpop.f32.mrb[0].mxu0
      %v904 = vadd.f32 %v855, %v903
      %v905 = vpop.f32.mrb[0].mxu0
      %v906 = vpop.f32.mrb[0].mxu0
      %v907 = vadd.f32 %v855, %v906
      %v908 = vpop.f32.mrb[0].mxu0
      %909 = vdwg.mxu0
      %s910 = scalar_lea.vmem %s4, 16
      %v911 = vld [vmem:[%s910] sm:$0xf]
      %v912 = vld [vmem:[%s910 + $0x4] sm:$0xf]
      %v913 = vld [vmem:[%s910 + $0x8] sm:$0xf]
      %v914 = vld [vmem:[%s910 + $0xc] sm:$0xf]
      %s915 = scalar_lea.vmem %s5, 1
      %v916 = vld [vmem:[%s915] sm:$0x1]
      %v918 = vlaneseq
      %v919 = vshrl.u32 %v918, 7
      %v920 = vsub.s32 0, %v919
      %v921 = vrot.slane %v916, %v920
      %v927 = vunpack.c.l.b16 %v911
      %v928 = vunpack.c.l.b16 %v912
      %v929 = vunpack.c.l.b16 %v913
      %v930 = vunpack.c.l.b16 %v914
      %v931 = vpack.c.b16 %v928, %v927
      %v932 = vpack.c.b16 %v930, %v929
      %935 = vmatprep.subr.bf16.mxu0 0
      %936 = vmatpush1.bf16.msra.mxu0 %v931
      %937 = vmatprep.subr.bf16.mxu0 0
      %938 = vmatpush1.bf16.msra.mxu0 %v932
      %939 = vmatprep.subr.bf16.mxu0 0
      %940 = vmatpush1.bf16.msra.mxu0 0
      %941 = vmatprep.subr.bf16.mxu0 0
      %942 = vmatpush1.bf16.msra.mxu0 0
      %943 = vmatprep.subr.bf16.mxu0 0
      %944 = vmatpush1.bf16.msra.mxu0 0
      %945 = vmatprep.subr.bf16.mxu0 0
      %946 = vmatpush1.bf16.msra.mxu0 0
      %947 = vmatprep.subr.bf16.mxu0 0
      %948 = vmatpush1.bf16.msra.mxu0 0
      %949 = vmatprep.subr.bf16.mxu0 0
      %950 = vmatpush1.bf16.msra.mxu0 0
      %951 = vmatprep.subr.bf16.mxu0 0
      %952 = vmatpush1.bf16.msra.mxu0 0
      %953 = vmatprep.subr.bf16.mxu0 0
      %954 = vmatpush1.bf16.msra.mxu0 0
      %955 = vmatprep.subr.bf16.mxu0 0
      %956 = vmatpush1.bf16.msra.mxu0 0
      %957 = vmatprep.subr.bf16.mxu0 0
      %958 = vmatpush1.bf16.msra.mxu0 0
      %959 = vmatprep.subr.bf16.mxu0 0
      %960 = vmatpush1.bf16.msra.mxu0 0
      %961 = vmatprep.subr.bf16.mxu0 0
      %962 = vmatpush1.bf16.msra.mxu0 0
      %963 = vmatprep.subr.bf16.mxu0 0
      %964 = vmatpush1.bf16.msra.mxu0 0
      %965 = vmatprep.subr.bf16.mxu0 0
      %966 = vmatpush1.bf16.msra.mxu0 0
      %967 = vmatprep.mubr.bf16.mxu0 0
      %968 = vmatmul.mubr.bf16.gmra.mrb[0].mxu0 %v614
      %v969 = vpop.f32.mrb[0].mxu0
      %v970 = vadd.f32 %v921, %v969
      %v971 = vpop.f32.mrb[0].mxu0
      %v972 = vpop.f32.mrb[0].mxu0
      %v973 = vadd.f32 %v921, %v972
      %v974 = vpop.f32.mrb[0].mxu0
      %975 = vdwg.mxu0
      %s976 = scalar_lea.vmem %s6, 16
      %v977 = vld [vmem:[%s976] sm:$0xf]
      %v978 = vld [vmem:[%s976 + $0x4] sm:$0xf]
      %v979 = vld [vmem:[%s976 + $0x8] sm:$0xf]
      %v980 = vld [vmem:[%s976 + $0xc] sm:$0xf]
      %s981 = scalar_lea.vmem %s7, 1
      %v982 = vld [vmem:[%s981] sm:$0x1]
      %v984 = vlaneseq
      %v985 = vshrl.u32 %v984, 7
      %v986 = vsub.s32 0, %v985
      %v987 = vrot.slane %v982, %v986
      %v993 = vunpack.c.l.b16 %v977
      %v994 = vunpack.c.l.b16 %v978
      %v995 = vunpack.c.l.b16 %v979
      %v996 = vunpack.c.l.b16 %v980
      %v997 = vpack.c.b16 %v994, %v993
      %v998 = vpack.c.b16 %v996, %v995
      %1001 = vmatprep.subr.bf16.mxu0 0
      %1002 = vmatpush1.bf16.msra.mxu0 %v997
      %1003 = vmatprep.subr.bf16.mxu0 0
      %1004 = vmatpush1.bf16.msra.mxu0 %v998
      %1005 = vmatprep.subr.bf16.mxu0 0
      %1006 = vmatpush1.bf16.msra.mxu0 0
      %1007 = vmatprep.subr.bf16.mxu0 0
      %1008 = vmatpush1.bf16.msra.mxu0 0
      %1009 = vmatprep.subr.bf16.mxu0 0
      %1010 = vmatpush1.bf16.msra.mxu0 0
      %1011 = vmatprep.subr.bf16.mxu0 0
      %1012 = vmatpush1.bf16.msra.mxu0 0
      %1013 = vmatprep.subr.bf16.mxu0 0
      %1014 = vmatpush1.bf16.msra.mxu0 0
      %1015 = vmatprep.subr.bf16.mxu0 0
      %1016 = vmatpush1.bf16.msra.mxu0 0
      %1017 = vmatprep.subr.bf16.mxu0 0
      %1018 = vmatpush1.bf16.msra.mxu0 0
      %1019 = vmatprep.subr.bf16.mxu0 0
      %1020 = vmatpush1.bf16.msra.mxu0 0
      %1021 = vmatprep.subr.bf16.mxu0 0
      %1022 = vmatpush1.bf16.msra.mxu0 0
      %1023 = vmatprep.subr.bf16.mxu0 0
      %1024 = vmatpush1.bf16.msra.mxu0 0
      %1025 = vmatprep.subr.bf16.mxu0 0
      %1026 = vmatpush1.bf16.msra.mxu0 0
      %1027 = vmatprep.subr.bf16.mxu0 0
      %1028 = vmatpush1.bf16.msra.mxu0 0
      %1029 = vmatprep.subr.bf16.mxu0 0
      %1030 = vmatpush1.bf16.msra.mxu0 0
      %1031 = vmatprep.subr.bf16.mxu0 0
      %1032 = vmatpush1.bf16.msra.mxu0 0
      %1033 = vmatprep.mubr.bf16.mxu0 0
      %1034 = vmatmul.mubr.bf16.gmra.mrb[0].mxu0 %v614
      %v1035 = vpop.f32.mrb[0].mxu0
      %v1036 = vadd.f32 %v987, %v1035
      %v1037 = vpop.f32.mrb[0].mxu0
      %v1038 = vpop.f32.mrb[0].mxu0
      %v1039 = vadd.f32 %v987, %v1038
      %v1040 = vpop.f32.mrb[0].mxu0
      %1041 = vdwg.mxu0
      %v1042 = vpack.c.bf16 %v907, %v904
      %v1043 = vpack.c.bf16 %v973, %v970
      %v1045 = vsel %vm723, %v1042, 0
      %v1048 = vsel %vm723, %v1043, 0
      %1050 = vmatprep.subr.bf16.mxu0 0
      %1051 = vmatpush1.bf16.xpose.msra.mxu0 %v1048
      %1052 = vmatprep.subr.bf16.mxu0 0
      %1053 = vmatpush1.bf16.xpose.msra.mxu0 0
      %1054 = vmatprep.subr.bf16.mxu0 0
      %1055 = vmatpush1.bf16.xpose.msra.mxu0 0
      %1056 = vmatprep.subr.bf16.mxu0 0
      %1057 = vmatpush1.bf16.xpose.msra.mxu0 0
      %1058 = vmatprep.subr.bf16.mxu0 0
      %1059 = vmatpush1.bf16.xpose.msra.mxu0 0
      %1060 = vmatprep.subr.bf16.mxu0 0
      %1061 = vmatpush1.bf16.xpose.msra.mxu0 0
      %1062 = vmatprep.subr.bf16.mxu0 0
      %1063 = vmatpush1.bf16.xpose.msra.mxu0 0
      %1064 = vmatprep.subr.bf16.mxu0 0
      %1065 = vmatpush1.bf16.xpose.msra.mxu0 0
      %1066 = vmatprep.subr.bf16.mxu0 0
      %1067 = vmatpush1.bf16.xpose.msra.mxu0 0
      %1068 = vmatprep.subr.bf16.mxu0 0
      %1069 = vmatpush1.bf16.xpose.msra.mxu0 0
      %1070 = vmatprep.subr.bf16.mxu0 0
      %1071 = vmatpush1.bf16.xpose.msra.mxu0 0
      %1072 = vmatprep.subr.bf16.mxu0 0
      %1073 = vmatpush1.bf16.xpose.msra.mxu0 0
      %1074 = vmatprep.subr.bf16.mxu0 0
      %1075 = vmatpush1.bf16.xpose.msra.mxu0 0
      %1076 = vmatprep.subr.bf16.mxu0 0
      %1077 = vmatpush1.bf16.xpose.msra.mxu0 0
      %1078 = vmatprep.subr.bf16.mxu0 0
      %1079 = vmatpush1.bf16.xpose.msra.mxu0 0
      %1080 = vmatprep.subr.bf16.mxu0 0
      %1081 = vmatpush1.bf16.xpose.msra.mxu0 0
      %1082 = vmatprep.mubr.bf16.mxu0 0
      %1083 = vmatmul.mubr.bf16.gmra.mrb[0].mxu0 %v1045
      %v1084 = vpop.f32.mrb[0].mxu0
      %v1085 = vadd.f32 0.0, %v1084
      %v1086 = vpop.f32.mrb[0].mxu0
      %v1087 = vpop.f32.mrb[0].mxu0
      %v1088 = vadd.f32 0.0, %v1087
      %v1089 = vpop.f32.mrb[0].mxu0
      %1090 = vdwg.mxu0
      %v1091 = vmul.f32 %v1085, 0.35355338
      %v1092 = vmul.f32 %v1088, 0.35355338
      %v1093 = vsel %vm773, %v1091, -inf
      %1094 = vmax.xlane.f32.xlu0 %v1093
      %v1095 = vpop.xlane.xlu0 %1094
      %v1096 = vsel %vm773, %v1092, -inf
      %1097 = vmax.xlane.f32.xlu0 %v1096
      %v1098 = vpop.xlane.xlu0 %1097
      %v1099 = vsub.f32 %v1091, %v1095
      %v1100 = vsub.f32 %v1092, %v1098
      %v1101 = vmul.f32 %v1099, 1.442695
      %v1102 = vpow.pop %v1101
      %v1103 = vmul.f32 %v1100, 1.442695
      %v1104 = vpow.pop %v1103
      %v1105 = vsel %vm773, %v1102, 0.0
      %1106 = vadd.xlane.f32.xlu0 %v1105
      %v1107 = vpop.xlane.xlu0 %1106
      %v1108 = vsel %vm773, %v1104, 0.0
      %1109 = vadd.xlane.f32.xlu0 %v1108
      %v1110 = vpop.xlane.xlu0 %1109
      %v1111 = vrcp.pop %v1107
      %v1112 = vrcp.pop %v1110
      %v1113 = vmul.f32 %v1102, %v1111
      %v1114 = vmul.f32 %v1104, %v1112
      %v1115 = vpack.c.bf16 %v1114, %v1113
      %v1116 = vpack.c.bf16 %v1039, %v1036
      %v1118 = vsel %vm773, %v1115, 0
      %1120 = vmatprep.subr.bf16.mxu0 0
      %1121 = vmatpush1.bf16.msra.mxu0 %v1116
      %1122 = vmatprep.subr.bf16.mxu0 0
      %1123 = vmatpush1.bf16.msra.mxu0 0
      %1124 = vmatprep.subr.bf16.mxu0 0
      %1125 = vmatpush1.bf16.msra.mxu0 0
      %1126 = vmatprep.subr.bf16.mxu0 0
      %1127 = vmatpush1.bf16.msra.mxu0 0
      %1128 = vmatprep.subr.bf16.mxu0 0
      %1129 = vmatpush1.bf16.msra.mxu0 0
      %1130 = vmatprep.subr.bf16.mxu0 0
      %1131 = vmatpush1.bf16.msra.mxu0 0
      %1132 = vmatprep.subr.bf16.mxu0 0
      %1133 = vmatpush1.bf16.msra.mxu0 0
      %1134 = vmatprep.subr.bf16.mxu0 0
      %1135 = vmatpush1.bf16.msra.mxu0 0
      %1136 = vmatprep.subr.bf16.mxu0 0
      %1137 = vmatpush1.bf16.msra.mxu0 0
      %1138 = vmatprep.subr.bf16.mxu0 0
      %1139 = vmatpush1.bf16.msra.mxu0 0
      %1140 = vmatprep.subr.bf16.mxu0 0
      %1141 = vmatpush1.bf16.msra.mxu0 0
      %1142 = vmatprep.subr.bf16.mxu0 0
      %1143 = vmatpush1.bf16.msra.mxu0 0
      %1144 = vmatprep.subr.bf16.mxu0 0
      %1145 = vmatpush1.bf16.msra.mxu0 0
      %1146 = vmatprep.subr.bf16.mxu0 0
      %1147 = vmatpush1.bf16.msra.mxu0 0
      %1148 = vmatprep.subr.bf16.mxu0 0
      %1149 = vmatpush1.bf16.msra.mxu0 0
      %1150 = vmatprep.subr.bf16.mxu0 0
      %1151 = vmatpush1.bf16.msra.mxu0 0
      %1152 = vmatprep.mubr.bf16.mxu0 0
      %1153 = vmatmul.mubr.bf16.gmra.mrb[0].mxu0 %v1118
      %v1154 = vpop.f32.mrb[0].mxu0
      %v1155 = vadd.f32 0.0, %v1154
      %v1156 = vpop.f32.mrb[0].mxu0
      %v1157 = vpop.f32.mrb[0].mxu0
      %v1158 = vadd.f32 0.0, %v1157
      %v1159 = vpop.f32.mrb[0].mxu0
      %1160 = vdwg.mxu0
      %v1161 = vpack.c.bf16 %v1158, %v1155
      %s1162 = scalar_lea.vmem %s8, 4
      %v1163 = vld [vmem:[%s1162] sm:$0xf]
      %v1165 = vsel %vm723, %v1161, 0
      %vm1167 = vcmask 1043456
      %v1169 = vsel %vm1167, %v1163, 0
      %1171 = vmatprep.subr.bf16.mxu0 0
      %1172 = vmatpush1.bf16.msra.mxu0 %v1169
      %1173 = vmatprep.subr.bf16.mxu0 0
      %1174 = vmatpush1.bf16.msra.mxu0 0
      %1175 = vmatprep.subr.bf16.mxu0 0
      %1176 = vmatpush1.bf16.msra.mxu0 0
      %1177 = vmatprep.subr.bf16.mxu0 0
      %1178 = vmatpush1.bf16.msra.mxu0 0
      %1179 = vmatprep.subr.bf16.mxu0 0
      %1180 = vmatpush1.bf16.msra.mxu0 0
      %1181 = vmatprep.subr.bf16.mxu0 0
      %1182 = vmatpush1.bf16.msra.mxu0 0
      %1183 = vmatprep.subr.bf16.mxu0 0
      %1184 = vmatpush1.bf16.msra.mxu0 0
      %1185 = vmatprep.subr.bf16.mxu0 0
      %1186 = vmatpush1.bf16.msra.mxu0 0
      %1187 = vmatprep.subr.bf16.mxu0 0
      %1188 = vmatpush1.bf16.msra.mxu0 0
      %1189 = vmatprep.subr.bf16.mxu0 0
      %1190 = vmatpush1.bf16.msra.mxu0 0
      %1191 = vmatprep.subr.bf16.mxu0 0
      %1192 = vmatpush1.bf16.msra.mxu0 0
      %1193 = vmatprep.subr.bf16.mxu0 0
      %1194 = vmatpush1.bf16.msra.mxu0 0
      %1195 = vmatprep.subr.bf16.mxu0 0
      %1196 = vmatpush1.bf16.msra.mxu0 0
      %1197 = vmatprep.subr.bf16.mxu0 0
      %1198 = vmatpush1.bf16.msra.mxu0 0
      %1199 = vmatprep.subr.bf16.mxu0 0
      %1200 = vmatpush1.bf16.msra.mxu0 0
      %1201 = vmatprep.subr.bf16.mxu0 0
      %1202 = vmatpush1.bf16.msra.mxu0 0
      %1203 = vmatprep.mubr.bf16.mxu0 0
      %1204 = vmatmul.mubr.bf16.gmra.mrb[0].mxu0 %v1165
      %v1205 = vpop.f32.mrb[0].mxu0
      %v1206 = vadd.f32 0.0, %v1205
      %v1207 = vpop.f32.mrb[0].mxu0
      %v1208 = vpop.f32.mrb[0].mxu0
      %v1209 = vadd.f32 0.0, %v1208
      %v1210 = vpop.f32.mrb[0].mxu0
      %1211 = vdwg.mxu0
      %v1213 = vsel %vm723, %v842, 0
      %v1216 = vsel %vm1167, %v843, 0
      %1218 = vmatprep.subr.bf16.mxu0 0
      %1219 = vmatpush1.bf16.msra.mxu0 %v1216
      %1220 = vmatprep.subr.bf16.mxu0 0
      %1221 = vmatpush1.bf16.msra.mxu0 0
      %1222 = vmatprep.subr.bf16.mxu0 0
      %1223 = vmatpush1.bf16.msra.mxu0 0
      %1224 = vmatprep.subr.bf16.mxu0 0
      %1225 = vmatpush1.bf16.msra.mxu0 0
      %1226 = vmatprep.subr.bf16.mxu0 0
      %1227 = vmatpush1.bf16.msra.mxu0 0
      %1228 = vmatprep.subr.bf16.mxu0 0
      %1229 = vmatpush1.bf16.msra.mxu0 0
      %1230 = vmatprep.subr.bf16.mxu0 0
      %1231 = vmatpush1.bf16.msra.mxu0 0
      %1232 = vmatprep.subr.bf16.mxu0 0
      %1233 = vmatpush1.bf16.msra.mxu0 0
      %1234 = vmatprep.subr.bf16.mxu0 0
      %1235 = vmatpush1.bf16.msra.mxu0 0
      %1236 = vmatprep.subr.bf16.mxu0 0
      %1237 = vmatpush1.bf16.msra.mxu0 0
      %1238 = vmatprep.subr.bf16.mxu0 0
      %1239 = vmatpush1.bf16.msra.mxu0 0
      %1240 = vmatprep.subr.bf16.mxu0 0
      %1241 = vmatpush1.bf16.msra.mxu0 0
      %1242 = vmatprep.subr.bf16.mxu0 0
      %1243 = vmatpush1.bf16.msra.mxu0 0
      %1244 = vmatprep.subr.bf16.mxu0 0
      %1245 = vmatpush1.bf16.msra.mxu0 0
      %1246 = vmatprep.subr.bf16.mxu0 0
      %1247 = vmatpush1.bf16.msra.mxu0 0
      %1248 = vmatprep.subr.bf16.mxu0 0
      %1249 = vmatpush1.bf16.msra.mxu0 0
      %1250 = vmatprep.mubr.bf16.mxu0 0
      %1251 = vmatmul.mubr.bf16.gmra.mrb[0].mxu0 %v1213
      %v1252 = vpop.f32.mrb[0].mxu0
      %v1253 = vadd.f32 %v1206, %v1252
      %v1254 = vpop.f32.mrb[0].mxu0
      %v1255 = vpop.f32.mrb[0].mxu0
      %v1256 = vadd.f32 %v1209, %v1255
      %v1257 = vpop.f32.mrb[0].mxu0
      %1258 = vdwg.mxu0
      %s1259 = scalar_lea.vmem %s2, 32
      %v1260 = vld [vmem:[%s1259] sm:$0xf]
      %v1261 = vld [vmem:[%s1259 + $0x4] sm:$0xf]
      %v1262 = vld [vmem:[%s1259 + $0x8] sm:$0xf]
      %v1263 = vld [vmem:[%s1259 + $0xc] sm:$0xf]
      %s1264 = scalar_lea.vmem %s3, 2
      %v1265 = vld [vmem:[%s1264] sm:$0x1]
      %v1267 = vlaneseq
      %v1268 = vshrl.u32 %v1267, 7
      %v1269 = vsub.s32 0, %v1268
      %v1270 = vrot.slane %v1265, %v1269
      %v1276 = vunpack.c.l.b16 %v1260
      %v1277 = vunpack.c.l.b16 %v1261
      %v1278 = vunpack.c.l.b16 %v1262
      %v1279 = vunpack.c.l.b16 %v1263
      %v1280 = vpack.c.b16 %v1277, %v1276
      %v1281 = vpack.c.b16 %v1279, %v1278
      %1284 = vmatprep.subr.bf16.mxu0 0
      %1285 = vmatpush1.bf16.msra.mxu0 %v1280
      %1286 = vmatprep.subr.bf16.mxu0 0
      %1287 = vmatpush1.bf16.msra.mxu0 %v1281
      %1288 = vmatprep.subr.bf16.mxu0 0
      %1289 = vmatpush1.bf16.msra.mxu0 0
      %1290 = vmatprep.subr.bf16.mxu0 0
      %1291 = vmatpush1.bf16.msra.mxu0 0
      %1292 = vmatprep.subr.bf16.mxu0 0
      %1293 = vmatpush1.bf16.msra.mxu0 0
      %1294 = vmatprep.subr.bf16.mxu0 0
      %1295 = vmatpush1.bf16.msra.mxu0 0
      %1296 = vmatprep.subr.bf16.mxu0 0
      %1297 = vmatpush1.bf16.msra.mxu0 0
      %1298 = vmatprep.subr.bf16.mxu0 0
      %1299 = vmatpush1.bf16.msra.mxu0 0
      %1300 = vmatprep.subr.bf16.mxu0 0
      %1301 = vmatpush1.bf16.msra.mxu0 0
      %1302 = vmatprep.subr.bf16.mxu0 0
      %1303 = vmatpush1.bf16.msra.mxu0 0
      %1304 = vmatprep.subr.bf16.mxu0 0
      %1305 = vmatpush1.bf16.msra.mxu0 0
      %1306 = vmatprep.subr.bf16.mxu0 0
      %1307 = vmatpush1.bf16.msra.mxu0 0
      %1308 = vmatprep.subr.bf16.mxu0 0
      %1309 = vmatpush1.bf16.msra.mxu0 0
      %1310 = vmatprep.subr.bf16.mxu0 0
      %1311 = vmatpush1.bf16.msra.mxu0 0
      %1312 = vmatprep.subr.bf16.mxu0 0
      %1313 = vmatpush1.bf16.msra.mxu0 0
      %1314 = vmatprep.subr.bf16.mxu0 0
      %1315 = vmatpush1.bf16.msra.mxu0 0
      %1316 = vmatprep.mubr.bf16.mxu0 0
      %1317 = vmatmul.mubr.bf16.gmra.mrb[0].mxu0 %v547
      %v1318 = vpop.f32.mrb[0].mxu0
      %v1319 = vadd.f32 %v1270, %v1318
      %v1320 = vpop.f32.mrb[0].mxu0
      %v1321 = vpop.f32.mrb[0].mxu0
      %v1322 = vadd.f32 %v1270, %v1321
      %v1323 = vpop.f32.mrb[0].mxu0
      %1324 = vdwg.mxu0
      %s1325 = scalar_lea.vmem %s4, 32
      %v1326 = vld [vmem:[%s1325] sm:$0xf]
      %v1327 = vld [vmem:[%s1325 + $0x4] sm:$0xf]
      %v1328 = vld [vmem:[%s1325 + $0x8] sm:$0xf]
      %v1329 = vld [vmem:[%s1325 + $0xc] sm:$0xf]
      %s1330 = scalar_lea.vmem %s5, 2
      %v1331 = vld [vmem:[%s1330] sm:$0x1]
      %v1333 = vlaneseq
      %v1334 = vshrl.u32 %v1333, 7
      %v1335 = vsub.s32 0, %v1334
      %v1336 = vrot.slane %v1331, %v1335
      %v1342 = vunpack.c.l.b16 %v1326
      %v1343 = vunpack.c.l.b16 %v1327
      %v1344 = vunpack.c.l.b16 %v1328
      %v1345 = vunpack.c.l.b16 %v1329
      %v1346 = vpack.c.b16 %v1343, %v1342
      %v1347 = vpack.c.b16 %v1345, %v1344
      %1350 = vmatprep.subr.bf16.mxu0 0
      %1351 = vmatpush1.bf16.msra.mxu0 %v1346
      %1352 = vmatprep.subr.bf16.mxu0 0
      %1353 = vmatpush1.bf16.msra.mxu0 %v1347
      %1354 = vmatprep.subr.bf16.mxu0 0
      %1355 = vmatpush1.bf16.msra.mxu0 0
      %1356 = vmatprep.subr.bf16.mxu0 0
      %1357 = vmatpush1.bf16.msra.mxu0 0
      %1358 = vmatprep.subr.bf16.mxu0 0
      %1359 = vmatpush1.bf16.msra.mxu0 0
      %1360 = vmatprep.subr.bf16.mxu0 0
      %1361 = vmatpush1.bf16.msra.mxu0 0
      %1362 = vmatprep.subr.bf16.mxu0 0
      %1363 = vmatpush1.bf16.msra.mxu0 0
      %1364 = vmatprep.subr.bf16.mxu0 0
      %1365 = vmatpush1.bf16.msra.mxu0 0
      %1366 = vmatprep.subr.bf16.mxu0 0
      %1367 = vmatpush1.bf16.msra.mxu0 0
      %1368 = vmatprep.subr.bf16.mxu0 0
      %1369 = vmatpush1.bf16.msra.mxu0 0
      %1370 = vmatprep.subr.bf16.mxu0 0
      %1371 = vmatpush1.bf16.msra.mxu0 0
      %1372 = vmatprep.subr.bf16.mxu0 0
      %1373 = vmatpush1.bf16.msra.mxu0 0
      %1374 = vmatprep.subr.bf16.mxu0 0
      %1375 = vmatpush1.bf16.msra.mxu0 0
      %1376 = vmatprep.subr.bf16.mxu0 0
      %1377 = vmatpush1.bf16.msra.mxu0 0
      %1378 = vmatprep.subr.bf16.mxu0 0
      %1379 = vmatpush1.bf16.msra.mxu0 0
      %1380 = vmatprep.subr.bf16.mxu0 0
      %1381 = vmatpush1.bf16.msra.mxu0 0
      %1382 = vmatprep.mubr.bf16.mxu0 0
      %1383 = vmatmul.mubr.bf16.gmra.mrb[0].mxu0 %v614
      %v1384 = vpop.f32.mrb[0].mxu0
      %v1385 = vadd.f32 %v1336, %v1384
      %v1386 = vpop.f32.mrb[0].mxu0
      %v1387 = vpop.f32.mrb[0].mxu0
      %v1388 = vadd.f32 %v1336, %v1387
      %v1389 = vpop.f32.mrb[0].mxu0
      %1390 = vdwg.mxu0
      %s1391 = scalar_lea.vmem %s6, 32
      %v1392 = vld [vmem:[%s1391] sm:$0xf]
      %v1393 = vld [vmem:[%s1391 + $0x4] sm:$0xf]
      %v1394 = vld [vmem:[%s1391 + $0x8] sm:$0xf]
      %v1395 = vld [vmem:[%s1391 + $0xc] sm:$0xf]
      %s1396 = scalar_lea.vmem %s7, 2
      %v1397 = vld [vmem:[%s1396] sm:$0x1]
      %v1399 = vlaneseq
      %v1400 = vshrl.u32 %v1399, 7
      %v1401 = vsub.s32 0, %v1400
      %v1402 = vrot.slane %v1397, %v1401
      %v1408 = vunpack.c.l.b16 %v1392
      %v1409 = vunpack.c.l.b16 %v1393
      %v1410 = vunpack.c.l.b16 %v1394
      %v1411 = vunpack.c.l.b16 %v1395
      %v1412 = vpack.c.b16 %v1409, %v1408
      %v1413 = vpack.c.b16 %v1411, %v1410
      %1416 = vmatprep.subr.bf16.mxu0 0
      %1417 = vmatpush1.bf16.msra.mxu0 %v1412
      %1418 = vmatprep.subr.bf16.mxu0 0
      %1419 = vmatpush1.bf16.msra.mxu0 %v1413
      %1420 = vmatprep.subr.bf16.mxu0 0
      %1421 = vmatpush1.bf16.msra.mxu0 0
      %1422 = vmatprep.subr.bf16.mxu0 0
      %1423 = vmatpush1.bf16.msra.mxu0 0
      %1424 = vmatprep.subr.bf16.mxu0 0
      %1425 = vmatpush1.bf16.msra.mxu0 0
      %1426 = vmatprep.subr.bf16.mxu0 0
      %1427 = vmatpush1.bf16.msra.mxu0 0
      %1428 = vmatprep.subr.bf16.mxu0 0
      %1429 = vmatpush1.bf16.msra.mxu0 0
      %1430 = vmatprep.subr.bf16.mxu0 0
      %1431 = vmatpush1.bf16.msra.mxu0 0
      %1432 = vmatprep.subr.bf16.mxu0 0
      %1433 = vmatpush1.bf16.msra.mxu0 0
      %1434 = vmatprep.subr.bf16.mxu0 0
      %1435 = vmatpush1.bf16.msra.mxu0 0
      %1436 = vmatprep.subr.bf16.mxu0 0
      %1437 = vmatpush1.bf16.msra.mxu0 0
      %1438 = vmatprep.subr.bf16.mxu0 0
      %1439 = vmatpush1.bf16.msra.mxu0 0
      %1440 = vmatprep.subr.bf16.mxu0 0
      %1441 = vmatpush1.bf16.msra.mxu0 0
      %1442 = vmatprep.subr.bf16.mxu0 0
      %1443 = vmatpush1.bf16.msra.mxu0 0
      %1444 = vmatprep.subr.bf16.mxu0 0
      %1445 = vmatpush1.bf16.msra.mxu0 0
      %1446 = vmatprep.subr.bf16.mxu0 0
      %1447 = vmatpush1.bf16.msra.mxu0 0
      %1448 = vmatprep.mubr.bf16.mxu0 0
      %1449 = vmatmul.mubr.bf16.gmra.mrb[0].mxu0 %v614
      %v1450 = vpop.f32.mrb[0].mxu0
      %v1451 = vadd.f32 %v1402, %v1450
      %v1452 = vpop.f32.mrb[0].mxu0
      %v1453 = vpop.f32.mrb[0].mxu0
      %v1454 = vadd.f32 %v1402, %v1453
      %v1455 = vpop.f32.mrb[0].mxu0
      %1456 = vdwg.mxu0
      %v1457 = vpack.c.bf16 %v1322, %v1319
      %v1458 = vpack.c.bf16 %v1388, %v1385
      %v1460 = vsel %vm723, %v1457, 0
      %v1463 = vsel %vm723, %v1458, 0
      %1465 = vmatprep.subr.bf16.mxu0 0
      %1466 = vmatpush1.bf16.xpose.msra.mxu0 %v1463
      %1467 = vmatprep.subr.bf16.mxu0 0
      %1468 = vmatpush1.bf16.xpose.msra.mxu0 0
      %1469 = vmatprep.subr.bf16.mxu0 0
      %1470 = vmatpush1.bf16.xpose.msra.mxu0 0
      %1471 = vmatprep.subr.bf16.mxu0 0
      %1472 = vmatpush1.bf16.xpose.msra.mxu0 0
      %1473 = vmatprep.subr.bf16.mxu0 0
      %1474 = vmatpush1.bf16.xpose.msra.mxu0 0
      %1475 = vmatprep.subr.bf16.mxu0 0
      %1476 = vmatpush1.bf16.xpose.msra.mxu0 0
      %1477 = vmatprep.subr.bf16.mxu0 0
      %1478 = vmatpush1.bf16.xpose.msra.mxu0 0
      %1479 = vmatprep.subr.bf16.mxu0 0
      %1480 = vmatpush1.bf16.xpose.msra.mxu0 0
      %1481 = vmatprep.subr.bf16.mxu0 0
      %1482 = vmatpush1.bf16.xpose.msra.mxu0 0
      %1483 = vmatprep.subr.bf16.mxu0 0
      %1484 = vmatpush1.bf16.xpose.msra.mxu0 0
      %1485 = vmatprep.subr.bf16.mxu0 0
      %1486 = vmatpush1.bf16.xpose.msra.mxu0 0
      %1487 = vmatprep.subr.bf16.mxu0 0
      %1488 = vmatpush1.bf16.xpose.msra.mxu0 0
      %1489 = vmatprep.subr.bf16.mxu0 0
      %1490 = vmatpush1.bf16.xpose.msra.mxu0 0
      %1491 = vmatprep.subr.bf16.mxu0 0
      %1492 = vmatpush1.bf16.xpose.msra.mxu0 0
      %1493 = vmatprep.subr.bf16.mxu0 0
      %1494 = vmatpush1.bf16.xpose.msra.mxu0 0
      %1495 = vmatprep.subr.bf16.mxu0 0
      %1496 = vmatpush1.bf16.xpose.msra.mxu0 0
      %1497 = vmatprep.mubr.bf16.mxu0 0
      %1498 = vmatmul.mubr.bf16.gmra.mrb[0].mxu0 %v1460
      %v1499 = vpop.f32.mrb[0].mxu0
      %v1500 = vadd.f32 0.0, %v1499
      %v1501 = vpop.f32.mrb[0].mxu0
      %v1502 = vpop.f32.mrb[0].mxu0
      %v1503 = vadd.f32 0.0, %v1502
      %v1504 = vpop.f32.mrb[0].mxu0
      %1505 = vdwg.mxu0
      %v1506 = vmul.f32 %v1500, 0.35355338
      %v1507 = vmul.f32 %v1503, 0.35355338
      %v1508 = vsel %vm773, %v1506, -inf
      %1509 = vmax.xlane.f32.xlu0 %v1508
      %v1510 = vpop.xlane.xlu0 %1509
      %v1511 = vsel %vm773, %v1507, -inf
      %1512 = vmax.xlane.f32.xlu0 %v1511
      %v1513 = vpop.xlane.xlu0 %1512
      %v1514 = vsub.f32 %v1506, %v1510
      %v1515 = vsub.f32 %v1507, %v1513
      %v1516 = vmul.f32 %v1514, 1.442695
      %v1517 = vpow.pop %v1516
      %v1518 = vmul.f32 %v1515, 1.442695
      %v1519 = vpow.pop %v1518
      %v1520 = vsel %vm773, %v1517, 0.0
      %1521 = vadd.xlane.f32.xlu0 %v1520
      %v1522 = vpop.xlane.xlu0 %1521
      %v1523 = vsel %vm773, %v1519, 0.0
      %1524 = vadd.xlane.f32.xlu0 %v1523
      %v1525 = vpop.xlane.xlu0 %1524
      %v1526 = vrcp.pop %v1522
      %v1527 = vrcp.pop %v1525
      %v1528 = vmul.f32 %v1517, %v1526
      %v1529 = vmul.f32 %v1519, %v1527
      %v1530 = vpack.c.bf16 %v1529, %v1528
      %v1531 = vpack.c.bf16 %v1454, %v1451
      %v1533 = vsel %vm773, %v1530, 0
      %1535 = vmatprep.subr.bf16.mxu0 0
      %1536 = vmatpush1.bf16.msra.mxu0 %v1531
      %1537 = vmatprep.subr.bf16.mxu0 0
      %1538 = vmatpush1.bf16.msra.mxu0 0
      %1539 = vmatprep.subr.bf16.mxu0 0
      %1540 = vmatpush1.bf16.msra.mxu0 0
      %1541 = vmatprep.subr.bf16.mxu0 0
      %1542 = vmatpush1.bf16.msra.mxu0 0
      %1543 = vmatprep.subr.bf16.mxu0 0
      %1544 = vmatpush1.bf16.msra.mxu0 0
      %1545 = vmatprep.subr.bf16.mxu0 0
      %1546 = vmatpush1.bf16.msra.mxu0 0
      %1547 = vmatprep.subr.bf16.mxu0 0
      %1548 = vmatpush1.bf16.msra.mxu0 0
      %1549 = vmatprep.subr.bf16.mxu0 0
      %1550 = vmatpush1.bf16.msra.mxu0 0
      %1551 = vmatprep.subr.bf16.mxu0 0
      %1552 = vmatpush1.bf16.msra.mxu0 0
      %1553 = vmatprep.subr.bf16.mxu0 0
      %1554 = vmatpush1.bf16.msra.mxu0 0
      %1555 = vmatprep.subr.bf16.mxu0 0
      %1556 = vmatpush1.bf16.msra.mxu0 0
      %1557 = vmatprep.subr.bf16.mxu0 0
      %1558 = vmatpush1.bf16.msra.mxu0 0
      %1559 = vmatprep.subr.bf16.mxu0 0
      %1560 = vmatpush1.bf16.msra.mxu0 0
      %1561 = vmatprep.subr.bf16.mxu0 0
      %1562 = vmatpush1.bf16.msra.mxu0 0
      %1563 = vmatprep.subr.bf16.mxu0 0
      %1564 = vmatpush1.bf16.msra.mxu0 0
      %1565 = vmatprep.subr.bf16.mxu0 0
      %1566 = vmatpush1.bf16.msra.mxu0 0
      %1567 = vmatprep.mubr.bf16.mxu0 0
      %1568 = vmatmul.mubr.bf16.gmra.mrb[0].mxu0 %v1533
      %v1569 = vpop.f32.mrb[0].mxu0
      %v1570 = vadd.f32 0.0, %v1569
      %v1571 = vpop.f32.mrb[0].mxu0
      %v1572 = vpop.f32.mrb[0].mxu0
      %v1573 = vadd.f32 0.0, %v1572
      %v1574 = vpop.f32.mrb[0].mxu0
      %1575 = vdwg.mxu0
      %v1576 = vpack.c.bf16 %v1573, %v1570
      %s1577 = scalar_lea.vmem %s8, 8
      %v1578 = vld [vmem:[%s1577] sm:$0xf]
      %v1580 = vsel %vm723, %v1576, 0
      %v1583 = vsel %vm1167, %v1578, 0
      %1585 = vmatprep.subr.bf16.mxu0 0
      %1586 = vmatpush1.bf16.msra.mxu0 %v1583
      %1587 = vmatprep.subr.bf16.mxu0 0
      %1588 = vmatpush1.bf16.msra.mxu0 0
      %1589 = vmatprep.subr.bf16.mxu0 0
      %1590 = vmatpush1.bf16.msra.mxu0 0
      %1591 = vmatprep.subr.bf16.mxu0 0
      %1592 = vmatpush1.bf16.msra.mxu0 0
      %1593 = vmatprep.subr.bf16.mxu0 0
      %1594 = vmatpush1.bf16.msra.mxu0 0
      %1595 = vmatprep.subr.bf16.mxu0 0
      %1596 = vmatpush1.bf16.msra.mxu0 0
      %1597 = vmatprep.subr.bf16.mxu0 0
      %1598 = vmatpush1.bf16.msra.mxu0 0
      %1599 = vmatprep.subr.bf16.mxu0 0
      %1600 = vmatpush1.bf16.msra.mxu0 0
      %1601 = vmatprep.subr.bf16.mxu0 0
      %1602 = vmatpush1.bf16.msra.mxu0 0
      %1603 = vmatprep.subr.bf16.mxu0 0
      %1604 = vmatpush1.bf16.msra.mxu0 0
      %1605 = vmatprep.subr.bf16.mxu0 0
      %1606 = vmatpush1.bf16.msra.mxu0 0
      %1607 = vmatprep.subr.bf16.mxu0 0
      %1608 = vmatpush1.bf16.msra.mxu0 0
      %1609 = vmatprep.subr.bf16.mxu0 0
      %1610 = vmatpush1.bf16.msra.mxu0 0
      %1611 = vmatprep.subr.bf16.mxu0 0
      %1612 = vmatpush1.bf16.msra.mxu0 0
      %1613 = vmatprep.subr.bf16.mxu0 0
      %1614 = vmatpush1.bf16.msra.mxu0 0
      %1615 = vmatprep.subr.bf16.mxu0 0
      %1616 = vmatpush1.bf16.msra.mxu0 0
      %1617 = vmatprep.mubr.bf16.mxu0 0
      %1618 = vmatmul.mubr.bf16.gmra.mrb[0].mxu0 %v1580
      %v1619 = vpop.f32.mrb[0].mxu0
      %v1620 = vadd.f32 0.0, %v1619
      %v1621 = vpop.f32.mrb[0].mxu0
      %v1622 = vpop.f32.mrb[0].mxu0
      %v1623 = vadd.f32 0.0, %v1622
      %v1624 = vpop.f32.mrb[0].mxu0
      %1625 = vdwg.mxu0
      %v1626 = vadd.f32 %v1253, %v1620
      %v1627 = vadd.f32 %v1256, %v1623
      %s1628 = scalar_lea.vmem %s2, 48
      %v1629 = vld [vmem:[%s1628] sm:$0xf]
      %v1630 = vld [vmem:[%s1628 + $0x4] sm:$0xf]
      %v1631 = vld [vmem:[%s1628 + $0x8] sm:$0xf]
      %v1632 = vld [vmem:[%s1628 + $0xc] sm:$0xf]
      %s1633 = scalar_lea.vmem %s3, 3
      %v1634 = vld [vmem:[%s1633] sm:$0x1]
      %v1636 = vlaneseq
      %v1637 = vshrl.u32 %v1636, 7
      %v1638 = vsub.s32 0, %v1637
      %v1639 = vrot.slane %v1634, %v1638
      %v1645 = vunpack.c.l.b16 %v1629
      %v1646 = vunpack.c.l.b16 %v1630
      %v1647 = vunpack.c.l.b16 %v1631
      %v1648 = vunpack.c.l.b16 %v1632
      %v1649 = vpack.c.b16 %v1646, %v1645
      %v1650 = vpack.c.b16 %v1648, %v1647
      %1653 = vmatprep.subr.bf16.mxu0 0
      %1654 = vmatpush1.bf16.msra.mxu0 %v1649
      %1655 = vmatprep.subr.bf16.mxu0 0
      %1656 = vmatpush1.bf16.msra.mxu0 %v1650
      %1657 = vmatprep.subr.bf16.mxu0 0
      %1658 = vmatpush1.bf16.msra.mxu0 0
      %1659 = vmatprep.subr.bf16.mxu0 0
      %1660 = vmatpush1.bf16.msra.mxu0 0
      %1661 = vmatprep.subr.bf16.mxu0 0
      %1662 = vmatpush1.bf16.msra.mxu0 0
      %1663 = vmatprep.subr.bf16.mxu0 0
      %1664 = vmatpush1.bf16.msra.mxu0 0
      %1665 = vmatprep.subr.bf16.mxu0 0
      %1666 = vmatpush1.bf16.msra.mxu0 0
      %1667 = vmatprep.subr.bf16.mxu0 0
      %1668 = vmatpush1.bf16.msra.mxu0 0
      %1669 = vmatprep.subr.bf16.mxu0 0
      %1670 = vmatpush1.bf16.msra.mxu0 0
      %1671 = vmatprep.subr.bf16.mxu0 0
      %1672 = vmatpush1.bf16.msra.mxu0 0
      %1673 = vmatprep.subr.bf16.mxu0 0
      %1674 = vmatpush1.bf16.msra.mxu0 0
      %1675 = vmatprep.subr.bf16.mxu0 0
      %1676 = vmatpush1.bf16.msra.mxu0 0
      %1677 = vmatprep.subr.bf16.mxu0 0
      %1678 = vmatpush1.bf16.msra.mxu0 0
      %1679 = vmatprep.subr.bf16.mxu0 0
      %1680 = vmatpush1.bf16.msra.mxu0 0
      %1681 = vmatprep.subr.bf16.mxu0 0
      %1682 = vmatpush1.bf16.msra.mxu0 0
      %1683 = vmatprep.subr.bf16.mxu0 0
      %1684 = vmatpush1.bf16.msra.mxu0 0
      %1685 = vmatprep.mubr.bf16.mxu0 0
      %1686 = vmatmul.mubr.bf16.gmra.mrb[0].mxu0 %v547
      %v1687 = vpop.f32.mrb[0].mxu0
      %v1688 = vadd.f32 %v1639, %v1687
      %v1689 = vpop.f32.mrb[0].mxu0
      %v1690 = vpop.f32.mrb[0].mxu0
      %v1691 = vadd.f32 %v1639, %v1690
      %v1692 = vpop.f32.mrb[0].mxu0
      %1693 = vdwg.mxu0
      %s1694 = scalar_lea.vmem %s4, 48
      %v1695 = vld [vmem:[%s1694] sm:$0xf]
      %v1696 = vld [vmem:[%s1694 + $0x4] sm:$0xf]
      %v1697 = vld [vmem:[%s1694 + $0x8] sm:$0xf]
      %v1698 = vld [vmem:[%s1694 + $0xc] sm:$0xf]
      %s1699 = scalar_lea.vmem %s5, 3
      %v1700 = vld [vmem:[%s1699] sm:$0x1]
      %v1702 = vlaneseq
      %v1703 = vshrl.u32 %v1702, 7
      %v1704 = vsub.s32 0, %v1703
      %v1705 = vrot.slane %v1700, %v1704
      %v1711 = vunpack.c.l.b16 %v1695
      %v1712 = vunpack.c.l.b16 %v1696
      %v1713 = vunpack.c.l.b16 %v1697
      %v1714 = vunpack.c.l.b16 %v1698
      %v1715 = vpack.c.b16 %v1712, %v1711
      %v1716 = vpack.c.b16 %v1714, %v1713
      %1719 = vmatprep.subr.bf16.mxu0 0
      %1720 = vmatpush1.bf16.msra.mxu0 %v1715
      %1721 = vmatprep.subr.bf16.mxu0 0
      %1722 = vmatpush1.bf16.msra.mxu0 %v1716
      %1723 = vmatprep.subr.bf16.mxu0 0
      %1724 = vmatpush1.bf16.msra.mxu0 0
      %1725 = vmatprep.subr.bf16.mxu0 0
      %1726 = vmatpush1.bf16.msra.mxu0 0
      %1727 = vmatprep.subr.bf16.mxu0 0
      %1728 = vmatpush1.bf16.msra.mxu0 0
      %1729 = vmatprep.subr.bf16.mxu0 0
      %1730 = vmatpush1.bf16.msra.mxu0 0
      %1731 = vmatprep.subr.bf16.mxu0 0
      %1732 = vmatpush1.bf16.msra.mxu0 0
      %1733 = vmatprep.subr.bf16.mxu0 0
      %1734 = vmatpush1.bf16.msra.mxu0 0
      %1735 = vmatprep.subr.bf16.mxu0 0
      %1736 = vmatpush1.bf16.msra.mxu0 0
      %1737 = vmatprep.subr.bf16.mxu0 0
      %1738 = vmatpush1.bf16.msra.mxu0 0
      %1739 = vmatprep.subr.bf16.mxu0 0
      %1740 = vmatpush1.bf16.msra.mxu0 0
      %1741 = vmatprep.subr.bf16.mxu0 0
      %1742 = vmatpush1.bf16.msra.mxu0 0
      %1743 = vmatprep.subr.bf16.mxu0 0
      %1744 = vmatpush1.bf16.msra.mxu0 0
      %1745 = vmatprep.subr.bf16.mxu0 0
      %1746 = vmatpush1.bf16.msra.mxu0 0
      %1747 = vmatprep.subr.bf16.mxu0 0
      %1748 = vmatpush1.bf16.msra.mxu0 0
      %1749 = vmatprep.subr.bf16.mxu0 0
      %1750 = vmatpush1.bf16.msra.mxu0 0
      %1751 = vmatprep.mubr.bf16.mxu0 0
      %1752 = vmatmul.mubr.bf16.gmra.mrb[0].mxu0 %v614
      %v1753 = vpop.f32.mrb[0].mxu0
      %v1754 = vadd.f32 %v1705, %v1753
      %v1755 = vpop.f32.mrb[0].mxu0
      %v1756 = vpop.f32.mrb[0].mxu0
      %v1757 = vadd.f32 %v1705, %v1756
      %v1758 = vpop.f32.mrb[0].mxu0
      %1759 = vdwg.mxu0
      %s1760 = scalar_lea.vmem %s6, 48
      %v1761 = vld [vmem:[%s1760] sm:$0xf]
      %v1762 = vld [vmem:[%s1760 + $0x4] sm:$0xf]
      %v1763 = vld [vmem:[%s1760 + $0x8] sm:$0xf]
      %v1764 = vld [vmem:[%s1760 + $0xc] sm:$0xf]
      %s1765 = scalar_lea.vmem %s7, 3
      %v1766 = vld [vmem:[%s1765] sm:$0x1]
      %v1768 = vlaneseq
      %v1769 = vshrl.u32 %v1768, 7
      %v1770 = vsub.s32 0, %v1769
      %v1771 = vrot.slane %v1766, %v1770
      %v1777 = vunpack.c.l.b16 %v1761
      %v1778 = vunpack.c.l.b16 %v1762
      %v1779 = vunpack.c.l.b16 %v1763
      %v1780 = vunpack.c.l.b16 %v1764
      %v1781 = vpack.c.b16 %v1778, %v1777
      %v1782 = vpack.c.b16 %v1780, %v1779
      %1785 = vmatprep.subr.bf16.mxu0 0
      %1786 = vmatpush1.bf16.msra.mxu0 %v1781
      %1787 = vmatprep.subr.bf16.mxu0 0
      %1788 = vmatpush1.bf16.msra.mxu0 %v1782
      %1789 = vmatprep.subr.bf16.mxu0 0
      %1790 = vmatpush1.bf16.msra.mxu0 0
      %1791 = vmatprep.subr.bf16.mxu0 0
      %1792 = vmatpush1.bf16.msra.mxu0 0
      %1793 = vmatprep.subr.bf16.mxu0 0
      %1794 = vmatpush1.bf16.msra.mxu0 0
      %1795 = vmatprep.subr.bf16.mxu0 0
      %1796 = vmatpush1.bf16.msra.mxu0 0
      %1797 = vmatprep.subr.bf16.mxu0 0
      %1798 = vmatpush1.bf16.msra.mxu0 0
      %1799 = vmatprep.subr.bf16.mxu0 0
      %1800 = vmatpush1.bf16.msra.mxu0 0
      %1801 = vmatprep.subr.bf16.mxu0 0
      %1802 = vmatpush1.bf16.msra.mxu0 0
      %1803 = vmatprep.subr.bf16.mxu0 0
      %1804 = vmatpush1.bf16.msra.mxu0 0
      %1805 = vmatprep.subr.bf16.mxu0 0
      %1806 = vmatpush1.bf16.msra.mxu0 0
      %1807 = vmatprep.subr.bf16.mxu0 0
      %1808 = vmatpush1.bf16.msra.mxu0 0
      %1809 = vmatprep.subr.bf16.mxu0 0
      %1810 = vmatpush1.bf16.msra.mxu0 0
      %1811 = vmatprep.subr.bf16.mxu0 0
      %1812 = vmatpush1.bf16.msra.mxu0 0
      %1813 = vmatprep.subr.bf16.mxu0 0
      %1814 = vmatpush1.bf16.msra.mxu0 0
      %1815 = vmatprep.subr.bf16.mxu0 0
      %1816 = vmatpush1.bf16.msra.mxu0 0
      %1817 = vmatprep.mubr.bf16.mxu0 0
      %1818 = vmatmul.mubr.bf16.gmra.mrb[0].mxu0 %v614
      %v1819 = vpop.f32.mrb[0].mxu0
      %v1820 = vadd.f32 %v1771, %v1819
      %v1821 = vpop.f32.mrb[0].mxu0
      %v1822 = vpop.f32.mrb[0].mxu0
      %v1823 = vadd.f32 %v1771, %v1822
      %v1824 = vpop.f32.mrb[0].mxu0
      %1825 = vdwg.mxu0
      %v1826 = vpack.c.bf16 %v1691, %v1688
      %v1827 = vpack.c.bf16 %v1757, %v1754
      %v1829 = vsel %vm723, %v1826, 0
      %v1832 = vsel %vm723, %v1827, 0
      %1834 = vmatprep.subr.bf16.mxu0 0
      %1835 = vmatpush1.bf16.xpose.msra.mxu0 %v1832
      %1836 = vmatprep.subr.bf16.mxu0 0
      %1837 = vmatpush1.bf16.xpose.msra.mxu0 0
      %1838 = vmatprep.subr.bf16.mxu0 0
      %1839 = vmatpush1.bf16.xpose.msra.mxu0 0
      %1840 = vmatprep.subr.bf16.mxu0 0
      %1841 = vmatpush1.bf16.xpose.msra.mxu0 0
      %1842 = vmatprep.subr.bf16.mxu0 0
      %1843 = vmatpush1.bf16.xpose.msra.mxu0 0
      %1844 = vmatprep.subr.bf16.mxu0 0
      %1845 = vmatpush1.bf16.xpose.msra.mxu0 0
      %1846 = vmatprep.subr.bf16.mxu0 0
      %1847 = vmatpush1.bf16.xpose.msra.mxu0 0
      %1848 = vmatprep.subr.bf16.mxu0 0
      %1849 = vmatpush1.bf16.xpose.msra.mxu0 0
      %1850 = vmatprep.subr.bf16.mxu0 0
      %1851 = vmatpush1.bf16.xpose.msra.mxu0 0
      %1852 = vmatprep.subr.bf16.mxu0 0
      %1853 = vmatpush1.bf16.xpose.msra.mxu0 0
      %1854 = vmatprep.subr.bf16.mxu0 0
      %1855 = vmatpush1.bf16.xpose.msra.mxu0 0
      %1856 = vmatprep.subr.bf16.mxu0 0
      %1857 = vmatpush1.bf16.xpose.msra.mxu0 0
      %1858 = vmatprep.subr.bf16.mxu0 0
      %1859 = vmatpush1.bf16.xpose.msra.mxu0 0
      %1860 = vmatprep.subr.bf16.mxu0 0
      %1861 = vmatpush1.bf16.xpose.msra.mxu0 0
      %1862 = vmatprep.subr.bf16.mxu0 0
      %1863 = vmatpush1.bf16.xpose.msra.mxu0 0
      %1864 = vmatprep.subr.bf16.mxu0 0
      %1865 = vmatpush1.bf16.xpose.msra.mxu0 0
      %1866 = vmatprep.mubr.bf16.mxu0 0
      %1867 = vmatmul.mubr.bf16.gmra.mrb[0].mxu0 %v1829
      %v1868 = vpop.f32.mrb[0].mxu0
      %v1869 = vadd.f32 0.0, %v1868
      %v1870 = vpop.f32.mrb[0].mxu0
      %v1871 = vpop.f32.mrb[0].mxu0
      %v1872 = vadd.f32 0.0, %v1871
      %v1873 = vpop.f32.mrb[0].mxu0
      %1874 = vdwg.mxu0
      %v1875 = vmul.f32 %v1869, 0.35355338
      %v1876 = vmul.f32 %v1872, 0.35355338
      %v1877 = vsel %vm773, %v1875, -inf
      %1878 = vmax.xlane.f32.xlu0 %v1877
      %v1879 = vpop.xlane.xlu0 %1878
      %v1880 = vsel %vm773, %v1876, -inf
      %1881 = vmax.xlane.f32.xlu0 %v1880
      %v1882 = vpop.xlane.xlu0 %1881
      %v1883 = vsub.f32 %v1875, %v1879
      %v1884 = vsub.f32 %v1876, %v1882
      %v1885 = vmul.f32 %v1883, 1.442695
      %v1886 = vpow.pop %v1885
      %v1887 = vmul.f32 %v1884, 1.442695
      %v1888 = vpow.pop %v1887
      %v1889 = vsel %vm773, %v1886, 0.0
      %1890 = vadd.xlane.f32.xlu0 %v1889
      %v1891 = vpop.xlane.xlu0 %1890
      %v1892 = vsel %vm773, %v1888, 0.0
      %1893 = vadd.xlane.f32.xlu0 %v1892
      %v1894 = vpop.xlane.xlu0 %1893
      %v1895 = vrcp.pop %v1891
      %v1896 = vrcp.pop %v1894
      %v1897 = vmul.f32 %v1886, %v1895
      %v1898 = vmul.f32 %v1888, %v1896
      %v1899 = vpack.c.bf16 %v1898, %v1897
      %v1900 = vpack.c.bf16 %v1823, %v1820
      %v1902 = vsel %vm773, %v1899, 0
      %1904 = vmatprep.subr.bf16.mxu0 0
      %1905 = vmatpush1.bf16.msra.mxu0 %v1900
      %1906 = vmatprep.subr.bf16.mxu0 0
      %1907 = vmatpush1.bf16.msra.mxu0 0
      %1908 = vmatprep.subr.bf16.mxu0 0
      %1909 = vmatpush1.bf16.msra.mxu0 0
      %1910 = vmatprep.subr.bf16.mxu0 0
      %1911 = vmatpush1.bf16.msra.mxu0 0
      %1912 = vmatprep.subr.bf16.mxu0 0
      %1913 = vmatpush1.bf16.msra.mxu0 0
      %1914 = vmatprep.subr.bf16.mxu0 0
      %1915 = vmatpush1.bf16.msra.mxu0 0
      %1916 = vmatprep.subr.bf16.mxu0 0
      %1917 = vmatpush1.bf16.msra.mxu0 0
      %1918 = vmatprep.subr.bf16.mxu0 0
      %1919 = vmatpush1.bf16.msra.mxu0 0
      %1920 = vmatprep.subr.bf16.mxu0 0
      %1921 = vmatpush1.bf16.msra.mxu0 0
      %1922 = vmatprep.subr.bf16.mxu0 0
      %1923 = vmatpush1.bf16.msra.mxu0 0
      %1924 = vmatprep.subr.bf16.mxu0 0
      %1925 = vmatpush1.bf16.msra.mxu0 0
      %1926 = vmatprep.subr.bf16.mxu0 0
      %1927 = vmatpush1.bf16.msra.mxu0 0
      %1928 = vmatprep.subr.bf16.mxu0 0
      %1929 = vmatpush1.bf16.msra.mxu0 0
      %1930 = vmatprep.subr.bf16.mxu0 0
      %1931 = vmatpush1.bf16.msra.mxu0 0
      %1932 = vmatprep.subr.bf16.mxu0 0
      %1933 = vmatpush1.bf16.msra.mxu0 0
      %1934 = vmatprep.subr.bf16.mxu0 0
      %1935 = vmatpush1.bf16.msra.mxu0 0
      %1936 = vmatprep.mubr.bf16.mxu0 0
      %1937 = vmatmul.mubr.bf16.gmra.mrb[0].mxu0 %v1902
      %v1938 = vpop.f32.mrb[0].mxu0
      %v1939 = vadd.f32 0.0, %v1938
      %v1940 = vpop.f32.mrb[0].mxu0
      %v1941 = vpop.f32.mrb[0].mxu0
      %v1942 = vadd.f32 0.0, %v1941
      %v1943 = vpop.f32.mrb[0].mxu0
      %1944 = vdwg.mxu0
      %v1945 = vpack.c.bf16 %v1942, %v1939
      %s1946 = scalar_lea.vmem %s8, 12
      %v1947 = vld [vmem:[%s1946] sm:$0xf]
      %v1949 = vsel %vm723, %v1945, 0
      %v1952 = vsel %vm1167, %v1947, 0
      %1954 = vmatprep.subr.bf16.mxu0 0
      %1955 = vmatpush1.bf16.msra.mxu0 %v1952
      %1956 = vmatprep.subr.bf16.mxu0 0
      %1957 = vmatpush1.bf16.msra.mxu0 0
      %1958 = vmatprep.subr.bf16.mxu0 0
      %1959 = vmatpush1.bf16.msra.mxu0 0
      %1960 = vmatprep.subr.bf16.mxu0 0
      %1961 = vmatpush1.bf16.msra.mxu0 0
      %1962 = vmatprep.subr.bf16.mxu0 0
      %1963 = vmatpush1.bf16.msra.mxu0 0
      %1964 = vmatprep.subr.bf16.mxu0 0
      %1965 = vmatpush1.bf16.msra.mxu0 0
      %1966 = vmatprep.subr.bf16.mxu0 0
      %1967 = vmatpush1.bf16.msra.mxu0 0
      %1968 = vmatprep.subr.bf16.mxu0 0
      %1969 = vmatpush1.bf16.msra.mxu0 0
      %1970 = vmatprep.subr.bf16.mxu0 0
      %1971 = vmatpush1.bf16.msra.mxu0 0
      %1972 = vmatprep.subr.bf16.mxu0 0
      %1973 = vmatpush1.bf16.msra.mxu0 0
      %1974 = vmatprep.subr.bf16.mxu0 0
      %1975 = vmatpush1.bf16.msra.mxu0 0
      %1976 = vmatprep.subr.bf16.mxu0 0
      %1977 = vmatpush1.bf16.msra.mxu0 0
      %1978 = vmatprep.subr.bf16.mxu0 0
      %1979 = vmatpush1.bf16.msra.mxu0 0
      %1980 = vmatprep.subr.bf16.mxu0 0
      %1981 = vmatpush1.bf16.msra.mxu0 0
      %1982 = vmatprep.subr.bf16.mxu0 0
      %1983 = vmatpush1.bf16.msra.mxu0 0
      %1984 = vmatprep.subr.bf16.mxu0 0
      %1985 = vmatpush1.bf16.msra.mxu0 0
      %1986 = vmatprep.mubr.bf16.mxu0 0
      %1987 = vmatmul.mubr.bf16.gmra.mrb[0].mxu0 %v1949
      %v1988 = vpop.f32.mrb[0].mxu0
      %v1989 = vadd.f32 0.0, %v1988
      %v1990 = vpop.f32.mrb[0].mxu0
      %v1991 = vpop.f32.mrb[0].mxu0
      %v1992 = vadd.f32 0.0, %v1991
      %v1993 = vpop.f32.mrb[0].mxu0
      %1994 = vdwg.mxu0
      %v1995 = vadd.f32 %v1626, %v1989
      %v1996 = vadd.f32 %v1627, %v1992
      %v1997 = vld [vmem:[%s9] sm:$0x1]
      %v1999 = vlaneseq
      %v2000 = vshrl.u32 %v1999, 7
      %v2001 = vsub.s32 0, %v2000
      %v2002 = vrot.slane %v1997, %v2001
      %v2004 = vadd.f32 %v1995, %v2002
      %v2005 = vadd.f32 %v1996, %v2002
      %v2006 = vld [vmem:[%s10] sm:$0xf]
      %v2007 = vld [vmem:[%s10 + $0x4] sm:$0xf]
      %v2008 = vld [vmem:[%s10 + $0x8] sm:$0xf]
      %v2009 = vld [vmem:[%s10 + $0xc] sm:$0xf]
      %v2010 = vpack.c.bf16 %v2005, %v2004
      %v2011 = vld [vmem:[%s11] sm:$0xf]
      %v2012 = vld [vmem:[%s11 + $0x4] sm:$0xf]
      %v2013 = vld [vmem:[%s11 + $0x8] sm:$0xf]
      %v2014 = vld [vmem:[%s11 + $0xc] sm:$0xf]
      %v2019 = vunpack.c.l.b16 %v2011
      %v2020 = vunpack.c.l.b16 %v2012
      %v2021 = vunpack.c.l.b16 %v2013
      %v2022 = vunpack.c.l.b16 %v2014
      %v2023 = vpack.c.b16 %v2020, %v2019
      %v2024 = vpack.c.b16 %v2022, %v2021
      %v2028 = vsel %vm545, %v2010, 0
      %2030 = vmatprep.subr.bf16.mxu0 0
      %2031 = vmatpush1.bf16.msra.mxu0 %v2023
      %2032 = vmatprep.subr.bf16.mxu0 0
      %2033 = vmatpush1.bf16.msra.mxu0 %v2024
      %2034 = vmatprep.subr.bf16.mxu0 0
      %2035 = vmatpush1.bf16.msra.mxu0 0
      %2036 = vmatprep.subr.bf16.mxu0 0
      %2037 = vmatpush1.bf16.msra.mxu0 0
      %2038 = vmatprep.subr.bf16.mxu0 0
      %2039 = vmatpush1.bf16.msra.mxu0 0
      %2040 = vmatprep.subr.bf16.mxu0 0
      %2041 = vmatpush1.bf16.msra.mxu0 0
      %2042 = vmatprep.subr.bf16.mxu0 0
      %2043 = vmatpush1.bf16.msra.mxu0 0
      %2044 = vmatprep.subr.bf16.mxu0 0
      %2045 = vmatpush1.bf16.msra.mxu0 0
      %2046 = vmatprep.subr.bf16.mxu0 0
      %2047 = vmatpush1.bf16.msra.mxu0 0
      %2048 = vmatprep.subr.bf16.mxu0 0
      %2049 = vmatpush1.bf16.msra.mxu0 0
      %2050 = vmatprep.subr.bf16.mxu0 0
      %2051 = vmatpush1.bf16.msra.mxu0 0
      %2052 = vmatprep.subr.bf16.mxu0 0
      %2053 = vmatpush1.bf16.msra.mxu0 0
      %2054 = vmatprep.subr.bf16.mxu0 0
      %2055 = vmatpush1.bf16.msra.mxu0 0
      %2056 = vmatprep.subr.bf16.mxu0 0
      %2057 = vmatpush1.bf16.msra.mxu0 0
      %2058 = vmatprep.subr.bf16.mxu0 0
      %2059 = vmatpush1.bf16.msra.mxu0 0
      %2060 = vmatprep.subr.bf16.mxu0 0
      %2061 = vmatpush1.bf16.msra.mxu0 0
      %2062 = vmatprep.mubr.bf16.mxu0 0
      %2063 = vmatmul.mubr.bf16.gmra.mrb[0].mxu0 %v2028
      %v2064 = vpop.f32.mrb[0].mxu0
      %v2065 = vadd.f32 0.0, %v2064
      %v2066 = vpop.f32.mrb[0].mxu0
      %v2067 = vpop.f32.mrb[0].mxu0
      %v2068 = vadd.f32 0.0, %v2067
      %v2069 = vpop.f32.mrb[0].mxu0
      %2070 = vdwg.mxu0
      %v2075 = vunpack.c.l.b16 %v2006
      %v2076 = vunpack.c.l.b16 %v2007
      %v2077 = vunpack.c.l.b16 %v2008
      %v2078 = vunpack.c.l.b16 %v2009
      %v2079 = vpack.c.b16 %v2076, %v2075
      %v2080 = vpack.c.b16 %v2078, %v2077
      %2083 = vmatprep.subr.bf16.mxu0 0
      %2084 = vmatpush1.bf16.msra.mxu0 %v2079
      %2085 = vmatprep.subr.bf16.mxu0 0
      %2086 = vmatpush1.bf16.msra.mxu0 %v2080
      %2087 = vmatprep.subr.bf16.mxu0 0
      %2088 = vmatpush1.bf16.msra.mxu0 0
      %2089 = vmatprep.subr.bf16.mxu0 0
      %2090 = vmatpush1.bf16.msra.mxu0 0
      %2091 = vmatprep.subr.bf16.mxu0 0
      %2092 = vmatpush1.bf16.msra.mxu0 0
      %2093 = vmatprep.subr.bf16.mxu0 0
      %2094 = vmatpush1.bf16.msra.mxu0 0
      %2095 = vmatprep.subr.bf16.mxu0 0
      %2096 = vmatpush1.bf16.msra.mxu0 0
      %2097 = vmatprep.subr.bf16.mxu0 0
      %2098 = vmatpush1.bf16.msra.mxu0 0
      %2099 = vmatprep.subr.bf16.mxu0 0
      %2100 = vmatpush1.bf16.msra.mxu0 0
      %2101 = vmatprep.subr.bf16.mxu0 0
      %2102 = vmatpush1.bf16.msra.mxu0 0
      %2103 = vmatprep.subr.bf16.mxu0 0
      %2104 = vmatpush1.bf16.msra.mxu0 0
      %2105 = vmatprep.subr.bf16.mxu0 0
      %2106 = vmatpush1.bf16.msra.mxu0 0
      %2107 = vmatprep.subr.bf16.mxu0 0
      %2108 = vmatpush1.bf16.msra.mxu0 0
      %2109 = vmatprep.subr.bf16.mxu0 0
      %2110 = vmatpush1.bf16.msra.mxu0 0
      %2111 = vmatprep.subr.bf16.mxu0 0
      %2112 = vmatpush1.bf16.msra.mxu0 0
      %2113 = vmatprep.subr.bf16.mxu0 0
      %2114 = vmatpush1.bf16.msra.mxu0 0
      %2115 = vmatprep.mubr.bf16.mxu0 0
      %2116 = vmatmul.mubr.bf16.gmra.mrb[0].mxu0 %v547
      %v2117 = vpop.f32.mrb[0].mxu0
      %v2118 = vadd.f32 %v2065, %v2117
      %v2119 = vpop.f32.mrb[0].mxu0
      %v2120 = vpop.f32.mrb[0].mxu0
      %v2121 = vadd.f32 %v2068, %v2120
      %v2122 = vpop.f32.mrb[0].mxu0
      %2123 = vdwg.mxu0
      %v2124 = vld [vmem:[%s12] sm:$0x1]
      %v2126 = vlaneseq
      %v2127 = vshrl.u32 %v2126, 7
      %v2128 = vsub.s32 0, %v2127
      %v2129 = vrot.slane %v2124, %v2128
      %v2131 = vadd.f32 %v2118, %v2129
      %v2132 = vadd.f32 %v2121, %v2129
      %vm2133 = vcmask 523264
      %v2134 = vsel %vm2133, %v2131, 0.0
      %v2135 = vsel %vm2133, %v2132, 0.0
      %v2136 = vadd.f32 %v2134, %v2135
      %v2137 = vrot.slane %v2136, 4
      %v2138 = vadd.f32 %v2136, %v2137
      %v2139 = vrot.slane %v2138, 2
      %v2140 = vadd.f32 %v2138, %v2139
      %v2141 = vrot.slane %v2140, 1
      %v2142 = vadd.f32 %v2140, %v2141
      %v2143 = vmul.f32 %v2142, 0.0625
      %v2144 = vmul.f32 %v2131, %v2131
      %v2145 = vmul.f32 %v2132, %v2132
      %v2146 = vsel %vm2133, %v2144, 0.0
      %v2147 = vsel %vm2133, %v2145, 0.0
      %v2148 = vadd.f32 %v2146, %v2147
      %v2149 = vrot.slane %v2148, 4
      %v2150 = vadd.f32 %v2148, %v2149
      %v2151 = vrot.slane %v2150, 2
      %v2152 = vadd.f32 %v2150, %v2151
      %v2153 = vrot.slane %v2152, 1
      %v2154 = vadd.f32 %v2152, %v2153
      %v2155 = vmul.f32 %v2154, 0.0625
      %v2156 = vmul.f32 %v2143, %v2143
      %v2157 = vsub.f32 %v2155, %v2156
      %v2158 = vmax.f32 %v2157, 0.0
      %v2159 = vsub.f32 %v2131, %v2143
      %v2160 = vsub.f32 %v2132, %v2143
      %v2161 = vadd.f32 %v2158, 1e-05
      %v2162 = vrsqrt.pop %v2161
      %v2163 = vmul.f32 %v2159, %v2162
      %v2164 = vmul.f32 %v2160, %v2162
      %v2165 = vmax.f32 %v2163, 0.0
      %v2166 = vmax.f32 %v2164, 0.0
      %v2167 = vpack.c.bf16 %v2166, %v2165
      %v2168 = vld [vmem:[%s13] sm:$0xf]
      %v2169 = vld [vmem:[%s13 + $0x4] sm:$0xf]
      %v2170 = vld [vmem:[%s13 + $0x8] sm:$0xf]
      %v2171 = vld [vmem:[%s13 + $0xc] sm:$0xf]
      %v2172 = vld [vmem:[%s13 + $0x10] sm:$0xf]
      %v2173 = vld [vmem:[%s13 + $0x14] sm:$0xf]
      %v2174 = vld [vmem:[%s13 + $0x18] sm:$0xf]
      %v2175 = vld [vmem:[%s13 + $0x1c] sm:$0xf]
      %v2176 = vld [vmem:[%s14] sm:$0x1]
      %v2178 = vlaneseq
      %v2179 = vshrl.u32 %v2178, 7
      %v2180 = vsub.s32 0, %v2179
      %v2181 = vrot.slane %v2176, %v2180
      %v2191 = vunpack.c.l.b16 %v2168
      %v2192 = vunpack.c.l.b16 %v2169
      %v2193 = vunpack.c.l.b16 %v2170
      %v2194 = vunpack.c.l.b16 %v2171
      %v2195 = vunpack.c.l.b16 %v2172
      %v2196 = vunpack.c.l.b16 %v2173
      %v2197 = vunpack.c.l.b16 %v2174
      %v2198 = vunpack.c.l.b16 %v2175
      %v2199 = vpack.c.b16 %v2192, %v2191
      %v2200 = vpack.c.b16 %v2194, %v2193
      %v2201 = vpack.c.b16 %v2196, %v2195
      %v2202 = vpack.c.b16 %v2198, %v2197
      %v2208 = vsel %vm2133, %v2167, 0
      %2210 = vmatprep.subr.bf16.mxu0 0
      %2211 = vmatpush1.bf16.msra.mxu0 %v2199
      %2212 = vmatprep.subr.bf16.mxu0 0
      %2213 = vmatpush1.bf16.msra.mxu0 %v2200
      %2214 = vmatprep.subr.bf16.mxu0 0
      %2215 = vmatpush1.bf16.msra.mxu0 %v2201
      %2216 = vmatprep.subr.bf16.mxu0 0
      %2217 = vmatpush1.bf16.msra.mxu0 %v2202
      %2218 = vmatprep.subr.bf16.mxu0 0
      %2219 = vmatpush1.bf16.msra.mxu0 0
      %2220 = vmatprep.subr.bf16.mxu0 0
      %2221 = vmatpush1.bf16.msra.mxu0 0
      %2222 = vmatprep.subr.bf16.mxu0 0
      %2223 = vmatpush1.bf16.msra.mxu0 0
      %2224 = vmatprep.subr.bf16.mxu0 0
      %2225 = vmatpush1.bf16.msra.mxu0 0
      %2226 = vmatprep.subr.bf16.mxu0 0
      %2227 = vmatpush1.bf16.msra.mxu0 0
      %2228 = vmatprep.subr.bf16.mxu0 0
      %2229 = vmatpush1.bf16.msra.mxu0 0
      %2230 = vmatprep.subr.bf16.mxu0 0
      %2231 = vmatpush1.bf16.msra.mxu0 0
      %2232 = vmatprep.subr.bf16.mxu0 0
      %2233 = vmatpush1.bf16.msra.mxu0 0
      %2234 = vmatprep.subr.bf16.mxu0 0
      %2235 = vmatpush1.bf16.msra.mxu0 0
      %2236 = vmatprep.subr.bf16.mxu0 0
      %2237 = vmatpush1.bf16.msra.mxu0 0
      %2238 = vmatprep.subr.bf16.mxu0 0
      %2239 = vmatpush1.bf16.msra.mxu0 0
      %2240 = vmatprep.subr.bf16.mxu0 0
      %2241 = vmatpush1.bf16.msra.mxu0 0
      %2242 = vmatprep.mubr.bf16.mxu0 0
      %2243 = vmatmul.mubr.bf16.gmra.mrb[0].mxu0 %v2208
      %v2244 = vpop.f32.mrb[0].mxu0
      %v2245 = vadd.f32 %v2181, %v2244
      %v2246 = vpop.f32.mrb[0].mxu0
      %v2247 = vpop.f32.mrb[0].mxu0
      %v2248 = vadd.f32 %v2181, %v2247
      %v2249 = vpop.f32.mrb[0].mxu0
      %2250 = vdwg.mxu0
      %v2251 = vadd.f32 %v516, %v2245
      %v2252 = vadd.f32 %v517, %v2248
      %2253 = vst.msk [vmem:[%s514] sm:$0xff] %vm545, %v2251
      %2254 = vst.msk [vmem:[%s514 + $0x8] sm:$0xff] %vm545, %v2252
      %p2255 = scmp.lt.s32.totalorder %s26, 1
      %s2256 = scalar_select %p2255, %s26, 1
      %s2257 = smul.addr %s2256, 2
      %s2258 = smul.addr %s2257, 8
      %s2259 = scalar_lea.vmem %s15, %s2258
      // Predicated region
      $region81: #{information_interactive.14} parent=79 // pred_check
        %p2260 = pneg %p369
      $region82: #{information_interactive.14} parent=79 // pred_check_branch
        %2262 = sbr.rel (%p2260) target = $region84
      $region83: #{information_interactive.14} parent=79 // pred_region
        _
      $region84: #{information_interactive.14} parent=79 // pred_fallthru
        _
    $region80: #{information_interactive.14} parent=5 // pred_fallthru
      _
    %p2263 = scmp.le.s32.totalorder 2, %s21
    // Predicated region
    $region85: #{information_interactive.14} parent=5 // pred_check
      %p2264 = pneg %p2263
    $region86: #{information_interactive.14} parent=5 // pred_check_branch
      %2266 = sbr.rel (%p2264) target = $region88
    $region87: #{information_interactive.14} parent=5 // pred_region
      %s2267 = ssub.s32 %s21, 2
      // Predicated region
      $region89: #{information_interactive.14} parent=87 // pred_check
        %p2268 = pneg %p375
      $region90: #{information_interactive.14} parent=87 // pred_check_branch
        %2270 = sbr.rel (%p2268) target = $region92
      $region91: #{information_interactive.14} parent=87 // pred_region
        %p2271 = scmp.lt.s32.totalorder %s27, 1
        %s2272 = scalar_select %p2271, %s27, 1
        %s2273 = smul.addr %s2272, 2
        %s2274 = smul.addr %s2273, 8
        %s2275 = scalar_lea.vmem %s15, %s2274
      $region92: #{information_interactive.14} parent=87 // pred_fallthru
        _
    $region88: #{information_interactive.14} parent=5 // pred_fallthru
      _
  $region6: #{information_interactive.14} parent=0 // loop_footer
    %s25 = sadd.s32 1, %s21
  $region7: #{information_interactive.14} parent=0 // loop_footer_branch
    %20 = sbr.rel target = $region3
  $region8: #{information_interactive.14} parent=0 // loop_exit
    _

// kernel: information_interactive.15
$region0: #{information_interactive.15}
  #allocation0 [shape = 'u32[]', space=smem, size = 0x4, offset = 0x4, fixed_abs, tag = 'smem constant byte address 0x4 - core index']
  #allocation1 [shape = 'u32[144,128]{1,0:T(1,128)}', space=vmem, size = 0x12000, scoped, tag = 'internal scratch']
  %s0 = inlined_call_operand.vmem [shape: f32[2,16,32], index: 0, kind: input, shape index: {}]
  %s1 = inlined_call_operand.vmem [shape: f32[2,16,32], index: 1, kind: input, shape index: {}]
  %s2 = inlined_call_operand.vmem [shape: bf16[4,32,8], index: 2, kind: input, shape index: {}]
  %s3 = inlined_call_operand.vmem [shape: f32[4,1,8], index: 3, kind: input, shape index: {}]
  %s4 = inlined_call_operand.vmem [shape: bf16[4,32,8], index: 4, kind: input, shape index: {}]
  %s5 = inlined_call_operand.vmem [shape: f32[4,1,8], index: 5, kind: input, shape index: {}]
  %s6 = inlined_call_operand.vmem [shape: bf16[4,32,8], index: 6, kind: input, shape index: {}]
  %s7 = inlined_call_operand.vmem [shape: f32[4,1,8], index: 7, kind: input, shape index: {}]
  %s8 = inlined_call_operand.vmem [shape: bf16[4,8,32], index: 8, kind: input, shape index: {}]
  %s9 = inlined_call_operand.vmem [shape: f32[1,32], index: 9, kind: input, shape index: {}]
  %s10 = inlined_call_operand.vmem [shape: bf16[32,64], index: 10, kind: input, shape index: {}]
  %s11 = inlined_call_operand.vmem [shape: bf16[32,64], index: 11, kind: input, shape index: {}]
  %s12 = inlined_call_operand.vmem [shape: f32[1,64], index: 12, kind: input, shape index: {}]
  %s13 = inlined_call_operand.vmem [shape: bf16[64,32], index: 13, kind: input, shape index: {}]
  %s14 = inlined_call_operand.vmem [shape: f32[1,32], index: 14, kind: input, shape index: {}]
  %s15 = inlined_call_operand.hbm [shape: f32[2,16,32], index: 15, kind: output, shape index: {}]
  %s16 = sld [smem:[#allocation0]]
  $region93: #{information_interactive.15} parent=0
    _
  %s18 = ssub.s32 1, %s16
  %s19 = scalar_select 0, %s18, %s16
  $region1: #{information_interactive.15} parent=0
    #allocation2 [shape = 'u8[16384]{0}', space=vmem, size = 0x4000, scoped, tag = 'output window, operand 0']
    #allocation3 [shape = 's32[2]{0}', space=sflag, size = 0x8, scoped, tag = 'scoped memory for information_interactive.15']
    %20 = vsyncpa [#allocation3], 0
    %s21 = scalar_lea.sflag [#allocation3], 1
    %22 = vsyncpa %s21, 0
    loop: start=0, step=1, limit=4
    $region2: #{information_interactive.15} parent=1 // loop_pre_header
      _
    $region3: #{information_interactive.15} parent=1 // loop_header
      %s24 = sphi 0, %s28
      %p25 = scmp.ge.s32.totalorder %s24, 4
      %s34 = sphi 0, %s36
      %s37 = sphi 0, %s34
      %s38 = sphi 0, %s37
      %s54 = sphi 0, %s38
      %s60 = sphi 0, %s62
      %s63 = sphi 0, %s60
      %s64 = sphi 0, %s63
      %s80 = sphi 0, %s64
      %s84 = sphi 0, %s84
      %s86 = sphi 0, %s84
      %s87 = sphi 0, %s86
      %s101 = sphi 0, %s87
      %s105 = sphi 0, %s105
      %s107 = sphi 0, %s105
      %s108 = sphi 0, %s107
      %s122 = sphi 0, %s108
      %s126 = sphi 0, %s126
      %s128 = sphi 0, %s126
      %s129 = sphi 0, %s128
      %s143 = sphi 0, %s129
      %s147 = sphi 0, %s147
      %s149 = sphi 0, %s147
      %s150 = sphi 0, %s149
      %s164 = sphi 0, %s150
      %s168 = sphi 0, %s168
      %s170 = sphi 0, %s168
      %s171 = sphi 0, %s170
      %s185 = sphi 0, %s171
      %s189 = sphi 0, %s189
      %s191 = sphi 0, %s189
      %s192 = sphi 0, %s191
      %s206 = sphi 0, %s192
      %s210 = sphi 0, %s210
      %s212 = sphi 0, %s210
      %s213 = sphi 0, %s212
      %s227 = sphi 0, %s213
      %s231 = sphi 0, %s231
      %s233 = sphi 0, %s231
      %s234 = sphi 0, %s233
      %s248 = sphi 0, %s234
      %s252 = sphi 0, %s252
      %s254 = sphi 0, %s252
      %s255 = sphi 0, %s254
      %s269 = sphi 0, %s255
      %s273 = sphi 0, %s273
      %s275 = sphi 0, %s273
      %s276 = sphi 0, %s275
      %s290 = sphi 0, %s276
      %s294 = sphi 0, %s294
      %s296 = sphi 0, %s294
      %s297 = sphi 0, %s296
      %s311 = sphi 0, %s297
      %s315 = sphi 0, %s315
      %s317 = sphi 0, %s315
      %s318 = sphi 0, %s317
      %s332 = sphi 0, %s318
      %s336 = sphi 0, %s336
      %s338 = sphi 0, %s336
      %s339 = sphi 0, %s338
      %s353 = sphi 0, %s339
      %s359 = sphi 0, %s361
      %s362 = sphi 0, %s359
      %s363 = sphi 0, %s362
      %s379 = sphi 0, %s363
    $region4: #{information_interactive.15} parent=1 // loop_header_branch
      %27 = sbr.rel (%p25) target = $region8
    $region5: #{information_interactive.15} parent=1 // loop_body
      %s29 = ssub.s32 %s24, 1
      %s30 = ssub.s32 %s24, 2
      %s31 = sadd.s32 %s24, 1
      %s32 = ssub.s32 %s24, %s31
      %p33 = scmp.eq.s32.totalorder %s32, 0
      %s35 = sadd.s32 %s34, 1
      %s36 = scalar_select %p33, %s34, %s35
      %p39 = pneg %p33
      %p40 = scmp.eq.s32.totalorder %s24, 1
      %p41 = por %p39, %p40
      %p42 = scmp.ne.s32.totalorder %s34, %s37
      %p43 = scmp.eq.s32.totalorder %s24, 0
      %p44 = por %p42, %p43
      %p45 = scmp.ne.s32.totalorder %s34, %s37
      %p46 = scmp.eq.s32.totalorder %s29, 1
      %p47 = por %p45, %p46
      %p48 = scmp.ne.s32.totalorder %s37, %s38
      %p49 = scmp.eq.s32.totalorder %s29, 0
      %p50 = por %p48, %p49
      %p51 = scmp.ne.s32.totalorder %s37, %s38
      %p52 = scmp.eq.s32.totalorder %s30, 1
      %p53 = por %p51, %p52
      %p55 = scmp.ne.s32.totalorder %s38, %s54
      %p56 = scmp.eq.s32.totalorder %s30, 0
      %p57 = por %p55, %p56
      %s58 = ssub.s32 %s24, %s31
      %p59 = scmp.eq.s32.totalorder %s58, 0
      %s61 = sadd.s32 %s60, 1
      %s62 = scalar_select %p59, %s60, %s61
      %p65 = pneg %p59
      %p66 = scmp.eq.s32.totalorder %s24, 1
      %p67 = por %p65, %p66
      %p68 = scmp.ne.s32.totalorder %s60, %s63
      %p69 = scmp.eq.s32.totalorder %s24, 0
      %p70 = por %p68, %p69
      %p71 = scmp.ne.s32.totalorder %s60, %s63
      %p72 = scmp.eq.s32.totalorder %s29, 1
      %p73 = por %p71, %p72
      %p74 = scmp.ne.s32.totalorder %s63, %s64
      %p75 = scmp.eq.s32.totalorder %s29, 0
      %p76 = por %p74, %p75
      %p77 = scmp.ne.s32.totalorder %s63, %s64
      %p78 = scmp.eq.s32.totalorder %s30, 1
      %p79 = por %p77, %p78
      %p81 = scmp.ne.s32.totalorder %s64, %s80
      %p82 = scmp.eq.s32.totalorder %s30, 0
      %p83 = por %p81, %p82
      %s85 = sadd.s32 %s84, 1
      %p88 = scmp.eq.s32.totalorder %s24, 1
      %p89 = scmp.ne.s32.totalorder %s84, %s86
      %p90 = scmp.eq.s32.totalorder %s24, 0
      %p91 = por %p89, %p90
      %p92 = scmp.ne.s32.totalorder %s84, %s86
      %p93 = scmp.eq.s32.totalorder %s29, 1
      %p94 = por %p92, %p93
      %p95 = scmp.ne.s32.totalorder %s86, %s87
      %p96 = scmp.eq.s32.totalorder %s29, 0
      %p97 = por %p95, %p96
      %p98 = scmp.ne.s32.totalorder %s86, %s87
      %p99 = scmp.eq.s32.totalorder %s30, 1
      %p100 = por %p98, %p99
      %p102 = scmp.ne.s32.totalorder %s87, %s101
      %p103 = scmp.eq.s32.totalorder %s30, 0
      %p104 = por %p102, %p103
      %s106 = sadd.s32 %s105, 1
      %p109 = scmp.eq.s32.totalorder %s24, 1
      %p110 = scmp.ne.s32.totalorder %s105, %s107
      %p111 = scmp.eq.s32.totalorder %s24, 0
      %p112 = por %p110, %p111
      %p113 = scmp.ne.s32.totalorder %s105, %s107
      %p114 = scmp.eq.s32.totalorder %s29, 1
      %p115 = por %p113, %p114
      %p116 = scmp.ne.s32.totalorder %s107, %s108
      %p117 = scmp.eq.s32.totalorder %s29, 0
      %p118 = por %p116, %p117
      %p119 = scmp.ne.s32.totalorder %s107, %s108
      %p120 = scmp.eq.s32.totalorder %s30, 1
      %p121 = por %p119, %p120
      %p123 = scmp.ne.s32.totalorder %s108, %s122
      %p124 = scmp.eq.s32.totalorder %s30, 0
      %p125 = por %p123, %p124
      %s127 = sadd.s32 %s126, 1
      %p130 = scmp.eq.s32.totalorder %s24, 1
      %p131 = scmp.ne.s32.totalorder %s126, %s128
      %p132 = scmp.eq.s32.totalorder %s24, 0
      %p133 = por %p131, %p132
      %p134 = scmp.ne.s32.totalorder %s126, %s128
      %p135 = scmp.eq.s32.totalorder %s29, 1
      %p136 = por %p134, %p135
      %p137 = scmp.ne.s32.totalorder %s128, %s129
      %p138 = scmp.eq.s32.totalorder %s29, 0
      %p139 = por %p137, %p138
      %p140 = scmp.ne.s32.totalorder %s128, %s129
      %p141 = scmp.eq.s32.totalorder %s30, 1
      %p142 = por %p140, %p141
      %p144 = scmp.ne.s32.totalorder %s129, %s143
      %p145 = scmp.eq.s32.totalorder %s30, 0
      %p146 = por %p144, %p145
      %s148 = sadd.s32 %s147, 1
      %p151 = scmp.eq.s32.totalorder %s24, 1
      %p152 = scmp.ne.s32.totalorder %s147, %s149
      %p153 = scmp.eq.s32.totalorder %s24, 0
      %p154 = por %p152, %p153
      %p155 = scmp.ne.s32.totalorder %s147, %s149
      %p156 = scmp.eq.s32.totalorder %s29, 1
      %p157 = por %p155, %p156
      %p158 = scmp.ne.s32.totalorder %s149, %s150
      %p159 = scmp.eq.s32.totalorder %s29, 0
      %p160 = por %p158, %p159
      %p161 = scmp.ne.s32.totalorder %s149, %s150
      %p162 = scmp.eq.s32.totalorder %s30, 1
      %p163 = por %p161, %p162
      %p165 = scmp.ne.s32.totalorder %s150, %s164
      %p166 = scmp.eq.s32.totalorder %s30, 0
      %p167 = por %p165, %p166
      %s169 = sadd.s32 %s168, 1
      %p172 = scmp.eq.s32.totalorder %s24, 1
      %p173 = scmp.ne.s32.totalorder %s168, %s170
      %p174 = scmp.eq.s32.totalorder %s24, 0
      %p175 = por %p173, %p174
      %p176 = scmp.ne.s32.totalorder %s168, %s170
      %p177 = scmp.eq.s32.totalorder %s29, 1
      %p178 = por %p176, %p177
      %p179 = scmp.ne.s32.totalorder %s170, %s171
      %p180 = scmp.eq.s32.totalorder %s29, 0
      %p181 = por %p179, %p180
      %p182 = scmp.ne.s32.totalorder %s170, %s171
      %p183 = scmp.eq.s32.totalorder %s30, 1
      %p184 = por %p182, %p183
      %p186 = scmp.ne.s32.totalorder %s171, %s185
      %p187 = scmp.eq.s32.totalorder %s30, 0
      %p188 = por %p186, %p187
      %s190 = sadd.s32 %s189, 1
      %p193 = scmp.eq.s32.totalorder %s24, 1
      %p194 = scmp.ne.s32.totalorder %s189, %s191
      %p195 = scmp.eq.s32.totalorder %s24, 0
      %p196 = por %p194, %p195
      %p197 = scmp.ne.s32.totalorder %s189, %s191
      %p198 = scmp.eq.s32.totalorder %s29, 1
      %p199 = por %p197, %p198
      %p200 = scmp.ne.s32.totalorder %s191, %s192
      %p201 = scmp.eq.s32.totalorder %s29, 0
      %p202 = por %p200, %p201
      %p203 = scmp.ne.s32.totalorder %s191, %s192
      %p204 = scmp.eq.s32.totalorder %s30, 1
      %p205 = por %p203, %p204
      %p207 = scmp.ne.s32.totalorder %s192, %s206
      %p208 = scmp.eq.s32.totalorder %s30, 0
      %p209 = por %p207, %p208
      %s211 = sadd.s32 %s210, 1
      %p214 = scmp.eq.s32.totalorder %s24, 1
      %p215 = scmp.ne.s32.totalorder %s210, %s212
      %p216 = scmp.eq.s32.totalorder %s24, 0
      %p217 = por %p215, %p216
      %p218 = scmp.ne.s32.totalorder %s210, %s212
      %p219 = scmp.eq.s32.totalorder %s29, 1
      %p220 = por %p218, %p219
      %p221 = scmp.ne.s32.totalorder %s212, %s213
      %p222 = scmp.eq.s32.totalorder %s29, 0
      %p223 = por %p221, %p222
      %p224 = scmp.ne.s32.totalorder %s212, %s213
      %p225 = scmp.eq.s32.totalorder %s30, 1
      %p226 = por %p224, %p225
      %p228 = scmp.ne.s32.totalorder %s213, %s227
      %p229 = scmp.eq.s32.totalorder %s30, 0
      %p230 = por %p228, %p229
      %s232 = sadd.s32 %s231, 1
      %p235 = scmp.eq.s32.totalorder %s24, 1
      %p236 = scmp.ne.s32.totalorder %s231, %s233
      %p237 = scmp.eq.s32.totalorder %s24, 0
      %p238 = por %p236, %p237
      %p239 = scmp.ne.s32.totalorder %s231, %s233
      %p240 = scmp.eq.s32.totalorder %s29, 1
      %p241 = por %p239, %p240
      %p242 = scmp.ne.s32.totalorder %s233, %s234
      %p243 = scmp.eq.s32.totalorder %s29, 0
      %p244 = por %p242, %p243
      %p245 = scmp.ne.s32.totalorder %s233, %s234
      %p246 = scmp.eq.s32.totalorder %s30, 1
      %p247 = por %p245, %p246
      %p249 = scmp.ne.s32.totalorder %s234, %s248
      %p250 = scmp.eq.s32.totalorder %s30, 0
      %p251 = por %p249, %p250
      %s253 = sadd.s32 %s252, 1
      %p256 = scmp.eq.s32.totalorder %s24, 1
      %p257 = scmp.ne.s32.totalorder %s252, %s254
      %p258 = scmp.eq.s32.totalorder %s24, 0
      %p259 = por %p257, %p258
      %p260 = scmp.ne.s32.totalorder %s252, %s254
      %p261 = scmp.eq.s32.totalorder %s29, 1
      %p262 = por %p260, %p261
      %p263 = scmp.ne.s32.totalorder %s254, %s255
      %p264 = scmp.eq.s32.totalorder %s29, 0
      %p265 = por %p263, %p264
      %p266 = scmp.ne.s32.totalorder %s254, %s255
      %p267 = scmp.eq.s32.totalorder %s30, 1
      %p268 = por %p266, %p267
      %p270 = scmp.ne.s32.totalorder %s255, %s269
      %p271 = scmp.eq.s32.totalorder %s30, 0
      %p272 = por %p270, %p271
      %s274 = sadd.s32 %s273, 1
      %p277 = scmp.eq.s32.totalorder %s24, 1
      %p278 = scmp.ne.s32.totalorder %s273, %s275
      %p279 = scmp.eq.s32.totalorder %s24, 0
      %p280 = por %p278, %p279
      %p281 = scmp.ne.s32.totalorder %s273, %s275
      %p282 = scmp.eq.s32.totalorder %s29, 1
      %p283 = por %p281, %p282
      %p284 = scmp.ne.s32.totalorder %s275, %s276
      %p285 = scmp.eq.s32.totalorder %s29, 0
      %p286 = por %p284, %p285
      %p287 = scmp.ne.s32.totalorder %s275, %s276
      %p288 = scmp.eq.s32.totalorder %s30, 1
      %p289 = por %p287, %p288
      %p291 = scmp.ne.s32.totalorder %s276, %s290
      %p292 = scmp.eq.s32.totalorder %s30, 0
      %p293 = por %p291, %p292
      %s295 = sadd.s32 %s294, 1
      %p298 = scmp.eq.s32.totalorder %s24, 1
      %p299 = scmp.ne.s32.totalorder %s294, %s296
      %p300 = scmp.eq.s32.totalorder %s24, 0
      %p301 = por %p299, %p300
      %p302 = scmp.ne.s32.totalorder %s294, %s296
      %p303 = scmp.eq.s32.totalorder %s29, 1
      %p304 = por %p302, %p303
      %p305 = scmp.ne.s32.totalorder %s296, %s297
      %p306 = scmp.eq.s32.totalorder %s29, 0
      %p307 = por %p305, %p306
      %p308 = scmp.ne.s32.totalorder %s296, %s297
      %p309 = scmp.eq.s32.totalorder %s30, 1
      %p310 = por %p308, %p309
      %p312 = scmp.ne.s32.totalorder %s297, %s311
      %p313 = scmp.eq.s32.totalorder %s30, 0
      %p314 = por %p312, %p313
      %s316 = sadd.s32 %s315, 1
      %p319 = scmp.eq.s32.totalorder %s24, 1
      %p320 = scmp.ne.s32.totalorder %s315, %s317
      %p321 = scmp.eq.s32.totalorder %s24, 0
      %p322 = por %p320, %p321
      %p323 = scmp.ne.s32.totalorder %s315, %s317
      %p324 = scmp.eq.s32.totalorder %s29, 1
      %p325 = por %p323, %p324
      %p326 = scmp.ne.s32.totalorder %s317, %s318
      %p327 = scmp.eq.s32.totalorder %s29, 0
      %p328 = por %p326, %p327
      %p329 = scmp.ne.s32.totalorder %s317, %s318
      %p330 = scmp.eq.s32.totalorder %s30, 1
      %p331 = por %p329, %p330
      %p333 = scmp.ne.s32.totalorder %s318, %s332
      %p334 = scmp.eq.s32.totalorder %s30, 0
      %p335 = por %p333, %p334
      %s337 = sadd.s32 %s336, 1
      %p340 = scmp.eq.s32.totalorder %s24, 1
      %p341 = scmp.ne.s32.totalorder %s336, %s338
      %p342 = scmp.eq.s32.totalorder %s24, 0
      %p343 = por %p341, %p342
      %p344 = scmp.ne.s32.totalorder %s336, %s338
      %p345 = scmp.eq.s32.totalorder %s29, 1
      %p346 = por %p344, %p345
      %p347 = scmp.ne.s32.totalorder %s338, %s339
      %p348 = scmp.eq.s32.totalorder %s29, 0
      %p349 = por %p347, %p348
      %p350 = scmp.ne.s32.totalorder %s338, %s339
      %p351 = scmp.eq.s32.totalorder %s30, 1
      %p352 = por %p350, %p351
      %p354 = scmp.ne.s32.totalorder %s339, %s353
      %p355 = scmp.eq.s32.totalorder %s30, 0
      %p356 = por %p354, %p355
      %s357 = ssub.s32 %s24, %s31
      %p358 = scmp.eq.s32.totalorder %s357, 0
      %s360 = sadd.s32 %s359, 1
      %s361 = scalar_select %p358, %s359, %s360
      %p364 = pneg %p358
      %p365 = scmp.eq.s32.totalorder %s24, 1
      %p366 = por %p364, %p365
      %p367 = scmp.ne.s32.totalorder %s359, %s362
      %p368 = scmp.eq.s32.totalorder %s24, 0
      %p369 = por %p367, %p368
      %p370 = scmp.ne.s32.totalorder %s359, %s362
      %p371 = scmp.eq.s32.totalorder %s29, 1
      %p372 = por %p370, %p371
      %p373 = scmp.ne.s32.totalorder %s362, %s363
      %p374 = scmp.eq.s32.totalorder %s29, 0
      %p375 = por %p373, %p374
      %p376 = scmp.ne.s32.totalorder %s362, %s363
      %p377 = scmp.eq.s32.totalorder %s30, 1
      %p378 = por %p376, %p377
      %p380 = scmp.ne.s32.totalorder %s363, %s379
      %p381 = scmp.eq.s32.totalorder %s30, 0
      %p382 = por %p380, %p381
      %p383 = scmp.le.s32.totalorder 1, %s24
      %p384 = scmp.lt.s32.totalorder %s24, 3
      %p385 = pnand %p383, %p384
      %p386 = pneg %p385
      // Predicated region
      $region9: #{information_interactive.15} parent=5 // pred_check
        _
      $region10: #{information_interactive.15} parent=5 // pred_check_branch
        %388 = sbr.rel (%p385) target = $region12
      $region11: #{information_interactive.15} parent=5 // pred_region
        %s389 = ssub.s32 %s24, 1
        // Predicated region
        $region13: #{information_interactive.15} parent=11 // pred_check
          %p390 = pneg %p97
        $region14: #{information_interactive.15} parent=11 // pred_check_branch
          %392 = sbr.rel (%p390) target = $region16
        $region15: #{information_interactive.15} parent=11 // pred_region
          _
        $region16: #{information_interactive.15} parent=11 // pred_fallthru
          _
        // Predicated region
        $region17: #{information_interactive.15} parent=11 // pred_check
          %p393 = pneg %p118
        $region18: #{information_interactive.15} parent=11 // pred_check_branch
          %395 = sbr.rel (%p393) target = $region20
        $region19: #{information_interactive.15} parent=11 // pred_region
          _
        $region20: #{information_interactive.15} parent=11 // pred_fallthru
          _
        // Predicated region
        $region21: #{information_interactive.15} parent=11 // pred_check
          %p396 = pneg %p139
        $region22: #{information_interactive.15} parent=11 // pred_check_branch
          %398 = sbr.rel (%p396) target = $region24
        $region23: #{information_interactive.15} parent=11 // pred_region
          _
        $region24: #{information_interactive.15} parent=11 // pred_fallthru
          _
        // Predicated region
        $region25: #{information_interactive.15} parent=11 // pred_check
          %p399 = pneg %p160
        $region26: #{information_interactive.15} parent=11 // pred_check_branch
          %401 = sbr.rel (%p399) target = $region28
        $region27: #{information_interactive.15} parent=11 // pred_region
          _
        $region28: #{information_interactive.15} parent=11 // pred_fallthru
          _
        // Predicated region
        $region29: #{information_interactive.15} parent=11 // pred_check
          %p402 = pneg %p181
        $region30: #{information_interactive.15} parent=11 // pred_check_branch
          %404 = sbr.rel (%p402) target = $region32
        $region31: #{information_interactive.15} parent=11 // pred_region
          _
        $region32: #{information_interactive.15} parent=11 // pred_fallthru
          _
        // Predicated region
        $region33: #{information_interactive.15} parent=11 // pred_check
          %p405 = pneg %p202
        $region34: #{information_interactive.15} parent=11 // pred_check_branch
          %407 = sbr.rel (%p405) target = $region36
        $region35: #{information_interactive.15} parent=11 // pred_region
          _
        $region36: #{information_interactive.15} parent=11 // pred_fallthru
          _
        // Predicated region
        $region37: #{information_interactive.15} parent=11 // pred_check
          %p408 = pneg %p223
        $region38: #{information_interactive.15} parent=11 // pred_check_branch
          %410 = sbr.rel (%p408) target = $region40
        $region39: #{information_interactive.15} parent=11 // pred_region
          _
        $region40: #{information_interactive.15} parent=11 // pred_fallthru
          _
        // Predicated region
        $region41: #{information_interactive.15} parent=11 // pred_check
          %p411 = pneg %p244
        $region42: #{information_interactive.15} parent=11 // pred_check_branch
          %413 = sbr.rel (%p411) target = $region44
        $region43: #{information_interactive.15} parent=11 // pred_region
          _
        $region44: #{information_interactive.15} parent=11 // pred_fallthru
          _
        // Predicated region
        $region45: #{information_interactive.15} parent=11 // pred_check
          %p414 = pneg %p265
        $region46: #{information_interactive.15} parent=11 // pred_check_branch
          %416 = sbr.rel (%p414) target = $region48
        $region47: #{information_interactive.15} parent=11 // pred_region
          _
        $region48: #{information_interactive.15} parent=11 // pred_fallthru
          _
        // Predicated region
        $region49: #{information_interactive.15} parent=11 // pred_check
          %p417 = pneg %p286
        $region50: #{information_interactive.15} parent=11 // pred_check_branch
          %419 = sbr.rel (%p417) target = $region52
        $region51: #{information_interactive.15} parent=11 // pred_region
          _
        $region52: #{information_interactive.15} parent=11 // pred_fallthru
          _
        // Predicated region
        $region53: #{information_interactive.15} parent=11 // pred_check
          %p420 = pneg %p307
        $region54: #{information_interactive.15} parent=11 // pred_check_branch
          %422 = sbr.rel (%p420) target = $region56
        $region55: #{information_interactive.15} parent=11 // pred_region
          _
        $region56: #{information_interactive.15} parent=11 // pred_fallthru
          _
        // Predicated region
        $region57: #{information_interactive.15} parent=11 // pred_check
          %p423 = pneg %p328
        $region58: #{information_interactive.15} parent=11 // pred_check_branch
          %425 = sbr.rel (%p423) target = $region60
        $region59: #{information_interactive.15} parent=11 // pred_region
          _
        $region60: #{information_interactive.15} parent=11 // pred_fallthru
          _
        // Predicated region
        $region61: #{information_interactive.15} parent=11 // pred_check
          %p426 = pneg %p349
        $region62: #{information_interactive.15} parent=11 // pred_check_branch
          %428 = sbr.rel (%p426) target = $region64
        $region63: #{information_interactive.15} parent=11 // pred_region
          _
        $region64: #{information_interactive.15} parent=11 // pred_fallthru
          _
      $region12: #{information_interactive.15} parent=5 // pred_fallthru
        _
      %p429 = scmp.lt.s32.totalorder %s24, 2
      // Predicated region
      $region65: #{information_interactive.15} parent=5 // pred_check
        %p430 = pneg %p429
      $region66: #{information_interactive.15} parent=5 // pred_check_branch
        %432 = sbr.rel (%p430) target = $region68
      $region67: #{information_interactive.15} parent=5 // pred_region
        // Predicated region
        $region69: #{information_interactive.15} parent=67 // pred_check
          %p433 = pneg %p44
        $region70: #{information_interactive.15} parent=67 // pred_check_branch
          %435 = sbr.rel (%p433) target = $region72
        $region71: #{information_interactive.15} parent=67 // pred_region
          %p436 = scmp.lt.s32.totalorder %s24, 1
          %s437 = scalar_select %p436, %s24, 1
          %s438 = smul.addr %s437, 2
          %s439 = smul.addr %s438, 8
          %s440 = scalar_lea.vmem %s0, %s439
        $region72: #{information_interactive.15} parent=67 // pred_fallthru
          _
        // Predicated region
        $region73: #{information_interactive.15} parent=67 // pred_check
          %p441 = pneg %p70
        $region74: #{information_interactive.15} parent=67 // pred_check_branch
          %443 = sbr.rel (%p441) target = $region76
        $region75: #{information_interactive.15} parent=67 // pred_region
          %p444 = scmp.lt.s32.totalorder %s24, 1
          %s445 = scalar_select %p444, %s24, 1
          %s446 = smul.addr %s445, 2
          %s447 = smul.addr %s446, 8
          %s448 = scalar_lea.vmem %s1, %s447
        $region76: #{information_interactive.15} parent=67 // pred_fallthru
          _
      $region68: #{information_interactive.15} parent=5 // pred_fallthru
        _
      %p449 = scmp.le.s32.totalorder 1, %s24
      %p450 = scmp.lt.s32.totalorder %s24, 3
      %p451 = pnand %p449, %p450
      %p452 = pneg %p451
      // Predicated region
      $region77: #{information_interactive.15} parent=5 // pred_check
        _
      $region78: #{information_interactive.15} parent=5 // pred_check_branch
        %454 = sbr.rel (%p451) target = $region80
      $region79: #{information_interactive.15} parent=5 // pred_region
        %s455 = ssub.s32 %s24, 1
        %p456 = scmp.lt.s32.totalorder %s29, 1
        %s457 = scalar_select %p456, %s29, 1
        %s458 = smul.addr %s457, 2
        %s459 = smul.addr %s458, 8
        %s460 = scalar_lea.vmem %s0, %s459
        %p461 = pneg %p50
        %p462 = pneg %p47
        %p463 = scmp.lt.s32.totalorder %s29, 1
        %s464 = scalar_select %p463, %s29, 1
        %s465 = smul.addr %s464, 2
        %s466 = smul.addr %s465, 8
        %s467 = scalar_lea.vmem %s1, %s466
        %p468 = pneg %p76
        %p469 = pneg %p73
        %p470 = pneg %p97
        %p471 = pneg %p94
        %p472 = pneg %p118
        %p473 = pneg %p115
        %p474 = pneg %p139
        %p475 = pneg %p136
        %p476 = pneg %p160
        %p477 = pneg %p157
        %p478 = pneg %p181
        %p479 = pneg %p178
        %p480 = pneg %p202
        %p481 = pneg %p199
        %p482 = pneg %p223
        %p483 = pneg %p220
        %p484 = pneg %p244
        %p485 = pneg %p241
        %p486 = pneg %p265
        %p487 = pneg %p262
        %p488 = pneg %p286
        %p489 = pneg %p283
        %p490 = pneg %p307
        %p491 = pneg %p304
        %p492 = pneg %p328
        %p493 = pneg %p325
        %p494 = pneg %p349
        %p495 = pneg %p346
        %p496 = pneg %p375
        %p497 = pneg %p372
        %s498 = sand.u32 %s362, 1
        %s499 = scalar_lea.sflag [#allocation3], %s498
        %s500 = sand.u32 %s362, 1
        %s501 = smul.addr %s500, 16
        %s502 = scalar_lea.vmem [#allocation2], %s501
        %p503 = scmp.lt.s32.totalorder %s29, 1
        %s504 = scalar_select %p503, %s29, 1
        %s505 = smul.addr %s504, 2
        %s506 = smul.addr %s505, 8
        %s507 = scalar_lea.vmem %s0, %s506
        %p508 = scmp.lt.s32.totalorder %s29, 1
        %s509 = scalar_select %p508, %s29, 1
        %s510 = smul.addr %s509, 2
        %s511 = smul.addr %s510, 8
        %s512 = scalar_lea.vmem %s1, %s511
        %v514 = vld [vmem:[%s507] sm:$0xff]
        %v515 = vld [vmem:[%s507 + $0x8] sm:$0xff]
        %v516 = vld [vmem:[%s512] sm:$0xff]
        %v517 = vld [vmem:[%s512 + $0x8] sm:$0xff]
        %v518 = vpack.c.bf16 %v515, %v514
        %v519 = vpack.c.bf16 %v517, %v516
        %v520 = vld [vmem:[%s2] sm:$0xf]
        %v521 = vld [vmem:[%s2 + $0x4] sm:$0xf]
        %v522 = vld [vmem:[%s2 + $0x8] sm:$0xf]
        %v523 = vld [vmem:[%s2 + $0xc] sm:$0xf]
        %v524 = vld [vmem:[%s3] sm:$0x1]
        %v526 = vlaneseq
        %v527 = vshrl.u32 %v526, 7
        %v528 = vsub.s32 0, %v527
        %v529 = vrot.slane %v524, %v528
        %v535 = vunpack.c.l.b16 %v520
        %v536 = vunpack.c.l.b16 %v521
        %v537 = vunpack.c.l.b16 %v522
        %v538 = vunpack.c.l.b16 %v523
        %v539 = vpack.c.b16 %v536, %v535
        %v540 = vpack.c.b16 %v538, %v537
        %vm543 = vcmask 261120
        %v545 = vsel %vm543, %v518, 0
        %547 = vmatprep.subr.bf16.mxu0 0
        %548 = vmatpush1.bf16.msra.mxu0 %v539
        %549 = vmatprep.subr.bf16.mxu0 0
        %550 = vmatpush1.bf16.msra.mxu0 %v540
        %551 = vmatprep.subr.bf16.mxu0 0
        %552 = vmatpush1.bf16.msra.mxu0 0
        %553 = vmatprep.subr.bf16.mxu0 0
        %554 = vmatpush1.bf16.msra.mxu0 0
        %555 = vmatprep.subr.bf16.mxu0 0
        %556 = vmatpush1.bf16.msra.mxu0 0
        %557 = vmatprep.subr.bf16.mxu0 0
        %558 = vmatpush1.bf16.msra.mxu0 0
        %559 = vmatprep.subr.bf16.mxu0 0
        %560 = vmatpush1.bf16.msra.mxu0 0
        %561 = vmatprep.subr.bf16.mxu0 0
        %562 = vmatpush1.bf16.msra.mxu0 0
        %563 = vmatprep.subr.bf16.mxu0 0
        %564 = vmatpush1.bf16.msra.mxu0 0
        %565 = vmatprep.subr.bf16.mxu0 0
        %566 = vmatpush1.bf16.msra.mxu0 0
        %567 = vmatprep.subr.bf16.mxu0 0
        %568 = vmatpush1.bf16.msra.mxu0 0
        %569 = vmatprep.subr.bf16.mxu0 0
        %570 = vmatpush1.bf16.msra.mxu0 0
        %571 = vmatprep.subr.bf16.mxu0 0
        %572 = vmatpush1.bf16.msra.mxu0 0
        %573 = vmatprep.subr.bf16.mxu0 0
        %574 = vmatpush1.bf16.msra.mxu0 0
        %575 = vmatprep.subr.bf16.mxu0 0
        %576 = vmatpush1.bf16.msra.mxu0 0
        %577 = vmatprep.subr.bf16.mxu0 0
        %578 = vmatpush1.bf16.msra.mxu0 0
        %579 = vmatprep.mubr.bf16.mxu0 0
        %580 = vmatmul.mubr.bf16.gmra.mrb[0].mxu0 %v545
        %v581 = vpop.f32.mrb[0].mxu0
        %v582 = vadd.f32 %v529, %v581
        %v583 = vpop.f32.mrb[0].mxu0
        %v584 = vpop.f32.mrb[0].mxu0
        %v585 = vadd.f32 %v529, %v584
        %v586 = vpop.f32.mrb[0].mxu0
        %587 = vdwg.mxu0
        %v588 = vld [vmem:[%s4] sm:$0xf]
        %v589 = vld [vmem:[%s4 + $0x4] sm:$0xf]
        %v590 = vld [vmem:[%s4 + $0x8] sm:$0xf]
        %v591 = vld [vmem:[%s4 + $0xc] sm:$0xf]
        %v592 = vld [vmem:[%s5] sm:$0x1]
        %v594 = vlaneseq
        %v595 = vshrl.u32 %v594, 7
        %v596 = vsub.s32 0, %v595
        %v597 = vrot.slane %v592, %v596
        %v603 = vunpack.c.l.b16 %v588
        %v604 = vunpack.c.l.b16 %v589
        %v605 = vunpack.c.l.b16 %v590
        %v606 = vunpack.c.l.b16 %v591
        %v607 = vpack.c.b16 %v604, %v603
        %v608 = vpack.c.b16 %v606, %v605
        %v612 = vsel %vm543, %v519, 0
        %614 = vmatprep.subr.bf16.mxu0 0
        %615 = vmatpush1.bf16.msra.mxu0 %v607
        %616 = vmatprep.subr.bf16.mxu0 0
        %617 = vmatpush1.bf16.msra.mxu0 %v608
        %618 = vmatprep.subr.bf16.mxu0 0
        %619 = vmatpush1.bf16.msra.mxu0 0
        %620 = vmatprep.subr.bf16.mxu0 0
        %621 = vmatpush1.bf16.msra.mxu0 0
        %622 = vmatprep.subr.bf16.mxu0 0
        %623 = vmatpush1.bf16.msra.mxu0 0
        %624 = vmatprep.subr.bf16.mxu0 0
        %625 = vmatpush1.bf16.msra.mxu0 0
        %626 = vmatprep.subr.bf16.mxu0 0
        %627 = vmatpush1.bf16.msra.mxu0 0
        %628 = vmatprep.subr.bf16.mxu0 0
        %629 = vmatpush1.bf16.msra.mxu0 0
        %630 = vmatprep.subr.bf16.mxu0 0
        %631 = vmatpush1.bf16.msra.mxu0 0
        %632 = vmatprep.subr.bf16.mxu0 0
        %633 = vmatpush1.bf16.msra.mxu0 0
        %634 = vmatprep.subr.bf16.mxu0 0
        %635 = vmatpush1.bf16.msra.mxu0 0
        %636 = vmatprep.subr.bf16.mxu0 0
        %637 = vmatpush1.bf16.msra.mxu0 0
        %638 = vmatprep.subr.bf16.mxu0 0
        %639 = vmatpush1.bf16.msra.mxu0 0
        %640 = vmatprep.subr.bf16.mxu0 0
        %641 = vmatpush1.bf16.msra.mxu0 0
        %642 = vmatprep.subr.bf16.mxu0 0
        %643 = vmatpush1.bf16.msra.mxu0 0
        %644 = vmatprep.subr.bf16.mxu0 0
        %645 = vmatpush1.bf16.msra.mxu0 0
        %646 = vmatprep.mubr.bf16.mxu0 0
        %647 = vmatmul.mubr.bf16.gmra.mrb[0].mxu0 %v612
        %v648 = vpop.f32.mrb[0].mxu0
        %v649 = vadd.f32 %v597, %v648
        %v650 = vpop.f32.mrb[0].mxu0
        %v651 = vpop.f32.mrb[0].mxu0
        %v652 = vadd.f32 %v597, %v651
        %v653 = vpop.f32.mrb[0].mxu0
        %654 = vdwg.mxu0
        %v655 = vld [vmem:[%s6] sm:$0xf]
        %v656 = vld [vmem:[%s6 + $0x4] sm:$0xf]
        %v657 = vld [vmem:[%s6 + $0x8] sm:$0xf]
        %v658 = vld [vmem:[%s6 + $0xc] sm:$0xf]
        %v659 = vld [vmem:[%s7] sm:$0x1]
        %v661 = vlaneseq
        %v662 = vshrl.u32 %v661, 7
        %v663 = vsub.s32 0, %v662
        %v664 = vrot.slane %v659, %v663
        %v670 = vunpack.c.l.b16 %v655
        %v671 = vunpack.c.l.b16 %v656
        %v672 = vunpack.c.l.b16 %v657
        %v673 = vunpack.c.l.b16 %v658
        %v674 = vpack.c.b16 %v671, %v670
        %v675 = vpack.c.b16 %v673, %v672
        %678 = vmatprep.subr.bf16.mxu0 0
        %679 = vmatpush1.bf16.msra.mxu0 %v674
        %680 = vmatprep.subr.bf16.mxu0 0
        %681 = vmatpush1.bf16.msra.mxu0 %v675
        %682 = vmatprep.subr.bf16.mxu0 0
        %683 = vmatpush1.bf16.msra.mxu0 0
        %684 = vmatprep.subr.bf16.mxu0 0
        %685 = vmatpush1.bf16.msra.mxu0 0
        %686 = vmatprep.subr.bf16.mxu0 0
        %687 = vmatpush1.bf16.msra.mxu0 0
        %688 = vmatprep.subr.bf16.mxu0 0
        %689 = vmatpush1.bf16.msra.mxu0 0
        %690 = vmatprep.subr.bf16.mxu0 0
        %691 = vmatpush1.bf16.msra.mxu0 0
        %692 = vmatprep.subr.bf16.mxu0 0
        %693 = vmatpush1.bf16.msra.mxu0 0
        %694 = vmatprep.subr.bf16.mxu0 0
        %695 = vmatpush1.bf16.msra.mxu0 0
        %696 = vmatprep.subr.bf16.mxu0 0
        %697 = vmatpush1.bf16.msra.mxu0 0
        %698 = vmatprep.subr.bf16.mxu0 0
        %699 = vmatpush1.bf16.msra.mxu0 0
        %700 = vmatprep.subr.bf16.mxu0 0
        %701 = vmatpush1.bf16.msra.mxu0 0
        %702 = vmatprep.subr.bf16.mxu0 0
        %703 = vmatpush1.bf16.msra.mxu0 0
        %704 = vmatprep.subr.bf16.mxu0 0
        %705 = vmatpush1.bf16.msra.mxu0 0
        %706 = vmatprep.subr.bf16.mxu0 0
        %707 = vmatpush1.bf16.msra.mxu0 0
        %708 = vmatprep.subr.bf16.mxu0 0
        %709 = vmatpush1.bf16.msra.mxu0 0
        %710 = vmatprep.mubr.bf16.mxu0 0
        %711 = vmatmul.mubr.bf16.gmra.mrb[0].mxu0 %v612
        %v712 = vpop.f32.mrb[0].mxu0
        %v713 = vadd.f32 %v664, %v712
        %v714 = vpop.f32.mrb[0].mxu0
        %v715 = vpop.f32.mrb[0].mxu0
        %v716 = vadd.f32 %v664, %v715
        %v717 = vpop.f32.mrb[0].mxu0
        %718 = vdwg.mxu0
        %v719 = vpack.c.bf16 %v585, %v582
        %v720 = vpack.c.bf16 %v652, %v649
        %vm721 = vcmask 64512
        %v723 = vsel %vm721, %v719, 0
        %v726 = vsel %vm721, %v720, 0
        %728 = vmatprep.subr.bf16.mxu0 0
        %729 = vmatpush1.bf16.xpose.msra.mxu0 %v726
        %730 = vmatprep.subr.bf16.mxu0 0
        %731 = vmatpush1.bf16.xpose.msra.mxu0 0
        %732 = vmatprep.subr.bf16.mxu0 0
        %733 = vmatpush1.bf16.xpose.msra.mxu0 0
        %734 = vmatprep.subr.bf16.mxu0 0
        %735 = vmatpush1.bf16.xpose.msra.mxu0 0
        %736 = vmatprep.subr.bf16.mxu0 0
        %737 = vmatpush1.bf16.xpose.msra.mxu0 0
        %738 = vmatprep.subr.bf16.mxu0 0
        %739 = vmatpush1.bf16.xpose.msra.mxu0 0
        %740 = vmatprep.subr.bf16.mxu0 0
        %741 = vmatpush1.bf16.xpose.msra.mxu0 0
        %742 = vmatprep.subr.bf16.mxu0 0
        %743 = vmatpush1.bf16.xpose.msra.mxu0 0
        %744 = vmatprep.subr.bf16.mxu0 0
        %745 = vmatpush1.bf16.xpose.msra.mxu0 0
        %746 = vmatprep.subr.bf16.mxu0 0
        %747 = vmatpush1.bf16.xpose.msra.mxu0 0
        %748 = vmatprep.subr.bf16.mxu0 0
        %749 = vmatpush1.bf16.xpose.msra.mxu0 0
        %750 = vmatprep.subr.bf16.mxu0 0
        %751 = vmatpush1.bf16.xpose.msra.mxu0 0
        %752 = vmatprep.subr.bf16.mxu0 0
        %753 = vmatpush1.bf16.xpose.msra.mxu0 0
        %754 = vmatprep.subr.bf16.mxu0 0
        %755 = vmatpush1.bf16.xpose.msra.mxu0 0
        %756 = vmatprep.subr.bf16.mxu0 0
        %757 = vmatpush1.bf16.xpose.msra.mxu0 0
        %758 = vmatprep.subr.bf16.mxu0 0
        %759 = vmatpush1.bf16.xpose.msra.mxu0 0
        %760 = vmatprep.mubr.bf16.mxu0 0
        %761 = vmatmul.mubr.bf16.gmra.mrb[0].mxu0 %v723
        %v762 = vpop.f32.mrb[0].mxu0
        %v763 = vadd.f32 0.0, %v762
        %v764 = vpop.f32.mrb[0].mxu0
        %v765 = vpop.f32.mrb[0].mxu0
        %v766 = vadd.f32 0.0, %v765
        %v767 = vpop.f32.mrb[0].mxu0
        %768 = vdwg.mxu0
        %v769 = vmul.f32 %v763, 0.35355338
        %v770 = vmul.f32 %v766, 0.35355338
        %vm771 = vcmask 130048
        %v772 = vsel %vm771, %v769, -inf
        %773 = vmax.xlane.f32.xlu0 %v772
        %v774 = vpop.xlane.xlu0 %773
        %v775 = vsel %vm771, %v770, -inf
        %776 = vmax.xlane.f32.xlu0 %v775
        %v777 = vpop.xlane.xlu0 %776
        %v778 = vsub.f32 %v769, %v774
        %v779 = vsub.f32 %v770, %v777
        %v780 = vmul.f32 %v778, 1.442695
        %v781 = vpow.pop %v780
        %v782 = vmul.f32 %v779, 1.442695
        %v783 = vpow.pop %v782
        %v784 = vsel %vm771, %v781, 0.0
        %785 = vadd.xlane.f32.xlu0 %v784
        %v786 = vpop.xlane.xlu0 %785
        %v787 = vsel %vm771, %v783, 0.0
        %788 = vadd.xlane.f32.xlu0 %v787
        %v789 = vpop.xlane.xlu0 %788
        %v790 = vrcp.pop %v786
        %v791 = vrcp.pop %v789
        %v792 = vmul.f32 %v781, %v790
        %v793 = vmul.f32 %v783, %v791
        %v794 = vpack.c.bf16 %v793, %v792
        %v795 = vpack.c.bf16 %v716, %v713
        %v797 = vsel %vm771, %v794, 0
        %799 = vmatprep.subr.bf16.mxu0 0
        %800 = vmatpush1.bf16.msra.mxu0 %v795
        %801 = vmatprep.subr.bf16.mxu0 0
        %802 = vmatpush1.bf16.msra.mxu0 0
        %803 = vmatprep.subr.bf16.mxu0 0
        %804 = vmatpush1.bf16.msra.mxu0 0
        %805 = vmatprep.subr.bf16.mxu0 0
        %806 = vmatpush1.bf16.msra.mxu0 0
        %807 = vmatprep.subr.bf16.mxu0 0
        %808 = vmatpush1.bf16.msra.mxu0 0
        %809 = vmatprep.subr.bf16.mxu0 0
        %810 = vmatpush1.bf16.msra.mxu0 0
        %811 = vmatprep.subr.bf16.mxu0 0
        %812 = vmatpush1.bf16.msra.mxu0 0
        %813 = vmatprep.subr.bf16.mxu0 0
        %814 = vmatpush1.bf16.msra.mxu0 0
        %815 = vmatprep.subr.bf16.mxu0 0
        %816 = vmatpush1.bf16.msra.mxu0 0
        %817 = vmatprep.subr.bf16.mxu0 0
        %818 = vmatpush1.bf16.msra.mxu0 0
        %819 = vmatprep.subr.bf16.mxu0 0
        %820 = vmatpush1.bf16.msra.mxu0 0
        %821 = vmatprep.subr.bf16.mxu0 0
        %822 = vmatpush1.bf16.msra.mxu0 0
        %823 = vmatprep.subr.bf16.mxu0 0
        %824 = vmatpush1.bf16.msra.mxu0 0
        %825 = vmatprep.subr.bf16.mxu0 0
        %826 = vmatpush1.bf16.msra.mxu0 0
        %827 = vmatprep.subr.bf16.mxu0 0
        %828 = vmatpush1.bf16.msra.mxu0 0
        %829 = vmatprep.subr.bf16.mxu0 0
        %830 = vmatpush1.bf16.msra.mxu0 0
        %831 = vmatprep.mubr.bf16.mxu0 0
        %832 = vmatmul.mubr.bf16.gmra.mrb[0].mxu0 %v797
        %v833 = vpop.f32.mrb[0].mxu0
        %v834 = vadd.f32 0.0, %v833
        %v835 = vpop.f32.mrb[0].mxu0
        %v836 = vpop.f32.mrb[0].mxu0
        %v837 = vadd.f32 0.0, %v836
        %v838 = vpop.f32.mrb[0].mxu0
        %839 = vdwg.mxu0
        %v840 = vpack.c.bf16 %v837, %v834
        %v841 = vld [vmem:[%s8] sm:$0xf]
        %s842 = scalar_lea.vmem %s2, 16
        %v843 = vld [vmem:[%s842] sm:$0xf]
        %v844 = vld [vmem:[%s842 + $0x4] sm:$0xf]
        %v845 = vld [vmem:[%s842 + $0x8] sm:$0xf]
        %v846 = vld [vmem:[%s842 + $0xc] sm:$0xf]
        %s847 = scalar_lea.vmem %s3, 1
        %v848 = vld [vmem:[%s847] sm:$0x1]
        %v850 = vlaneseq
        %v851 = vshrl.u32 %v850, 7
        %v852 = vsub.s32 0, %v851
        %v853 = vrot.slane %v848, %v852
        %v859 = vunpack.c.l.b16 %v843
        %v860 = vunpack.c.l.b16 %v844
        %v861 = vunpack.c.l.b16 %v845
        %v862 = vunpack.c.l.b16 %v846
        %v863 = vpack.c.b16 %v860, %v859
        %v864 = vpack.c.b16 %v862, %v861
        %867 = vmatprep.subr.bf16.mxu0 0
        %868 = vmatpush1.bf16.msra.mxu0 %v863
        %869 = vmatprep.subr.bf16.mxu0 0
        %870 = vmatpush1.bf16.msra.mxu0 %v864
        %871 = vmatprep.subr.bf16.mxu0 0
        %872 = vmatpush1.bf16.msra.mxu0 0
        %873 = vmatprep.subr.bf16.mxu0 0
        %874 = vmatpush1.bf16.msra.mxu0 0
        %875 = vmatprep.subr.bf16.mxu0 0
        %876 = vmatpush1.bf16.msra.mxu0 0
        %877 = vmatprep.subr.bf16.mxu0 0
        %878 = vmatpush1.bf16.msra.mxu0 0
        %879 = vmatprep.subr.bf16.mxu0 0
        %880 = vmatpush1.bf16.msra.mxu0 0
        %881 = vmatprep.subr.bf16.mxu0 0
        %882 = vmatpush1.bf16.msra.mxu0 0
        %883 = vmatprep.subr.bf16.mxu0 0
        %884 = vmatpush1.bf16.msra.mxu0 0
        %885 = vmatprep.subr.bf16.mxu0 0
        %886 = vmatpush1.bf16.msra.mxu0 0
        %887 = vmatprep.subr.bf16.mxu0 0
        %888 = vmatpush1.bf16.msra.mxu0 0
        %889 = vmatprep.subr.bf16.mxu0 0
        %890 = vmatpush1.bf16.msra.mxu0 0
        %891 = vmatprep.subr.bf16.mxu0 0
        %892 = vmatpush1.bf16.msra.mxu0 0
        %893 = vmatprep.subr.bf16.mxu0 0
        %894 = vmatpush1.bf16.msra.mxu0 0
        %895 = vmatprep.subr.bf16.mxu0 0
        %896 = vmatpush1.bf16.msra.mxu0 0
        %897 = vmatprep.subr.bf16.mxu0 0
        %898 = vmatpush1.bf16.msra.mxu0 0
        %899 = vmatprep.mubr.bf16.mxu0 0
        %900 = vmatmul.mubr.bf16.gmra.mrb[0].mxu0 %v545
        %v901 = vpop.f32.mrb[0].mxu0
        %v902 = vadd.f32 %v853, %v901
        %v903 = vpop.f32.mrb[0].mxu0
        %v904 = vpop.f32.mrb[0].mxu0
        %v905 = vadd.f32 %v853, %v904
        %v906 = vpop.f32.mrb[0].mxu0
        %907 = vdwg.mxu0
        %s908 = scalar_lea.vmem %s4, 16
        %v909 = vld [vmem:[%s908] sm:$0xf]
        %v910 = vld [vmem:[%s908 + $0x4] sm:$0xf]
        %v911 = vld [vmem:[%s908 + $0x8] sm:$0xf]
        %v912 = vld [vmem:[%s908 + $0xc] sm:$0xf]
        %s913 = scalar_lea.vmem %s5, 1
        %v914 = vld [vmem:[%s913] sm:$0x1]
        %v916 = vlaneseq
        %v917 = vshrl.u32 %v916, 7
        %v918 = vsub.s32 0, %v917
        %v919 = vrot.slane %v914, %v918
        %v925 = vunpack.c.l.b16 %v909
        %v926 = vunpack.c.l.b16 %v910
        %v927 = vunpack.c.l.b16 %v911
        %v928 = vunpack.c.l.b16 %v912
        %v929 = vpack.c.b16 %v926, %v925
        %v930 = vpack.c.b16 %v928, %v927
        %933 = vmatprep.subr.bf16.mxu0 0
        %934 = vmatpush1.bf16.msra.mxu0 %v929
        %935 = vmatprep.subr.bf16.mxu0 0
        %936 = vmatpush1.bf16.msra.mxu0 %v930
        %937 = vmatprep.subr.bf16.mxu0 0
        %938 = vmatpush1.bf16.msra.mxu0 0
        %939 = vmatprep.subr.bf16.mxu0 0
        %940 = vmatpush1.bf16.msra.mxu0 0
        %941 = vmatprep.subr.bf16.mxu0 0
        %942 = vmatpush1.bf16.msra.mxu0 0
        %943 = vmatprep.subr.bf16.mxu0 0
        %944 = vmatpush1.bf16.msra.mxu0 0
        %945 = vmatprep.subr.bf16.mxu0 0
        %946 = vmatpush1.bf16.msra.mxu0 0
        %947 = vmatprep.subr.bf16.mxu0 0
        %948 = vmatpush1.bf16.msra.mxu0 0
        %949 = vmatprep.subr.bf16.mxu0 0
        %950 = vmatpush1.bf16.msra.mxu0 0
        %951 = vmatprep.subr.bf16.mxu0 0
        %952 = vmatpush1.bf16.msra.mxu0 0
        %953 = vmatprep.subr.bf16.mxu0 0
        %954 = vmatpush1.bf16.msra.mxu0 0
        %955 = vmatprep.subr.bf16.mxu0 0
        %956 = vmatpush1.bf16.msra.mxu0 0
        %957 = vmatprep.subr.bf16.mxu0 0
        %958 = vmatpush1.bf16.msra.mxu0 0
        %959 = vmatprep.subr.bf16.mxu0 0
        %960 = vmatpush1.bf16.msra.mxu0 0
        %961 = vmatprep.subr.bf16.mxu0 0
        %962 = vmatpush1.bf16.msra.mxu0 0
        %963 = vmatprep.subr.bf16.mxu0 0
        %964 = vmatpush1.bf16.msra.mxu0 0
        %965 = vmatprep.mubr.bf16.mxu0 0
        %966 = vmatmul.mubr.bf16.gmra.mrb[0].mxu0 %v612
        %v967 = vpop.f32.mrb[0].mxu0
        %v968 = vadd.f32 %v919, %v967
        %v969 = vpop.f32.mrb[0].mxu0
        %v970 = vpop.f32.mrb[0].mxu0
        %v971 = vadd.f32 %v919, %v970
        %v972 = vpop.f32.mrb[0].mxu0
        %973 = vdwg.mxu0
        %s974 = scalar_lea.vmem %s6, 16
        %v975 = vld [vmem:[%s974] sm:$0xf]
        %v976 = vld [vmem:[%s974 + $0x4] sm:$0xf]
        %v977 = vld [vmem:[%s974 + $0x8] sm:$0xf]
        %v978 = vld [vmem:[%s974 + $0xc] sm:$0xf]
        %s979 = scalar_lea.vmem %s7, 1
        %v980 = vld [vmem:[%s979] sm:$0x1]
        %v982 = vlaneseq
        %v983 = vshrl.u32 %v982, 7
        %v984 = vsub.s32 0, %v983
        %v985 = vrot.slane %v980, %v984
        %v991 = vunpack.c.l.b16 %v975
        %v992 = vunpack.c.l.b16 %v976
        %v993 = vunpack.c.l.b16 %v977
        %v994 = vunpack.c.l.b16 %v978
        %v995 = vpack.c.b16 %v992, %v991
        %v996 = vpack.c.b16 %v994, %v993
        %999 = vmatprep.subr.bf16.mxu0 0
        %1000 = vmatpush1.bf16.msra.mxu0 %v995
        %1001 = vmatprep.subr.bf16.mxu0 0
        %1002 = vmatpush1.bf16.msra.mxu0 %v996
        %1003 = vmatprep.subr.bf16.mxu0 0
        %1004 = vmatpush1.bf16.msra.mxu0 0
        %1005 = vmatprep.subr.bf16.mxu0 0
        %1006 = vmatpush1.bf16.msra.mxu0 0
        %1007 = vmatprep.subr.bf16.mxu0 0
        %1008 = vmatpush1.bf16.msra.mxu0 0
        %1009 = vmatprep.subr.bf16.mxu0 0
        %1010 = vmatpush1.bf16.msra.mxu0 0
        %1011 = vmatprep.subr.bf16.mxu0 0
        %1012 = vmatpush1.bf16.msra.mxu0 0
        %1013 = vmatprep.subr.bf16.mxu0 0
        %1014 = vmatpush1.bf16.msra.mxu0 0
        %1015 = vmatprep.subr.bf16.mxu0 0
        %1016 = vmatpush1.bf16.msra.mxu0 0
        %1017 = vmatprep.subr.bf16.mxu0 0
        %1018 = vmatpush1.bf16.msra.mxu0 0
        %1019 = vmatprep.subr.bf16.mxu0 0
        %1020 = vmatpush1.bf16.msra.mxu0 0
        %1021 = vmatprep.subr.bf16.mxu0 0
        %1022 = vmatpush1.bf16.msra.mxu0 0
        %1023 = vmatprep.subr.bf16.mxu0 0
        %1024 = vmatpush1.bf16.msra.mxu0 0
        %1025 = vmatprep.subr.bf16.mxu0 0
        %1026 = vmatpush1.bf16.msra.mxu0 0
        %1027 = vmatprep.subr.bf16.mxu0 0
        %1028 = vmatpush1.bf16.msra.mxu0 0
        %1029 = vmatprep.subr.bf16.mxu0 0
        %1030 = vmatpush1.bf16.msra.mxu0 0
        %1031 = vmatprep.mubr.bf16.mxu0 0
        %1032 = vmatmul.mubr.bf16.gmra.mrb[0].mxu0 %v612
        %v1033 = vpop.f32.mrb[0].mxu0
        %v1034 = vadd.f32 %v985, %v1033
        %v1035 = vpop.f32.mrb[0].mxu0
        %v1036 = vpop.f32.mrb[0].mxu0
        %v1037 = vadd.f32 %v985, %v1036
        %v1038 = vpop.f32.mrb[0].mxu0
        %1039 = vdwg.mxu0
        %v1040 = vpack.c.bf16 %v905, %v902
        %v1041 = vpack.c.bf16 %v971, %v968
        %v1043 = vsel %vm721, %v1040, 0
        %v1046 = vsel %vm721, %v1041, 0
        %1048 = vmatprep.subr.bf16.mxu0 0
        %1049 = vmatpush1.bf16.xpose.msra.mxu0 %v1046
        %1050 = vmatprep.subr.bf16.mxu0 0
        %1051 = vmatpush1.bf16.xpose.msra.mxu0 0
        %1052 = vmatprep.subr.bf16.mxu0 0
        %1053 = vmatpush1.bf16.xpose.msra.mxu0 0
        %1054 = vmatprep.subr.bf16.mxu0 0
        %1055 = vmatpush1.bf16.xpose.msra.mxu0 0
        %1056 = vmatprep.subr.bf16.mxu0 0
        %1057 = vmatpush1.bf16.xpose.msra.mxu0 0
        %1058 = vmatprep.subr.bf16.mxu0 0
        %1059 = vmatpush1.bf16.xpose.msra.mxu0 0
        %1060 = vmatprep.subr.bf16.mxu0 0
        %1061 = vmatpush1.bf16.xpose.msra.mxu0 0
        %1062 = vmatprep.subr.bf16.mxu0 0
        %1063 = vmatpush1.bf16.xpose.msra.mxu0 0
        %1064 = vmatprep.subr.bf16.mxu0 0
        %1065 = vmatpush1.bf16.xpose.msra.mxu0 0
        %1066 = vmatprep.subr.bf16.mxu0 0
        %1067 = vmatpush1.bf16.xpose.msra.mxu0 0
        %1068 = vmatprep.subr.bf16.mxu0 0
        %1069 = vmatpush1.bf16.xpose.msra.mxu0 0
        %1070 = vmatprep.subr.bf16.mxu0 0
        %1071 = vmatpush1.bf16.xpose.msra.mxu0 0
        %1072 = vmatprep.subr.bf16.mxu0 0
        %1073 = vmatpush1.bf16.xpose.msra.mxu0 0
        %1074 = vmatprep.subr.bf16.mxu0 0
        %1075 = vmatpush1.bf16.xpose.msra.mxu0 0
        %1076 = vmatprep.subr.bf16.mxu0 0
        %1077 = vmatpush1.bf16.xpose.msra.mxu0 0
        %1078 = vmatprep.subr.bf16.mxu0 0
        %1079 = vmatpush1.bf16.xpose.msra.mxu0 0
        %1080 = vmatprep.mubr.bf16.mxu0 0
        %1081 = vmatmul.mubr.bf16.gmra.mrb[0].mxu0 %v1043
        %v1082 = vpop.f32.mrb[0].mxu0
        %v1083 = vadd.f32 0.0, %v1082
        %v1084 = vpop.f32.mrb[0].mxu0
        %v1085 = vpop.f32.mrb[0].mxu0
        %v1086 = vadd.f32 0.0, %v1085
        %v1087 = vpop.f32.mrb[0].mxu0
        %1088 = vdwg.mxu0
        %v1089 = vmul.f32 %v1083, 0.35355338
        %v1090 = vmul.f32 %v1086, 0.35355338
        %v1091 = vsel %vm771, %v1089, -inf
        %1092 = vmax.xlane.f32.xlu0 %v1091
        %v1093 = vpop.xlane.xlu0 %1092
        %v1094 = vsel %vm771, %v1090, -inf
        %1095 = vmax.xlane.f32.xlu0 %v1094
        %v1096 = vpop.xlane.xlu0 %1095
        %v1097 = vsub.f32 %v1089, %v1093
        %v1098 = vsub.f32 %v1090, %v1096
        %v1099 = vmul.f32 %v1097, 1.442695
        %v1100 = vpow.pop %v1099
        %v1101 = vmul.f32 %v1098, 1.442695
        %v1102 = vpow.pop %v1101
        %v1103 = vsel %vm771, %v1100, 0.0
        %1104 = vadd.xlane.f32.xlu0 %v1103
        %v1105 = vpop.xlane.xlu0 %1104
        %v1106 = vsel %vm771, %v1102, 0.0
        %1107 = vadd.xlane.f32.xlu0 %v1106
        %v1108 = vpop.xlane.xlu0 %1107
        %v1109 = vrcp.pop %v1105
        %v1110 = vrcp.pop %v1108
        %v1111 = vmul.f32 %v1100, %v1109
        %v1112 = vmul.f32 %v1102, %v1110
        %v1113 = vpack.c.bf16 %v1112, %v1111
        %v1114 = vpack.c.bf16 %v1037, %v1034
        %v1116 = vsel %vm771, %v1113, 0
        %1118 = vmatprep.subr.bf16.mxu0 0
        %1119 = vmatpush1.bf16.msra.mxu0 %v1114
        %1120 = vmatprep.subr.bf16.mxu0 0
        %1121 = vmatpush1.bf16.msra.mxu0 0
        %1122 = vmatprep.subr.bf16.mxu0 0
        %1123 = vmatpush1.bf16.msra.mxu0 0
        %1124 = vmatprep.subr.bf16.mxu0 0
        %1125 = vmatpush1.bf16.msra.mxu0 0
        %1126 = vmatprep.subr.bf16.mxu0 0
        %1127 = vmatpush1.bf16.msra.mxu0 0
        %1128 = vmatprep.subr.bf16.mxu0 0
        %1129 = vmatpush1.bf16.msra.mxu0 0
        %1130 = vmatprep.subr.bf16.mxu0 0
        %1131 = vmatpush1.bf16.msra.mxu0 0
        %1132 = vmatprep.subr.bf16.mxu0 0
        %1133 = vmatpush1.bf16.msra.mxu0 0
        %1134 = vmatprep.subr.bf16.mxu0 0
        %1135 = vmatpush1.bf16.msra.mxu0 0
        %1136 = vmatprep.subr.bf16.mxu0 0
        %1137 = vmatpush1.bf16.msra.mxu0 0
        %1138 = vmatprep.subr.bf16.mxu0 0
        %1139 = vmatpush1.bf16.msra.mxu0 0
        %1140 = vmatprep.subr.bf16.mxu0 0
        %1141 = vmatpush1.bf16.msra.mxu0 0
        %1142 = vmatprep.subr.bf16.mxu0 0
        %1143 = vmatpush1.bf16.msra.mxu0 0
        %1144 = vmatprep.subr.bf16.mxu0 0
        %1145 = vmatpush1.bf16.msra.mxu0 0
        %1146 = vmatprep.subr.bf16.mxu0 0
        %1147 = vmatpush1.bf16.msra.mxu0 0
        %1148 = vmatprep.subr.bf16.mxu0 0
        %1149 = vmatpush1.bf16.msra.mxu0 0
        %1150 = vmatprep.mubr.bf16.mxu0 0
        %1151 = vmatmul.mubr.bf16.gmra.mrb[0].mxu0 %v1116
        %v1152 = vpop.f32.mrb[0].mxu0
        %v1153 = vadd.f32 0.0, %v1152
        %v1154 = vpop.f32.mrb[0].mxu0
        %v1155 = vpop.f32.mrb[0].mxu0
        %v1156 = vadd.f32 0.0, %v1155
        %v1157 = vpop.f32.mrb[0].mxu0
        %1158 = vdwg.mxu0
        %v1159 = vpack.c.bf16 %v1156, %v1153
        %s1160 = scalar_lea.vmem %s8, 4
        %v1161 = vld [vmem:[%s1160] sm:$0xf]
        %v1163 = vsel %vm721, %v1159, 0
        %vm1165 = vcmask 1043456
        %v1167 = vsel %vm1165, %v1161, 0
        %1169 = vmatprep.subr.bf16.mxu0 0
        %1170 = vmatpush1.bf16.msra.mxu0 %v1167
        %1171 = vmatprep.subr.bf16.mxu0 0
        %1172 = vmatpush1.bf16.msra.mxu0 0
        %1173 = vmatprep.subr.bf16.mxu0 0
        %1174 = vmatpush1.bf16.msra.mxu0 0
        %1175 = vmatprep.subr.bf16.mxu0 0
        %1176 = vmatpush1.bf16.msra.mxu0 0
        %1177 = vmatprep.subr.bf16.mxu0 0
        %1178 = vmatpush1.bf16.msra.mxu0 0
        %1179 = vmatprep.subr.bf16.mxu0 0
        %1180 = vmatpush1.bf16.msra.mxu0 0
        %1181 = vmatprep.subr.bf16.mxu0 0
        %1182 = vmatpush1.bf16.msra.mxu0 0
        %1183 = vmatprep.subr.bf16.mxu0 0
        %1184 = vmatpush1.bf16.msra.mxu0 0
        %1185 = vmatprep.subr.bf16.mxu0 0
        %1186 = vmatpush1.bf16.msra.mxu0 0
        %1187 = vmatprep.subr.bf16.mxu0 0
        %1188 = vmatpush1.bf16.msra.mxu0 0
        %1189 = vmatprep.subr.bf16.mxu0 0
        %1190 = vmatpush1.bf16.msra.mxu0 0
        %1191 = vmatprep.subr.bf16.mxu0 0
        %1192 = vmatpush1.bf16.msra.mxu0 0
        %1193 = vmatprep.subr.bf16.mxu0 0
        %1194 = vmatpush1.bf16.msra.mxu0 0
        %1195 = vmatprep.subr.bf16.mxu0 0
        %1196 = vmatpush1.bf16.msra.mxu0 0
        %1197 = vmatprep.subr.bf16.mxu0 0
        %1198 = vmatpush1.bf16.msra.mxu0 0
        %1199 = vmatprep.subr.bf16.mxu0 0
        %1200 = vmatpush1.bf16.msra.mxu0 0
        %1201 = vmatprep.mubr.bf16.mxu0 0
        %1202 = vmatmul.mubr.bf16.gmra.mrb[0].mxu0 %v1163
        %v1203 = vpop.f32.mrb[0].mxu0
        %v1204 = vadd.f32 0.0, %v1203
        %v1205 = vpop.f32.mrb[0].mxu0
        %v1206 = vpop.f32.mrb[0].mxu0
        %v1207 = vadd.f32 0.0, %v1206
        %v1208 = vpop.f32.mrb[0].mxu0
        %1209 = vdwg.mxu0
        %v1211 = vsel %vm721, %v840, 0
        %v1214 = vsel %vm1165, %v841, 0
        %1216 = vmatprep.subr.bf16.mxu0 0
        %1217 = vmatpush1.bf16.msra.mxu0 %v1214
        %1218 = vmatprep.subr.bf16.mxu0 0
        %1219 = vmatpush1.bf16.msra.mxu0 0
        %1220 = vmatprep.subr.bf16.mxu0 0
        %1221 = vmatpush1.bf16.msra.mxu0 0
        %1222 = vmatprep.subr.bf16.mxu0 0
        %1223 = vmatpush1.bf16.msra.mxu0 0
        %1224 = vmatprep.subr.bf16.mxu0 0
        %1225 = vmatpush1.bf16.msra.mxu0 0
        %1226 = vmatprep.subr.bf16.mxu0 0
        %1227 = vmatpush1.bf16.msra.mxu0 0
        %1228 = vmatprep.subr.bf16.mxu0 0
        %1229 = vmatpush1.bf16.msra.mxu0 0
        %1230 = vmatprep.subr.bf16.mxu0 0
        %1231 = vmatpush1.bf16.msra.mxu0 0
        %1232 = vmatprep.subr.bf16.mxu0 0
        %1233 = vmatpush1.bf16.msra.mxu0 0
        %1234 = vmatprep.subr.bf16.mxu0 0
        %1235 = vmatpush1.bf16.msra.mxu0 0
        %1236 = vmatprep.subr.bf16.mxu0 0
        %1237 = vmatpush1.bf16.msra.mxu0 0
        %1238 = vmatprep.subr.bf16.mxu0 0
        %1239 = vmatpush1.bf16.msra.mxu0 0
        %1240 = vmatprep.subr.bf16.mxu0 0
        %1241 = vmatpush1.bf16.msra.mxu0 0
        %1242 = vmatprep.subr.bf16.mxu0 0
        %1243 = vmatpush1.bf16.msra.mxu0 0
        %1244 = vmatprep.subr.bf16.mxu0 0
        %1245 = vmatpush1.bf16.msra.mxu0 0
        %1246 = vmatprep.subr.bf16.mxu0 0
        %1247 = vmatpush1.bf16.msra.mxu0 0
        %1248 = vmatprep.mubr.bf16.mxu0 0
        %1249 = vmatmul.mubr.bf16.gmra.mrb[0].mxu0 %v1211
        %v1250 = vpop.f32.mrb[0].mxu0
        %v1251 = vadd.f32 %v1204, %v1250
        %v1252 = vpop.f32.mrb[0].mxu0
        %v1253 = vpop.f32.mrb[0].mxu0
        %v1254 = vadd.f32 %v1207, %v1253
        %v1255 = vpop.f32.mrb[0].mxu0
        %1256 = vdwg.mxu0
        %s1257 = scalar_lea.vmem %s2, 32
        %v1258 = vld [vmem:[%s1257] sm:$0xf]
        %v1259 = vld [vmem:[%s1257 + $0x4] sm:$0xf]
        %v1260 = vld [vmem:[%s1257 + $0x8] sm:$0xf]
        %v1261 = vld [vmem:[%s1257 + $0xc] sm:$0xf]
        %s1262 = scalar_lea.vmem %s3, 2
        %v1263 = vld [vmem:[%s1262] sm:$0x1]
        %v1265 = vlaneseq
        %v1266 = vshrl.u32 %v1265, 7
        %v1267 = vsub.s32 0, %v1266
        %v1268 = vrot.slane %v1263, %v1267
        %v1274 = vunpack.c.l.b16 %v1258
        %v1275 = vunpack.c.l.b16 %v1259
        %v1276 = vunpack.c.l.b16 %v1260
        %v1277 = vunpack.c.l.b16 %v1261
        %v1278 = vpack.c.b16 %v1275, %v1274
        %v1279 = vpack.c.b16 %v1277, %v1276
        %1282 = vmatprep.subr.bf16.mxu0 0
        %1283 = vmatpush1.bf16.msra.mxu0 %v1278
        %1284 = vmatprep.subr.bf16.mxu0 0
        %1285 = vmatpush1.bf16.msra.mxu0 %v1279
        %1286 = vmatprep.subr.bf16.mxu0 0
        %1287 = vmatpush1.bf16.msra.mxu0 0
        %1288 = vmatprep.subr.bf16.mxu0 0
        %1289 = vmatpush1.bf16.msra.mxu0 0
        %1290 = vmatprep.subr.bf16.mxu0 0
        %1291 = vmatpush1.bf16.msra.mxu0 0
        %1292 = vmatprep.subr.bf16.mxu0 0
        %1293 = vmatpush1.bf16.msra.mxu0 0
        %1294 = vmatprep.subr.bf16.mxu0 0
        %1295 = vmatpush1.bf16.msra.mxu0 0
        %1296 = vmatprep.subr.bf16.mxu0 0
        %1297 = vmatpush1.bf16.msra.mxu0 0
        %1298 = vmatprep.subr.bf16.mxu0 0
        %1299 = vmatpush1.bf16.msra.mxu0 0
        %1300 = vmatprep.subr.bf16.mxu0 0
        %1301 = vmatpush1.bf16.msra.mxu0 0
        %1302 = vmatprep.subr.bf16.mxu0 0
        %1303 = vmatpush1.bf16.msra.mxu0 0
        %1304 = vmatprep.subr.bf16.mxu0 0
        %1305 = vmatpush1.bf16.msra.mxu0 0
        %1306 = vmatprep.subr.bf16.mxu0 0
        %1307 = vmatpush1.bf16.msra.mxu0 0
        %1308 = vmatprep.subr.bf16.mxu0 0
        %1309 = vmatpush1.bf16.msra.mxu0 0
        %1310 = vmatprep.subr.bf16.mxu0 0
        %1311 = vmatpush1.bf16.msra.mxu0 0
        %1312 = vmatprep.subr.bf16.mxu0 0
        %1313 = vmatpush1.bf16.msra.mxu0 0
        %1314 = vmatprep.mubr.bf16.mxu0 0
        %1315 = vmatmul.mubr.bf16.gmra.mrb[0].mxu0 %v545
        %v1316 = vpop.f32.mrb[0].mxu0
        %v1317 = vadd.f32 %v1268, %v1316
        %v1318 = vpop.f32.mrb[0].mxu0
        %v1319 = vpop.f32.mrb[0].mxu0
        %v1320 = vadd.f32 %v1268, %v1319
        %v1321 = vpop.f32.mrb[0].mxu0
        %1322 = vdwg.mxu0
        %s1323 = scalar_lea.vmem %s4, 32
        %v1324 = vld [vmem:[%s1323] sm:$0xf]
        %v1325 = vld [vmem:[%s1323 + $0x4] sm:$0xf]
        %v1326 = vld [vmem:[%s1323 + $0x8] sm:$0xf]
        %v1327 = vld [vmem:[%s1323 + $0xc] sm:$0xf]
        %s1328 = scalar_lea.vmem %s5, 2
        %v1329 = vld [vmem:[%s1328] sm:$0x1]
        %v1331 = vlaneseq
        %v1332 = vshrl.u32 %v1331, 7
        %v1333 = vsub.s32 0, %v1332
        %v1334 = vrot.slane %v1329, %v1333
        %v1340 = vunpack.c.l.b16 %v1324
        %v1341 = vunpack.c.l.b16 %v1325
        %v1342 = vunpack.c.l.b16 %v1326
        %v1343 = vunpack.c.l.b16 %v1327
        %v1344 = vpack.c.b16 %v1341, %v1340
        %v1345 = vpack.c.b16 %v1343, %v1342
        %1348 = vmatprep.subr.bf16.mxu0 0
        %1349 = vmatpush1.bf16.msra.mxu0 %v1344
        %1350 = vmatprep.subr.bf16.mxu0 0
        %1351 = vmatpush1.bf16.msra.mxu0 %v1345
        %1352 = vmatprep.subr.bf16.mxu0 0
        %1353 = vmatpush1.bf16.msra.mxu0 0
        %1354 = vmatprep.subr.bf16.mxu0 0
        %1355 = vmatpush1.bf16.msra.mxu0 0
        %1356 = vmatprep.subr.bf16.mxu0 0
        %1357 = vmatpush1.bf16.msra.mxu0 0
        %1358 = vmatprep.subr.bf16.mxu0 0
        %1359 = vmatpush1.bf16.msra.mxu0 0
        %1360 = vmatprep.subr.bf16.mxu0 0
        %1361 = vmatpush1.bf16.msra.mxu0 0
        %1362 = vmatprep.subr.bf16.mxu0 0
        %1363 = vmatpush1.bf16.msra.mxu0 0
        %1364 = vmatprep.subr.bf16.mxu0 0
        %1365 = vmatpush1.bf16.msra.mxu0 0
        %1366 = vmatprep.subr.bf16.mxu0 0
        %1367 = vmatpush1.bf16.msra.mxu0 0
        %1368 = vmatprep.subr.bf16.mxu0 0
        %1369 = vmatpush1.bf16.msra.mxu0 0
        %1370 = vmatprep.subr.bf16.mxu0 0
        %1371 = vmatpush1.bf16.msra.mxu0 0
        %1372 = vmatprep.subr.bf16.mxu0 0
        %1373 = vmatpush1.bf16.msra.mxu0 0
        %1374 = vmatprep.subr.bf16.mxu0 0
        %1375 = vmatpush1.bf16.msra.mxu0 0
        %1376 = vmatprep.subr.bf16.mxu0 0
        %1377 = vmatpush1.bf16.msra.mxu0 0
        %1378 = vmatprep.subr.bf16.mxu0 0
        %1379 = vmatpush1.bf16.msra.mxu0 0
        %1380 = vmatprep.mubr.bf16.mxu0 0
        %1381 = vmatmul.mubr.bf16.gmra.mrb[0].mxu0 %v612
        %v1382 = vpop.f32.mrb[0].mxu0
        %v1383 = vadd.f32 %v1334, %v1382
        %v1384 = vpop.f32.mrb[0].mxu0
        %v1385 = vpop.f32.mrb[0].mxu0
        %v1386 = vadd.f32 %v1334, %v1385
        %v1387 = vpop.f32.mrb[0].mxu0
        %1388 = vdwg.mxu0
        %s1389 = scalar_lea.vmem %s6, 32
        %v1390 = vld [vmem:[%s1389] sm:$0xf]
        %v1391 = vld [vmem:[%s1389 + $0x4] sm:$0xf]
        %v1392 = vld [vmem:[%s1389 + $0x8] sm:$0xf]
        %v1393 = vld [vmem:[%s1389 + $0xc] sm:$0xf]
        %s1394 = scalar_lea.vmem %s7, 2
        %v1395 = vld [vmem:[%s1394] sm:$0x1]
        %v1397 = vlaneseq
        %v1398 = vshrl.u32 %v1397, 7
        %v1399 = vsub.s32 0, %v1398
        %v1400 = vrot.slane %v1395, %v1399
        %v1406 = vunpack.c.l.b16 %v1390
        %v1407 = vunpack.c.l.b16 %v1391
        %v1408 = vunpack.c.l.b16 %v1392
        %v1409 = vunpack.c.l.b16 %v1393
        %v1410 = vpack.c.b16 %v1407, %v1406
        %v1411 = vpack.c.b16 %v1409, %v1408
        %1414 = vmatprep.subr.bf16.mxu0 0
        %1415 = vmatpush1.bf16.msra.mxu0 %v1410
        %1416 = vmatprep.subr.bf16.mxu0 0
        %1417 = vmatpush1.bf16.msra.mxu0 %v1411
        %1418 = vmatprep.subr.bf16.mxu0 0
        %1419 = vmatpush1.bf16.msra.mxu0 0
        %1420 = vmatprep.subr.bf16.mxu0 0
        %1421 = vmatpush1.bf16.msra.mxu0 0
        %1422 = vmatprep.subr.bf16.mxu0 0
        %1423 = vmatpush1.bf16.msra.mxu0 0
        %1424 = vmatprep.subr.bf16.mxu0 0
        %1425 = vmatpush1.bf16.msra.mxu0 0
        %1426 = vmatprep.subr.bf16.mxu0 0
        %1427 = vmatpush1.bf16.msra.mxu0 0
        %1428 = vmatprep.subr.bf16.mxu0 0
        %1429 = vmatpush1.bf16.msra.mxu0 0
        %1430 = vmatprep.subr.bf16.mxu0 0
        %1431 = vmatpush1.bf16.msra.mxu0 0
        %1432 = vmatprep.subr.bf16.mxu0 0
        %1433 = vmatpush1.bf16.msra.mxu0 0
        %1434 = vmatprep.subr.bf16.mxu0 0
        %1435 = vmatpush1.bf16.msra.mxu0 0
        %1436 = vmatprep.subr.bf16.mxu0 0
        %1437 = vmatpush1.bf16.msra.mxu0 0
        %1438 = vmatprep.subr.bf16.mxu0 0
        %1439 = vmatpush1.bf16.msra.mxu0 0
        %1440 = vmatprep.subr.bf16.mxu0 0
        %1441 = vmatpush1.bf16.msra.mxu0 0
        %1442 = vmatprep.subr.bf16.mxu0 0
        %1443 = vmatpush1.bf16.msra.mxu0 0
        %1444 = vmatprep.subr.bf16.mxu0 0
        %1445 = vmatpush1.bf16.msra.mxu0 0
        %1446 = vmatprep.mubr.bf16.mxu0 0
        %1447 = vmatmul.mubr.bf16.gmra.mrb[0].mxu0 %v612
        %v1448 = vpop.f32.mrb[0].mxu0
        %v1449 = vadd.f32 %v1400, %v1448
        %v1450 = vpop.f32.mrb[0].mxu0
        %v1451 = vpop.f32.mrb[0].mxu0
        %v1452 = vadd.f32 %v1400, %v1451
        %v1453 = vpop.f32.mrb[0].mxu0
        %1454 = vdwg.mxu0
        %v1455 = vpack.c.bf16 %v1320, %v1317
        %v1456 = vpack.c.bf16 %v1386, %v1383
        %v1458 = vsel %vm721, %v1455, 0
        %v1461 = vsel %vm721, %v1456, 0
        %1463 = vmatprep.subr.bf16.mxu0 0
        %1464 = vmatpush1.bf16.xpose.msra.mxu0 %v1461
        %1465 = vmatprep.subr.bf16.mxu0 0
        %1466 = vmatpush1.bf16.xpose.msra.mxu0 0
        %1467 = vmatprep.subr.bf16.mxu0 0
        %1468 = vmatpush1.bf16.xpose.msra.mxu0 0
        %1469 = vmatprep.subr.bf16.mxu0 0
        %1470 = vmatpush1.bf16.xpose.msra.mxu0 0
        %1471 = vmatprep.subr.bf16.mxu0 0
        %1472 = vmatpush1.bf16.xpose.msra.mxu0 0
        %1473 = vmatprep.subr.bf16.mxu0 0
        %1474 = vmatpush1.bf16.xpose.msra.mxu0 0
        %1475 = vmatprep.subr.bf16.mxu0 0
        %1476 = vmatpush1.bf16.xpose.msra.mxu0 0
        %1477 = vmatprep.subr.bf16.mxu0 0
        %1478 = vmatpush1.bf16.xpose.msra.mxu0 0
        %1479 = vmatprep.subr.bf16.mxu0 0
        %1480 = vmatpush1.bf16.xpose.msra.mxu0 0
        %1481 = vmatprep.subr.bf16.mxu0 0
        %1482 = vmatpush1.bf16.xpose.msra.mxu0 0
        %1483 = vmatprep.subr.bf16.mxu0 0
        %1484 = vmatpush1.bf16.xpose.msra.mxu0 0
        %1485 = vmatprep.subr.bf16.mxu0 0
        %1486 = vmatpush1.bf16.xpose.msra.mxu0 0
        %1487 = vmatprep.subr.bf16.mxu0 0
        %1488 = vmatpush1.bf16.xpose.msra.mxu0 0
        %1489 = vmatprep.subr.bf16.mxu0 0
        %1490 = vmatpush1.bf16.xpose.msra.mxu0 0
        %1491 = vmatprep.subr.bf16.mxu0 0
        %1492 = vmatpush1.bf16.xpose.msra.mxu0 0
        %1493 = vmatprep.subr.bf16.mxu0 0
        %1494 = vmatpush1.bf16.xpose.msra.mxu0 0
        %1495 = vmatprep.mubr.bf16.mxu0 0
        %1496 = vmatmul.mubr.bf16.gmra.mrb[0].mxu0 %v1458
        %v1497 = vpop.f32.mrb[0].mxu0
        %v1498 = vadd.f32 0.0, %v1497
        %v1499 = vpop.f32.mrb[0].mxu0
        %v1500 = vpop.f32.mrb[0].mxu0
        %v1501 = vadd.f32 0.0, %v1500
        %v1502 = vpop.f32.mrb[0].mxu0
        %1503 = vdwg.mxu0
        %v1504 = vmul.f32 %v1498, 0.35355338
        %v1505 = vmul.f32 %v1501, 0.35355338
        %v1506 = vsel %vm771, %v1504, -inf
        %1507 = vmax.xlane.f32.xlu0 %v1506
        %v1508 = vpop.xlane.xlu0 %1507
        %v1509 = vsel %vm771, %v1505, -inf
        %1510 = vmax.xlane.f32.xlu0 %v1509
        %v1511 = vpop.xlane.xlu0 %1510
        %v1512 = vsub.f32 %v1504, %v1508
        %v1513 = vsub.f32 %v1505, %v1511
        %v1514 = vmul.f32 %v1512, 1.442695
        %v1515 = vpow.pop %v1514
        %v1516 = vmul.f32 %v1513, 1.442695
        %v1517 = vpow.pop %v1516
        %v1518 = vsel %vm771, %v1515, 0.0
        %1519 = vadd.xlane.f32.xlu0 %v1518
        %v1520 = vpop.xlane.xlu0 %1519
        %v1521 = vsel %vm771, %v1517, 0.0
        %1522 = vadd.xlane.f32.xlu0 %v1521
        %v1523 = vpop.xlane.xlu0 %1522
        %v1524 = vrcp.pop %v1520
        %v1525 = vrcp.pop %v1523
        %v1526 = vmul.f32 %v1515, %v1524
        %v1527 = vmul.f32 %v1517, %v1525
        %v1528 = vpack.c.bf16 %v1527, %v1526
        %v1529 = vpack.c.bf16 %v1452, %v1449
        %v1531 = vsel %vm771, %v1528, 0
        %1533 = vmatprep.subr.bf16.mxu0 0
        %1534 = vmatpush1.bf16.msra.mxu0 %v1529
        %1535 = vmatprep.subr.bf16.mxu0 0
        %1536 = vmatpush1.bf16.msra.mxu0 0
        %1537 = vmatprep.subr.bf16.mxu0 0
        %1538 = vmatpush1.bf16.msra.mxu0 0
        %1539 = vmatprep.subr.bf16.mxu0 0
        %1540 = vmatpush1.bf16.msra.mxu0 0
        %1541 = vmatprep.subr.bf16.mxu0 0
        %1542 = vmatpush1.bf16.msra.mxu0 0
        %1543 = vmatprep.subr.bf16.mxu0 0
        %1544 = vmatpush1.bf16.msra.mxu0 0
        %1545 = vmatprep.subr.bf16.mxu0 0
        %1546 = vmatpush1.bf16.msra.mxu0 0
        %1547 = vmatprep.subr.bf16.mxu0 0
        %1548 = vmatpush1.bf16.msra.mxu0 0
        %1549 = vmatprep.subr.bf16.mxu0 0
        %1550 = vmatpush1.bf16.msra.mxu0 0
        %1551 = vmatprep.subr.bf16.mxu0 0
        %1552 = vmatpush1.bf16.msra.mxu0 0
        %1553 = vmatprep.subr.bf16.mxu0 0
        %1554 = vmatpush1.bf16.msra.mxu0 0
        %1555 = vmatprep.subr.bf16.mxu0 0
        %1556 = vmatpush1.bf16.msra.mxu0 0
        %1557 = vmatprep.subr.bf16.mxu0 0
        %1558 = vmatpush1.bf16.msra.mxu0 0
        %1559 = vmatprep.subr.bf16.mxu0 0
        %1560 = vmatpush1.bf16.msra.mxu0 0
        %1561 = vmatprep.subr.bf16.mxu0 0
        %1562 = vmatpush1.bf16.msra.mxu0 0
        %1563 = vmatprep.subr.bf16.mxu0 0
        %1564 = vmatpush1.bf16.msra.mxu0 0
        %1565 = vmatprep.mubr.bf16.mxu0 0
        %1566 = vmatmul.mubr.bf16.gmra.mrb[0].mxu0 %v1531
        %v1567 = vpop.f32.mrb[0].mxu0
        %v1568 = vadd.f32 0.0, %v1567
        %v1569 = vpop.f32.mrb[0].mxu0
        %v1570 = vpop.f32.mrb[0].mxu0
        %v1571 = vadd.f32 0.0, %v1570
        %v1572 = vpop.f32.mrb[0].mxu0
        %1573 = vdwg.mxu0
        %v1574 = vpack.c.bf16 %v1571, %v1568
        %s1575 = scalar_lea.vmem %s8, 8
        %v1576 = vld [vmem:[%s1575] sm:$0xf]
        %v1578 = vsel %vm721, %v1574, 0
        %v1581 = vsel %vm1165, %v1576, 0
        %1583 = vmatprep.subr.bf16.mxu0 0
        %1584 = vmatpush1.bf16.msra.mxu0 %v1581
        %1585 = vmatprep.subr.bf16.mxu0 0
        %1586 = vmatpush1.bf16.msra.mxu0 0
        %1587 = vmatprep.subr.bf16.mxu0 0
        %1588 = vmatpush1.bf16.msra.mxu0 0
        %1589 = vmatprep.subr.bf16.mxu0 0
        %1590 = vmatpush1.bf16.msra.mxu0 0
        %1591 = vmatprep.subr.bf16.mxu0 0
        %1592 = vmatpush1.bf16.msra.mxu0 0
        %1593 = vmatprep.subr.bf16.mxu0 0
        %1594 = vmatpush1.bf16.msra.mxu0 0
        %1595 = vmatprep.subr.bf16.mxu0 0
        %1596 = vmatpush1.bf16.msra.mxu0 0
        %1597 = vmatprep.subr.bf16.mxu0 0
        %1598 = vmatpush1.bf16.msra.mxu0 0
        %1599 = vmatprep.subr.bf16.mxu0 0
        %1600 = vmatpush1.bf16.msra.mxu0 0
        %1601 = vmatprep.subr.bf16.mxu0 0
        %1602 = vmatpush1.bf16.msra.mxu0 0
        %1603 = vmatprep.subr.bf16.mxu0 0
        %1604 = vmatpush1.bf16.msra.mxu0 0
        %1605 = vmatprep.subr.bf16.mxu0 0
        %1606 = vmatpush1.bf16.msra.mxu0 0
        %1607 = vmatprep.subr.bf16.mxu0 0
        %1608 = vmatpush1.bf16.msra.mxu0 0
        %1609 = vmatprep.subr.bf16.mxu0 0
        %1610 = vmatpush1.bf16.msra.mxu0 0
        %1611 = vmatprep.subr.bf16.mxu0 0
        %1612 = vmatpush1.bf16.msra.mxu0 0
        %1613 = vmatprep.subr.bf16.mxu0 0
        %1614 = vmatpush1.bf16.msra.mxu0 0
        %1615 = vmatprep.mubr.bf16.mxu0 0
        %1616 = vmatmul.mubr.bf16.gmra.mrb[0].mxu0 %v1578
        %v1617 = vpop.f32.mrb[0].mxu0
        %v1618 = vadd.f32 0.0, %v1617
        %v1619 = vpop.f32.mrb[0].mxu0
        %v1620 = vpop.f32.mrb[0].mxu0
        %v1621 = vadd.f32 0.0, %v1620
        %v1622 = vpop.f32.mrb[0].mxu0
        %1623 = vdwg.mxu0
        %v1624 = vadd.f32 %v1251, %v1618
        %v1625 = vadd.f32 %v1254, %v1621
        %s1626 = scalar_lea.vmem %s2, 48
        %v1627 = vld [vmem:[%s1626] sm:$0xf]
        %v1628 = vld [vmem:[%s1626 + $0x4] sm:$0xf]
        %v1629 = vld [vmem:[%s1626 + $0x8] sm:$0xf]
        %v1630 = vld [vmem:[%s1626 + $0xc] sm:$0xf]
        %s1631 = scalar_lea.vmem %s3, 3
        %v1632 = vld [vmem:[%s1631] sm:$0x1]
        %v1634 = vlaneseq
        %v1635 = vshrl.u32 %v1634, 7
        %v1636 = vsub.s32 0, %v1635
        %v1637 = vrot.slane %v1632, %v1636
        %v1643 = vunpack.c.l.b16 %v1627
        %v1644 = vunpack.c.l.b16 %v1628
        %v1645 = vunpack.c.l.b16 %v1629
        %v1646 = vunpack.c.l.b16 %v1630
        %v1647 = vpack.c.b16 %v1644, %v1643
        %v1648 = vpack.c.b16 %v1646, %v1645
        %1651 = vmatprep.subr.bf16.mxu0 0
        %1652 = vmatpush1.bf16.msra.mxu0 %v1647
        %1653 = vmatprep.subr.bf16.mxu0 0
        %1654 = vmatpush1.bf16.msra.mxu0 %v1648
        %1655 = vmatprep.subr.bf16.mxu0 0
        %1656 = vmatpush1.bf16.msra.mxu0 0
        %1657 = vmatprep.subr.bf16.mxu0 0
        %1658 = vmatpush1.bf16.msra.mxu0 0
        %1659 = vmatprep.subr.bf16.mxu0 0
        %1660 = vmatpush1.bf16.msra.mxu0 0
        %1661 = vmatprep.subr.bf16.mxu0 0
        %1662 = vmatpush1.bf16.msra.mxu0 0
        %1663 = vmatprep.subr.bf16.mxu0 0
        %1664 = vmatpush1.bf16.msra.mxu0 0
        %1665 = vmatprep.subr.bf16.mxu0 0
        %1666 = vmatpush1.bf16.msra.mxu0 0
        %1667 = vmatprep.subr.bf16.mxu0 0
        %1668 = vmatpush1.bf16.msra.mxu0 0
        %1669 = vmatprep.subr.bf16.mxu0 0
        %1670 = vmatpush1.bf16.msra.mxu0 0
        %1671 = vmatprep.subr.bf16.mxu0 0
        %1672 = vmatpush1.bf16.msra.mxu0 0
        %1673 = vmatprep.subr.bf16.mxu0 0
        %1674 = vmatpush1.bf16.msra.mxu0 0
        %1675 = vmatprep.subr.bf16.mxu0 0
        %1676 = vmatpush1.bf16.msra.mxu0 0
        %1677 = vmatprep.subr.bf16.mxu0 0
        %1678 = vmatpush1.bf16.msra.mxu0 0
        %1679 = vmatprep.subr.bf16.mxu0 0
        %1680 = vmatpush1.bf16.msra.mxu0 0
        %1681 = vmatprep.subr.bf16.mxu0 0
        %1682 = vmatpush1.bf16.msra.mxu0 0
        %1683 = vmatprep.mubr.bf16.mxu0 0
        %1684 = vmatmul.mubr.bf16.gmra.mrb[0].mxu0 %v545
        %v1685 = vpop.f32.mrb[0].mxu0
        %v1686 = vadd.f32 %v1637, %v1685
        %v1687 = vpop.f32.mrb[0].mxu0
        %v1688 = vpop.f32.mrb[0].mxu0
        %v1689 = vadd.f32 %v1637, %v1688
        %v1690 = vpop.f32.mrb[0].mxu0
        %1691 = vdwg.mxu0
        %s1692 = scalar_lea.vmem %s4, 48
        %v1693 = vld [vmem:[%s1692] sm:$0xf]
        %v1694 = vld [vmem:[%s1692 + $0x4] sm:$0xf]
        %v1695 = vld [vmem:[%s1692 + $0x8] sm:$0xf]
        %v1696 = vld [vmem:[%s1692 + $0xc] sm:$0xf]
        %s1697 = scalar_lea.vmem %s5, 3
        %v1698 = vld [vmem:[%s1697] sm:$0x1]
        %v1700 = vlaneseq
        %v1701 = vshrl.u32 %v1700, 7
        %v1702 = vsub.s32 0, %v1701
        %v1703 = vrot.slane %v1698, %v1702
        %v1709 = vunpack.c.l.b16 %v1693
        %v1710 = vunpack.c.l.b16 %v1694
        %v1711 = vunpack.c.l.b16 %v1695
        %v1712 = vunpack.c.l.b16 %v1696
        %v1713 = vpack.c.b16 %v1710, %v1709
        %v1714 = vpack.c.b16 %v1712, %v1711
        %1717 = vmatprep.subr.bf16.mxu0 0
        %1718 = vmatpush1.bf16.msra.mxu0 %v1713
        %1719 = vmatprep.subr.bf16.mxu0 0
        %1720 = vmatpush1.bf16.msra.mxu0 %v1714
        %1721 = vmatprep.subr.bf16.mxu0 0
        %1722 = vmatpush1.bf16.msra.mxu0 0
        %1723 = vmatprep.subr.bf16.mxu0 0
        %1724 = vmatpush1.bf16.msra.mxu0 0
        %1725 = vmatprep.subr.bf16.mxu0 0
        %1726 = vmatpush1.bf16.msra.mxu0 0
        %1727 = vmatprep.subr.bf16.mxu0 0
        %1728 = vmatpush1.bf16.msra.mxu0 0
        %1729 = vmatprep.subr.bf16.mxu0 0
        %1730 = vmatpush1.bf16.msra.mxu0 0
        %1731 = vmatprep.subr.bf16.mxu0 0
        %1732 = vmatpush1.bf16.msra.mxu0 0
        %1733 = vmatprep.subr.bf16.mxu0 0
        %1734 = vmatpush1.bf16.msra.mxu0 0
        %1735 = vmatprep.subr.bf16.mxu0 0
        %1736 = vmatpush1.bf16.msra.mxu0 0
        %1737 = vmatprep.subr.bf16.mxu0 0
        %1738 = vmatpush1.bf16.msra.mxu0 0
        %1739 = vmatprep.subr.bf16.mxu0 0
        %1740 = vmatpush1.bf16.msra.mxu0 0
        %1741 = vmatprep.subr.bf16.mxu0 0
        %1742 = vmatpush1.bf16.msra.mxu0 0
        %1743 = vmatprep.subr.bf16.mxu0 0
        %1744 = vmatpush1.bf16.msra.mxu0 0
        %1745 = vmatprep.subr.bf16.mxu0 0
        %1746 = vmatpush1.bf16.msra.mxu0 0
        %1747 = vmatprep.subr.bf16.mxu0 0
        %1748 = vmatpush1.bf16.msra.mxu0 0
        %1749 = vmatprep.mubr.bf16.mxu0 0
        %1750 = vmatmul.mubr.bf16.gmra.mrb[0].mxu0 %v612
        %v1751 = vpop.f32.mrb[0].mxu0
        %v1752 = vadd.f32 %v1703, %v1751
        %v1753 = vpop.f32.mrb[0].mxu0
        %v1754 = vpop.f32.mrb[0].mxu0
        %v1755 = vadd.f32 %v1703, %v1754
        %v1756 = vpop.f32.mrb[0].mxu0
        %1757 = vdwg.mxu0
        %s1758 = scalar_lea.vmem %s6, 48
        %v1759 = vld [vmem:[%s1758] sm:$0xf]
        %v1760 = vld [vmem:[%s1758 + $0x4] sm:$0xf]
        %v1761 = vld [vmem:[%s1758 + $0x8] sm:$0xf]
        %v1762 = vld [vmem:[%s1758 + $0xc] sm:$0xf]
        %s1763 = scalar_lea.vmem %s7, 3
        %v1764 = vld [vmem:[%s1763] sm:$0x1]
        %v1766 = vlaneseq
        %v1767 = vshrl.u32 %v1766, 7
        %v1768 = vsub.s32 0, %v1767
        %v1769 = vrot.slane %v1764, %v1768
        %v1775 = vunpack.c.l.b16 %v1759
        %v1776 = vunpack.c.l.b16 %v1760
        %v1777 = vunpack.c.l.b16 %v1761
        %v1778 = vunpack.c.l.b16 %v1762
        %v1779 = vpack.c.b16 %v1776, %v1775
        %v1780 = vpack.c.b16 %v1778, %v1777
        %1783 = vmatprep.subr.bf16.mxu0 0
        %1784 = vmatpush1.bf16.msra.mxu0 %v1779
        %1785 = vmatprep.subr.bf16.mxu0 0
        %1786 = vmatpush1.bf16.msra.mxu0 %v1780
        %1787 = vmatprep.subr.bf16.mxu0 0
        %1788 = vmatpush1.bf16.msra.mxu0 0
        %1789 = vmatprep.subr.bf16.mxu0 0
        %1790 = vmatpush1.bf16.msra.mxu0 0
        %1791 = vmatprep.subr.bf16.mxu0 0
        %1792 = vmatpush1.bf16.msra.mxu0 0
        %1793 = vmatprep.subr.bf16.mxu0 0
        %1794 = vmatpush1.bf16.msra.mxu0 0
        %1795 = vmatprep.subr.bf16.mxu0 0
        %1796 = vmatpush1.bf16.msra.mxu0 0
        %1797 = vmatprep.subr.bf16.mxu0 0
        %1798 = vmatpush1.bf16.msra.mxu0 0
        %1799 = vmatprep.subr.bf16.mxu0 0
        %1800 = vmatpush1.bf16.msra.mxu0 0
        %1801 = vmatprep.subr.bf16.mxu0 0
        %1802 = vmatpush1.bf16.msra.mxu0 0
        %1803 = vmatprep.subr.bf16.mxu0 0
        %1804 = vmatpush1.bf16.msra.mxu0 0
        %1805 = vmatprep.subr.bf16.mxu0 0
        %1806 = vmatpush1.bf16.msra.mxu0 0
        %1807 = vmatprep.subr.bf16.mxu0 0
        %1808 = vmatpush1.bf16.msra.mxu0 0
        %1809 = vmatprep.subr.bf16.mxu0 0
        %1810 = vmatpush1.bf16.msra.mxu0 0
        %1811 = vmatprep.subr.bf16.mxu0 0
        %1812 = vmatpush1.bf16.msra.mxu0 0
        %1813 = vmatprep.subr.bf16.mxu0 0
        %1814 = vmatpush1.bf16.msra.mxu0 0
        %1815 = vmatprep.mubr.bf16.mxu0 0
        %1816 = vmatmul.mubr.bf16.gmra.mrb[0].mxu0 %v612
        %v1817 = vpop.f32.mrb[0].mxu0
        %v1818 = vadd.f32 %v1769, %v1817
        %v1819 = vpop.f32.mrb[0].mxu0
        %v1820 = vpop.f32.mrb[0].mxu0
        %v1821 = vadd.f32 %v1769, %v1820
        %v1822 = vpop.f32.mrb[0].mxu0
        %1823 = vdwg.mxu0
        %v1824 = vpack.c.bf16 %v1689, %v1686
        %v1825 = vpack.c.bf16 %v1755, %v1752
        %v1827 = vsel %vm721, %v1824, 0
        %v1830 = vsel %vm721, %v1825, 0
        %1832 = vmatprep.subr.bf16.mxu0 0
        %1833 = vmatpush1.bf16.xpose.msra.mxu0 %v1830
        %1834 = vmatprep.subr.bf16.mxu0 0
        %1835 = vmatpush1.bf16.xpose.msra.mxu0 0
        %1836 = vmatprep.subr.bf16.mxu0 0
        %1837 = vmatpush1.bf16.xpose.msra.mxu0 0
        %1838 = vmatprep.subr.bf16.mxu0 0
        %1839 = vmatpush1.bf16.xpose.msra.mxu0 0
        %1840 = vmatprep.subr.bf16.mxu0 0
        %1841 = vmatpush1.bf16.xpose.msra.mxu0 0
        %1842 = vmatprep.subr.bf16.mxu0 0
        %1843 = vmatpush1.bf16.xpose.msra.mxu0 0
        %1844 = vmatprep.subr.bf16.mxu0 0
        %1845 = vmatpush1.bf16.xpose.msra.mxu0 0
        %1846 = vmatprep.subr.bf16.mxu0 0
        %1847 = vmatpush1.bf16.xpose.msra.mxu0 0
        %1848 = vmatprep.subr.bf16.mxu0 0
        %1849 = vmatpush1.bf16.xpose.msra.mxu0 0
        %1850 = vmatprep.subr.bf16.mxu0 0
        %1851 = vmatpush1.bf16.xpose.msra.mxu0 0
        %1852 = vmatprep.subr.bf16.mxu0 0
        %1853 = vmatpush1.bf16.xpose.msra.mxu0 0
        %1854 = vmatprep.subr.bf16.mxu0 0
        %1855 = vmatpush1.bf16.xpose.msra.mxu0 0
        %1856 = vmatprep.subr.bf16.mxu0 0
        %1857 = vmatpush1.bf16.xpose.msra.mxu0 0
        %1858 = vmatprep.subr.bf16.mxu0 0
        %1859 = vmatpush1.bf16.xpose.msra.mxu0 0
        %1860 = vmatprep.subr.bf16.mxu0 0
        %1861 = vmatpush1.bf16.xpose.msra.mxu0 0
        %1862 = vmatprep.subr.bf16.mxu0 0
        %1863 = vmatpush1.bf16.xpose.msra.mxu0 0
        %1864 = vmatprep.mubr.bf16.mxu0 0
        %1865 = vmatmul.mubr.bf16.gmra.mrb[0].mxu0 %v1827
        %v1866 = vpop.f32.mrb[0].mxu0
        %v1867 = vadd.f32 0.0, %v1866
        %v1868 = vpop.f32.mrb[0].mxu0
        %v1869 = vpop.f32.mrb[0].mxu0
        %v1870 = vadd.f32 0.0, %v1869
        %v1871 = vpop.f32.mrb[0].mxu0
        %1872 = vdwg.mxu0
        %v1873 = vmul.f32 %v1867, 0.35355338
        %v1874 = vmul.f32 %v1870, 0.35355338
        %v1875 = vsel %vm771, %v1873, -inf
        %1876 = vmax.xlane.f32.xlu0 %v1875
        %v1877 = vpop.xlane.xlu0 %1876
        %v1878 = vsel %vm771, %v1874, -inf
        %1879 = vmax.xlane.f32.xlu0 %v1878
        %v1880 = vpop.xlane.xlu0 %1879
        %v1881 = vsub.f32 %v1873, %v1877
        %v1882 = vsub.f32 %v1874, %v1880
        %v1883 = vmul.f32 %v1881, 1.442695
        %v1884 = vpow.pop %v1883
        %v1885 = vmul.f32 %v1882, 1.442695
        %v1886 = vpow.pop %v1885
        %v1887 = vsel %vm771, %v1884, 0.0
        %1888 = vadd.xlane.f32.xlu0 %v1887
        %v1889 = vpop.xlane.xlu0 %1888
        %v1890 = vsel %vm771, %v1886, 0.0
        %1891 = vadd.xlane.f32.xlu0 %v1890
        %v1892 = vpop.xlane.xlu0 %1891
        %v1893 = vrcp.pop %v1889
        %v1894 = vrcp.pop %v1892
        %v1895 = vmul.f32 %v1884, %v1893
        %v1896 = vmul.f32 %v1886, %v1894
        %v1897 = vpack.c.bf16 %v1896, %v1895
        %v1898 = vpack.c.bf16 %v1821, %v1818
        %v1900 = vsel %vm771, %v1897, 0
        %1902 = vmatprep.subr.bf16.mxu0 0
        %1903 = vmatpush1.bf16.msra.mxu0 %v1898
        %1904 = vmatprep.subr.bf16.mxu0 0
        %1905 = vmatpush1.bf16.msra.mxu0 0
        %1906 = vmatprep.subr.bf16.mxu0 0
        %1907 = vmatpush1.bf16.msra.mxu0 0
        %1908 = vmatprep.subr.bf16.mxu0 0
        %1909 = vmatpush1.bf16.msra.mxu0 0
        %1910 = vmatprep.subr.bf16.mxu0 0
        %1911 = vmatpush1.bf16.msra.mxu0 0
        %1912 = vmatprep.subr.bf16.mxu0 0
        %1913 = vmatpush1.bf16.msra.mxu0 0
        %1914 = vmatprep.subr.bf16.mxu0 0
        %1915 = vmatpush1.bf16.msra.mxu0 0
        %1916 = vmatprep.subr.bf16.mxu0 0
        %1917 = vmatpush1.bf16.msra.mxu0 0
        %1918 = vmatprep.subr.bf16.mxu0 0
        %1919 = vmatpush1.bf16.msra.mxu0 0
        %1920 = vmatprep.subr.bf16.mxu0 0
        %1921 = vmatpush1.bf16.msra.mxu0 0
        %1922 = vmatprep.subr.bf16.mxu0 0
        %1923 = vmatpush1.bf16.msra.mxu0 0
        %1924 = vmatprep.subr.bf16.mxu0 0
        %1925 = vmatpush1.bf16.msra.mxu0 0
        %1926 = vmatprep.subr.bf16.mxu0 0
        %1927 = vmatpush1.bf16.msra.mxu0 0
        %1928 = vmatprep.subr.bf16.mxu0 0
        %1929 = vmatpush1.bf16.msra.mxu0 0
        %1930 = vmatprep.subr.bf16.mxu0 0
        %1931 = vmatpush1.bf16.msra.mxu0 0
        %1932 = vmatprep.subr.bf16.mxu0 0
        %1933 = vmatpush1.bf16.msra.mxu0 0
        %1934 = vmatprep.mubr.bf16.mxu0 0
        %1935 = vmatmul.mubr.bf16.gmra.mrb[0].mxu0 %v1900
        %v1936 = vpop.f32.mrb[0].mxu0
        %v1937 = vadd.f32 0.0, %v1936
        %v1938 = vpop.f32.mrb[0].mxu0
        %v1939 = vpop.f32.mrb[0].mxu0
        %v1940 = vadd.f32 0.0, %v1939
        %v1941 = vpop.f32.mrb[0].mxu0
        %1942 = vdwg.mxu0
        %v1943 = vpack.c.bf16 %v1940, %v1937
        %s1944 = scalar_lea.vmem %s8, 12
        %v1945 = vld [vmem:[%s1944] sm:$0xf]
        %v1947 = vsel %vm721, %v1943, 0
        %v1950 = vsel %vm1165, %v1945, 0
        %1952 = vmatprep.subr.bf16.mxu0 0
        %1953 = vmatpush1.bf16.msra.mxu0 %v1950
        %1954 = vmatprep.subr.bf16.mxu0 0
        %1955 = vmatpush1.bf16.msra.mxu0 0
        %1956 = vmatprep.subr.bf16.mxu0 0
        %1957 = vmatpush1.bf16.msra.mxu0 0
        %1958 = vmatprep.subr.bf16.mxu0 0
        %1959 = vmatpush1.bf16.msra.mxu0 0
        %1960 = vmatprep.subr.bf16.mxu0 0
        %1961 = vmatpush1.bf16.msra.mxu0 0
        %1962 = vmatprep.subr.bf16.mxu0 0
        %1963 = vmatpush1.bf16.msra.mxu0 0
        %1964 = vmatprep.subr.bf16.mxu0 0
        %1965 = vmatpush1.bf16.msra.mxu0 0
        %1966 = vmatprep.subr.bf16.mxu0 0
        %1967 = vmatpush1.bf16.msra.mxu0 0
        %1968 = vmatprep.subr.bf16.mxu0 0
        %1969 = vmatpush1.bf16.msra.mxu0 0
        %1970 = vmatprep.subr.bf16.mxu0 0
        %1971 = vmatpush1.bf16.msra.mxu0 0
        %1972 = vmatprep.subr.bf16.mxu0 0
        %1973 = vmatpush1.bf16.msra.mxu0 0
        %1974 = vmatprep.subr.bf16.mxu0 0
        %1975 = vmatpush1.bf16.msra.mxu0 0
        %1976 = vmatprep.subr.bf16.mxu0 0
        %1977 = vmatpush1.bf16.msra.mxu0 0
        %1978 = vmatprep.subr.bf16.mxu0 0
        %1979 = vmatpush1.bf16.msra.mxu0 0
        %1980 = vmatprep.subr.bf16.mxu0 0
        %1981 = vmatpush1.bf16.msra.mxu0 0
        %1982 = vmatprep.subr.bf16.mxu0 0
        %1983 = vmatpush1.bf16.msra.mxu0 0
        %1984 = vmatprep.mubr.bf16.mxu0 0
        %1985 = vmatmul.mubr.bf16.gmra.mrb[0].mxu0 %v1947
        %v1986 = vpop.f32.mrb[0].mxu0
        %v1987 = vadd.f32 0.0, %v1986
        %v1988 = vpop.f32.mrb[0].mxu0
        %v1989 = vpop.f32.mrb[0].mxu0
        %v1990 = vadd.f32 0.0, %v1989
        %v1991 = vpop.f32.mrb[0].mxu0
        %1992 = vdwg.mxu0
        %v1993 = vadd.f32 %v1624, %v1987
        %v1994 = vadd.f32 %v1625, %v1990
        %v1995 = vld [vmem:[%s9] sm:$0x1]
        %v1997 = vlaneseq
        %v1998 = vshrl.u32 %v1997, 7
        %v1999 = vsub.s32 0, %v1998
        %v2000 = vrot.slane %v1995, %v1999
        %v2002 = vadd.f32 %v1993, %v2000
        %v2003 = vadd.f32 %v1994, %v2000
        %v2004 = vld [vmem:[%s10] sm:$0xf]
        %v2005 = vld [vmem:[%s10 + $0x4] sm:$0xf]
        %v2006 = vld [vmem:[%s10 + $0x8] sm:$0xf]
        %v2007 = vld [vmem:[%s10 + $0xc] sm:$0xf]
        %v2008 = vpack.c.bf16 %v2003, %v2002
        %v2009 = vld [vmem:[%s11] sm:$0xf]
        %v2010 = vld [vmem:[%s11 + $0x4] sm:$0xf]
        %v2011 = vld [vmem:[%s11 + $0x8] sm:$0xf]
        %v2012 = vld [vmem:[%s11 + $0xc] sm:$0xf]
        %v2017 = vunpack.c.l.b16 %v2009
        %v2018 = vunpack.c.l.b16 %v2010
        %v2019 = vunpack.c.l.b16 %v2011
        %v2020 = vunpack.c.l.b16 %v2012
        %v2021 = vpack.c.b16 %v2018, %v2017
        %v2022 = vpack.c.b16 %v2020, %v2019
        %v2026 = vsel %vm543, %v2008, 0
        %2028 = vmatprep.subr.bf16.mxu0 0
        %2029 = vmatpush1.bf16.msra.mxu0 %v2021
        %2030 = vmatprep.subr.bf16.mxu0 0
        %2031 = vmatpush1.bf16.msra.mxu0 %v2022
        %2032 = vmatprep.subr.bf16.mxu0 0
        %2033 = vmatpush1.bf16.msra.mxu0 0
        %2034 = vmatprep.subr.bf16.mxu0 0
        %2035 = vmatpush1.bf16.msra.mxu0 0
        %2036 = vmatprep.subr.bf16.mxu0 0
        %2037 = vmatpush1.bf16.msra.mxu0 0
        %2038 = vmatprep.subr.bf16.mxu0 0
        %2039 = vmatpush1.bf16.msra.mxu0 0
        %2040 = vmatprep.subr.bf16.mxu0 0
        %2041 = vmatpush1.bf16.msra.mxu0 0
        %2042 = vmatprep.subr.bf16.mxu0 0
        %2043 = vmatpush1.bf16.msra.mxu0 0
        %2044 = vmatprep.subr.bf16.mxu0 0
        %2045 = vmatpush1.bf16.msra.mxu0 0
        %2046 = vmatprep.subr.bf16.mxu0 0
        %2047 = vmatpush1.bf16.msra.mxu0 0
        %2048 = vmatprep.subr.bf16.mxu0 0
        %2049 = vmatpush1.bf16.msra.mxu0 0
        %2050 = vmatprep.subr.bf16.mxu0 0
        %2051 = vmatpush1.bf16.msra.mxu0 0
        %2052 = vmatprep.subr.bf16.mxu0 0
        %2053 = vmatpush1.bf16.msra.mxu0 0
        %2054 = vmatprep.subr.bf16.mxu0 0
        %2055 = vmatpush1.bf16.msra.mxu0 0
        %2056 = vmatprep.subr.bf16.mxu0 0
        %2057 = vmatpush1.bf16.msra.mxu0 0
        %2058 = vmatprep.subr.bf16.mxu0 0
        %2059 = vmatpush1.bf16.msra.mxu0 0
        %2060 = vmatprep.mubr.bf16.mxu0 0
        %2061 = vmatmul.mubr.bf16.gmra.mrb[0].mxu0 %v2026
        %v2062 = vpop.f32.mrb[0].mxu0
        %v2063 = vadd.f32 0.0, %v2062
        %v2064 = vpop.f32.mrb[0].mxu0
        %v2065 = vpop.f32.mrb[0].mxu0
        %v2066 = vadd.f32 0.0, %v2065
        %v2067 = vpop.f32.mrb[0].mxu0
        %2068 = vdwg.mxu0
        %v2073 = vunpack.c.l.b16 %v2004
        %v2074 = vunpack.c.l.b16 %v2005
        %v2075 = vunpack.c.l.b16 %v2006
        %v2076 = vunpack.c.l.b16 %v2007
        %v2077 = vpack.c.b16 %v2074, %v2073
        %v2078 = vpack.c.b16 %v2076, %v2075
        %2081 = vmatprep.subr.bf16.mxu0 0
        %2082 = vmatpush1.bf16.msra.mxu0 %v2077
        %2083 = vmatprep.subr.bf16.mxu0 0
        %2084 = vmatpush1.bf16.msra.mxu0 %v2078
        %2085 = vmatprep.subr.bf16.mxu0 0
        %2086 = vmatpush1.bf16.msra.mxu0 0
        %2087 = vmatprep.subr.bf16.mxu0 0
        %2088 = vmatpush1.bf16.msra.mxu0 0
        %2089 = vmatprep.subr.bf16.mxu0 0
        %2090 = vmatpush1.bf16.msra.mxu0 0
        %2091 = vmatprep.subr.bf16.mxu0 0
        %2092 = vmatpush1.bf16.msra.mxu0 0
        %2093 = vmatprep.subr.bf16.mxu0 0
        %2094 = vmatpush1.bf16.msra.mxu0 0
        %2095 = vmatprep.subr.bf16.mxu0 0
        %2096 = vmatpush1.bf16.msra.mxu0 0
        %2097 = vmatprep.subr.bf16.mxu0 0
        %2098 = vmatpush1.bf16.msra.mxu0 0
        %2099 = vmatprep.subr.bf16.mxu0 0
        %2100 = vmatpush1.bf16.msra.mxu0 0
        %2101 = vmatprep.subr.bf16.mxu0 0
        %2102 = vmatpush1.bf16.msra.mxu0 0
        %2103 = vmatprep.subr.bf16.mxu0 0
        %2104 = vmatpush1.bf16.msra.mxu0 0
        %2105 = vmatprep.subr.bf16.mxu0 0
        %2106 = vmatpush1.bf16.msra.mxu0 0
        %2107 = vmatprep.subr.bf16.mxu0 0
        %2108 = vmatpush1.bf16.msra.mxu0 0
        %2109 = vmatprep.subr.bf16.mxu0 0
        %2110 = vmatpush1.bf16.msra.mxu0 0
        %2111 = vmatprep.subr.bf16.mxu0 0
        %2112 = vmatpush1.bf16.msra.mxu0 0
        %2113 = vmatprep.mubr.bf16.mxu0 0
        %2114 = vmatmul.mubr.bf16.gmra.mrb[0].mxu0 %v545
        %v2115 = vpop.f32.mrb[0].mxu0
        %v2116 = vadd.f32 %v2063, %v2115
        %v2117 = vpop.f32.mrb[0].mxu0
        %v2118 = vpop.f32.mrb[0].mxu0
        %v2119 = vadd.f32 %v2066, %v2118
        %v2120 = vpop.f32.mrb[0].mxu0
        %2121 = vdwg.mxu0
        %v2122 = vld [vmem:[%s12] sm:$0x1]
        %v2124 = vlaneseq
        %v2125 = vshrl.u32 %v2124, 7
        %v2126 = vsub.s32 0, %v2125
        %v2127 = vrot.slane %v2122, %v2126
        %v2129 = vadd.f32 %v2116, %v2127
        %v2130 = vadd.f32 %v2119, %v2127
        %vm2131 = vcmask 523264
        %v2132 = vsel %vm2131, %v2129, 0.0
        %v2133 = vsel %vm2131, %v2130, 0.0
        %v2134 = vadd.f32 %v2132, %v2133
        %v2135 = vrot.slane %v2134, 4
        %v2136 = vadd.f32 %v2134, %v2135
        %v2137 = vrot.slane %v2136, 2
        %v2138 = vadd.f32 %v2136, %v2137
        %v2139 = vrot.slane %v2138, 1
        %v2140 = vadd.f32 %v2138, %v2139
        %v2141 = vmul.f32 %v2140, 0.0625
        %v2142 = vmul.f32 %v2129, %v2129
        %v2143 = vmul.f32 %v2130, %v2130
        %v2144 = vsel %vm2131, %v2142, 0.0
        %v2145 = vsel %vm2131, %v2143, 0.0
        %v2146 = vadd.f32 %v2144, %v2145
        %v2147 = vrot.slane %v2146, 4
        %v2148 = vadd.f32 %v2146, %v2147
        %v2149 = vrot.slane %v2148, 2
        %v2150 = vadd.f32 %v2148, %v2149
        %v2151 = vrot.slane %v2150, 1
        %v2152 = vadd.f32 %v2150, %v2151
        %v2153 = vmul.f32 %v2152, 0.0625
        %v2154 = vmul.f32 %v2141, %v2141
        %v2155 = vsub.f32 %v2153, %v2154
        %v2156 = vmax.f32 %v2155, 0.0
        %v2157 = vsub.f32 %v2129, %v2141
        %v2158 = vsub.f32 %v2130, %v2141
        %v2159 = vadd.f32 %v2156, 1e-05
        %v2160 = vrsqrt.pop %v2159
        %v2161 = vmul.f32 %v2157, %v2160
        %v2162 = vmul.f32 %v2158, %v2160
        %v2163 = vmax.f32 %v2161, 0.0
        %v2164 = vmax.f32 %v2162, 0.0
        %v2165 = vpack.c.bf16 %v2164, %v2163
        %v2166 = vld [vmem:[%s13] sm:$0xf]
        %v2167 = vld [vmem:[%s13 + $0x4] sm:$0xf]
        %v2168 = vld [vmem:[%s13 + $0x8] sm:$0xf]
        %v2169 = vld [vmem:[%s13 + $0xc] sm:$0xf]
        %v2170 = vld [vmem:[%s13 + $0x10] sm:$0xf]
        %v2171 = vld [vmem:[%s13 + $0x14] sm:$0xf]
        %v2172 = vld [vmem:[%s13 + $0x18] sm:$0xf]
        %v2173 = vld [vmem:[%s13 + $0x1c] sm:$0xf]
        %v2174 = vld [vmem:[%s14] sm:$0x1]
        %v2176 = vlaneseq
        %v2177 = vshrl.u32 %v2176, 7
        %v2178 = vsub.s32 0, %v2177
        %v2179 = vrot.slane %v2174, %v2178
        %v2189 = vunpack.c.l.b16 %v2166
        %v2190 = vunpack.c.l.b16 %v2167
        %v2191 = vunpack.c.l.b16 %v2168
        %v2192 = vunpack.c.l.b16 %v2169
        %v2193 = vunpack.c.l.b16 %v2170
        %v2194 = vunpack.c.l.b16 %v2171
        %v2195 = vunpack.c.l.b16 %v2172
        %v2196 = vunpack.c.l.b16 %v2173
        %v2197 = vpack.c.b16 %v2190, %v2189
        %v2198 = vpack.c.b16 %v2192, %v2191
        %v2199 = vpack.c.b16 %v2194, %v2193
        %v2200 = vpack.c.b16 %v2196, %v2195
        %v2206 = vsel %vm2131, %v2165, 0
        %2208 = vmatprep.subr.bf16.mxu0 0
        %2209 = vmatpush1.bf16.msra.mxu0 %v2197
        %2210 = vmatprep.subr.bf16.mxu0 0
        %2211 = vmatpush1.bf16.msra.mxu0 %v2198
        %2212 = vmatprep.subr.bf16.mxu0 0
        %2213 = vmatpush1.bf16.msra.mxu0 %v2199
        %2214 = vmatprep.subr.bf16.mxu0 0
        %2215 = vmatpush1.bf16.msra.mxu0 %v2200
        %2216 = vmatprep.subr.bf16.mxu0 0
        %2217 = vmatpush1.bf16.msra.mxu0 0
        %2218 = vmatprep.subr.bf16.mxu0 0
        %2219 = vmatpush1.bf16.msra.mxu0 0
        %2220 = vmatprep.subr.bf16.mxu0 0
        %2221 = vmatpush1.bf16.msra.mxu0 0
        %2222 = vmatprep.subr.bf16.mxu0 0
        %2223 = vmatpush1.bf16.msra.mxu0 0
        %2224 = vmatprep.subr.bf16.mxu0 0
        %2225 = vmatpush1.bf16.msra.mxu0 0
        %2226 = vmatprep.subr.bf16.mxu0 0
        %2227 = vmatpush1.bf16.msra.mxu0 0
        %2228 = vmatprep.subr.bf16.mxu0 0
        %2229 = vmatpush1.bf16.msra.mxu0 0
        %2230 = vmatprep.subr.bf16.mxu0 0
        %2231 = vmatpush1.bf16.msra.mxu0 0
        %2232 = vmatprep.subr.bf16.mxu0 0
        %2233 = vmatpush1.bf16.msra.mxu0 0
        %2234 = vmatprep.subr.bf16.mxu0 0
        %2235 = vmatpush1.bf16.msra.mxu0 0
        %2236 = vmatprep.subr.bf16.mxu0 0
        %2237 = vmatpush1.bf16.msra.mxu0 0
        %2238 = vmatprep.subr.bf16.mxu0 0
        %2239 = vmatpush1.bf16.msra.mxu0 0
        %2240 = vmatprep.mubr.bf16.mxu0 0
        %2241 = vmatmul.mubr.bf16.gmra.mrb[0].mxu0 %v2206
        %v2242 = vpop.f32.mrb[0].mxu0
        %v2243 = vadd.f32 %v2179, %v2242
        %v2244 = vpop.f32.mrb[0].mxu0
        %v2245 = vpop.f32.mrb[0].mxu0
        %v2246 = vadd.f32 %v2179, %v2245
        %v2247 = vpop.f32.mrb[0].mxu0
        %2248 = vdwg.mxu0
        %v2249 = vadd.f32 %v514, %v2243
        %v2250 = vadd.f32 %v515, %v2246
        %2251 = vst.msk [vmem:[%s502] sm:$0xff] %vm543, %v2249
        %2252 = vst.msk [vmem:[%s502 + $0x8] sm:$0xff] %vm543, %v2250
        %s2253 = sand.u32 %s362, 1
        %s2254 = scalar_lea.sflag [#allocation3], %s2253
        %s2255 = sand.u32 %s362, 1
        %s2256 = smul.addr %s2255, 16
        %s2257 = scalar_lea.vmem [#allocation2], %s2256
        // Predicated region
        $region81: #{information_interactive.15} parent=79 // pred_check
          %p2258 = pneg %p372
        $region82: #{information_interactive.15} parent=79 // pred_check_branch
          %2260 = sbr.rel (%p2258) target = $region84
        $region83: #{information_interactive.15} parent=79 // pred_region
          %s2262 = ssub.s32 256, 256
          %2263 = vsyncadd %s2254, %s2262
          %s2264 = smul.addr %s29, 2
          %s2265 = smul.addr %s2264, 128
          %s2266 = scalar_lea.hbm %s15, %s2265
          %s2267 = sshll.u32 %s2257, 4
          %s2268 = int_to_ptr.vmem [resolvable:$true] %s2267
          %2273 = dma.vmem_to_hbm [thread:$0]  %s2268, 256, %s2266, %s2254, 128, 128, 8
        $region84: #{information_interactive.15} parent=79 // pred_fallthru
          _
      $region80: #{information_interactive.15} parent=5 // pred_fallthru
        _
      %p2274 = scmp.le.s32.totalorder 2, %s24
      // Predicated region
      $region85: #{information_interactive.15} parent=5 // pred_check
        %p2275 = pneg %p2274
      $region86: #{information_interactive.15} parent=5 // pred_check_branch
        %2277 = sbr.rel (%p2275) target = $region88
      $region87: #{information_interactive.15} parent=5 // pred_region
        %s2278 = ssub.s32 %s24, 2
        // Predicated region
        $region89: #{information_interactive.15} parent=87 // pred_check
          %p2279 = pneg %p378
        $region90: #{information_interactive.15} parent=87 // pred_check_branch
          %2281 = sbr.rel (%p2279) target = $region92
        $region91: #{information_interactive.15} parent=87 // pred_region
          %s2282 = sand.u32 %s363, 1
          %s2283 = scalar_lea.sflag [#allocation3], %s2282
          %s2284 = sand.u32 %s363, 1
          %s2285 = smul.addr %s2284, 16
          %s2286 = scalar_lea.vmem [#allocation2], %s2285
          %2287 = dma.done %s2283, 256
        $region92: #{information_interactive.15} parent=87 // pred_fallthru
          _
      $region88: #{information_interactive.15} parent=5 // pred_fallthru
        _
    $region6: #{information_interactive.15} parent=1 // loop_footer
      %s28 = sadd.s32 1, %s24
    $region7: #{information_interactive.15} parent=1 // loop_footer_branch
      %23 = sbr.rel target = $region3
    $region8: #{information_interactive.15} parent=1 // loop_exit
      _
    %2288 = vsyncpa [#allocation3], 1
    %s2289 = scalar_lea.sflag [#allocation3], 1
    %2290 = vsyncpa %s2289, 1

</llo_original>
